<compile_context>
chip_gen: v5e
topology: v5e:2x2
jax: 0.10.0
libtpu: 0.0.40
codegen_flags: <defaults>
</compile_context>

<pallas_src>
import numpy as np
import jax
import jax.numpy as jnp
from jax import lax
from jax.experimental import pallas as pl
from jax.experimental.pallas import tpu as pltpu

HIDDEN = 5
MSG_STEPS = 10


def gnn_kernel(edge_feat_ref, b_ref, g2_ref, s2_ref,
               msg1_ref, msg2_ref, msg3_ref, gru_zr_ref, gru_h_ref,
               out1_ref, out2_ref, out3_ref, out_ref):
    f32 = jnp.float32
    H = HIDDEN
    hi = lax.Precision.HIGHEST

    feat = edge_feat_ref[...]            # (Eb, 4) = [b_in, b_out, J, -J]   (static per step)
    b_node = b_ref[...]                  # (Nb, 1)
    G2 = g2_ref[...]                     # (2*Eb, 2*Nb) block-diag one-hot gather
    S2 = s2_ref[...]                     # (2*Nb, 2*Eb) = G2^T (scatter_add)
    n_edge = feat.shape[0]
    n_node = b_node.shape[0]

    def dot(a, w, precision=None):
        return jnp.dot(a, w, preferred_element_type=f32, precision=precision)

    # ---- unpack packed weights once (static slices, hoisted out of the loop) ----
    m1w = msg1_ref[...]                                  # (H+4+1, 64)
    w1h, w1f, b1 = m1w[:H], m1w[H:H + 4], m1w[H + 4:H + 5]
    m2w = msg2_ref[...]                                  # (65, 64)
    w2, b2 = m2w[:64], m2w[64:65]
    m3w = msg3_ref[...]                                  # (65, H)
    w3, b3 = m3w[:64], m3w[64:65]
    zrw = gru_zr_ref[...]                                # (3H+1, 2H)  [Wz | Wr ; bz | br]
    wzr, bzr = zrw[:3 * H], zrw[3 * H:3 * H + 1]
    hw = gru_h_ref[...]                                  # (3H+1, H)
    wh, bh = hw[:3 * H], hw[3 * H:3 * H + 1]
    o1w = out1_ref[...]                                  # (H+2, 64)
    wo1h, wo1b, bo1 = o1w[:H], o1w[H:H + 1], o1w[H + 1:H + 2]
    o2w = out2_ref[...]                                  # (65, 64)
    wo2, bo2 = o2w[:64], o2w[64:65]
    o3w = out3_ref[...]                                  # (1, 65) = [Wo3^T | bo3]
    wo3_row, bo3 = o3w[:, :64], o3w[:, 64:65]

    # ---- loop-invariant edge-feature projection, hoisted out of the message loop ----
    feat_proj = dot(feat, w1f) + b1                               # (Eb, 64)
    feat_proj2 = jnp.concatenate([feat_proj, feat_proj], axis=0)  # (2*Eb, 64)

    h_t0 = jnp.zeros((n_node, H), f32)
    h_t1 = jnp.zeros((n_node, H), f32)
    m0 = jnp.zeros((n_node, H), f32)
    m1 = jnp.zeros((n_node, H), f32)

    for _ in range(MSG_STEPS):
        # gather h_t0[index_out] and h_t1[index_out] with ONE block-diag one-hot matmul
        h_cat = jnp.concatenate([h_t0, h_t1], axis=0)             # (2*Nb, H)
        h_e = dot(G2, h_cat, precision=hi)                        # (2*Eb, H)
        # shared message MLP, single pass over both stacked gathers
        x = jnp.maximum(dot(h_e, w1h) + feat_proj2, 0.0)
        x = jnp.maximum(dot(x, w2) + b2, 0.0)
        me = dot(x, w3) + b3                                      # (2*Eb, H)
        # scatter_add for both passes with ONE block-diag one-hot matmul
        s01 = dot(S2, me, precision=hi)                           # (2*Nb, H)
        m0 = m0 + s01[:n_node]
        m1 = m0 + s01[n_node:]        # uses freshly-updated m0 (faithful to the PyTorch quirk)
        # GRU with fused update/reset gates (one matmul) + h_hat (one matmul)
        a = jnp.concatenate([h_t1, m0, m1], axis=1)               # (Nb, 3H)
        zr = jax.nn.sigmoid(dot(a, wzr) + bzr)                    # (Nb, 2H)
        z, r = zr[:, :H], zr[:, H:]
        joined = jnp.concatenate([r * h_t1, m0, m1], axis=1)      # (Nb, 3H)
        h_hat = jnp.tanh(dot(joined, wh) + bh)
        h_new = (1.0 - z) * h_t1 + z * h_hat
        h_t0, h_t1 = h_t1, h_new

    # output MLP on concat(h, b): split-K (h @ Wo1_h) + rank-1 (b * Wo1_b row)
    x = jnp.maximum(dot(h_t1, wo1h) + b_node * wo1b + bo1, 0.0)   # (Nb, 64)
    x = jnp.maximum(dot(x, wo2) + bo2, 0.0)                       # (Nb, 64)
    y = jnp.sum(x * wo3_row, axis=1, keepdims=True) + bo3         # Linear(64,1) on VPU+XLU
    out_ref[...] = jax.nn.sigmoid(y)                              # (Nb, 1)


def gnn_forward_pallas(edge_feat, b, gather_one, packed_weights, num_row_blocks=1):
    """edge_feat: (B,E,4), b: (B,N,1), gather_one: (E,N) per-graph one-hot gather."""
    B, E, _ = edge_feat.shape
    N = b.shape[1]
    assert B % num_row_blocks == 0, "num_row_blocks must divide the batch"
    Bb = B // num_row_blocks                       # graphs handled per grid step

    g = np.asarray(gather_one, np.float32)
    # block-diagonal gather for (h_t0 ; h_t1) row-stacking over Bb graphs
    G2 = np.kron(np.eye(2 * Bb, dtype=np.float32), g)      # (2*Bb*E, 2*Bb*N)
    S2 = np.ascontiguousarray(G2.T)                         # (2*Bb*N, 2*Bb*E)

    ef = edge_feat.reshape(B * E, 4)
    bn = b.reshape(B * N, 1)

    def rows_spec(rows, cols):
        return pl.BlockSpec((rows, cols), lambda i: (i, 0))

    def full_spec(shape):
        return pl.BlockSpec(tuple(shape), lambda i: (0, 0))

    in_specs = [rows_spec(Bb * E, 4), rows_spec(Bb * N, 1),
                full_spec(G2.shape), full_spec(S2.shape)]
    in_specs += [full_spec(w.shape) for w in packed_weights]

    out = pl.pallas_call(
        gnn_kernel,
        out_shape=jax.ShapeDtypeStruct((B * N, 1), jnp.float32),
        grid=(num_row_blocks,),
        in_specs=in_specs,
        out_specs=rows_spec(Bb * N, 1),
        compiler_params=pltpu.CompilerParams(dimension_semantics=("parallel",)),
    )(ef, bn, jnp.asarray(G2), jnp.asarray(S2), *packed_weights)
    # matches torch: output.view(batch_size, 1, -1)
    return out.reshape(B, 1, N)


def init_params(key):
    def linear(k, fan_in, fan_out):
        k1, k2 = jax.random.split(k)
        bound = 1.0 / np.sqrt(fan_in)
        w = jax.random.uniform(k1, (fan_in, fan_out), jnp.float32, -bound, bound)
        bb = jax.random.uniform(k2, (1, fan_out), jnp.float32, -bound, bound)
        return w, bb

    keys = jax.random.split(key, 9)
    p = {}
    p["Wm1"], p["bm1"] = linear(keys[0], HIDDEN + 4, 64)
    p["Wm2"], p["bm2"] = linear(keys[1], 64, 64)
    p["Wm3"], p["bm3"] = linear(keys[2], 64, HIDDEN)
    p["Wz"], p["bz"] = linear(keys[3], 3 * HIDDEN, HIDDEN)
    p["Wr"], p["br"] = linear(keys[4], 3 * HIDDEN, HIDDEN)
    p["Wh"], p["bh"] = linear(keys[5], 3 * HIDDEN, HIDDEN)
    p["Wo1"], p["bo1"] = linear(keys[6], HIDDEN + 1, 64)
    p["Wo2"], p["bo2"] = linear(keys[7], 64, 64)
    p["Wo3"], p["bo3"] = linear(keys[8], 64, 1)
    # TODO(synk): the module also defines self.h_update, but it is never used in forward().
    return p


def pack_params_for_kernel(p):
    """Collapse the 27 small weights/biases into 8 packed arrays (fewer tiny DMA inputs)."""
    msg1 = jnp.concatenate([p["Wm1"], p["bm1"]], axis=0)          # (H+5, 64): [W_h; W_feat; b]
    msg2 = jnp.concatenate([p["Wm2"], p["bm2"]], axis=0)          # (65, 64)
    msg3 = jnp.concatenate([p["Wm3"], p["bm3"]], axis=0)          # (65, H)
    gru_zr = jnp.concatenate(
        [jnp.concatenate([p["Wz"], p["Wr"]], axis=1),
         jnp.concatenate([p["bz"], p["br"]], axis=1)], axis=0)    # (3H+1, 2H)
    gru_h = jnp.concatenate([p["Wh"], p["bh"]], axis=0)           # (3H+1, H)
    out1 = jnp.concatenate([p["Wo1"], p["bo1"]], axis=0)          # (H+2, 64)
    out2 = jnp.concatenate([p["Wo2"], p["bo2"]], axis=0)          # (65, 64)
    out3 = jnp.concatenate([p["Wo3"].T, p["bo3"]], axis=1)        # (1, 65)
    return [msg1, msg2, msg3, gru_zr, gru_h, out1, out2, out3]


def gnn_forward_reference(J_msg, b, index_in, index_out, n_node, p):
    """Pure-JAX mirror of the PyTorch forward (for correctness checking)."""
    B = b.shape[0]
    b_in = b[:, index_in]
    b_out = b[:, index_out]

    def msg(h_e):
        x = jnp.concatenate([h_e, b_in, b_out, J_msg, -J_msg], axis=2)
        x = jax.nn.relu(x @ p["Wm1"] + p["bm1"])
        x = jax.nn.relu(x @ p["Wm2"] + p["bm2"])
        return x @ p["Wm3"] + p["bm3"]

    def scatter_add(base, vals):
        add = jax.vmap(lambda v: jax.ops.segment_sum(v, index_out, num_segments=n_node))(vals)
        return base + add

    h_t0 = jnp.zeros((B, n_node, HIDDEN), jnp.float32)
    h_t1 = jnp.zeros((B, n_node, HIDDEN), jnp.float32)
    m0 = jnp.zeros((B, n_node, HIDDEN), jnp.float32)
    m1 = jnp.zeros((B, n_node, HIDDEN), jnp.float32)

    for _ in range(MSG_STEPS):
        me0 = msg(h_t0[:, index_out])
        me1 = msg(h_t1[:, index_out])
        m0 = scatter_add(m0, me0)
        m1 = scatter_add(m0, me1)          # same quirk as the original code
        a = jnp.concatenate([h_t1, m0, m1], axis=2)
        z = jax.nn.sigmoid(a @ p["Wz"] + p["bz"])
        r = jax.nn.sigmoid(a @ p["Wr"] + p["br"])
        joined = jnp.concatenate([r * h_t1, m0, m1], axis=2)
        h_hat = jnp.tanh(joined @ p["Wh"] + p["bh"])
        h_new = (1.0 - z) * h_t1 + z * h_hat
        h_t0, h_t1 = h_t1, h_new

    x = jnp.concatenate([h_t1, b], axis=2)
    x = jax.nn.relu(x @ p["Wo1"] + p["bo1"])
    x = jax.nn.relu(x @ p["Wo2"] + p["bo2"])
    x = jax.nn.sigmoid(x @ p["Wo3"] + p["bo3"])   # (B, N, 1)
    return x.reshape(B, 1, n_node)


if __name__ == "__main__":
    key = jax.random.PRNGKey(0)
    batch, n_node = 2, 8

    # Ring graph (bidirectional): fixed sparsity across the batch, as the module assumes.
    mask = np.zeros((n_node, n_node), dtype=np.float32)
    for i in range(n_node):
        mask[i, (i + 1) % n_node] = 1.0
        mask[(i + 1) % n_node, i] = 1.0
    edges = np.argwhere(mask > 0)                 # row-major = torch's double-loop order
    index_in = jnp.asarray(edges[:, 0], jnp.int32)
    index_out = jnp.asarray(edges[:, 1], jnp.int32)
    E = edges.shape[0]

    kJ, kb, kp = jax.random.split(key, 3)
    vals = jax.random.normal(kJ, (batch, n_node, n_node), jnp.float32)
    J = vals * jnp.asarray(mask)[None]                       # (B, N, N) couplings
    J_msg = J[:, edges[:, 0], edges[:, 1]][..., None]        # (B, E, 1) nonzero values, row-major
    b = jax.random.normal(kb, (batch, n_node, 1), jnp.float32)

    # Edge-static features [b_in, b_out, J, -J] and the per-graph one-hot gather operator.
    b_in = b[:, index_in]
    b_out = b[:, index_out]
    edge_feat = jnp.concatenate([b_in, b_out, J_msg, -J_msg], axis=2)   # (B, E, 4)
    gath_one = np.zeros((E, n_node), dtype=np.float32)
    gath_one[np.arange(E), edges[:, 1]] = 1.0                # (E, N): gath_one @ h == h[index_out]

    params = init_params(kp)
    packed = pack_params_for_kernel(params)

    # num_row_blocks=1: whole batch in one grid step (best on v5e/v6e, single TensorCore).
    # On v7x set num_row_blocks=2 so the "parallel" grid axis shards across both TensorCores.
    out = gnn_forward_pallas(edge_feat, b, gath_one, packed, num_row_blocks=1)
    out = jax.block_until_ready(out)

    ref = gnn_forward_reference(J_msg, b, index_in, index_out, n_node, params)
    ref = jax.block_until_ready(ref)

    assert out.shape == (batch, 1, n_node), out.shape
    if np.allclose(np.asarray(out), np.asarray(ref), atol=1e-2, rtol=1e-2):
        print("KERNEL_OK")
    else:
        print("MISMATCH max_abs_err =",
              float(np.max(np.abs(np.asarray(out) - np.asarray(ref)))))
</pallas_src>

<mosaic_0001>
module attributes {stable_mosaic.version = 11 : i64} {
  func.func @gnn_kernel(%arg0: i32, %arg1: memref<32x4xf32, #tpu.memory_space<vmem>>, %arg2: memref<16x1xf32, #tpu.memory_space<vmem>>, %arg3: memref<64x32xf32, #tpu.memory_space<vmem>>, %arg4: memref<32x64xf32, #tpu.memory_space<vmem>>, %arg5: memref<10x64xf32, #tpu.memory_space<vmem>>, %arg6: memref<65x64xf32, #tpu.memory_space<vmem>>, %arg7: memref<65x5xf32, #tpu.memory_space<vmem>>, %arg8: memref<16x10xf32, #tpu.memory_space<vmem>>, %arg9: memref<16x5xf32, #tpu.memory_space<vmem>>, %arg10: memref<7x64xf32, #tpu.memory_space<vmem>>, %arg11: memref<65x64xf32, #tpu.memory_space<vmem>>, %arg12: memref<1x65xf32, #tpu.memory_space<vmem>>, %arg13: memref<16x1xf32, #tpu.memory_space<vmem>>) attributes {dimension_semantics = [#tpu.dimension_semantics<parallel>], iteration_bounds = array<i64: 1>, scalar_prefetch = 0 : i64, scratch_operands = 0 : i64, tpu.core_type = #tpu.core_type<tc>, window_params = [{transform_indices = @transform_0, window_bounds = array<i64: 32, 4>}, {transform_indices = @transform_1, window_bounds = array<i64: 16, 1>}, {pipeline_mode = #tpu.pipeline_mode<synchronous>, transform_indices = @transform_2, window_bounds = array<i64: 64, 32>}, {pipeline_mode = #tpu.pipeline_mode<synchronous>, transform_indices = @transform_3, window_bounds = array<i64: 32, 64>}, {pipeline_mode = #tpu.pipeline_mode<synchronous>, transform_indices = @transform_4, window_bounds = array<i64: 10, 64>}, {pipeline_mode = #tpu.pipeline_mode<synchronous>, transform_indices = @transform_5, window_bounds = array<i64: 65, 64>}, {pipeline_mode = #tpu.pipeline_mode<synchronous>, transform_indices = @transform_6, window_bounds = array<i64: 65, 5>}, {pipeline_mode = #tpu.pipeline_mode<synchronous>, transform_indices = @transform_7, window_bounds = array<i64: 16, 10>}, {pipeline_mode = #tpu.pipeline_mode<synchronous>, transform_indices = @transform_8, window_bounds = array<i64: 16, 5>}, {pipeline_mode = #tpu.pipeline_mode<synchronous>, transform_indices = @transform_9, window_bounds = array<i64: 7, 64>}, {pipeline_mode = #tpu.pipeline_mode<synchronous>, transform_indices = @transform_10, window_bounds = array<i64: 65, 64>}, {pipeline_mode = #tpu.pipeline_mode<synchronous>, transform_indices = @transform_11, window_bounds = array<i64: 1, 65>}, {transform_indices = @transform_12, window_bounds = array<i64: 16, 1>}]} {
    %c0 = arith.constant 0 : index
    %c0_0 = arith.constant 0 : index
    %0 = vector.load %arg1[%c0, %c0_0] : memref<32x4xf32, #tpu.memory_space<vmem>>, vector<32x4xf32>
    %c0_1 = arith.constant 0 : index
    %c0_2 = arith.constant 0 : index
    %1 = vector.load %arg2[%c0_1, %c0_2] : memref<16x1xf32, #tpu.memory_space<vmem>>, vector<16x1xf32>
    %c0_3 = arith.constant 0 : index
    %c0_4 = arith.constant 0 : index
    %2 = vector.load %arg3[%c0_3, %c0_4] : memref<64x32xf32, #tpu.memory_space<vmem>>, vector<64x32xf32>
    %c0_5 = arith.constant 0 : index
    %c0_6 = arith.constant 0 : index
    %3 = vector.load %arg4[%c0_5, %c0_6] : memref<32x64xf32, #tpu.memory_space<vmem>>, vector<32x64xf32>
    %c0_7 = arith.constant 0 : index
    %c0_8 = arith.constant 0 : index
    %4 = vector.load %arg5[%c0_7, %c0_8] : memref<10x64xf32, #tpu.memory_space<vmem>>, vector<10x64xf32>
    %5 = vector.extract_strided_slice %4 {offsets = [0, 0], sizes = [5, 64], strides = [1, 1]} : vector<10x64xf32> to vector<5x64xf32>
    %6 = vector.extract_strided_slice %4 {offsets = [5, 0], sizes = [4, 64], strides = [1, 1]} : vector<10x64xf32> to vector<4x64xf32>
    %7 = vector.extract_strided_slice %4 {offsets = [9, 0], sizes = [1, 64], strides = [1, 1]} : vector<10x64xf32> to vector<1x64xf32>
    %c0_9 = arith.constant 0 : index
    %c0_10 = arith.constant 0 : index
    %8 = vector.load %arg6[%c0_9, %c0_10] : memref<65x64xf32, #tpu.memory_space<vmem>>, vector<65x64xf32>
    %9 = vector.extract_strided_slice %8 {offsets = [0, 0], sizes = [64, 64], strides = [1, 1]} : vector<65x64xf32> to vector<64x64xf32>
    %10 = vector.extract_strided_slice %8 {offsets = [64, 0], sizes = [1, 64], strides = [1, 1]} : vector<65x64xf32> to vector<1x64xf32>
    %c0_11 = arith.constant 0 : index
    %c0_12 = arith.constant 0 : index
    %11 = vector.load %arg7[%c0_11, %c0_12] : memref<65x5xf32, #tpu.memory_space<vmem>>, vector<65x5xf32>
    %12 = vector.extract_strided_slice %11 {offsets = [0, 0], sizes = [64, 5], strides = [1, 1]} : vector<65x5xf32> to vector<64x5xf32>
    %13 = vector.extract_strided_slice %11 {offsets = [64, 0], sizes = [1, 5], strides = [1, 1]} : vector<65x5xf32> to vector<1x5xf32>
    %c0_13 = arith.constant 0 : index
    %c0_14 = arith.constant 0 : index
    %14 = vector.load %arg8[%c0_13, %c0_14] : memref<16x10xf32, #tpu.memory_space<vmem>>, vector<16x10xf32>
    %15 = vector.extract_strided_slice %14 {offsets = [0, 0], sizes = [15, 10], strides = [1, 1]} : vector<16x10xf32> to vector<15x10xf32>
    %16 = vector.extract_strided_slice %14 {offsets = [15, 0], sizes = [1, 10], strides = [1, 1]} : vector<16x10xf32> to vector<1x10xf32>
    %c0_15 = arith.constant 0 : index
    %c0_16 = arith.constant 0 : index
    %17 = vector.load %arg9[%c0_15, %c0_16] : memref<16x5xf32, #tpu.memory_space<vmem>>, vector<16x5xf32>
    %18 = vector.extract_strided_slice %17 {offsets = [0, 0], sizes = [15, 5], strides = [1, 1]} : vector<16x5xf32> to vector<15x5xf32>
    %19 = vector.extract_strided_slice %17 {offsets = [15, 0], sizes = [1, 5], strides = [1, 1]} : vector<16x5xf32> to vector<1x5xf32>
    %c0_17 = arith.constant 0 : index
    %c0_18 = arith.constant 0 : index
    %20 = vector.load %arg10[%c0_17, %c0_18] : memref<7x64xf32, #tpu.memory_space<vmem>>, vector<7x64xf32>
    %21 = vector.extract_strided_slice %20 {offsets = [0, 0], sizes = [5, 64], strides = [1, 1]} : vector<7x64xf32> to vector<5x64xf32>
    %22 = vector.extract_strided_slice %20 {offsets = [5, 0], sizes = [1, 64], strides = [1, 1]} : vector<7x64xf32> to vector<1x64xf32>
    %23 = vector.extract_strided_slice %20 {offsets = [6, 0], sizes = [1, 64], strides = [1, 1]} : vector<7x64xf32> to vector<1x64xf32>
    %c0_19 = arith.constant 0 : index
    %c0_20 = arith.constant 0 : index
    %24 = vector.load %arg11[%c0_19, %c0_20] : memref<65x64xf32, #tpu.memory_space<vmem>>, vector<65x64xf32>
    %25 = vector.extract_strided_slice %24 {offsets = [0, 0], sizes = [64, 64], strides = [1, 1]} : vector<65x64xf32> to vector<64x64xf32>
    %26 = vector.extract_strided_slice %24 {offsets = [64, 0], sizes = [1, 64], strides = [1, 1]} : vector<65x64xf32> to vector<1x64xf32>
    %c0_21 = arith.constant 0 : index
    %c0_22 = arith.constant 0 : index
    %27 = vector.load %arg12[%c0_21, %c0_22] : memref<1x65xf32, #tpu.memory_space<vmem>>, vector<1x65xf32>
    %28 = vector.extract_strided_slice %27 {offsets = [0, 0], sizes = [1, 64], strides = [1, 1]} : vector<1x65xf32> to vector<1x64xf32>
    %29 = vector.extract_strided_slice %27 {offsets = [0, 64], sizes = [1, 1], strides = [1, 1]} : vector<1x65xf32> to vector<1x1xf32>
    %cst = arith.constant dense<0.000000e+00> : vector<32x64xf32>
    %30 = tpu.matmul %0, %6, %cst {dimension_numbers = #tpu.dot_dimension_numbers<[1], [0], [0], [1], [0, 0, 1, 1], [], []>} : vector<32x4xf32>, vector<4x64xf32>, vector<32x64xf32> -> vector<32x64xf32>
    %31 = vector.broadcast %7 : vector<1x64xf32> to vector<32x64xf32>
    %32 = arith.addf %30, %31 : vector<32x64xf32>
    %33 = tpu.concatenate %32, %32 in 0 : vector<32x64xf32>, vector<32x64xf32> -> vector<64x64xf32>
    %cst_23 = arith.constant 0.000000e+00 : f32
    %34 = vector.broadcast %cst_23 : f32 to vector<16x5xf32>
    %cst_24 = arith.constant 0.000000e+00 : f32
    %35 = vector.broadcast %cst_24 : f32 to vector<16x5xf32>
    %cst_25 = arith.constant 0.000000e+00 : f32
    %36 = vector.broadcast %cst_25 : f32 to vector<16x5xf32>
    %37 = tpu.concatenate %34, %35 in 0 : vector<16x5xf32>, vector<16x5xf32> -> vector<32x5xf32>
    %cst_26 = arith.constant dense<0.000000e+00> : vector<64x5xf32>
    %38 = tpu.matmul %2, %37, %cst_26 {dimension_numbers = #tpu.dot_dimension_numbers<[1], [0], [0], [1], [0, 0, 1, 1], [], []>, precision = #tpu.contract_precision<fp32>} : vector<64x32xf32>, vector<32x5xf32>, vector<64x5xf32> -> vector<64x5xf32>
    %cst_27 = arith.constant dense<0.000000e+00> : vector<64x64xf32>
    %39 = tpu.matmul %38, %5, %cst_27 {dimension_numbers = #tpu.dot_dimension_numbers<[1], [0], [0], [1], [0, 0, 1, 1], [], []>} : vector<64x5xf32>, vector<5x64xf32>, vector<64x64xf32> -> vector<64x64xf32>
    %40 = arith.addf %39, %33 : vector<64x64xf32>
    %cst_28 = arith.constant 0.000000e+00 : f32
    %41 = vector.broadcast %cst_28 : f32 to vector<64x64xf32>
    %42 = arith.maximumf %40, %41 : vector<64x64xf32>
    %cst_29 = arith.constant dense<0.000000e+00> : vector<64x64xf32>
    %43 = tpu.matmul %42, %9, %cst_29 {dimension_numbers = #tpu.dot_dimension_numbers<[1], [0], [0], [1], [0, 0, 1, 1], [], []>} : vector<64x64xf32>, vector<64x64xf32>, vector<64x64xf32> -> vector<64x64xf32>
    %44 = vector.broadcast %10 : vector<1x64xf32> to vector<64x64xf32>
    %45 = arith.addf %43, %44 : vector<64x64xf32>
    %cst_30 = arith.constant 0.000000e+00 : f32
    %46 = vector.broadcast %cst_30 : f32 to vector<64x64xf32>
    %47 = arith.maximumf %45, %46 : vector<64x64xf32>
    %cst_31 = arith.constant dense<0.000000e+00> : vector<64x5xf32>
    %48 = tpu.matmul %47, %12, %cst_31 {dimension_numbers = #tpu.dot_dimension_numbers<[1], [0], [0], [1], [0, 0, 1, 1], [], []>} : vector<64x64xf32>, vector<64x5xf32>, vector<64x5xf32> -> vector<64x5xf32>
    %49 = vector.broadcast %13 : vector<1x5xf32> to vector<64x5xf32>
    %50 = arith.addf %48, %49 : vector<64x5xf32>
    %cst_32 = arith.constant dense<0.000000e+00> : vector<32x5xf32>
    %51 = tpu.matmul %3, %50, %cst_32 {dimension_numbers = #tpu.dot_dimension_numbers<[1], [0], [0], [1], [0, 0, 1, 1], [], []>, precision = #tpu.contract_precision<fp32>} : vector<32x64xf32>, vector<64x5xf32>, vector<32x5xf32> -> vector<32x5xf32>
    %52 = vector.extract_strided_slice %51 {offsets = [0, 0], sizes = [16, 5], strides = [1, 1]} : vector<32x5xf32> to vector<16x5xf32>
    %53 = arith.addf %36, %52 : vector<16x5xf32>
    %54 = vector.extract_strided_slice %51 {offsets = [16, 0], sizes = [16, 5], strides = [1, 1]} : vector<32x5xf32> to vector<16x5xf32>
    %55 = arith.addf %53, %54 : vector<16x5xf32>
    %56 = tpu.concatenate %35, %53, %55 in 1 : vector<16x5xf32>, vector<16x5xf32>, vector<16x5xf32> -> vector<16x15xf32>
    %cst_33 = arith.constant dense<0.000000e+00> : vector<16x10xf32>
    %57 = tpu.matmul %56, %15, %cst_33 {dimension_numbers = #tpu.dot_dimension_numbers<[1], [0], [0], [1], [0, 0, 1, 1], [], []>} : vector<16x15xf32>, vector<15x10xf32>, vector<16x10xf32> -> vector<16x10xf32>
    %58 = vector.broadcast %16 : vector<1x10xf32> to vector<16x10xf32>
    %59 = arith.addf %57, %58 : vector<16x10xf32>
    %60 = arith.negf %59 : vector<16x10xf32>
    %61 = math.exp %60 : vector<16x10xf32>
    %cst_34 = arith.constant 1.000000e+00 : f32
    %62 = vector.broadcast %cst_34 : f32 to vector<16x10xf32>
    %63 = arith.addf %62, %61 : vector<16x10xf32>
    %64 = arith.divf %62, %63 : vector<16x10xf32>
    %65 = vector.extract_strided_slice %64 {offsets = [0, 0], sizes = [16, 5], strides = [1, 1]} : vector<16x10xf32> to vector<16x5xf32>
    %66 = vector.extract_strided_slice %64 {offsets = [0, 5], sizes = [16, 5], strides = [1, 1]} : vector<16x10xf32> to vector<16x5xf32>
    %67 = arith.mulf %66, %35 : vector<16x5xf32>
    %68 = tpu.concatenate %67, %53, %55 in 1 : vector<16x5xf32>, vector<16x5xf32>, vector<16x5xf32> -> vector<16x15xf32>
    %cst_35 = arith.constant dense<0.000000e+00> : vector<16x5xf32>
    %69 = tpu.matmul %68, %18, %cst_35 {dimension_numbers = #tpu.dot_dimension_numbers<[1], [0], [0], [1], [0, 0, 1, 1], [], []>} : vector<16x15xf32>, vector<15x5xf32>, vector<16x5xf32> -> vector<16x5xf32>
    %70 = vector.broadcast %19 : vector<1x5xf32> to vector<16x5xf32>
    %71 = arith.addf %69, %70 : vector<16x5xf32>
    %72 = math.tanh %71 : vector<16x5xf32>
    %cst_36 = arith.constant 1.000000e+00 : f32
    %73 = vector.broadcast %cst_36 : f32 to vector<16x5xf32>
    %74 = arith.subf %73, %65 : vector<16x5xf32>
    %75 = arith.mulf %74, %35 : vector<16x5xf32>
    %76 = arith.mulf %65, %72 : vector<16x5xf32>
    %77 = arith.addf %75, %76 : vector<16x5xf32>
    %78 = tpu.concatenate %35, %77 in 0 : vector<16x5xf32>, vector<16x5xf32> -> vector<32x5xf32>
    %cst_37 = arith.constant dense<0.000000e+00> : vector<64x5xf32>
    %79 = tpu.matmul %2, %78, %cst_37 {dimension_numbers = #tpu.dot_dimension_numbers<[1], [0], [0], [1], [0, 0, 1, 1], [], []>, precision = #tpu.contract_precision<fp32>} : vector<64x32xf32>, vector<32x5xf32>, vector<64x5xf32> -> vector<64x5xf32>
    %cst_38 = arith.constant dense<0.000000e+00> : vector<64x64xf32>
    %80 = tpu.matmul %79, %5, %cst_38 {dimension_numbers = #tpu.dot_dimension_numbers<[1], [0], [0], [1], [0, 0, 1, 1], [], []>} : vector<64x5xf32>, vector<5x64xf32>, vector<64x64xf32> -> vector<64x64xf32>
    %81 = arith.addf %80, %33 : vector<64x64xf32>
    %cst_39 = arith.constant 0.000000e+00 : f32
    %82 = vector.broadcast %cst_39 : f32 to vector<64x64xf32>
    %83 = arith.maximumf %81, %82 : vector<64x64xf32>
    %cst_40 = arith.constant dense<0.000000e+00> : vector<64x64xf32>
    %84 = tpu.matmul %83, %9, %cst_40 {dimension_numbers = #tpu.dot_dimension_numbers<[1], [0], [0], [1], [0, 0, 1, 1], [], []>} : vector<64x64xf32>, vector<64x64xf32>, vector<64x64xf32> -> vector<64x64xf32>
    %85 = vector.broadcast %10 : vector<1x64xf32> to vector<64x64xf32>
    %86 = arith.addf %84, %85 : vector<64x64xf32>
    %cst_41 = arith.constant 0.000000e+00 : f32
    %87 = vector.broadcast %cst_41 : f32 to vector<64x64xf32>
    %88 = arith.maximumf %86, %87 : vector<64x64xf32>
    %cst_42 = arith.constant dense<0.000000e+00> : vector<64x5xf32>
    %89 = tpu.matmul %88, %12, %cst_42 {dimension_numbers = #tpu.dot_dimension_numbers<[1], [0], [0], [1], [0, 0, 1, 1], [], []>} : vector<64x64xf32>, vector<64x5xf32>, vector<64x5xf32> -> vector<64x5xf32>
    %90 = vector.broadcast %13 : vector<1x5xf32> to vector<64x5xf32>
    %91 = arith.addf %89, %90 : vector<64x5xf32>
    %cst_43 = arith.constant dense<0.000000e+00> : vector<32x5xf32>
    %92 = tpu.matmul %3, %91, %cst_43 {dimension_numbers = #tpu.dot_dimension_numbers<[1], [0], [0], [1], [0, 0, 1, 1], [], []>, precision = #tpu.contract_precision<fp32>} : vector<32x64xf32>, vector<64x5xf32>, vector<32x5xf32> -> vector<32x5xf32>
    %93 = vector.extract_strided_slice %92 {offsets = [0, 0], sizes = [16, 5], strides = [1, 1]} : vector<32x5xf32> to vector<16x5xf32>
    %94 = arith.addf %53, %93 : vector<16x5xf32>
    %95 = vector.extract_strided_slice %92 {offsets = [16, 0], sizes = [16, 5], strides = [1, 1]} : vector<32x5xf32> to vector<16x5xf32>
    %96 = arith.addf %94, %95 : vector<16x5xf32>
    %97 = tpu.concatenate %77, %94, %96 in 1 : vector<16x5xf32>, vector<16x5xf32>, vector<16x5xf32> -> vector<16x15xf32>
    %cst_44 = arith.constant dense<0.000000e+00> : vector<16x10xf32>
    %98 = tpu.matmul %97, %15, %cst_44 {dimension_numbers = #tpu.dot_dimension_numbers<[1], [0], [0], [1], [0, 0, 1, 1], [], []>} : vector<16x15xf32>, vector<15x10xf32>, vector<16x10xf32> -> vector<16x10xf32>
    %99 = vector.broadcast %16 : vector<1x10xf32> to vector<16x10xf32>
    %100 = arith.addf %98, %99 : vector<16x10xf32>
    %101 = arith.negf %100 : vector<16x10xf32>
    %102 = math.exp %101 : vector<16x10xf32>
    %cst_45 = arith.constant 1.000000e+00 : f32
    %103 = vector.broadcast %cst_45 : f32 to vector<16x10xf32>
    %104 = arith.addf %103, %102 : vector<16x10xf32>
    %105 = arith.divf %103, %104 : vector<16x10xf32>
    %106 = vector.extract_strided_slice %105 {offsets = [0, 0], sizes = [16, 5], strides = [1, 1]} : vector<16x10xf32> to vector<16x5xf32>
    %107 = vector.extract_strided_slice %105 {offsets = [0, 5], sizes = [16, 5], strides = [1, 1]} : vector<16x10xf32> to vector<16x5xf32>
    %108 = arith.mulf %107, %77 : vector<16x5xf32>
    %109 = tpu.concatenate %108, %94, %96 in 1 : vector<16x5xf32>, vector<16x5xf32>, vector<16x5xf32> -> vector<16x15xf32>
    %cst_46 = arith.constant dense<0.000000e+00> : vector<16x5xf32>
    %110 = tpu.matmul %109, %18, %cst_46 {dimension_numbers = #tpu.dot_dimension_numbers<[1], [0], [0], [1], [0, 0, 1, 1], [], []>} : vector<16x15xf32>, vector<15x5xf32>, vector<16x5xf32> -> vector<16x5xf32>
    %111 = vector.broadcast %19 : vector<1x5xf32> to vector<16x5xf32>
    %112 = arith.addf %110, %111 : vector<16x5xf32>
    %113 = math.tanh %112 : vector<16x5xf32>
    %cst_47 = arith.constant 1.000000e+00 : f32
    %114 = vector.broadcast %cst_47 : f32 to vector<16x5xf32>
    %115 = arith.subf %114, %106 : vector<16x5xf32>
    %116 = arith.mulf %115, %77 : vector<16x5xf32>
    %117 = arith.mulf %106, %113 : vector<16x5xf32>
    %118 = arith.addf %116, %117 : vector<16x5xf32>
    %119 = tpu.concatenate %77, %118 in 0 : vector<16x5xf32>, vector<16x5xf32> -> vector<32x5xf32>
    %cst_48 = arith.constant dense<0.000000e+00> : vector<64x5xf32>
    %120 = tpu.matmul %2, %119, %cst_48 {dimension_numbers = #tpu.dot_dimension_numbers<[1], [0], [0], [1], [0, 0, 1, 1], [], []>, precision = #tpu.contract_precision<fp32>} : vector<64x32xf32>, vector<32x5xf32>, vector<64x5xf32> -> vector<64x5xf32>
    %cst_49 = arith.constant dense<0.000000e+00> : vector<64x64xf32>
    %121 = tpu.matmul %120, %5, %cst_49 {dimension_numbers = #tpu.dot_dimension_numbers<[1], [0], [0], [1], [0, 0, 1, 1], [], []>} : vector<64x5xf32>, vector<5x64xf32>, vector<64x64xf32> -> vector<64x64xf32>
    %122 = arith.addf %121, %33 : vector<64x64xf32>
    %cst_50 = arith.constant 0.000000e+00 : f32
    %123 = vector.broadcast %cst_50 : f32 to vector<64x64xf32>
    %124 = arith.maximumf %122, %123 : vector<64x64xf32>
    %cst_51 = arith.constant dense<0.000000e+00> : vector<64x64xf32>
    %125 = tpu.matmul %124, %9, %cst_51 {dimension_numbers = #tpu.dot_dimension_numbers<[1], [0], [0], [1], [0, 0, 1, 1], [], []>} : vector<64x64xf32>, vector<64x64xf32>, vector<64x64xf32> -> vector<64x64xf32>
    %126 = vector.broadcast %10 : vector<1x64xf32> to vector<64x64xf32>
    %127 = arith.addf %125, %126 : vector<64x64xf32>
    %cst_52 = arith.constant 0.000000e+00 : f32
    %128 = vector.broadcast %cst_52 : f32 to vector<64x64xf32>
    %129 = arith.maximumf %127, %128 : vector<64x64xf32>
    %cst_53 = arith.constant dense<0.000000e+00> : vector<64x5xf32>
    %130 = tpu.matmul %129, %12, %cst_53 {dimension_numbers = #tpu.dot_dimension_numbers<[1], [0], [0], [1], [0, 0, 1, 1], [], []>} : vector<64x64xf32>, vector<64x5xf32>, vector<64x5xf32> -> vector<64x5xf32>
    %131 = vector.broadcast %13 : vector<1x5xf32> to vector<64x5xf32>
    %132 = arith.addf %130, %131 : vector<64x5xf32>
    %cst_54 = arith.constant dense<0.000000e+00> : vector<32x5xf32>
    %133 = tpu.matmul %3, %132, %cst_54 {dimension_numbers = #tpu.dot_dimension_numbers<[1], [0], [0], [1], [0, 0, 1, 1], [], []>, precision = #tpu.contract_precision<fp32>} : vector<32x64xf32>, vector<64x5xf32>, vector<32x5xf32> -> vector<32x5xf32>
    %134 = vector.extract_strided_slice %133 {offsets = [0, 0], sizes = [16, 5], strides = [1, 1]} : vector<32x5xf32> to vector<16x5xf32>
    %135 = arith.addf %94, %134 : vector<16x5xf32>
    %136 = vector.extract_strided_slice %133 {offsets = [16, 0], sizes = [16, 5], strides = [1, 1]} : vector<32x5xf32> to vector<16x5xf32>
    %137 = arith.addf %135, %136 : vector<16x5xf32>
    %138 = tpu.concatenate %118, %135, %137 in 1 : vector<16x5xf32>, vector<16x5xf32>, vector<16x5xf32> -> vector<16x15xf32>
    %cst_55 = arith.constant dense<0.000000e+00> : vector<16x10xf32>
    %139 = tpu.matmul %138, %15, %cst_55 {dimension_numbers = #tpu.dot_dimension_numbers<[1], [0], [0], [1], [0, 0, 1, 1], [], []>} : vector<16x15xf32>, vector<15x10xf32>, vector<16x10xf32> -> vector<16x10xf32>
    %140 = vector.broadcast %16 : vector<1x10xf32> to vector<16x10xf32>
    %141 = arith.addf %139, %140 : vector<16x10xf32>
    %142 = arith.negf %141 : vector<16x10xf32>
    %143 = math.exp %142 : vector<16x10xf32>
    %cst_56 = arith.constant 1.000000e+00 : f32
    %144 = vector.broadcast %cst_56 : f32 to vector<16x10xf32>
    %145 = arith.addf %144, %143 : vector<16x10xf32>
    %146 = arith.divf %144, %145 : vector<16x10xf32>
    %147 = vector.extract_strided_slice %146 {offsets = [0, 0], sizes = [16, 5], strides = [1, 1]} : vector<16x10xf32> to vector<16x5xf32>
    %148 = vector.extract_strided_slice %146 {offsets = [0, 5], sizes = [16, 5], strides = [1, 1]} : vector<16x10xf32> to vector<16x5xf32>
    %149 = arith.mulf %148, %118 : vector<16x5xf32>
    %150 = tpu.concatenate %149, %135, %137 in 1 : vector<16x5xf32>, vector<16x5xf32>, vector<16x5xf32> -> vector<16x15xf32>
    %cst_57 = arith.constant dense<0.000000e+00> : vector<16x5xf32>
    %151 = tpu.matmul %150, %18, %cst_57 {dimension_numbers = #tpu.dot_dimension_numbers<[1], [0], [0], [1], [0, 0, 1, 1], [], []>} : vector<16x15xf32>, vector<15x5xf32>, vector<16x5xf32> -> vector<16x5xf32>
    %152 = vector.broadcast %19 : vector<1x5xf32> to vector<16x5xf32>
    %153 = arith.addf %151, %152 : vector<16x5xf32>
    %154 = math.tanh %153 : vector<16x5xf32>
    %cst_58 = arith.constant 1.000000e+00 : f32
    %155 = vector.broadcast %cst_58 : f32 to vector<16x5xf32>
    %156 = arith.subf %155, %147 : vector<16x5xf32>
    %157 = arith.mulf %156, %118 : vector<16x5xf32>
    %158 = arith.mulf %147, %154 : vector<16x5xf32>
    %159 = arith.addf %157, %158 : vector<16x5xf32>
    %160 = tpu.concatenate %118, %159 in 0 : vector<16x5xf32>, vector<16x5xf32> -> vector<32x5xf32>
    %cst_59 = arith.constant dense<0.000000e+00> : vector<64x5xf32>
    %161 = tpu.matmul %2, %160, %cst_59 {dimension_numbers = #tpu.dot_dimension_numbers<[1], [0], [0], [1], [0, 0, 1, 1], [], []>, precision = #tpu.contract_precision<fp32>} : vector<64x32xf32>, vector<32x5xf32>, vector<64x5xf32> -> vector<64x5xf32>
    %cst_60 = arith.constant dense<0.000000e+00> : vector<64x64xf32>
    %162 = tpu.matmul %161, %5, %cst_60 {dimension_numbers = #tpu.dot_dimension_numbers<[1], [0], [0], [1], [0, 0, 1, 1], [], []>} : vector<64x5xf32>, vector<5x64xf32>, vector<64x64xf32> -> vector<64x64xf32>
    %163 = arith.addf %162, %33 : vector<64x64xf32>
    %cst_61 = arith.constant 0.000000e+00 : f32
    %164 = vector.broadcast %cst_61 : f32 to vector<64x64xf32>
    %165 = arith.maximumf %163, %164 : vector<64x64xf32>
    %cst_62 = arith.constant dense<0.000000e+00> : vector<64x64xf32>
    %166 = tpu.matmul %165, %9, %cst_62 {dimension_numbers = #tpu.dot_dimension_numbers<[1], [0], [0], [1], [0, 0, 1, 1], [], []>} : vector<64x64xf32>, vector<64x64xf32>, vector<64x64xf32> -> vector<64x64xf32>
    %167 = vector.broadcast %10 : vector<1x64xf32> to vector<64x64xf32>
    %168 = arith.addf %166, %167 : vector<64x64xf32>
    %cst_63 = arith.constant 0.000000e+00 : f32
    %169 = vector.broadcast %cst_63 : f32 to vector<64x64xf32>
    %170 = arith.maximumf %168, %169 : vector<64x64xf32>
    %cst_64 = arith.constant dense<0.000000e+00> : vector<64x5xf32>
    %171 = tpu.matmul %170, %12, %cst_64 {dimension_numbers = #tpu.dot_dimension_numbers<[1], [0], [0], [1], [0, 0, 1, 1], [], []>} : vector<64x64xf32>, vector<64x5xf32>, vector<64x5xf32> -> vector<64x5xf32>
    %172 = vector.broadcast %13 : vector<1x5xf32> to vector<64x5xf32>
    %173 = arith.addf %171, %172 : vector<64x5xf32>
    %cst_65 = arith.constant dense<0.000000e+00> : vector<32x5xf32>
    %174 = tpu.matmul %3, %173, %cst_65 {dimension_numbers = #tpu.dot_dimension_numbers<[1], [0], [0], [1], [0, 0, 1, 1], [], []>, precision = #tpu.contract_precision<fp32>} : vector<32x64xf32>, vector<64x5xf32>, vector<32x5xf32> -> vector<32x5xf32>
    %175 = vector.extract_strided_slice %174 {offsets = [0, 0], sizes = [16, 5], strides = [1, 1]} : vector<32x5xf32> to vector<16x5xf32>
    %176 = arith.addf %135, %175 : vector<16x5xf32>
    %177 = vector.extract_strided_slice %174 {offsets = [16, 0], sizes = [16, 5], strides = [1, 1]} : vector<32x5xf32> to vector<16x5xf32>
    %178 = arith.addf %176, %177 : vector<16x5xf32>
    %179 = tpu.concatenate %159, %176, %178 in 1 : vector<16x5xf32>, vector<16x5xf32>, vector<16x5xf32> -> vector<16x15xf32>
    %cst_66 = arith.constant dense<0.000000e+00> : vector<16x10xf32>
    %180 = tpu.matmul %179, %15, %cst_66 {dimension_numbers = #tpu.dot_dimension_numbers<[1], [0], [0], [1], [0, 0, 1, 1], [], []>} : vector<16x15xf32>, vector<15x10xf32>, vector<16x10xf32> -> vector<16x10xf32>
    %181 = vector.broadcast %16 : vector<1x10xf32> to vector<16x10xf32>
    %182 = arith.addf %180, %181 : vector<16x10xf32>
    %183 = arith.negf %182 : vector<16x10xf32>
    %184 = math.exp %183 : vector<16x10xf32>
    %cst_67 = arith.constant 1.000000e+00 : f32
    %185 = vector.broadcast %cst_67 : f32 to vector<16x10xf32>
    %186 = arith.addf %185, %184 : vector<16x10xf32>
    %187 = arith.divf %185, %186 : vector<16x10xf32>
    %188 = vector.extract_strided_slice %187 {offsets = [0, 0], sizes = [16, 5], strides = [1, 1]} : vector<16x10xf32> to vector<16x5xf32>
    %189 = vector.extract_strided_slice %187 {offsets = [0, 5], sizes = [16, 5], strides = [1, 1]} : vector<16x10xf32> to vector<16x5xf32>
    %190 = arith.mulf %189, %159 : vector<16x5xf32>
    %191 = tpu.concatenate %190, %176, %178 in 1 : vector<16x5xf32>, vector<16x5xf32>, vector<16x5xf32> -> vector<16x15xf32>
    %cst_68 = arith.constant dense<0.000000e+00> : vector<16x5xf32>
    %192 = tpu.matmul %191, %18, %cst_68 {dimension_numbers = #tpu.dot_dimension_numbers<[1], [0], [0], [1], [0, 0, 1, 1], [], []>} : vector<16x15xf32>, vector<15x5xf32>, vector<16x5xf32> -> vector<16x5xf32>
    %193 = vector.broadcast %19 : vector<1x5xf32> to vector<16x5xf32>
    %194 = arith.addf %192, %193 : vector<16x5xf32>
    %195 = math.tanh %194 : vector<16x5xf32>
    %cst_69 = arith.constant 1.000000e+00 : f32
    %196 = vector.broadcast %cst_69 : f32 to vector<16x5xf32>
    %197 = arith.subf %196, %188 : vector<16x5xf32>
    %198 = arith.mulf %197, %159 : vector<16x5xf32>
    %199 = arith.mulf %188, %195 : vector<16x5xf32>
    %200 = arith.addf %198, %199 : vector<16x5xf32>
    %201 = tpu.concatenate %159, %200 in 0 : vector<16x5xf32>, vector<16x5xf32> -> vector<32x5xf32>
    %cst_70 = arith.constant dense<0.000000e+00> : vector<64x5xf32>
    %202 = tpu.matmul %2, %201, %cst_70 {dimension_numbers = #tpu.dot_dimension_numbers<[1], [0], [0], [1], [0, 0, 1, 1], [], []>, precision = #tpu.contract_precision<fp32>} : vector<64x32xf32>, vector<32x5xf32>, vector<64x5xf32> -> vector<64x5xf32>
    %cst_71 = arith.constant dense<0.000000e+00> : vector<64x64xf32>
    %203 = tpu.matmul %202, %5, %cst_71 {dimension_numbers = #tpu.dot_dimension_numbers<[1], [0], [0], [1], [0, 0, 1, 1], [], []>} : vector<64x5xf32>, vector<5x64xf32>, vector<64x64xf32> -> vector<64x64xf32>
    %204 = arith.addf %203, %33 : vector<64x64xf32>
    %cst_72 = arith.constant 0.000000e+00 : f32
    %205 = vector.broadcast %cst_72 : f32 to vector<64x64xf32>
    %206 = arith.maximumf %204, %205 : vector<64x64xf32>
    %cst_73 = arith.constant dense<0.000000e+00> : vector<64x64xf32>
    %207 = tpu.matmul %206, %9, %cst_73 {dimension_numbers = #tpu.dot_dimension_numbers<[1], [0], [0], [1], [0, 0, 1, 1], [], []>} : vector<64x64xf32>, vector<64x64xf32>, vector<64x64xf32> -> vector<64x64xf32>
    %208 = vector.broadcast %10 : vector<1x64xf32> to vector<64x64xf32>
    %209 = arith.addf %207, %208 : vector<64x64xf32>
    %cst_74 = arith.constant 0.000000e+00 : f32
    %210 = vector.broadcast %cst_74 : f32 to vector<64x64xf32>
    %211 = arith.maximumf %209, %210 : vector<64x64xf32>
    %cst_75 = arith.constant dense<0.000000e+00> : vector<64x5xf32>
    %212 = tpu.matmul %211, %12, %cst_75 {dimension_numbers = #tpu.dot_dimension_numbers<[1], [0], [0], [1], [0, 0, 1, 1], [], []>} : vector<64x64xf32>, vector<64x5xf32>, vector<64x5xf32> -> vector<64x5xf32>
    %213 = vector.broadcast %13 : vector<1x5xf32> to vector<64x5xf32>
    %214 = arith.addf %212, %213 : vector<64x5xf32>
    %cst_76 = arith.constant dense<0.000000e+00> : vector<32x5xf32>
    %215 = tpu.matmul %3, %214, %cst_76 {dimension_numbers = #tpu.dot_dimension_numbers<[1], [0], [0], [1], [0, 0, 1, 1], [], []>, precision = #tpu.contract_precision<fp32>} : vector<32x64xf32>, vector<64x5xf32>, vector<32x5xf32> -> vector<32x5xf32>
    %216 = vector.extract_strided_slice %215 {offsets = [0, 0], sizes = [16, 5], strides = [1, 1]} : vector<32x5xf32> to vector<16x5xf32>
    %217 = arith.addf %176, %216 : vector<16x5xf32>
    %218 = vector.extract_strided_slice %215 {offsets = [16, 0], sizes = [16, 5], strides = [1, 1]} : vector<32x5xf32> to vector<16x5xf32>
    %219 = arith.addf %217, %218 : vector<16x5xf32>
    %220 = tpu.concatenate %200, %217, %219 in 1 : vector<16x5xf32>, vector<16x5xf32>, vector<16x5xf32> -> vector<16x15xf32>
    %cst_77 = arith.constant dense<0.000000e+00> : vector<16x10xf32>
    %221 = tpu.matmul %220, %15, %cst_77 {dimension_numbers = #tpu.dot_dimension_numbers<[1], [0], [0], [1], [0, 0, 1, 1], [], []>} : vector<16x15xf32>, vector<15x10xf32>, vector<16x10xf32> -> vector<16x10xf32>
    %222 = vector.broadcast %16 : vector<1x10xf32> to vector<16x10xf32>
    %223 = arith.addf %221, %222 : vector<16x10xf32>
    %224 = arith.negf %223 : vector<16x10xf32>
    %225 = math.exp %224 : vector<16x10xf32>
    %cst_78 = arith.constant 1.000000e+00 : f32
    %226 = vector.broadcast %cst_78 : f32 to vector<16x10xf32>
    %227 = arith.addf %226, %225 : vector<16x10xf32>
    %228 = arith.divf %226, %227 : vector<16x10xf32>
    %229 = vector.extract_strided_slice %228 {offsets = [0, 0], sizes = [16, 5], strides = [1, 1]} : vector<16x10xf32> to vector<16x5xf32>
    %230 = vector.extract_strided_slice %228 {offsets = [0, 5], sizes = [16, 5], strides = [1, 1]} : vector<16x10xf32> to vector<16x5xf32>
    %231 = arith.mulf %230, %200 : vector<16x5xf32>
    %232 = tpu.concatenate %231, %217, %219 in 1 : vector<16x5xf32>, vector<16x5xf32>, vector<16x5xf32> -> vector<16x15xf32>
    %cst_79 = arith.constant dense<0.000000e+00> : vector<16x5xf32>
    %233 = tpu.matmul %232, %18, %cst_79 {dimension_numbers = #tpu.dot_dimension_numbers<[1], [0], [0], [1], [0, 0, 1, 1], [], []>} : vector<16x15xf32>, vector<15x5xf32>, vector<16x5xf32> -> vector<16x5xf32>
    %234 = vector.broadcast %19 : vector<1x5xf32> to vector<16x5xf32>
    %235 = arith.addf %233, %234 : vector<16x5xf32>
    %236 = math.tanh %235 : vector<16x5xf32>
    %cst_80 = arith.constant 1.000000e+00 : f32
    %237 = vector.broadcast %cst_80 : f32 to vector<16x5xf32>
    %238 = arith.subf %237, %229 : vector<16x5xf32>
    %239 = arith.mulf %238, %200 : vector<16x5xf32>
    %240 = arith.mulf %229, %236 : vector<16x5xf32>
    %241 = arith.addf %239, %240 : vector<16x5xf32>
    %242 = tpu.concatenate %200, %241 in 0 : vector<16x5xf32>, vector<16x5xf32> -> vector<32x5xf32>
    %cst_81 = arith.constant dense<0.000000e+00> : vector<64x5xf32>
    %243 = tpu.matmul %2, %242, %cst_81 {dimension_numbers = #tpu.dot_dimension_numbers<[1], [0], [0], [1], [0, 0, 1, 1], [], []>, precision = #tpu.contract_precision<fp32>} : vector<64x32xf32>, vector<32x5xf32>, vector<64x5xf32> -> vector<64x5xf32>
    %cst_82 = arith.constant dense<0.000000e+00> : vector<64x64xf32>
    %244 = tpu.matmul %243, %5, %cst_82 {dimension_numbers = #tpu.dot_dimension_numbers<[1], [0], [0], [1], [0, 0, 1, 1], [], []>} : vector<64x5xf32>, vector<5x64xf32>, vector<64x64xf32> -> vector<64x64xf32>
    %245 = arith.addf %244, %33 : vector<64x64xf32>
    %cst_83 = arith.constant 0.000000e+00 : f32
    %246 = vector.broadcast %cst_83 : f32 to vector<64x64xf32>
    %247 = arith.maximumf %245, %246 : vector<64x64xf32>
    %cst_84 = arith.constant dense<0.000000e+00> : vector<64x64xf32>
    %248 = tpu.matmul %247, %9, %cst_84 {dimension_numbers = #tpu.dot_dimension_numbers<[1], [0], [0], [1], [0, 0, 1, 1], [], []>} : vector<64x64xf32>, vector<64x64xf32>, vector<64x64xf32> -> vector<64x64xf32>
    %249 = vector.broadcast %10 : vector<1x64xf32> to vector<64x64xf32>
    %250 = arith.addf %248, %249 : vector<64x64xf32>
    %cst_85 = arith.constant 0.000000e+00 : f32
    %251 = vector.broadcast %cst_85 : f32 to vector<64x64xf32>
    %252 = arith.maximumf %250, %251 : vector<64x64xf32>
    %cst_86 = arith.constant dense<0.000000e+00> : vector<64x5xf32>
    %253 = tpu.matmul %252, %12, %cst_86 {dimension_numbers = #tpu.dot_dimension_numbers<[1], [0], [0], [1], [0, 0, 1, 1], [], []>} : vector<64x64xf32>, vector<64x5xf32>, vector<64x5xf32> -> vector<64x5xf32>
    %254 = vector.broadcast %13 : vector<1x5xf32> to vector<64x5xf32>
    %255 = arith.addf %253, %254 : vector<64x5xf32>
    %cst_87 = arith.constant dense<0.000000e+00> : vector<32x5xf32>
    %256 = tpu.matmul %3, %255, %cst_87 {dimension_numbers = #tpu.dot_dimension_numbers<[1], [0], [0], [1], [0, 0, 1, 1], [], []>, precision = #tpu.contract_precision<fp32>} : vector<32x64xf32>, vector<64x5xf32>, vector<32x5xf32> -> vector<32x5xf32>
    %257 = vector.extract_strided_slice %256 {offsets = [0, 0], sizes = [16, 5], strides = [1, 1]} : vector<32x5xf32> to vector<16x5xf32>
    %258 = arith.addf %217, %257 : vector<16x5xf32>
    %259 = vector.extract_strided_slice %256 {offsets = [16, 0], sizes = [16, 5], strides = [1, 1]} : vector<32x5xf32> to vector<16x5xf32>
    %260 = arith.addf %258, %259 : vector<16x5xf32>
    %261 = tpu.concatenate %241, %258, %260 in 1 : vector<16x5xf32>, vector<16x5xf32>, vector<16x5xf32> -> vector<16x15xf32>
    %cst_88 = arith.constant dense<0.000000e+00> : vector<16x10xf32>
    %262 = tpu.matmul %261, %15, %cst_88 {dimension_numbers = #tpu.dot_dimension_numbers<[1], [0], [0], [1], [0, 0, 1, 1], [], []>} : vector<16x15xf32>, vector<15x10xf32>, vector<16x10xf32> -> vector<16x10xf32>
    %263 = vector.broadcast %16 : vector<1x10xf32> to vector<16x10xf32>
    %264 = arith.addf %262, %263 : vector<16x10xf32>
    %265 = arith.negf %264 : vector<16x10xf32>
    %266 = math.exp %265 : vector<16x10xf32>
    %cst_89 = arith.constant 1.000000e+00 : f32
    %267 = vector.broadcast %cst_89 : f32 to vector<16x10xf32>
    %268 = arith.addf %267, %266 : vector<16x10xf32>
    %269 = arith.divf %267, %268 : vector<16x10xf32>
    %270 = vector.extract_strided_slice %269 {offsets = [0, 0], sizes = [16, 5], strides = [1, 1]} : vector<16x10xf32> to vector<16x5xf32>
    %271 = vector.extract_strided_slice %269 {offsets = [0, 5], sizes = [16, 5], strides = [1, 1]} : vector<16x10xf32> to vector<16x5xf32>
    %272 = arith.mulf %271, %241 : vector<16x5xf32>
    %273 = tpu.concatenate %272, %258, %260 in 1 : vector<16x5xf32>, vector<16x5xf32>, vector<16x5xf32> -> vector<16x15xf32>
    %cst_90 = arith.constant dense<0.000000e+00> : vector<16x5xf32>
    %274 = tpu.matmul %273, %18, %cst_90 {dimension_numbers = #tpu.dot_dimension_numbers<[1], [0], [0], [1], [0, 0, 1, 1], [], []>} : vector<16x15xf32>, vector<15x5xf32>, vector<16x5xf32> -> vector<16x5xf32>
    %275 = vector.broadcast %19 : vector<1x5xf32> to vector<16x5xf32>
    %276 = arith.addf %274, %275 : vector<16x5xf32>
    %277 = math.tanh %276 : vector<16x5xf32>
    %cst_91 = arith.constant 1.000000e+00 : f32
    %278 = vector.broadcast %cst_91 : f32 to vector<16x5xf32>
    %279 = arith.subf %278, %270 : vector<16x5xf32>
    %280 = arith.mulf %279, %241 : vector<16x5xf32>
    %281 = arith.mulf %270, %277 : vector<16x5xf32>
    %282 = arith.addf %280, %281 : vector<16x5xf32>
    %283 = tpu.concatenate %241, %282 in 0 : vector<16x5xf32>, vector<16x5xf32> -> vector<32x5xf32>
    %cst_92 = arith.constant dense<0.000000e+00> : vector<64x5xf32>
    %284 = tpu.matmul %2, %283, %cst_92 {dimension_numbers = #tpu.dot_dimension_numbers<[1], [0], [0], [1], [0, 0, 1, 1], [], []>, precision = #tpu.contract_precision<fp32>} : vector<64x32xf32>, vector<32x5xf32>, vector<64x5xf32> -> vector<64x5xf32>
    %cst_93 = arith.constant dense<0.000000e+00> : vector<64x64xf32>
    %285 = tpu.matmul %284, %5, %cst_93 {dimension_numbers = #tpu.dot_dimension_numbers<[1], [0], [0], [1], [0, 0, 1, 1], [], []>} : vector<64x5xf32>, vector<5x64xf32>, vector<64x64xf32> -> vector<64x64xf32>
    %286 = arith.addf %285, %33 : vector<64x64xf32>
    %cst_94 = arith.constant 0.000000e+00 : f32
    %287 = vector.broadcast %cst_94 : f32 to vector<64x64xf32>
    %288 = arith.maximumf %286, %287 : vector<64x64xf32>
    %cst_95 = arith.constant dense<0.000000e+00> : vector<64x64xf32>
    %289 = tpu.matmul %288, %9, %cst_95 {dimension_numbers = #tpu.dot_dimension_numbers<[1], [0], [0], [1], [0, 0, 1, 1], [], []>} : vector<64x64xf32>, vector<64x64xf32>, vector<64x64xf32> -> vector<64x64xf32>
    %290 = vector.broadcast %10 : vector<1x64xf32> to vector<64x64xf32>
    %291 = arith.addf %289, %290 : vector<64x64xf32>
    %cst_96 = arith.constant 0.000000e+00 : f32
    %292 = vector.broadcast %cst_96 : f32 to vector<64x64xf32>
    %293 = arith.maximumf %291, %292 : vector<64x64xf32>
    %cst_97 = arith.constant dense<0.000000e+00> : vector<64x5xf32>
    %294 = tpu.matmul %293, %12, %cst_97 {dimension_numbers = #tpu.dot_dimension_numbers<[1], [0], [0], [1], [0, 0, 1, 1], [], []>} : vector<64x64xf32>, vector<64x5xf32>, vector<64x5xf32> -> vector<64x5xf32>
    %295 = vector.broadcast %13 : vector<1x5xf32> to vector<64x5xf32>
    %296 = arith.addf %294, %295 : vector<64x5xf32>
    %cst_98 = arith.constant dense<0.000000e+00> : vector<32x5xf32>
    %297 = tpu.matmul %3, %296, %cst_98 {dimension_numbers = #tpu.dot_dimension_numbers<[1], [0], [0], [1], [0, 0, 1, 1], [], []>, precision = #tpu.contract_precision<fp32>} : vector<32x64xf32>, vector<64x5xf32>, vector<32x5xf32> -> vector<32x5xf32>
    %298 = vector.extract_strided_slice %297 {offsets = [0, 0], sizes = [16, 5], strides = [1, 1]} : vector<32x5xf32> to vector<16x5xf32>
    %299 = arith.addf %258, %298 : vector<16x5xf32>
    %300 = vector.extract_strided_slice %297 {offsets = [16, 0], sizes = [16, 5], strides = [1, 1]} : vector<32x5xf32> to vector<16x5xf32>
    %301 = arith.addf %299, %300 : vector<16x5xf32>
    %302 = tpu.concatenate %282, %299, %301 in 1 : vector<16x5xf32>, vector<16x5xf32>, vector<16x5xf32> -> vector<16x15xf32>
    %cst_99 = arith.constant dense<0.000000e+00> : vector<16x10xf32>
    %303 = tpu.matmul %302, %15, %cst_99 {dimension_numbers = #tpu.dot_dimension_numbers<[1], [0], [0], [1], [0, 0, 1, 1], [], []>} : vector<16x15xf32>, vector<15x10xf32>, vector<16x10xf32> -> vector<16x10xf32>
    %304 = vector.broadcast %16 : vector<1x10xf32> to vector<16x10xf32>
    %305 = arith.addf %303, %304 : vector<16x10xf32>
    %306 = arith.negf %305 : vector<16x10xf32>
    %307 = math.exp %306 : vector<16x10xf32>
    %cst_100 = arith.constant 1.000000e+00 : f32
    %308 = vector.broadcast %cst_100 : f32 to vector<16x10xf32>
    %309 = arith.addf %308, %307 : vector<16x10xf32>
    %310 = arith.divf %308, %309 : vector<16x10xf32>
    %311 = vector.extract_strided_slice %310 {offsets = [0, 0], sizes = [16, 5], strides = [1, 1]} : vector<16x10xf32> to vector<16x5xf32>
    %312 = vector.extract_strided_slice %310 {offsets = [0, 5], sizes = [16, 5], strides = [1, 1]} : vector<16x10xf32> to vector<16x5xf32>
    %313 = arith.mulf %312, %282 : vector<16x5xf32>
    %314 = tpu.concatenate %313, %299, %301 in 1 : vector<16x5xf32>, vector<16x5xf32>, vector<16x5xf32> -> vector<16x15xf32>
    %cst_101 = arith.constant dense<0.000000e+00> : vector<16x5xf32>
    %315 = tpu.matmul %314, %18, %cst_101 {dimension_numbers = #tpu.dot_dimension_numbers<[1], [0], [0], [1], [0, 0, 1, 1], [], []>} : vector<16x15xf32>, vector<15x5xf32>, vector<16x5xf32> -> vector<16x5xf32>
    %316 = vector.broadcast %19 : vector<1x5xf32> to vector<16x5xf32>
    %317 = arith.addf %315, %316 : vector<16x5xf32>
    %318 = math.tanh %317 : vector<16x5xf32>
    %cst_102 = arith.constant 1.000000e+00 : f32
    %319 = vector.broadcast %cst_102 : f32 to vector<16x5xf32>
    %320 = arith.subf %319, %311 : vector<16x5xf32>
    %321 = arith.mulf %320, %282 : vector<16x5xf32>
    %322 = arith.mulf %311, %318 : vector<16x5xf32>
    %323 = arith.addf %321, %322 : vector<16x5xf32>
    %324 = tpu.concatenate %282, %323 in 0 : vector<16x5xf32>, vector<16x5xf32> -> vector<32x5xf32>
    %cst_103 = arith.constant dense<0.000000e+00> : vector<64x5xf32>
    %325 = tpu.matmul %2, %324, %cst_103 {dimension_numbers = #tpu.dot_dimension_numbers<[1], [0], [0], [1], [0, 0, 1, 1], [], []>, precision = #tpu.contract_precision<fp32>} : vector<64x32xf32>, vector<32x5xf32>, vector<64x5xf32> -> vector<64x5xf32>
    %cst_104 = arith.constant dense<0.000000e+00> : vector<64x64xf32>
    %326 = tpu.matmul %325, %5, %cst_104 {dimension_numbers = #tpu.dot_dimension_numbers<[1], [0], [0], [1], [0, 0, 1, 1], [], []>} : vector<64x5xf32>, vector<5x64xf32>, vector<64x64xf32> -> vector<64x64xf32>
    %327 = arith.addf %326, %33 : vector<64x64xf32>
    %cst_105 = arith.constant 0.000000e+00 : f32
    %328 = vector.broadcast %cst_105 : f32 to vector<64x64xf32>
    %329 = arith.maximumf %327, %328 : vector<64x64xf32>
    %cst_106 = arith.constant dense<0.000000e+00> : vector<64x64xf32>
    %330 = tpu.matmul %329, %9, %cst_106 {dimension_numbers = #tpu.dot_dimension_numbers<[1], [0], [0], [1], [0, 0, 1, 1], [], []>} : vector<64x64xf32>, vector<64x64xf32>, vector<64x64xf32> -> vector<64x64xf32>
    %331 = vector.broadcast %10 : vector<1x64xf32> to vector<64x64xf32>
    %332 = arith.addf %330, %331 : vector<64x64xf32>
    %cst_107 = arith.constant 0.000000e+00 : f32
    %333 = vector.broadcast %cst_107 : f32 to vector<64x64xf32>
    %334 = arith.maximumf %332, %333 : vector<64x64xf32>
    %cst_108 = arith.constant dense<0.000000e+00> : vector<64x5xf32>
    %335 = tpu.matmul %334, %12, %cst_108 {dimension_numbers = #tpu.dot_dimension_numbers<[1], [0], [0], [1], [0, 0, 1, 1], [], []>} : vector<64x64xf32>, vector<64x5xf32>, vector<64x5xf32> -> vector<64x5xf32>
    %336 = vector.broadcast %13 : vector<1x5xf32> to vector<64x5xf32>
    %337 = arith.addf %335, %336 : vector<64x5xf32>
    %cst_109 = arith.constant dense<0.000000e+00> : vector<32x5xf32>
    %338 = tpu.matmul %3, %337, %cst_109 {dimension_numbers = #tpu.dot_dimension_numbers<[1], [0], [0], [1], [0, 0, 1, 1], [], []>, precision = #tpu.contract_precision<fp32>} : vector<32x64xf32>, vector<64x5xf32>, vector<32x5xf32> -> vector<32x5xf32>
    %339 = vector.extract_strided_slice %338 {offsets = [0, 0], sizes = [16, 5], strides = [1, 1]} : vector<32x5xf32> to vector<16x5xf32>
    %340 = arith.addf %299, %339 : vector<16x5xf32>
    %341 = vector.extract_strided_slice %338 {offsets = [16, 0], sizes = [16, 5], strides = [1, 1]} : vector<32x5xf32> to vector<16x5xf32>
    %342 = arith.addf %340, %341 : vector<16x5xf32>
    %343 = tpu.concatenate %323, %340, %342 in 1 : vector<16x5xf32>, vector<16x5xf32>, vector<16x5xf32> -> vector<16x15xf32>
    %cst_110 = arith.constant dense<0.000000e+00> : vector<16x10xf32>
    %344 = tpu.matmul %343, %15, %cst_110 {dimension_numbers = #tpu.dot_dimension_numbers<[1], [0], [0], [1], [0, 0, 1, 1], [], []>} : vector<16x15xf32>, vector<15x10xf32>, vector<16x10xf32> -> vector<16x10xf32>
    %345 = vector.broadcast %16 : vector<1x10xf32> to vector<16x10xf32>
    %346 = arith.addf %344, %345 : vector<16x10xf32>
    %347 = arith.negf %346 : vector<16x10xf32>
    %348 = math.exp %347 : vector<16x10xf32>
    %cst_111 = arith.constant 1.000000e+00 : f32
    %349 = vector.broadcast %cst_111 : f32 to vector<16x10xf32>
    %350 = arith.addf %349, %348 : vector<16x10xf32>
    %351 = arith.divf %349, %350 : vector<16x10xf32>
    %352 = vector.extract_strided_slice %351 {offsets = [0, 0], sizes = [16, 5], strides = [1, 1]} : vector<16x10xf32> to vector<16x5xf32>
    %353 = vector.extract_strided_slice %351 {offsets = [0, 5], sizes = [16, 5], strides = [1, 1]} : vector<16x10xf32> to vector<16x5xf32>
    %354 = arith.mulf %353, %323 : vector<16x5xf32>
    %355 = tpu.concatenate %354, %340, %342 in 1 : vector<16x5xf32>, vector<16x5xf32>, vector<16x5xf32> -> vector<16x15xf32>
    %cst_112 = arith.constant dense<0.000000e+00> : vector<16x5xf32>
    %356 = tpu.matmul %355, %18, %cst_112 {dimension_numbers = #tpu.dot_dimension_numbers<[1], [0], [0], [1], [0, 0, 1, 1], [], []>} : vector<16x15xf32>, vector<15x5xf32>, vector<16x5xf32> -> vector<16x5xf32>
    %357 = vector.broadcast %19 : vector<1x5xf32> to vector<16x5xf32>
    %358 = arith.addf %356, %357 : vector<16x5xf32>
    %359 = math.tanh %358 : vector<16x5xf32>
    %cst_113 = arith.constant 1.000000e+00 : f32
    %360 = vector.broadcast %cst_113 : f32 to vector<16x5xf32>
    %361 = arith.subf %360, %352 : vector<16x5xf32>
    %362 = arith.mulf %361, %323 : vector<16x5xf32>
    %363 = arith.mulf %352, %359 : vector<16x5xf32>
    %364 = arith.addf %362, %363 : vector<16x5xf32>
    %365 = tpu.concatenate %323, %364 in 0 : vector<16x5xf32>, vector<16x5xf32> -> vector<32x5xf32>
    %cst_114 = arith.constant dense<0.000000e+00> : vector<64x5xf32>
    %366 = tpu.matmul %2, %365, %cst_114 {dimension_numbers = #tpu.dot_dimension_numbers<[1], [0], [0], [1], [0, 0, 1, 1], [], []>, precision = #tpu.contract_precision<fp32>} : vector<64x32xf32>, vector<32x5xf32>, vector<64x5xf32> -> vector<64x5xf32>
    %cst_115 = arith.constant dense<0.000000e+00> : vector<64x64xf32>
    %367 = tpu.matmul %366, %5, %cst_115 {dimension_numbers = #tpu.dot_dimension_numbers<[1], [0], [0], [1], [0, 0, 1, 1], [], []>} : vector<64x5xf32>, vector<5x64xf32>, vector<64x64xf32> -> vector<64x64xf32>
    %368 = arith.addf %367, %33 : vector<64x64xf32>
    %cst_116 = arith.constant 0.000000e+00 : f32
    %369 = vector.broadcast %cst_116 : f32 to vector<64x64xf32>
    %370 = arith.maximumf %368, %369 : vector<64x64xf32>
    %cst_117 = arith.constant dense<0.000000e+00> : vector<64x64xf32>
    %371 = tpu.matmul %370, %9, %cst_117 {dimension_numbers = #tpu.dot_dimension_numbers<[1], [0], [0], [1], [0, 0, 1, 1], [], []>} : vector<64x64xf32>, vector<64x64xf32>, vector<64x64xf32> -> vector<64x64xf32>
    %372 = vector.broadcast %10 : vector<1x64xf32> to vector<64x64xf32>
    %373 = arith.addf %371, %372 : vector<64x64xf32>
    %cst_118 = arith.constant 0.000000e+00 : f32
    %374 = vector.broadcast %cst_118 : f32 to vector<64x64xf32>
    %375 = arith.maximumf %373, %374 : vector<64x64xf32>
    %cst_119 = arith.constant dense<0.000000e+00> : vector<64x5xf32>
    %376 = tpu.matmul %375, %12, %cst_119 {dimension_numbers = #tpu.dot_dimension_numbers<[1], [0], [0], [1], [0, 0, 1, 1], [], []>} : vector<64x64xf32>, vector<64x5xf32>, vector<64x5xf32> -> vector<64x5xf32>
    %377 = vector.broadcast %13 : vector<1x5xf32> to vector<64x5xf32>
    %378 = arith.addf %376, %377 : vector<64x5xf32>
    %cst_120 = arith.constant dense<0.000000e+00> : vector<32x5xf32>
    %379 = tpu.matmul %3, %378, %cst_120 {dimension_numbers = #tpu.dot_dimension_numbers<[1], [0], [0], [1], [0, 0, 1, 1], [], []>, precision = #tpu.contract_precision<fp32>} : vector<32x64xf32>, vector<64x5xf32>, vector<32x5xf32> -> vector<32x5xf32>
    %380 = vector.extract_strided_slice %379 {offsets = [0, 0], sizes = [16, 5], strides = [1, 1]} : vector<32x5xf32> to vector<16x5xf32>
    %381 = arith.addf %340, %380 : vector<16x5xf32>
    %382 = vector.extract_strided_slice %379 {offsets = [16, 0], sizes = [16, 5], strides = [1, 1]} : vector<32x5xf32> to vector<16x5xf32>
    %383 = arith.addf %381, %382 : vector<16x5xf32>
    %384 = tpu.concatenate %364, %381, %383 in 1 : vector<16x5xf32>, vector<16x5xf32>, vector<16x5xf32> -> vector<16x15xf32>
    %cst_121 = arith.constant dense<0.000000e+00> : vector<16x10xf32>
    %385 = tpu.matmul %384, %15, %cst_121 {dimension_numbers = #tpu.dot_dimension_numbers<[1], [0], [0], [1], [0, 0, 1, 1], [], []>} : vector<16x15xf32>, vector<15x10xf32>, vector<16x10xf32> -> vector<16x10xf32>
    %386 = vector.broadcast %16 : vector<1x10xf32> to vector<16x10xf32>
    %387 = arith.addf %385, %386 : vector<16x10xf32>
    %388 = arith.negf %387 : vector<16x10xf32>
    %389 = math.exp %388 : vector<16x10xf32>
    %cst_122 = arith.constant 1.000000e+00 : f32
    %390 = vector.broadcast %cst_122 : f32 to vector<16x10xf32>
    %391 = arith.addf %390, %389 : vector<16x10xf32>
    %392 = arith.divf %390, %391 : vector<16x10xf32>
    %393 = vector.extract_strided_slice %392 {offsets = [0, 0], sizes = [16, 5], strides = [1, 1]} : vector<16x10xf32> to vector<16x5xf32>
    %394 = vector.extract_strided_slice %392 {offsets = [0, 5], sizes = [16, 5], strides = [1, 1]} : vector<16x10xf32> to vector<16x5xf32>
    %395 = arith.mulf %394, %364 : vector<16x5xf32>
    %396 = tpu.concatenate %395, %381, %383 in 1 : vector<16x5xf32>, vector<16x5xf32>, vector<16x5xf32> -> vector<16x15xf32>
    %cst_123 = arith.constant dense<0.000000e+00> : vector<16x5xf32>
    %397 = tpu.matmul %396, %18, %cst_123 {dimension_numbers = #tpu.dot_dimension_numbers<[1], [0], [0], [1], [0, 0, 1, 1], [], []>} : vector<16x15xf32>, vector<15x5xf32>, vector<16x5xf32> -> vector<16x5xf32>
    %398 = vector.broadcast %19 : vector<1x5xf32> to vector<16x5xf32>
    %399 = arith.addf %397, %398 : vector<16x5xf32>
    %400 = math.tanh %399 : vector<16x5xf32>
    %cst_124 = arith.constant 1.000000e+00 : f32
    %401 = vector.broadcast %cst_124 : f32 to vector<16x5xf32>
    %402 = arith.subf %401, %393 : vector<16x5xf32>
    %403 = arith.mulf %402, %364 : vector<16x5xf32>
    %404 = arith.mulf %393, %400 : vector<16x5xf32>
    %405 = arith.addf %403, %404 : vector<16x5xf32>
    %406 = tpu.concatenate %364, %405 in 0 : vector<16x5xf32>, vector<16x5xf32> -> vector<32x5xf32>
    %cst_125 = arith.constant dense<0.000000e+00> : vector<64x5xf32>
    %407 = tpu.matmul %2, %406, %cst_125 {dimension_numbers = #tpu.dot_dimension_numbers<[1], [0], [0], [1], [0, 0, 1, 1], [], []>, precision = #tpu.contract_precision<fp32>} : vector<64x32xf32>, vector<32x5xf32>, vector<64x5xf32> -> vector<64x5xf32>
    %cst_126 = arith.constant dense<0.000000e+00> : vector<64x64xf32>
    %408 = tpu.matmul %407, %5, %cst_126 {dimension_numbers = #tpu.dot_dimension_numbers<[1], [0], [0], [1], [0, 0, 1, 1], [], []>} : vector<64x5xf32>, vector<5x64xf32>, vector<64x64xf32> -> vector<64x64xf32>
    %409 = arith.addf %408, %33 : vector<64x64xf32>
    %cst_127 = arith.constant 0.000000e+00 : f32
    %410 = vector.broadcast %cst_127 : f32 to vector<64x64xf32>
    %411 = arith.maximumf %409, %410 : vector<64x64xf32>
    %cst_128 = arith.constant dense<0.000000e+00> : vector<64x64xf32>
    %412 = tpu.matmul %411, %9, %cst_128 {dimension_numbers = #tpu.dot_dimension_numbers<[1], [0], [0], [1], [0, 0, 1, 1], [], []>} : vector<64x64xf32>, vector<64x64xf32>, vector<64x64xf32> -> vector<64x64xf32>
    %413 = vector.broadcast %10 : vector<1x64xf32> to vector<64x64xf32>
    %414 = arith.addf %412, %413 : vector<64x64xf32>
    %cst_129 = arith.constant 0.000000e+00 : f32
    %415 = vector.broadcast %cst_129 : f32 to vector<64x64xf32>
    %416 = arith.maximumf %414, %415 : vector<64x64xf32>
    %cst_130 = arith.constant dense<0.000000e+00> : vector<64x5xf32>
    %417 = tpu.matmul %416, %12, %cst_130 {dimension_numbers = #tpu.dot_dimension_numbers<[1], [0], [0], [1], [0, 0, 1, 1], [], []>} : vector<64x64xf32>, vector<64x5xf32>, vector<64x5xf32> -> vector<64x5xf32>
    %418 = vector.broadcast %13 : vector<1x5xf32> to vector<64x5xf32>
    %419 = arith.addf %417, %418 : vector<64x5xf32>
    %cst_131 = arith.constant dense<0.000000e+00> : vector<32x5xf32>
    %420 = tpu.matmul %3, %419, %cst_131 {dimension_numbers = #tpu.dot_dimension_numbers<[1], [0], [0], [1], [0, 0, 1, 1], [], []>, precision = #tpu.contract_precision<fp32>} : vector<32x64xf32>, vector<64x5xf32>, vector<32x5xf32> -> vector<32x5xf32>
    %421 = vector.extract_strided_slice %420 {offsets = [0, 0], sizes = [16, 5], strides = [1, 1]} : vector<32x5xf32> to vector<16x5xf32>
    %422 = arith.addf %381, %421 : vector<16x5xf32>
    %423 = vector.extract_strided_slice %420 {offsets = [16, 0], sizes = [16, 5], strides = [1, 1]} : vector<32x5xf32> to vector<16x5xf32>
    %424 = arith.addf %422, %423 : vector<16x5xf32>
    %425 = tpu.concatenate %405, %422, %424 in 1 : vector<16x5xf32>, vector<16x5xf32>, vector<16x5xf32> -> vector<16x15xf32>
    %cst_132 = arith.constant dense<0.000000e+00> : vector<16x10xf32>
    %426 = tpu.matmul %425, %15, %cst_132 {dimension_numbers = #tpu.dot_dimension_numbers<[1], [0], [0], [1], [0, 0, 1, 1], [], []>} : vector<16x15xf32>, vector<15x10xf32>, vector<16x10xf32> -> vector<16x10xf32>
    %427 = vector.broadcast %16 : vector<1x10xf32> to vector<16x10xf32>
    %428 = arith.addf %426, %427 : vector<16x10xf32>
    %429 = arith.negf %428 : vector<16x10xf32>
    %430 = math.exp %429 : vector<16x10xf32>
    %cst_133 = arith.constant 1.000000e+00 : f32
    %431 = vector.broadcast %cst_133 : f32 to vector<16x10xf32>
    %432 = arith.addf %431, %430 : vector<16x10xf32>
    %433 = arith.divf %431, %432 : vector<16x10xf32>
    %434 = vector.extract_strided_slice %433 {offsets = [0, 0], sizes = [16, 5], strides = [1, 1]} : vector<16x10xf32> to vector<16x5xf32>
    %435 = vector.extract_strided_slice %433 {offsets = [0, 5], sizes = [16, 5], strides = [1, 1]} : vector<16x10xf32> to vector<16x5xf32>
    %436 = arith.mulf %435, %405 : vector<16x5xf32>
    %437 = tpu.concatenate %436, %422, %424 in 1 : vector<16x5xf32>, vector<16x5xf32>, vector<16x5xf32> -> vector<16x15xf32>
    %cst_134 = arith.constant dense<0.000000e+00> : vector<16x5xf32>
    %438 = tpu.matmul %437, %18, %cst_134 {dimension_numbers = #tpu.dot_dimension_numbers<[1], [0], [0], [1], [0, 0, 1, 1], [], []>} : vector<16x15xf32>, vector<15x5xf32>, vector<16x5xf32> -> vector<16x5xf32>
    %439 = vector.broadcast %19 : vector<1x5xf32> to vector<16x5xf32>
    %440 = arith.addf %438, %439 : vector<16x5xf32>
    %441 = math.tanh %440 : vector<16x5xf32>
    %cst_135 = arith.constant 1.000000e+00 : f32
    %442 = vector.broadcast %cst_135 : f32 to vector<16x5xf32>
    %443 = arith.subf %442, %434 : vector<16x5xf32>
    %444 = arith.mulf %443, %405 : vector<16x5xf32>
    %445 = arith.mulf %434, %441 : vector<16x5xf32>
    %446 = arith.addf %444, %445 : vector<16x5xf32>
    %cst_136 = arith.constant dense<0.000000e+00> : vector<16x64xf32>
    %447 = tpu.matmul %446, %21, %cst_136 {dimension_numbers = #tpu.dot_dimension_numbers<[1], [0], [0], [1], [0, 0, 1, 1], [], []>} : vector<16x5xf32>, vector<5x64xf32>, vector<16x64xf32> -> vector<16x64xf32>
    %448 = vector.broadcast %1 : vector<16x1xf32> to vector<16x64xf32>
    %449 = vector.broadcast %22 : vector<1x64xf32> to vector<16x64xf32>
    %450 = arith.mulf %448, %449 : vector<16x64xf32>
    %451 = arith.addf %447, %450 : vector<16x64xf32>
    %452 = vector.broadcast %23 : vector<1x64xf32> to vector<16x64xf32>
    %453 = arith.addf %451, %452 : vector<16x64xf32>
    %cst_137 = arith.constant 0.000000e+00 : f32
    %454 = vector.broadcast %cst_137 : f32 to vector<16x64xf32>
    %455 = arith.maximumf %453, %454 : vector<16x64xf32>
    %cst_138 = arith.constant dense<0.000000e+00> : vector<16x64xf32>
    %456 = tpu.matmul %455, %25, %cst_138 {dimension_numbers = #tpu.dot_dimension_numbers<[1], [0], [0], [1], [0, 0, 1, 1], [], []>} : vector<16x64xf32>, vector<64x64xf32>, vector<16x64xf32> -> vector<16x64xf32>
    %457 = vector.broadcast %26 : vector<1x64xf32> to vector<16x64xf32>
    %458 = arith.addf %456, %457 : vector<16x64xf32>
    %cst_139 = arith.constant 0.000000e+00 : f32
    %459 = vector.broadcast %cst_139 : f32 to vector<16x64xf32>
    %460 = arith.maximumf %458, %459 : vector<16x64xf32>
    %461 = vector.broadcast %28 : vector<1x64xf32> to vector<16x64xf32>
    %462 = arith.mulf %460, %461 : vector<16x64xf32>
    %cst_140 = arith.constant dense<0.000000e+00> : vector<16xf32>
    %463 = vector.multi_reduction <add>, %462, %cst_140 [1] : vector<16x64xf32> to vector<16xf32>
    %464 = vector.shape_cast %463 : vector<16xf32> to vector<16x1xf32>
    %465 = vector.broadcast %29 : vector<1x1xf32> to vector<16x1xf32>
    %466 = arith.addf %464, %465 : vector<16x1xf32>
    %467 = arith.negf %466 : vector<16x1xf32>
    %468 = math.exp %467 : vector<16x1xf32>
    %cst_141 = arith.constant 1.000000e+00 : f32
    %469 = vector.broadcast %cst_141 : f32 to vector<16x1xf32>
    %470 = arith.addf %469, %468 : vector<16x1xf32>
    %471 = arith.divf %469, %470 : vector<16x1xf32>
    %c0_142 = arith.constant 0 : index
    %c0_143 = arith.constant 0 : index
    %472 = vector.load %arg13[%c0_142, %c0_143] : memref<16x1xf32, #tpu.memory_space<vmem>>, vector<16x1xf32>
    tpu.vector_store %arg13[%c0_142, %c0_143], %471 {strides = array<i32>} : memref<16x1xf32, #tpu.memory_space<vmem>>, vector<16x1xf32>,
    return
  }
  func.func @transform_0(%arg0: i32) -> (i32, i32) {
    %c0_i32 = arith.constant 0 : i32
    %c0_i32_0 = arith.constant 0 : i32
    return %arg0, %c0_i32 : i32, i32
  }
  func.func @transform_1(%arg0: i32) -> (i32, i32) {
    %c0_i32 = arith.constant 0 : i32
    %c0_i32_0 = arith.constant 0 : i32
    return %arg0, %c0_i32 : i32, i32
  }
  func.func @transform_2(%arg0: i32) -> (i32, i32) {
    %c0_i32 = arith.constant 0 : i32
    %c0_i32_0 = arith.constant 0 : i32
    %c0_i32_1 = arith.constant 0 : i32
    return %c0_i32, %c0_i32_0 : i32, i32
  }
  func.func @transform_3(%arg0: i32) -> (i32, i32) {
    %c0_i32 = arith.constant 0 : i32
    %c0_i32_0 = arith.constant 0 : i32
    %c0_i32_1 = arith.constant 0 : i32
    return %c0_i32, %c0_i32_0 : i32, i32
  }
  func.func @transform_4(%arg0: i32) -> (i32, i32) {
    %c0_i32 = arith.constant 0 : i32
    %c0_i32_0 = arith.constant 0 : i32
    %c0_i32_1 = arith.constant 0 : i32
    return %c0_i32, %c0_i32_0 : i32, i32
  }
  func.func @transform_5(%arg0: i32) -> (i32, i32) {
    %c0_i32 = arith.constant 0 : i32
    %c0_i32_0 = arith.constant 0 : i32
    %c0_i32_1 = arith.constant 0 : i32
    return %c0_i32, %c0_i32_0 : i32, i32
  }
  func.func @transform_6(%arg0: i32) -> (i32, i32) {
    %c0_i32 = arith.constant 0 : i32
    %c0_i32_0 = arith.constant 0 : i32
    %c0_i32_1 = arith.constant 0 : i32
    return %c0_i32, %c0_i32_0 : i32, i32
  }
  func.func @transform_7(%arg0: i32) -> (i32, i32) {
    %c0_i32 = arith.constant 0 : i32
    %c0_i32_0 = arith.constant 0 : i32
    %c0_i32_1 = arith.constant 0 : i32
    return %c0_i32, %c0_i32_0 : i32, i32
  }
  func.func @transform_8(%arg0: i32) -> (i32, i32) {
    %c0_i32 = arith.constant 0 : i32
    %c0_i32_0 = arith.constant 0 : i32
    %c0_i32_1 = arith.constant 0 : i32
    return %c0_i32, %c0_i32_0 : i32, i32
  }
  func.func @transform_9(%arg0: i32) -> (i32, i32) {
    %c0_i32 = arith.constant 0 : i32
    %c0_i32_0 = arith.constant 0 : i32
    %c0_i32_1 = arith.constant 0 : i32
    return %c0_i32, %c0_i32_0 : i32, i32
  }
  func.func @transform_10(%arg0: i32) -> (i32, i32) {
    %c0_i32 = arith.constant 0 : i32
    %c0_i32_0 = arith.constant 0 : i32
    %c0_i32_1 = arith.constant 0 : i32
    return %c0_i32, %c0_i32_0 : i32, i32
  }
  func.func @transform_11(%arg0: i32) -> (i32, i32) {
    %c0_i32 = arith.constant 0 : i32
    %c0_i32_0 = arith.constant 0 : i32
    %c0_i32_1 = arith.constant 0 : i32
    return %c0_i32, %c0_i32_0 : i32, i32
  }
  func.func @transform_12(%arg0: i32) -> (i32, i32) {
    %c0_i32 = arith.constant 0 : i32
    %c0_i32_0 = arith.constant 0 : i32
    return %arg0, %c0_i32 : i32, i32
  }
}

</mosaic_0001>

<llo_original>
// kernel: tpu_custom_call.1
$region0: #{tpu_custom_call.1}
  #allocation0 [shape = 'u32[]', space=smem, size = 0x4, offset = 0x4, fixed_abs, tag = 'smem constant byte address 0x4 - core index']
  #allocation1 [shape = 'u32[72,128]{1,0:T(1,128)}', space=vmem, size = 0x9000, scoped, tag = 'internal scratch']
  %s0 = inlined_call_operand.vmem [shape: f32[32,4], index: 0, kind: input, shape index: {}]
  %s1 = inlined_call_operand.vmem [shape: f32[16,1], index: 1, kind: input, shape index: {}]
  %s2 = inlined_call_operand.vmem [shape: f32[64,32], index: 2, kind: input, shape index: {}]
  %s3 = inlined_call_operand.vmem [shape: f32[32,64], index: 3, kind: input, shape index: {}]
  %s4 = inlined_call_operand.vmem [shape: f32[10,64], index: 4, kind: input, shape index: {}]
  %s5 = inlined_call_operand.vmem [shape: f32[65,64], index: 5, kind: input, shape index: {}]
  %s6 = inlined_call_operand.vmem [shape: f32[65,5], index: 6, kind: input, shape index: {}]
  %s7 = inlined_call_operand.vmem [shape: f32[16,10], index: 7, kind: input, shape index: {}]
  %s8 = inlined_call_operand.vmem [shape: f32[16,5], index: 8, kind: input, shape index: {}]
  %s9 = inlined_call_operand.vmem [shape: f32[7,64], index: 9, kind: input, shape index: {}]
  %s10 = inlined_call_operand.vmem [shape: f32[65,64], index: 10, kind: input, shape index: {}]
  %s11 = inlined_call_operand.vmem [shape: f32[1,65], index: 11, kind: input, shape index: {}]
  %s12 = inlined_call_operand.vmem [shape: f32[16,1], index: 12, kind: output, shape index: {}]
  %s13 = sld [smem:[#allocation0]]
  $region58: #{tpu_custom_call.1} parent=0
    _
  %s15 = ssub.s32 1, %s13
  %s16 = scalar_select 0, %s15, %s13
  // Predicated region
  $region2: #{tpu_custom_call.1} parent=0 // pred_check
    _
  $region3: #{tpu_custom_call.1} parent=0 // pred_check_branch
    %18 = sbr.rel (0) target = $region5
  $region4: #{tpu_custom_call.1} parent=0 // pred_region
    _
  $region5: #{tpu_custom_call.1} parent=0 // pred_fallthru
    _
  // Predicated region
  $region6: #{tpu_custom_call.1} parent=0 // pred_check
    _
  $region7: #{tpu_custom_call.1} parent=0 // pred_check_branch
    %20 = sbr.rel (0) target = $region9
  $region8: #{tpu_custom_call.1} parent=0 // pred_region
    _
  $region9: #{tpu_custom_call.1} parent=0 // pred_fallthru
    _
  // Predicated region
  $region10: #{tpu_custom_call.1} parent=0 // pred_check
    _
  $region11: #{tpu_custom_call.1} parent=0 // pred_check_branch
    %22 = sbr.rel (0) target = $region13
  $region12: #{tpu_custom_call.1} parent=0 // pred_region
    _
  $region13: #{tpu_custom_call.1} parent=0 // pred_fallthru
    _
  // Predicated region
  $region14: #{tpu_custom_call.1} parent=0 // pred_check
    _
  $region15: #{tpu_custom_call.1} parent=0 // pred_check_branch
    %24 = sbr.rel (0) target = $region17
  $region16: #{tpu_custom_call.1} parent=0 // pred_region
    _
  $region17: #{tpu_custom_call.1} parent=0 // pred_fallthru
    _
  // Predicated region
  $region18: #{tpu_custom_call.1} parent=0 // pred_check
    _
  $region19: #{tpu_custom_call.1} parent=0 // pred_check_branch
    %26 = sbr.rel (0) target = $region21
  $region20: #{tpu_custom_call.1} parent=0 // pred_region
    _
  $region21: #{tpu_custom_call.1} parent=0 // pred_fallthru
    _
  // Predicated region
  $region22: #{tpu_custom_call.1} parent=0 // pred_check
    _
  $region23: #{tpu_custom_call.1} parent=0 // pred_check_branch
    %28 = sbr.rel (0) target = $region25
  $region24: #{tpu_custom_call.1} parent=0 // pred_region
    _
  $region25: #{tpu_custom_call.1} parent=0 // pred_fallthru
    _
  // Predicated region
  $region26: #{tpu_custom_call.1} parent=0 // pred_check
    _
  $region27: #{tpu_custom_call.1} parent=0 // pred_check_branch
    %30 = sbr.rel (0) target = $region29
  $region28: #{tpu_custom_call.1} parent=0 // pred_region
    _
  $region29: #{tpu_custom_call.1} parent=0 // pred_fallthru
    _
  // Predicated region
  $region30: #{tpu_custom_call.1} parent=0 // pred_check
    _
  $region31: #{tpu_custom_call.1} parent=0 // pred_check_branch
    %32 = sbr.rel (0) target = $region33
  $region32: #{tpu_custom_call.1} parent=0 // pred_region
    _
  $region33: #{tpu_custom_call.1} parent=0 // pred_fallthru
    _
  // Predicated region
  $region34: #{tpu_custom_call.1} parent=0 // pred_check
    _
  $region35: #{tpu_custom_call.1} parent=0 // pred_check_branch
    %34 = sbr.rel (0) target = $region37
  $region36: #{tpu_custom_call.1} parent=0 // pred_region
    _
  $region37: #{tpu_custom_call.1} parent=0 // pred_fallthru
    _
  // Predicated region
  $region38: #{tpu_custom_call.1} parent=0 // pred_check
    _
  $region39: #{tpu_custom_call.1} parent=0 // pred_check_branch
    %36 = sbr.rel (0) target = $region41
  $region40: #{tpu_custom_call.1} parent=0 // pred_region
    _
  $region41: #{tpu_custom_call.1} parent=0 // pred_fallthru
    _
  // Predicated region
  $region42: #{tpu_custom_call.1} parent=0 // pred_check
    _
  $region43: #{tpu_custom_call.1} parent=0 // pred_check_branch
    %38 = sbr.rel (0) target = $region45
  $region44: #{tpu_custom_call.1} parent=0 // pred_region
    _
  $region45: #{tpu_custom_call.1} parent=0 // pred_fallthru
    _
  // Predicated region
  $region46: #{tpu_custom_call.1} parent=0 // pred_check
    _
  $region47: #{tpu_custom_call.1} parent=0 // pred_check_branch
    %40 = sbr.rel (0) target = $region49
  $region48: #{tpu_custom_call.1} parent=0 // pred_region
    _
  $region49: #{tpu_custom_call.1} parent=0 // pred_fallthru
    _
  %v41 = vld [vmem:[%s0] sm:$0xff]
  %v42 = vld [vmem:[%s0 + $0x8] sm:$0xff]
  %v43 = vld [vmem:[%s0 + $0x10] sm:$0xff]
  %v44 = vld [vmem:[%s0 + $0x18] sm:$0xff]
  %v45 = vld [vmem:[%s1] sm:$0xff]
  %v46 = vld [vmem:[%s1 + $0x8] sm:$0xff]
  %v47 = vld [vmem:[%s2] sm:$0xff]
  %v48 = vld [vmem:[%s2 + $0x8] sm:$0xff]
  %v49 = vld [vmem:[%s2 + $0x10] sm:$0xff]
  %v50 = vld [vmem:[%s2 + $0x18] sm:$0xff]
  %v51 = vld [vmem:[%s2 + $0x20] sm:$0xff]
  %v52 = vld [vmem:[%s2 + $0x28] sm:$0xff]
  %v53 = vld [vmem:[%s2 + $0x30] sm:$0xff]
  %v54 = vld [vmem:[%s2 + $0x38] sm:$0xff]
  %v55 = vld [vmem:[%s3] sm:$0xff]
  %v56 = vld [vmem:[%s3 + $0x8] sm:$0xff]
  %v57 = vld [vmem:[%s3 + $0x10] sm:$0xff]
  %v58 = vld [vmem:[%s3 + $0x18] sm:$0xff]
  %v59 = vld [vmem:[%s4] sm:$0xff]
  %v60 = vld [vmem:[%s4 + $0x8] sm:$0x3]
  %v61 = vld [vmem:[%s5] sm:$0xff]
  %v62 = vld [vmem:[%s5 + $0x8] sm:$0xff]
  %v63 = vld [vmem:[%s5 + $0x10] sm:$0xff]
  %v64 = vld [vmem:[%s5 + $0x18] sm:$0xff]
  %v65 = vld [vmem:[%s5 + $0x20] sm:$0xff]
  %v66 = vld [vmem:[%s5 + $0x28] sm:$0xff]
  %v67 = vld [vmem:[%s5 + $0x30] sm:$0xff]
  %v68 = vld [vmem:[%s5 + $0x38] sm:$0xff]
  %v69 = vld [vmem:[%s5 + $0x40] sm:$0x1]
  %v70 = vld [vmem:[%s6] sm:$0xff]
  %v71 = vld [vmem:[%s6 + $0x8] sm:$0xff]
  %v72 = vld [vmem:[%s6 + $0x10] sm:$0xff]
  %v73 = vld [vmem:[%s6 + $0x18] sm:$0xff]
  %v74 = vld [vmem:[%s6 + $0x20] sm:$0xff]
  %v75 = vld [vmem:[%s6 + $0x28] sm:$0xff]
  %v76 = vld [vmem:[%s6 + $0x30] sm:$0xff]
  %v77 = vld [vmem:[%s6 + $0x38] sm:$0xff]
  %v78 = vld [vmem:[%s6 + $0x40] sm:$0x1]
  %v79 = vld [vmem:[%s7] sm:$0xff]
  %v80 = vld [vmem:[%s7 + $0x8] sm:$0xff]
  %v81 = vld [vmem:[%s8] sm:$0xff]
  %v82 = vld [vmem:[%s8 + $0x8] sm:$0xff]
  %v83 = vld [vmem:[%s9] sm:$0x7f]
  %v84 = vld [vmem:[%s10] sm:$0xff]
  %v85 = vld [vmem:[%s10 + $0x8] sm:$0xff]
  %v86 = vld [vmem:[%s10 + $0x10] sm:$0xff]
  %v87 = vld [vmem:[%s10 + $0x18] sm:$0xff]
  %v88 = vld [vmem:[%s10 + $0x20] sm:$0xff]
  %v89 = vld [vmem:[%s10 + $0x28] sm:$0xff]
  %v90 = vld [vmem:[%s10 + $0x30] sm:$0xff]
  %v91 = vld [vmem:[%s10 + $0x38] sm:$0xff]
  %v92 = vld [vmem:[%s10 + $0x40] sm:$0x1]
  %v93 = vld [vmem:[%s11] sm:$0x1]
  %v94 = vperm.slane %v60, 1
  %vm97 = vcmask 1042432
  %v98 = vrot.slane %v59, 5
  %v99 = vrot.slane %v60, 5
  %v100 = vsel %vm97, %v98, %v99
  %vm101 = vcmask 31744
  %v103 = vsel %vm101, %v41, 0
  %v106 = vsel %vm101, %v42, 0
  %v109 = vsel %vm101, %v43, 0
  %v112 = vsel %vm101, %v44, 0
  %vm114 = vcmask 1043456
  %v115 = vsel %vm114, %v100, 0
  %117 = vmatpush.msra.mxu0 0.0
  %118 = vmatpush.msra.mxu0 0.0
  %119 = vmatpush.msra.mxu0 0.0
  %120 = vmatpush.msra.mxu0 0.0
  %121 = vmatpush.msra.mxu0 0.0
  %122 = vmatpush.msra.mxu0 0.0
  %123 = vmatpush.msra.mxu0 0.0
  %124 = vmatpush.msra.mxu0 0.0
  %125 = vmatpush.msra.mxu0 0.0
  %126 = vmatpush.msra.mxu0 0.0
  %127 = vmatpush.msra.mxu0 0.0
  %128 = vmatpush.msra.mxu0 0.0
  %129 = vmatpush.msra.mxu0 0.0
  %130 = vmatpush.msra.mxu0 0.0
  %131 = vmatpush.msra.mxu0 0.0
  %132 = vmatpush.msra.mxu0 %v115
  %133 = vmatmul.f32.gmra.mxu0 %v103
  %v134 = vpop.f32.mrf.mxu0
  %v135 = vadd.f32 %v94, %v134
  %136 = vmatmul.f32.gmra.mxu0 %v106
  %v137 = vpop.f32.mrf.mxu0
  %v138 = vadd.f32 %v94, %v137
  %139 = vmatmul.f32.gmra.mxu0 %v109
  %v140 = vpop.f32.mrf.mxu0
  %v141 = vadd.f32 %v94, %v140
  %142 = vmatmul.f32.gmra.mxu0 %v112
  %v143 = vpop.f32.mrf.mxu0
  %v144 = vadd.f32 %v94, %v143
  %145 = vdwg.mxu0
  %vm146 = vcmask 261120
  %v148 = vsel %vm146, %v47, 0
  %v151 = vsel %vm146, %v48, 0
  %v154 = vsel %vm146, %v49, 0
  %v157 = vsel %vm146, %v50, 0
  %v160 = vsel %vm146, %v51, 0
  %v163 = vsel %vm146, %v52, 0
  %v166 = vsel %vm146, %v53, 0
  %v169 = vsel %vm146, %v54, 0
  %171 = vmatpush.msra.mxu0 0.0
  %172 = vmatpush.msra.mxu0 0.0
  %173 = vmatpush.msra.mxu0 0.0
  %174 = vmatpush.msra.mxu0 0.0
  %175 = vmatpush.msra.mxu0 0.0
  %176 = vmatpush.msra.mxu0 0.0
  %177 = vmatpush.msra.mxu0 0.0
  %178 = vmatpush.msra.mxu0 0.0
  %179 = vmatpush.msra.mxu0 0.0
  %180 = vmatpush.msra.mxu0 0.0
  %181 = vmatpush.msra.mxu0 0.0
  %182 = vmatpush.msra.mxu0 0.0
  %183 = vmatpush.msra.mxu0 0.0
  %184 = vmatpush.msra.mxu0 0.0
  %185 = vmatpush.msra.mxu0 0.0
  %186 = vmatpush.msra.mxu0 0.0
  %v187 = vand.u32 %v148, 4294901760
  %v188 = vsub.f32 %v148, %v187
  %v189 = vand.u32 %v188, 4294901760
  %v190 = vsub.f32 %v188, %v189
  %v191 = vand.u32 %v190, 4294901760
  %192 = vmatmul.f32.gmra.mxu0 %v191
  %v193 = vpop.f32.mrf.mxu0
  %v194 = vadd.f32 0.0, %v193
  %v195 = vand.u32 %v151, 4294901760
  %v196 = vsub.f32 %v151, %v195
  %v197 = vand.u32 %v196, 4294901760
  %v198 = vsub.f32 %v196, %v197
  %v199 = vand.u32 %v198, 4294901760
  %200 = vmatmul.f32.gmra.mxu0 %v199
  %v201 = vpop.f32.mrf.mxu0
  %v202 = vadd.f32 0.0, %v201
  %v203 = vand.u32 %v154, 4294901760
  %v204 = vsub.f32 %v154, %v203
  %v205 = vand.u32 %v204, 4294901760
  %v206 = vsub.f32 %v204, %v205
  %v207 = vand.u32 %v206, 4294901760
  %208 = vmatmul.f32.gmra.mxu0 %v207
  %v209 = vpop.f32.mrf.mxu0
  %v210 = vadd.f32 0.0, %v209
  %v211 = vand.u32 %v157, 4294901760
  %v212 = vsub.f32 %v157, %v211
  %v213 = vand.u32 %v212, 4294901760
  %v214 = vsub.f32 %v212, %v213
  %v215 = vand.u32 %v214, 4294901760
  %216 = vmatmul.f32.gmra.mxu0 %v215
  %v217 = vpop.f32.mrf.mxu0
  %v218 = vadd.f32 0.0, %v217
  %v219 = vand.u32 %v160, 4294901760
  %v220 = vsub.f32 %v160, %v219
  %v221 = vand.u32 %v220, 4294901760
  %v222 = vsub.f32 %v220, %v221
  %v223 = vand.u32 %v222, 4294901760
  %224 = vmatmul.f32.gmra.mxu0 %v223
  %v225 = vpop.f32.mrf.mxu0
  %v226 = vadd.f32 0.0, %v225
  %v227 = vand.u32 %v163, 4294901760
  %v228 = vsub.f32 %v163, %v227
  %v229 = vand.u32 %v228, 4294901760
  %v230 = vsub.f32 %v228, %v229
  %v231 = vand.u32 %v230, 4294901760
  %232 = vmatmul.f32.gmra.mxu0 %v231
  %v233 = vpop.f32.mrf.mxu0
  %v234 = vadd.f32 0.0, %v233
  %v235 = vand.u32 %v166, 4294901760
  %v236 = vsub.f32 %v166, %v235
  %v237 = vand.u32 %v236, 4294901760
  %v238 = vsub.f32 %v236, %v237
  %v239 = vand.u32 %v238, 4294901760
  %240 = vmatmul.f32.gmra.mxu0 %v239
  %v241 = vpop.f32.mrf.mxu0
  %v242 = vadd.f32 0.0, %v241
  %v243 = vand.u32 %v169, 4294901760
  %v244 = vsub.f32 %v169, %v243
  %v245 = vand.u32 %v244, 4294901760
  %v246 = vsub.f32 %v244, %v245
  %v247 = vand.u32 %v246, 4294901760
  %248 = vmatmul.f32.gmra.mxu0 %v247
  %v249 = vpop.f32.mrf.mxu0
  %v250 = vadd.f32 0.0, %v249
  %251 = vdwg.mxu0
  %252 = vmatpush.msra.mxu0 0.0
  %253 = vmatpush.msra.mxu0 0.0
  %254 = vmatpush.msra.mxu0 0.0
  %255 = vmatpush.msra.mxu0 0.0
  %256 = vmatpush.msra.mxu0 0.0
  %257 = vmatpush.msra.mxu0 0.0
  %258 = vmatpush.msra.mxu0 0.0
  %259 = vmatpush.msra.mxu0 0.0
  %260 = vmatpush.msra.mxu0 0.0
  %261 = vmatpush.msra.mxu0 0.0
  %262 = vmatpush.msra.mxu0 0.0
  %263 = vmatpush.msra.mxu0 0.0
  %264 = vmatpush.msra.mxu0 0.0
  %265 = vmatpush.msra.mxu0 0.0
  %266 = vmatpush.msra.mxu0 0.0
  %267 = vmatpush.msra.mxu0 0.0
  %v268 = vand.u32 %v148, 4294901760
  %269 = vmatmul.f32.gmra.mxu0 %v268
  %v270 = vpop.f32.mrf.mxu0
  %v271 = vadd.f32 %v194, %v270
  %v272 = vand.u32 %v151, 4294901760
  %273 = vmatmul.f32.gmra.mxu0 %v272
  %v274 = vpop.f32.mrf.mxu0
  %v275 = vadd.f32 %v202, %v274
  %v276 = vand.u32 %v154, 4294901760
  %277 = vmatmul.f32.gmra.mxu0 %v276
  %v278 = vpop.f32.mrf.mxu0
  %v279 = vadd.f32 %v210, %v278
  %v280 = vand.u32 %v157, 4294901760
  %281 = vmatmul.f32.gmra.mxu0 %v280
  %v282 = vpop.f32.mrf.mxu0
  %v283 = vadd.f32 %v218, %v282
  %v284 = vand.u32 %v160, 4294901760
  %285 = vmatmul.f32.gmra.mxu0 %v284
  %v286 = vpop.f32.mrf.mxu0
  %v287 = vadd.f32 %v226, %v286
  %v288 = vand.u32 %v163, 4294901760
  %289 = vmatmul.f32.gmra.mxu0 %v288
  %v290 = vpop.f32.mrf.mxu0
  %v291 = vadd.f32 %v234, %v290
  %v292 = vand.u32 %v166, 4294901760
  %293 = vmatmul.f32.gmra.mxu0 %v292
  %v294 = vpop.f32.mrf.mxu0
  %v295 = vadd.f32 %v242, %v294
  %v296 = vand.u32 %v169, 4294901760
  %297 = vmatmul.f32.gmra.mxu0 %v296
  %v298 = vpop.f32.mrf.mxu0
  %v299 = vadd.f32 %v250, %v298
  %300 = vdwg.mxu0
  %301 = vmatpush.msra.mxu0 0.0
  %302 = vmatpush.msra.mxu0 0.0
  %303 = vmatpush.msra.mxu0 0.0
  %304 = vmatpush.msra.mxu0 0.0
  %305 = vmatpush.msra.mxu0 0.0
  %306 = vmatpush.msra.mxu0 0.0
  %307 = vmatpush.msra.mxu0 0.0
  %308 = vmatpush.msra.mxu0 0.0
  %309 = vmatpush.msra.mxu0 0.0
  %310 = vmatpush.msra.mxu0 0.0
  %311 = vmatpush.msra.mxu0 0.0
  %312 = vmatpush.msra.mxu0 0.0
  %313 = vmatpush.msra.mxu0 0.0
  %314 = vmatpush.msra.mxu0 0.0
  %315 = vmatpush.msra.mxu0 0.0
  %316 = vmatpush.msra.mxu0 0.0
  %v317 = vand.u32 %v148, 4294901760
  %v318 = vsub.f32 %v148, %v317
  %319 = vmatmul.f32.gmra.mxu0 %v318
  %v320 = vpop.f32.mrf.mxu0
  %v321 = vadd.f32 %v271, %v320
  %v322 = vand.u32 %v151, 4294901760
  %v323 = vsub.f32 %v151, %v322
  %324 = vmatmul.f32.gmra.mxu0 %v323
  %v325 = vpop.f32.mrf.mxu0
  %v326 = vadd.f32 %v275, %v325
  %v327 = vand.u32 %v154, 4294901760
  %v328 = vsub.f32 %v154, %v327
  %329 = vmatmul.f32.gmra.mxu0 %v328
  %v330 = vpop.f32.mrf.mxu0
  %v331 = vadd.f32 %v279, %v330
  %v332 = vand.u32 %v157, 4294901760
  %v333 = vsub.f32 %v157, %v332
  %334 = vmatmul.f32.gmra.mxu0 %v333
  %v335 = vpop.f32.mrf.mxu0
  %v336 = vadd.f32 %v283, %v335
  %v337 = vand.u32 %v160, 4294901760
  %v338 = vsub.f32 %v160, %v337
  %339 = vmatmul.f32.gmra.mxu0 %v338
  %v340 = vpop.f32.mrf.mxu0
  %v341 = vadd.f32 %v287, %v340
  %v342 = vand.u32 %v163, 4294901760
  %v343 = vsub.f32 %v163, %v342
  %344 = vmatmul.f32.gmra.mxu0 %v343
  %v345 = vpop.f32.mrf.mxu0
  %v346 = vadd.f32 %v291, %v345
  %v347 = vand.u32 %v166, 4294901760
  %v348 = vsub.f32 %v166, %v347
  %349 = vmatmul.f32.gmra.mxu0 %v348
  %v350 = vpop.f32.mrf.mxu0
  %v351 = vadd.f32 %v295, %v350
  %v352 = vand.u32 %v169, 4294901760
  %v353 = vsub.f32 %v169, %v352
  %354 = vmatmul.f32.gmra.mxu0 %v353
  %v355 = vpop.f32.mrf.mxu0
  %v356 = vadd.f32 %v299, %v355
  %357 = vdwg.mxu0
  %358 = vmatpush.msra.mxu0 0.0
  %359 = vmatpush.msra.mxu0 0.0
  %360 = vmatpush.msra.mxu0 0.0
  %361 = vmatpush.msra.mxu0 0.0
  %362 = vmatpush.msra.mxu0 0.0
  %363 = vmatpush.msra.mxu0 0.0
  %364 = vmatpush.msra.mxu0 0.0
  %365 = vmatpush.msra.mxu0 0.0
  %366 = vmatpush.msra.mxu0 0.0
  %367 = vmatpush.msra.mxu0 0.0
  %368 = vmatpush.msra.mxu0 0.0
  %369 = vmatpush.msra.mxu0 0.0
  %370 = vmatpush.msra.mxu0 0.0
  %371 = vmatpush.msra.mxu0 0.0
  %372 = vmatpush.msra.mxu0 0.0
  %373 = vmatpush.msra.mxu0 0.0
  %v374 = vand.u32 %v148, 4294901760
  %v375 = vsub.f32 %v148, %v374
  %v376 = vand.u32 %v375, 4294901760
  %377 = vmatmul.f32.gmra.mxu0 %v376
  %v378 = vpop.f32.mrf.mxu0
  %v379 = vadd.f32 %v321, %v378
  %v380 = vand.u32 %v151, 4294901760
  %v381 = vsub.f32 %v151, %v380
  %v382 = vand.u32 %v381, 4294901760
  %383 = vmatmul.f32.gmra.mxu0 %v382
  %v384 = vpop.f32.mrf.mxu0
  %v385 = vadd.f32 %v326, %v384
  %v386 = vand.u32 %v154, 4294901760
  %v387 = vsub.f32 %v154, %v386
  %v388 = vand.u32 %v387, 4294901760
  %389 = vmatmul.f32.gmra.mxu0 %v388
  %v390 = vpop.f32.mrf.mxu0
  %v391 = vadd.f32 %v331, %v390
  %v392 = vand.u32 %v157, 4294901760
  %v393 = vsub.f32 %v157, %v392
  %v394 = vand.u32 %v393, 4294901760
  %395 = vmatmul.f32.gmra.mxu0 %v394
  %v396 = vpop.f32.mrf.mxu0
  %v397 = vadd.f32 %v336, %v396
  %v398 = vand.u32 %v160, 4294901760
  %v399 = vsub.f32 %v160, %v398
  %v400 = vand.u32 %v399, 4294901760
  %401 = vmatmul.f32.gmra.mxu0 %v400
  %v402 = vpop.f32.mrf.mxu0
  %v403 = vadd.f32 %v341, %v402
  %v404 = vand.u32 %v163, 4294901760
  %v405 = vsub.f32 %v163, %v404
  %v406 = vand.u32 %v405, 4294901760
  %407 = vmatmul.f32.gmra.mxu0 %v406
  %v408 = vpop.f32.mrf.mxu0
  %v409 = vadd.f32 %v346, %v408
  %v410 = vand.u32 %v166, 4294901760
  %v411 = vsub.f32 %v166, %v410
  %v412 = vand.u32 %v411, 4294901760
  %413 = vmatmul.f32.gmra.mxu0 %v412
  %v414 = vpop.f32.mrf.mxu0
  %v415 = vadd.f32 %v351, %v414
  %v416 = vand.u32 %v169, 4294901760
  %v417 = vsub.f32 %v169, %v416
  %v418 = vand.u32 %v417, 4294901760
  %419 = vmatmul.f32.gmra.mxu0 %v418
  %v420 = vpop.f32.mrf.mxu0
  %v421 = vadd.f32 %v356, %v420
  %422 = vdwg.mxu0
  %423 = vmatpush.msra.mxu0 0.0
  %424 = vmatpush.msra.mxu0 0.0
  %425 = vmatpush.msra.mxu0 0.0
  %426 = vmatpush.msra.mxu0 0.0
  %427 = vmatpush.msra.mxu0 0.0
  %428 = vmatpush.msra.mxu0 0.0
  %429 = vmatpush.msra.mxu0 0.0
  %430 = vmatpush.msra.mxu0 0.0
  %431 = vmatpush.msra.mxu0 0.0
  %432 = vmatpush.msra.mxu0 0.0
  %433 = vmatpush.msra.mxu0 0.0
  %434 = vmatpush.msra.mxu0 0.0
  %435 = vmatpush.msra.mxu0 0.0
  %436 = vmatpush.msra.mxu0 0.0
  %437 = vmatpush.msra.mxu0 0.0
  %438 = vmatpush.msra.mxu0 0.0
  %v439 = vand.u32 %v148, 4294901760
  %440 = vmatmul.f32.gmra.mxu0 %v439
  %v441 = vpop.f32.mrf.mxu0
  %v442 = vadd.f32 %v379, %v441
  %v443 = vand.u32 %v151, 4294901760
  %444 = vmatmul.f32.gmra.mxu0 %v443
  %v445 = vpop.f32.mrf.mxu0
  %v446 = vadd.f32 %v385, %v445
  %v447 = vand.u32 %v154, 4294901760
  %448 = vmatmul.f32.gmra.mxu0 %v447
  %v449 = vpop.f32.mrf.mxu0
  %v450 = vadd.f32 %v391, %v449
  %v451 = vand.u32 %v157, 4294901760
  %452 = vmatmul.f32.gmra.mxu0 %v451
  %v453 = vpop.f32.mrf.mxu0
  %v454 = vadd.f32 %v397, %v453
  %v455 = vand.u32 %v160, 4294901760
  %456 = vmatmul.f32.gmra.mxu0 %v455
  %v457 = vpop.f32.mrf.mxu0
  %v458 = vadd.f32 %v403, %v457
  %v459 = vand.u32 %v163, 4294901760
  %460 = vmatmul.f32.gmra.mxu0 %v459
  %v461 = vpop.f32.mrf.mxu0
  %v462 = vadd.f32 %v409, %v461
  %v463 = vand.u32 %v166, 4294901760
  %464 = vmatmul.f32.gmra.mxu0 %v463
  %v465 = vpop.f32.mrf.mxu0
  %v466 = vadd.f32 %v415, %v465
  %v467 = vand.u32 %v169, 4294901760
  %468 = vmatmul.f32.gmra.mxu0 %v467
  %v469 = vpop.f32.mrf.mxu0
  %v470 = vadd.f32 %v421, %v469
  %471 = vdwg.mxu0
  %472 = vmatpush.msra.mxu0 0.0
  %473 = vmatpush.msra.mxu0 0.0
  %474 = vmatpush.msra.mxu0 0.0
  %475 = vmatpush.msra.mxu0 0.0
  %476 = vmatpush.msra.mxu0 0.0
  %477 = vmatpush.msra.mxu0 0.0
  %478 = vmatpush.msra.mxu0 0.0
  %479 = vmatpush.msra.mxu0 0.0
  %480 = vmatpush.msra.mxu0 0.0
  %481 = vmatpush.msra.mxu0 0.0
  %482 = vmatpush.msra.mxu0 0.0
  %483 = vmatpush.msra.mxu0 0.0
  %484 = vmatpush.msra.mxu0 0.0
  %485 = vmatpush.msra.mxu0 0.0
  %486 = vmatpush.msra.mxu0 0.0
  %487 = vmatpush.msra.mxu0 0.0
  %v488 = vand.u32 %v148, 4294901760
  %489 = vmatmul.f32.gmra.mxu0 %v488
  %v490 = vpop.f32.mrf.mxu0
  %v491 = vadd.f32 %v442, %v490
  %v492 = vand.u32 %v151, 4294901760
  %493 = vmatmul.f32.gmra.mxu0 %v492
  %v494 = vpop.f32.mrf.mxu0
  %v495 = vadd.f32 %v446, %v494
  %v496 = vand.u32 %v154, 4294901760
  %497 = vmatmul.f32.gmra.mxu0 %v496
  %v498 = vpop.f32.mrf.mxu0
  %v499 = vadd.f32 %v450, %v498
  %v500 = vand.u32 %v157, 4294901760
  %501 = vmatmul.f32.gmra.mxu0 %v500
  %v502 = vpop.f32.mrf.mxu0
  %v503 = vadd.f32 %v454, %v502
  %v504 = vand.u32 %v160, 4294901760
  %505 = vmatmul.f32.gmra.mxu0 %v504
  %v506 = vpop.f32.mrf.mxu0
  %v507 = vadd.f32 %v458, %v506
  %v508 = vand.u32 %v163, 4294901760
  %509 = vmatmul.f32.gmra.mxu0 %v508
  %v510 = vpop.f32.mrf.mxu0
  %v511 = vadd.f32 %v462, %v510
  %v512 = vand.u32 %v166, 4294901760
  %513 = vmatmul.f32.gmra.mxu0 %v512
  %v514 = vpop.f32.mrf.mxu0
  %v515 = vadd.f32 %v466, %v514
  %v516 = vand.u32 %v169, 4294901760
  %517 = vmatmul.f32.gmra.mxu0 %v516
  %v518 = vpop.f32.mrf.mxu0
  %v519 = vadd.f32 %v470, %v518
  %520 = vdwg.mxu0
  %vm521 = vcmask 39936
  %v523 = vsel %vm521, %v491, 0
  %v526 = vsel %vm521, %v495, 0
  %v529 = vsel %vm521, %v499, 0
  %v532 = vsel %vm521, %v503, 0
  %v535 = vsel %vm521, %v507, 0
  %v538 = vsel %vm521, %v511, 0
  %v541 = vsel %vm521, %v515, 0
  %v544 = vsel %vm521, %v519, 0
  %vm546 = vcmask 1044480
  %v547 = vsel %vm546, %v59, 0
  %549 = vmatpush.msra.mxu0 0.0
  %550 = vmatpush.msra.mxu0 0.0
  %551 = vmatpush.msra.mxu0 0.0
  %552 = vmatpush.msra.mxu0 0.0
  %553 = vmatpush.msra.mxu0 0.0
  %554 = vmatpush.msra.mxu0 0.0
  %555 = vmatpush.msra.mxu0 0.0
  %556 = vmatpush.msra.mxu0 0.0
  %557 = vmatpush.msra.mxu0 0.0
  %558 = vmatpush.msra.mxu0 0.0
  %559 = vmatpush.msra.mxu0 0.0
  %560 = vmatpush.msra.mxu0 0.0
  %561 = vmatpush.msra.mxu0 0.0
  %562 = vmatpush.msra.mxu0 0.0
  %563 = vmatpush.msra.mxu0 0.0
  %564 = vmatpush.msra.mxu0 %v547
  %565 = vmatmul.f32.gmra.mxu0 %v523
  %v566 = vpop.f32.mrf.mxu0
  %v567 = vadd.f32 %v135, %v566
  %568 = vmatmul.f32.gmra.mxu0 %v526
  %v569 = vpop.f32.mrf.mxu0
  %v570 = vadd.f32 %v138, %v569
  %571 = vmatmul.f32.gmra.mxu0 %v529
  %v572 = vpop.f32.mrf.mxu0
  %v573 = vadd.f32 %v141, %v572
  %574 = vmatmul.f32.gmra.mxu0 %v532
  %v575 = vpop.f32.mrf.mxu0
  %v576 = vadd.f32 %v144, %v575
  %577 = vmatmul.f32.gmra.mxu0 %v535
  %v578 = vpop.f32.mrf.mxu0
  %v579 = vadd.f32 %v135, %v578
  %580 = vmatmul.f32.gmra.mxu0 %v538
  %v581 = vpop.f32.mrf.mxu0
  %v582 = vadd.f32 %v138, %v581
  %583 = vmatmul.f32.gmra.mxu0 %v541
  %v584 = vpop.f32.mrf.mxu0
  %v585 = vadd.f32 %v141, %v584
  %586 = vmatmul.f32.gmra.mxu0 %v544
  %v587 = vpop.f32.mrf.mxu0
  %v588 = vadd.f32 %v144, %v587
  %589 = vdwg.mxu0
  %v590 = vmax.f32 %v567, 0.0
  %v591 = vmax.f32 %v570, 0.0
  %v592 = vmax.f32 %v573, 0.0
  %v593 = vmax.f32 %v576, 0.0
  %v594 = vmax.f32 %v579, 0.0
  %v595 = vmax.f32 %v582, 0.0
  %v596 = vmax.f32 %v585, 0.0
  %v597 = vmax.f32 %v588, 0.0
  %v598 = vperm.slane %v69, 0
  %vm599 = vcmask 523264
  %v601 = vsel %vm599, %v590, 0
  %v604 = vsel %vm599, %v591, 0
  %v607 = vsel %vm599, %v592, 0
  %v610 = vsel %vm599, %v593, 0
  %v613 = vsel %vm599, %v594, 0
  %v616 = vsel %vm599, %v595, 0
  %v619 = vsel %vm599, %v596, 0
  %v622 = vsel %vm599, %v597, 0
  %624 = vmatpush.msra.mxu0 0.0
  %625 = vmatpush.msra.mxu0 0.0
  %626 = vmatpush.msra.mxu0 0.0
  %627 = vmatpush.msra.mxu0 0.0
  %628 = vmatpush.msra.mxu0 0.0
  %629 = vmatpush.msra.mxu0 0.0
  %630 = vmatpush.msra.mxu0 0.0
  %631 = vmatpush.msra.mxu0 0.0
  %632 = vmatpush.msra.mxu0 %v68
  %633 = vmatpush.msra.mxu0 %v67
  %634 = vmatpush.msra.mxu0 %v66
  %635 = vmatpush.msra.mxu0 %v65
  %636 = vmatpush.msra.mxu0 %v64
  %637 = vmatpush.msra.mxu0 %v63
  %638 = vmatpush.msra.mxu0 %v62
  %639 = vmatpush.msra.mxu0 %v61
  %640 = vmatmul.f32.gmra.mxu0 %v601
  %v641 = vpop.f32.mrf.mxu0
  %v642 = vadd.f32 %v598, %v641
  %643 = vmatmul.f32.gmra.mxu0 %v604
  %v644 = vpop.f32.mrf.mxu0
  %v645 = vadd.f32 %v598, %v644
  %646 = vmatmul.f32.gmra.mxu0 %v607
  %v647 = vpop.f32.mrf.mxu0
  %v648 = vadd.f32 %v598, %v647
  %649 = vmatmul.f32.gmra.mxu0 %v610
  %v650 = vpop.f32.mrf.mxu0
  %v651 = vadd.f32 %v598, %v650
  %652 = vmatmul.f32.gmra.mxu0 %v613
  %v653 = vpop.f32.mrf.mxu0
  %v654 = vadd.f32 %v598, %v653
  %655 = vmatmul.f32.gmra.mxu0 %v616
  %v656 = vpop.f32.mrf.mxu0
  %v657 = vadd.f32 %v598, %v656
  %658 = vmatmul.f32.gmra.mxu0 %v619
  %v659 = vpop.f32.mrf.mxu0
  %v660 = vadd.f32 %v598, %v659
  %661 = vmatmul.f32.gmra.mxu0 %v622
  %v662 = vpop.f32.mrf.mxu0
  %v663 = vadd.f32 %v598, %v662
  %664 = vdwg.mxu0
  %v665 = vmax.f32 %v642, 0.0
  %v666 = vmax.f32 %v645, 0.0
  %v667 = vmax.f32 %v648, 0.0
  %v668 = vmax.f32 %v651, 0.0
  %v669 = vmax.f32 %v654, 0.0
  %v670 = vmax.f32 %v657, 0.0
  %v671 = vmax.f32 %v660, 0.0
  %v672 = vmax.f32 %v663, 0.0
  %v673 = vperm.slane %v78, 0
  %v675 = vsel %vm599, %v665, 0
  %v678 = vsel %vm599, %v666, 0
  %v681 = vsel %vm599, %v667, 0
  %v684 = vsel %vm599, %v668, 0
  %v687 = vsel %vm599, %v669, 0
  %v690 = vsel %vm599, %v670, 0
  %v693 = vsel %vm599, %v671, 0
  %v696 = vsel %vm599, %v672, 0
  %698 = vmatpush.msra.mxu0 0.0
  %699 = vmatpush.msra.mxu0 0.0
  %700 = vmatpush.msra.mxu0 0.0
  %701 = vmatpush.msra.mxu0 0.0
  %702 = vmatpush.msra.mxu0 0.0
  %703 = vmatpush.msra.mxu0 0.0
  %704 = vmatpush.msra.mxu0 0.0
  %705 = vmatpush.msra.mxu0 0.0
  %706 = vmatpush.msra.mxu0 %v77
  %707 = vmatpush.msra.mxu0 %v76
  %708 = vmatpush.msra.mxu0 %v75
  %709 = vmatpush.msra.mxu0 %v74
  %710 = vmatpush.msra.mxu0 %v73
  %711 = vmatpush.msra.mxu0 %v72
  %712 = vmatpush.msra.mxu0 %v71
  %713 = vmatpush.msra.mxu0 %v70
  %714 = vmatmul.f32.gmra.mxu0 %v675
  %v715 = vpop.f32.mrf.mxu0
  %v716 = vadd.f32 %v673, %v715
  %717 = vmatmul.f32.gmra.mxu0 %v678
  %v718 = vpop.f32.mrf.mxu0
  %v719 = vadd.f32 %v673, %v718
  %720 = vmatmul.f32.gmra.mxu0 %v681
  %v721 = vpop.f32.mrf.mxu0
  %v722 = vadd.f32 %v673, %v721
  %723 = vmatmul.f32.gmra.mxu0 %v684
  %v724 = vpop.f32.mrf.mxu0
  %v725 = vadd.f32 %v673, %v724
  %726 = vmatmul.f32.gmra.mxu0 %v687
  %v727 = vpop.f32.mrf.mxu0
  %v728 = vadd.f32 %v673, %v727
  %729 = vmatmul.f32.gmra.mxu0 %v690
  %v730 = vpop.f32.mrf.mxu0
  %v731 = vadd.f32 %v673, %v730
  %732 = vmatmul.f32.gmra.mxu0 %v693
  %v733 = vpop.f32.mrf.mxu0
  %v734 = vadd.f32 %v673, %v733
  %735 = vmatmul.f32.gmra.mxu0 %v696
  %v736 = vpop.f32.mrf.mxu0
  %v737 = vadd.f32 %v673, %v736
  %738 = vdwg.mxu0
  %v740 = vsel %vm599, %v55, 0
  %v743 = vsel %vm599, %v56, 0
  %v746 = vsel %vm599, %v57, 0
  %v749 = vsel %vm599, %v58, 0
  %751 = vmatpush.msra.mxu0 0.0
  %752 = vmatpush.msra.mxu0 0.0
  %753 = vmatpush.msra.mxu0 0.0
  %754 = vmatpush.msra.mxu0 0.0
  %755 = vmatpush.msra.mxu0 0.0
  %756 = vmatpush.msra.mxu0 0.0
  %757 = vmatpush.msra.mxu0 0.0
  %758 = vmatpush.msra.mxu0 0.0
  %v759 = vand.u32 %v737, 4294901760
  %760 = vmatpush.msra.mxu0 %v759
  %v761 = vand.u32 %v734, 4294901760
  %762 = vmatpush.msra.mxu0 %v761
  %v763 = vand.u32 %v731, 4294901760
  %764 = vmatpush.msra.mxu0 %v763
  %v765 = vand.u32 %v728, 4294901760
  %766 = vmatpush.msra.mxu0 %v765
  %v767 = vand.u32 %v725, 4294901760
  %768 = vmatpush.msra.mxu0 %v767
  %v769 = vand.u32 %v722, 4294901760
  %770 = vmatpush.msra.mxu0 %v769
  %v771 = vand.u32 %v719, 4294901760
  %772 = vmatpush.msra.mxu0 %v771
  %v773 = vand.u32 %v716, 4294901760
  %774 = vmatpush.msra.mxu0 %v773
  %v775 = vand.u32 %v740, 4294901760
  %v776 = vsub.f32 %v740, %v775
  %v777 = vand.u32 %v776, 4294901760
  %v778 = vsub.f32 %v776, %v777
  %v779 = vand.u32 %v778, 4294901760
  %780 = vmatmul.f32.gmra.mxu0 %v779
  %v781 = vpop.f32.mrf.mxu0
  %v782 = vadd.f32 0.0, %v781
  %v783 = vand.u32 %v743, 4294901760
  %v784 = vsub.f32 %v743, %v783
  %v785 = vand.u32 %v784, 4294901760
  %v786 = vsub.f32 %v784, %v785
  %v787 = vand.u32 %v786, 4294901760
  %788 = vmatmul.f32.gmra.mxu0 %v787
  %v789 = vpop.f32.mrf.mxu0
  %v790 = vadd.f32 0.0, %v789
  %v791 = vand.u32 %v746, 4294901760
  %v792 = vsub.f32 %v746, %v791
  %v793 = vand.u32 %v792, 4294901760
  %v794 = vsub.f32 %v792, %v793
  %v795 = vand.u32 %v794, 4294901760
  %796 = vmatmul.f32.gmra.mxu0 %v795
  %v797 = vpop.f32.mrf.mxu0
  %v798 = vadd.f32 0.0, %v797
  %v799 = vand.u32 %v749, 4294901760
  %v800 = vsub.f32 %v749, %v799
  %v801 = vand.u32 %v800, 4294901760
  %v802 = vsub.f32 %v800, %v801
  %v803 = vand.u32 %v802, 4294901760
  %804 = vmatmul.f32.gmra.mxu0 %v803
  %v805 = vpop.f32.mrf.mxu0
  %v806 = vadd.f32 0.0, %v805
  %807 = vdwg.mxu0
  %808 = vmatpush.msra.mxu0 0.0
  %809 = vmatpush.msra.mxu0 0.0
  %810 = vmatpush.msra.mxu0 0.0
  %811 = vmatpush.msra.mxu0 0.0
  %812 = vmatpush.msra.mxu0 0.0
  %813 = vmatpush.msra.mxu0 0.0
  %814 = vmatpush.msra.mxu0 0.0
  %815 = vmatpush.msra.mxu0 0.0
  %v816 = vand.u32 %v737, 4294901760
  %v817 = vsub.f32 %v737, %v816
  %v818 = vand.u32 %v817, 4294901760
  %v819 = vsub.f32 %v817, %v818
  %v820 = vand.u32 %v819, 4294901760
  %821 = vmatpush.msra.mxu0 %v820
  %v822 = vand.u32 %v734, 4294901760
  %v823 = vsub.f32 %v734, %v822
  %v824 = vand.u32 %v823, 4294901760
  %v825 = vsub.f32 %v823, %v824
  %v826 = vand.u32 %v825, 4294901760
  %827 = vmatpush.msra.mxu0 %v826
  %v828 = vand.u32 %v731, 4294901760
  %v829 = vsub.f32 %v731, %v828
  %v830 = vand.u32 %v829, 4294901760
  %v831 = vsub.f32 %v829, %v830
  %v832 = vand.u32 %v831, 4294901760
  %833 = vmatpush.msra.mxu0 %v832
  %v834 = vand.u32 %v728, 4294901760
  %v835 = vsub.f32 %v728, %v834
  %v836 = vand.u32 %v835, 4294901760
  %v837 = vsub.f32 %v835, %v836
  %v838 = vand.u32 %v837, 4294901760
  %839 = vmatpush.msra.mxu0 %v838
  %v840 = vand.u32 %v725, 4294901760
  %v841 = vsub.f32 %v725, %v840
  %v842 = vand.u32 %v841, 4294901760
  %v843 = vsub.f32 %v841, %v842
  %v844 = vand.u32 %v843, 4294901760
  %845 = vmatpush.msra.mxu0 %v844
  %v846 = vand.u32 %v722, 4294901760
  %v847 = vsub.f32 %v722, %v846
  %v848 = vand.u32 %v847, 4294901760
  %v849 = vsub.f32 %v847, %v848
  %v850 = vand.u32 %v849, 4294901760
  %851 = vmatpush.msra.mxu0 %v850
  %v852 = vand.u32 %v719, 4294901760
  %v853 = vsub.f32 %v719, %v852
  %v854 = vand.u32 %v853, 4294901760
  %v855 = vsub.f32 %v853, %v854
  %v856 = vand.u32 %v855, 4294901760
  %857 = vmatpush.msra.mxu0 %v856
  %v858 = vand.u32 %v716, 4294901760
  %v859 = vsub.f32 %v716, %v858
  %v860 = vand.u32 %v859, 4294901760
  %v861 = vsub.f32 %v859, %v860
  %v862 = vand.u32 %v861, 4294901760
  %863 = vmatpush.msra.mxu0 %v862
  %v864 = vand.u32 %v740, 4294901760
  %865 = vmatmul.f32.gmra.mxu0 %v864
  %v866 = vpop.f32.mrf.mxu0
  %v867 = vadd.f32 %v782, %v866
  %v868 = vand.u32 %v743, 4294901760
  %869 = vmatmul.f32.gmra.mxu0 %v868
  %v870 = vpop.f32.mrf.mxu0
  %v871 = vadd.f32 %v790, %v870
  %v872 = vand.u32 %v746, 4294901760
  %873 = vmatmul.f32.gmra.mxu0 %v872
  %v874 = vpop.f32.mrf.mxu0
  %v875 = vadd.f32 %v798, %v874
  %v876 = vand.u32 %v749, 4294901760
  %877 = vmatmul.f32.gmra.mxu0 %v876
  %v878 = vpop.f32.mrf.mxu0
  %v879 = vadd.f32 %v806, %v878
  %880 = vdwg.mxu0
  %881 = vmatpush.msra.mxu0 0.0
  %882 = vmatpush.msra.mxu0 0.0
  %883 = vmatpush.msra.mxu0 0.0
  %884 = vmatpush.msra.mxu0 0.0
  %885 = vmatpush.msra.mxu0 0.0
  %886 = vmatpush.msra.mxu0 0.0
  %887 = vmatpush.msra.mxu0 0.0
  %888 = vmatpush.msra.mxu0 0.0
  %v889 = vand.u32 %v737, 4294901760
  %v890 = vsub.f32 %v737, %v889
  %891 = vmatpush.msra.mxu0 %v890
  %v892 = vand.u32 %v734, 4294901760
  %v893 = vsub.f32 %v734, %v892
  %894 = vmatpush.msra.mxu0 %v893
  %v895 = vand.u32 %v731, 4294901760
  %v896 = vsub.f32 %v731, %v895
  %897 = vmatpush.msra.mxu0 %v896
  %v898 = vand.u32 %v728, 4294901760
  %v899 = vsub.f32 %v728, %v898
  %900 = vmatpush.msra.mxu0 %v899
  %v901 = vand.u32 %v725, 4294901760
  %v902 = vsub.f32 %v725, %v901
  %903 = vmatpush.msra.mxu0 %v902
  %v904 = vand.u32 %v722, 4294901760
  %v905 = vsub.f32 %v722, %v904
  %906 = vmatpush.msra.mxu0 %v905
  %v907 = vand.u32 %v719, 4294901760
  %v908 = vsub.f32 %v719, %v907
  %909 = vmatpush.msra.mxu0 %v908
  %v910 = vand.u32 %v716, 4294901760
  %v911 = vsub.f32 %v716, %v910
  %912 = vmatpush.msra.mxu0 %v911
  %v913 = vand.u32 %v740, 4294901760
  %v914 = vsub.f32 %v740, %v913
  %915 = vmatmul.f32.gmra.mxu0 %v914
  %v916 = vpop.f32.mrf.mxu0
  %v917 = vadd.f32 %v867, %v916
  %v918 = vand.u32 %v743, 4294901760
  %v919 = vsub.f32 %v743, %v918
  %920 = vmatmul.f32.gmra.mxu0 %v919
  %v921 = vpop.f32.mrf.mxu0
  %v922 = vadd.f32 %v871, %v921
  %v923 = vand.u32 %v746, 4294901760
  %v924 = vsub.f32 %v746, %v923
  %925 = vmatmul.f32.gmra.mxu0 %v924
  %v926 = vpop.f32.mrf.mxu0
  %v927 = vadd.f32 %v875, %v926
  %v928 = vand.u32 %v749, 4294901760
  %v929 = vsub.f32 %v749, %v928
  %930 = vmatmul.f32.gmra.mxu0 %v929
  %v931 = vpop.f32.mrf.mxu0
  %v932 = vadd.f32 %v879, %v931
  %933 = vdwg.mxu0
  %934 = vmatpush.msra.mxu0 0.0
  %935 = vmatpush.msra.mxu0 0.0
  %936 = vmatpush.msra.mxu0 0.0
  %937 = vmatpush.msra.mxu0 0.0
  %938 = vmatpush.msra.mxu0 0.0
  %939 = vmatpush.msra.mxu0 0.0
  %940 = vmatpush.msra.mxu0 0.0
  %941 = vmatpush.msra.mxu0 0.0
  %v942 = vand.u32 %v737, 4294901760
  %943 = vmatpush.msra.mxu0 %v942
  %v944 = vand.u32 %v734, 4294901760
  %945 = vmatpush.msra.mxu0 %v944
  %v946 = vand.u32 %v731, 4294901760
  %947 = vmatpush.msra.mxu0 %v946
  %v948 = vand.u32 %v728, 4294901760
  %949 = vmatpush.msra.mxu0 %v948
  %v950 = vand.u32 %v725, 4294901760
  %951 = vmatpush.msra.mxu0 %v950
  %v952 = vand.u32 %v722, 4294901760
  %953 = vmatpush.msra.mxu0 %v952
  %v954 = vand.u32 %v719, 4294901760
  %955 = vmatpush.msra.mxu0 %v954
  %v956 = vand.u32 %v716, 4294901760
  %957 = vmatpush.msra.mxu0 %v956
  %v958 = vand.u32 %v740, 4294901760
  %v959 = vsub.f32 %v740, %v958
  %v960 = vand.u32 %v959, 4294901760
  %961 = vmatmul.f32.gmra.mxu0 %v960
  %v962 = vpop.f32.mrf.mxu0
  %v963 = vadd.f32 %v917, %v962
  %v964 = vand.u32 %v743, 4294901760
  %v965 = vsub.f32 %v743, %v964
  %v966 = vand.u32 %v965, 4294901760
  %967 = vmatmul.f32.gmra.mxu0 %v966
  %v968 = vpop.f32.mrf.mxu0
  %v969 = vadd.f32 %v922, %v968
  %v970 = vand.u32 %v746, 4294901760
  %v971 = vsub.f32 %v746, %v970
  %v972 = vand.u32 %v971, 4294901760
  %973 = vmatmul.f32.gmra.mxu0 %v972
  %v974 = vpop.f32.mrf.mxu0
  %v975 = vadd.f32 %v927, %v974
  %v976 = vand.u32 %v749, 4294901760
  %v977 = vsub.f32 %v749, %v976
  %v978 = vand.u32 %v977, 4294901760
  %979 = vmatmul.f32.gmra.mxu0 %v978
  %v980 = vpop.f32.mrf.mxu0
  %v981 = vadd.f32 %v932, %v980
  %982 = vdwg.mxu0
  %983 = vmatpush.msra.mxu0 0.0
  %984 = vmatpush.msra.mxu0 0.0
  %985 = vmatpush.msra.mxu0 0.0
  %986 = vmatpush.msra.mxu0 0.0
  %987 = vmatpush.msra.mxu0 0.0
  %988 = vmatpush.msra.mxu0 0.0
  %989 = vmatpush.msra.mxu0 0.0
  %990 = vmatpush.msra.mxu0 0.0
  %v991 = vand.u32 %v737, 4294901760
  %v992 = vsub.f32 %v737, %v991
  %v993 = vand.u32 %v992, 4294901760
  %994 = vmatpush.msra.mxu0 %v993
  %v995 = vand.u32 %v734, 4294901760
  %v996 = vsub.f32 %v734, %v995
  %v997 = vand.u32 %v996, 4294901760
  %998 = vmatpush.msra.mxu0 %v997
  %v999 = vand.u32 %v731, 4294901760
  %v1000 = vsub.f32 %v731, %v999
  %v1001 = vand.u32 %v1000, 4294901760
  %1002 = vmatpush.msra.mxu0 %v1001
  %v1003 = vand.u32 %v728, 4294901760
  %v1004 = vsub.f32 %v728, %v1003
  %v1005 = vand.u32 %v1004, 4294901760
  %1006 = vmatpush.msra.mxu0 %v1005
  %v1007 = vand.u32 %v725, 4294901760
  %v1008 = vsub.f32 %v725, %v1007
  %v1009 = vand.u32 %v1008, 4294901760
  %1010 = vmatpush.msra.mxu0 %v1009
  %v1011 = vand.u32 %v722, 4294901760
  %v1012 = vsub.f32 %v722, %v1011
  %v1013 = vand.u32 %v1012, 4294901760
  %1014 = vmatpush.msra.mxu0 %v1013
  %v1015 = vand.u32 %v719, 4294901760
  %v1016 = vsub.f32 %v719, %v1015
  %v1017 = vand.u32 %v1016, 4294901760
  %1018 = vmatpush.msra.mxu0 %v1017
  %v1019 = vand.u32 %v716, 4294901760
  %v1020 = vsub.f32 %v716, %v1019
  %v1021 = vand.u32 %v1020, 4294901760
  %1022 = vmatpush.msra.mxu0 %v1021
  %v1023 = vand.u32 %v740, 4294901760
  %1024 = vmatmul.f32.gmra.mxu0 %v1023
  %v1025 = vpop.f32.mrf.mxu0
  %v1026 = vadd.f32 %v963, %v1025
  %v1027 = vand.u32 %v743, 4294901760
  %1028 = vmatmul.f32.gmra.mxu0 %v1027
  %v1029 = vpop.f32.mrf.mxu0
  %v1030 = vadd.f32 %v969, %v1029
  %v1031 = vand.u32 %v746, 4294901760
  %1032 = vmatmul.f32.gmra.mxu0 %v1031
  %v1033 = vpop.f32.mrf.mxu0
  %v1034 = vadd.f32 %v975, %v1033
  %v1035 = vand.u32 %v749, 4294901760
  %1036 = vmatmul.f32.gmra.mxu0 %v1035
  %v1037 = vpop.f32.mrf.mxu0
  %v1038 = vadd.f32 %v981, %v1037
  %1039 = vdwg.mxu0
  %1040 = vmatpush.msra.mxu0 0.0
  %1041 = vmatpush.msra.mxu0 0.0
  %1042 = vmatpush.msra.mxu0 0.0
  %1043 = vmatpush.msra.mxu0 0.0
  %1044 = vmatpush.msra.mxu0 0.0
  %1045 = vmatpush.msra.mxu0 0.0
  %1046 = vmatpush.msra.mxu0 0.0
  %1047 = vmatpush.msra.mxu0 0.0
  %v1048 = vand.u32 %v737, 4294901760
  %1049 = vmatpush.msra.mxu0 %v1048
  %v1050 = vand.u32 %v734, 4294901760
  %1051 = vmatpush.msra.mxu0 %v1050
  %v1052 = vand.u32 %v731, 4294901760
  %1053 = vmatpush.msra.mxu0 %v1052
  %v1054 = vand.u32 %v728, 4294901760
  %1055 = vmatpush.msra.mxu0 %v1054
  %v1056 = vand.u32 %v725, 4294901760
  %1057 = vmatpush.msra.mxu0 %v1056
  %v1058 = vand.u32 %v722, 4294901760
  %1059 = vmatpush.msra.mxu0 %v1058
  %v1060 = vand.u32 %v719, 4294901760
  %1061 = vmatpush.msra.mxu0 %v1060
  %v1062 = vand.u32 %v716, 4294901760
  %1063 = vmatpush.msra.mxu0 %v1062
  %v1064 = vand.u32 %v740, 4294901760
  %1065 = vmatmul.f32.gmra.mxu0 %v1064
  %v1066 = vpop.f32.mrf.mxu0
  %v1067 = vadd.f32 %v1026, %v1066
  %v1068 = vand.u32 %v743, 4294901760
  %1069 = vmatmul.f32.gmra.mxu0 %v1068
  %v1070 = vpop.f32.mrf.mxu0
  %v1071 = vadd.f32 %v1030, %v1070
  %v1072 = vand.u32 %v746, 4294901760
  %1073 = vmatmul.f32.gmra.mxu0 %v1072
  %v1074 = vpop.f32.mrf.mxu0
  %v1075 = vadd.f32 %v1034, %v1074
  %v1076 = vand.u32 %v749, 4294901760
  %1077 = vmatmul.f32.gmra.mxu0 %v1076
  %v1078 = vpop.f32.mrf.mxu0
  %v1079 = vadd.f32 %v1038, %v1078
  %1080 = vdwg.mxu0
  %v1081 = vadd.f32 %v1067, 0.0
  %v1082 = vadd.f32 %v1071, 0.0
  %v1083 = vadd.f32 %v1081, %v1075
  %v1084 = vadd.f32 %v1082, %v1079
  %1087 = vrot.lane.b32.xlu0 %v1081, 5
  %v1088 = vpop.permute.xlu0 %1087
  %1089 = vrot.lane.b32.xlu0 %v1082, 5
  %v1090 = vpop.permute.xlu0 %1089
  %1095 = vrot.lane.b32.xlu0 %v1083, 10
  %v1096 = vpop.permute.xlu0 %1095
  %1097 = vrot.lane.b32.xlu0 %v1084, 10
  %v1098 = vpop.permute.xlu0 %1097
  %v1101 = vsel %vm521, 0.0, %v1088
  %v1102 = vsel %vm521, 0.0, %v1090
  %vm1103 = vcmask 80896
  %v1104 = vsel %vm1103, %v1101, %v1096
  %v1105 = vsel %vm1103, %v1102, %v1098
  %v1106 = vperm.slane %v80, 7
  %vm1107 = vcmask 121856
  %v1109 = vsel %vm1107, %v1104, 0
  %v1112 = vsel %vm1107, %v1105, 0
  %vm1114 = vcmask 1046528
  %v1116 = vsel %vm1114, %v80, 0
  %1118 = vmatpush.msra.mxu0 0.0
  %1119 = vmatpush.msra.mxu0 0.0
  %1120 = vmatpush.msra.mxu0 0.0
  %1121 = vmatpush.msra.mxu0 0.0
  %1122 = vmatpush.msra.mxu0 0.0
  %1123 = vmatpush.msra.mxu0 0.0
  %1124 = vmatpush.msra.mxu0 0.0
  %1125 = vmatpush.msra.mxu0 0.0
  %1126 = vmatpush.msra.mxu0 0.0
  %1127 = vmatpush.msra.mxu0 0.0
  %1128 = vmatpush.msra.mxu0 0.0
  %1129 = vmatpush.msra.mxu0 0.0
  %1130 = vmatpush.msra.mxu0 0.0
  %1131 = vmatpush.msra.mxu0 0.0
  %1132 = vmatpush.msra.mxu0 %v1116
  %1133 = vmatpush.msra.mxu0 %v79
  %1134 = vmatmul.f32.gmra.mxu0 %v1109
  %v1135 = vpop.f32.mrf.mxu0
  %v1136 = vadd.f32 %v1106, %v1135
  %1137 = vmatmul.f32.gmra.mxu0 %v1112
  %v1138 = vpop.f32.mrf.mxu0
  %v1139 = vadd.f32 %v1106, %v1138
  %1140 = vdwg.mxu0
  %v1141 = vxor.u32 %v1136, 2147483648
  %v1142 = vxor.u32 %v1139, 2147483648
  %v1143 = vmul.f32 %v1141, 1.442695
  %v1144 = vpow.pop %v1143
  %v1145 = vmul.f32 %v1142, 1.442695
  %v1146 = vpow.pop %v1145
  %v1147 = vadd.f32 %v1144, 1.0
  %v1148 = vadd.f32 %v1146, 1.0
  %v1149 = vrcp.pop %v1147
  %v1150 = vmul.f32 %v1147, %v1149
  %v1151 = vsub.f32 1.0, %v1150
  %v1152 = vmul.f32 %v1149, %v1151
  %v1153 = vadd.f32 %v1149, %v1152
  %vm1154 = vweird.f32 %v1147
  %vm1155 = vweird.f32 %v1149
  %vm1156 = vmor %vm1154, %vm1155
  %v1157 = vsel %vm1156, %v1149, %v1153
  %v1158 = vand.u32 2147483647, %v1147
  %vm1159 = vcmp.eq.f32.partialorder %v1158, 8.507059e+37
  %v1160 = vand.u32 %v1147, 2147483648
  %v1161 = vor.u32 1.1754944e-38, %v1160
  %v1162 = vsel %vm1159, %v1161, %v1157
  %v1163 = vmul.f32 1.0, %v1162
  %v1164 = vrcp.pop %v1148
  %v1165 = vmul.f32 %v1148, %v1164
  %v1166 = vsub.f32 1.0, %v1165
  %v1167 = vmul.f32 %v1164, %v1166
  %v1168 = vadd.f32 %v1164, %v1167
  %vm1169 = vweird.f32 %v1148
  %vm1170 = vweird.f32 %v1164
  %vm1171 = vmor %vm1169, %vm1170
  %v1172 = vsel %vm1171, %v1164, %v1168
  %v1173 = vand.u32 2147483647, %v1148
  %vm1174 = vcmp.eq.f32.partialorder %v1173, 8.507059e+37
  %v1175 = vand.u32 %v1148, 2147483648
  %v1176 = vor.u32 1.1754944e-38, %v1175
  %v1177 = vsel %vm1174, %v1176, %v1172
  %v1178 = vmul.f32 1.0, %v1177
  %v1179 = vmul.f32 %v1163, 0.0
  %v1180 = vmul.f32 %v1178, 0.0
  %1183 = vrot.lane.b32.xlu0 %v1179, 123
  %v1184 = vpop.permute.xlu0 %1183
  %1185 = vrot.lane.b32.xlu0 %v1180, 123
  %v1186 = vpop.permute.xlu0 %1185
  %v1189 = vsel %vm521, %v1184, %v1088
  %v1190 = vsel %vm521, %v1186, %v1090
  %v1191 = vsel %vm1103, %v1189, %v1096
  %v1192 = vsel %vm1103, %v1190, %v1098
  %v1193 = vperm.slane %v82, 7
  %v1195 = vsel %vm1107, %v1191, 0
  %v1198 = vsel %vm1107, %v1192, 0
  %v1201 = vsel %vm1114, %v82, 0
  %1203 = vmatpush.msra.mxu0 0.0
  %1204 = vmatpush.msra.mxu0 0.0
  %1205 = vmatpush.msra.mxu0 0.0
  %1206 = vmatpush.msra.mxu0 0.0
  %1207 = vmatpush.msra.mxu0 0.0
  %1208 = vmatpush.msra.mxu0 0.0
  %1209 = vmatpush.msra.mxu0 0.0
  %1210 = vmatpush.msra.mxu0 0.0
  %1211 = vmatpush.msra.mxu0 0.0
  %1212 = vmatpush.msra.mxu0 0.0
  %1213 = vmatpush.msra.mxu0 0.0
  %1214 = vmatpush.msra.mxu0 0.0
  %1215 = vmatpush.msra.mxu0 0.0
  %1216 = vmatpush.msra.mxu0 0.0
  %1217 = vmatpush.msra.mxu0 %v1201
  %1218 = vmatpush.msra.mxu0 %v81
  %1219 = vmatmul.f32.gmra.mxu0 %v1195
  %v1220 = vpop.f32.mrf.mxu0
  %v1221 = vadd.f32 %v1193, %v1220
  %1222 = vmatmul.f32.gmra.mxu0 %v1198
  %v1223 = vpop.f32.mrf.mxu0
  %v1224 = vadd.f32 %v1193, %v1223
  %1225 = vdwg.mxu0
  %v1226 = vtanh.pop %v1221
  %v1227 = vtanh.pop %v1224
  %v1228 = vsub.f32 1.0, %v1163
  %v1229 = vsub.f32 1.0, %v1178
  %v1230 = vmul.f32 %v1228, 0.0
  %v1231 = vmul.f32 %v1229, 0.0
  %v1232 = vmul.f32 %v1163, %v1226
  %v1233 = vmul.f32 %v1178, %v1227
  %v1234 = vadd.f32 %v1230, %v1232
  %v1235 = vadd.f32 %v1231, %v1233
  %1236 = vmatpush.msra.mxu0 0.0
  %1237 = vmatpush.msra.mxu0 0.0
  %1238 = vmatpush.msra.mxu0 0.0
  %1239 = vmatpush.msra.mxu0 0.0
  %1240 = vmatpush.msra.mxu0 0.0
  %1241 = vmatpush.msra.mxu0 0.0
  %1242 = vmatpush.msra.mxu0 0.0
  %1243 = vmatpush.msra.mxu0 0.0
  %1244 = vmatpush.msra.mxu0 0.0
  %1245 = vmatpush.msra.mxu0 0.0
  %1246 = vmatpush.msra.mxu0 0.0
  %1247 = vmatpush.msra.mxu0 0.0
  %v1248 = vand.u32 %v1235, 4294901760
  %1249 = vmatpush.msra.mxu0 %v1248
  %v1250 = vand.u32 %v1234, 4294901760
  %1251 = vmatpush.msra.mxu0 %v1250
  %1252 = vmatpush.msra.mxu0 0.0
  %1253 = vmatpush.msra.mxu0 0.0
  %v1254 = vand.u32 %v148, 4294901760
  %v1255 = vsub.f32 %v148, %v1254
  %v1256 = vand.u32 %v1255, 4294901760
  %v1257 = vsub.f32 %v1255, %v1256
  %v1258 = vand.u32 %v1257, 4294901760
  %1259 = vmatmul.f32.gmra.mxu0 %v1258
  %v1260 = vpop.f32.mrf.mxu0
  %v1261 = vadd.f32 0.0, %v1260
  %v1262 = vand.u32 %v151, 4294901760
  %v1263 = vsub.f32 %v151, %v1262
  %v1264 = vand.u32 %v1263, 4294901760
  %v1265 = vsub.f32 %v1263, %v1264
  %v1266 = vand.u32 %v1265, 4294901760
  %1267 = vmatmul.f32.gmra.mxu0 %v1266
  %v1268 = vpop.f32.mrf.mxu0
  %v1269 = vadd.f32 0.0, %v1268
  %v1270 = vand.u32 %v154, 4294901760
  %v1271 = vsub.f32 %v154, %v1270
  %v1272 = vand.u32 %v1271, 4294901760
  %v1273 = vsub.f32 %v1271, %v1272
  %v1274 = vand.u32 %v1273, 4294901760
  %1275 = vmatmul.f32.gmra.mxu0 %v1274
  %v1276 = vpop.f32.mrf.mxu0
  %v1277 = vadd.f32 0.0, %v1276
  %v1278 = vand.u32 %v157, 4294901760
  %v1279 = vsub.f32 %v157, %v1278
  %v1280 = vand.u32 %v1279, 4294901760
  %v1281 = vsub.f32 %v1279, %v1280
  %v1282 = vand.u32 %v1281, 4294901760
  %1283 = vmatmul.f32.gmra.mxu0 %v1282
  %v1284 = vpop.f32.mrf.mxu0
  %v1285 = vadd.f32 0.0, %v1284
  %v1286 = vand.u32 %v160, 4294901760
  %v1287 = vsub.f32 %v160, %v1286
  %v1288 = vand.u32 %v1287, 4294901760
  %v1289 = vsub.f32 %v1287, %v1288
  %v1290 = vand.u32 %v1289, 4294901760
  %1291 = vmatmul.f32.gmra.mxu0 %v1290
  %v1292 = vpop.f32.mrf.mxu0
  %v1293 = vadd.f32 0.0, %v1292
  %v1294 = vand.u32 %v163, 4294901760
  %v1295 = vsub.f32 %v163, %v1294
  %v1296 = vand.u32 %v1295, 4294901760
  %v1297 = vsub.f32 %v1295, %v1296
  %v1298 = vand.u32 %v1297, 4294901760
  %1299 = vmatmul.f32.gmra.mxu0 %v1298
  %v1300 = vpop.f32.mrf.mxu0
  %v1301 = vadd.f32 0.0, %v1300
  %v1302 = vand.u32 %v166, 4294901760
  %v1303 = vsub.f32 %v166, %v1302
  %v1304 = vand.u32 %v1303, 4294901760
  %v1305 = vsub.f32 %v1303, %v1304
  %v1306 = vand.u32 %v1305, 4294901760
  %1307 = vmatmul.f32.gmra.mxu0 %v1306
  %v1308 = vpop.f32.mrf.mxu0
  %v1309 = vadd.f32 0.0, %v1308
  %v1310 = vand.u32 %v169, 4294901760
  %v1311 = vsub.f32 %v169, %v1310
  %v1312 = vand.u32 %v1311, 4294901760
  %v1313 = vsub.f32 %v1311, %v1312
  %v1314 = vand.u32 %v1313, 4294901760
  %1315 = vmatmul.f32.gmra.mxu0 %v1314
  %v1316 = vpop.f32.mrf.mxu0
  %v1317 = vadd.f32 0.0, %v1316
  %1318 = vdwg.mxu0
  %1319 = vmatpush.msra.mxu0 0.0
  %1320 = vmatpush.msra.mxu0 0.0
  %1321 = vmatpush.msra.mxu0 0.0
  %1322 = vmatpush.msra.mxu0 0.0
  %1323 = vmatpush.msra.mxu0 0.0
  %1324 = vmatpush.msra.mxu0 0.0
  %1325 = vmatpush.msra.mxu0 0.0
  %1326 = vmatpush.msra.mxu0 0.0
  %1327 = vmatpush.msra.mxu0 0.0
  %1328 = vmatpush.msra.mxu0 0.0
  %1329 = vmatpush.msra.mxu0 0.0
  %1330 = vmatpush.msra.mxu0 0.0
  %v1331 = vand.u32 %v1235, 4294901760
  %v1332 = vsub.f32 %v1235, %v1331
  %v1333 = vand.u32 %v1332, 4294901760
  %v1334 = vsub.f32 %v1332, %v1333
  %v1335 = vand.u32 %v1334, 4294901760
  %1336 = vmatpush.msra.mxu0 %v1335
  %v1337 = vand.u32 %v1234, 4294901760
  %v1338 = vsub.f32 %v1234, %v1337
  %v1339 = vand.u32 %v1338, 4294901760
  %v1340 = vsub.f32 %v1338, %v1339
  %v1341 = vand.u32 %v1340, 4294901760
  %1342 = vmatpush.msra.mxu0 %v1341
  %1343 = vmatpush.msra.mxu0 0.0
  %1344 = vmatpush.msra.mxu0 0.0
  %v1345 = vand.u32 %v148, 4294901760
  %1346 = vmatmul.f32.gmra.mxu0 %v1345
  %v1347 = vpop.f32.mrf.mxu0
  %v1348 = vadd.f32 %v1261, %v1347
  %v1349 = vand.u32 %v151, 4294901760
  %1350 = vmatmul.f32.gmra.mxu0 %v1349
  %v1351 = vpop.f32.mrf.mxu0
  %v1352 = vadd.f32 %v1269, %v1351
  %v1353 = vand.u32 %v154, 4294901760
  %1354 = vmatmul.f32.gmra.mxu0 %v1353
  %v1355 = vpop.f32.mrf.mxu0
  %v1356 = vadd.f32 %v1277, %v1355
  %v1357 = vand.u32 %v157, 4294901760
  %1358 = vmatmul.f32.gmra.mxu0 %v1357
  %v1359 = vpop.f32.mrf.mxu0
  %v1360 = vadd.f32 %v1285, %v1359
  %v1361 = vand.u32 %v160, 4294901760
  %1362 = vmatmul.f32.gmra.mxu0 %v1361
  %v1363 = vpop.f32.mrf.mxu0
  %v1364 = vadd.f32 %v1293, %v1363
  %v1365 = vand.u32 %v163, 4294901760
  %1366 = vmatmul.f32.gmra.mxu0 %v1365
  %v1367 = vpop.f32.mrf.mxu0
  %v1368 = vadd.f32 %v1301, %v1367
  %v1369 = vand.u32 %v166, 4294901760
  %1370 = vmatmul.f32.gmra.mxu0 %v1369
  %v1371 = vpop.f32.mrf.mxu0
  %v1372 = vadd.f32 %v1309, %v1371
  %v1373 = vand.u32 %v169, 4294901760
  %1374 = vmatmul.f32.gmra.mxu0 %v1373
  %v1375 = vpop.f32.mrf.mxu0
  %v1376 = vadd.f32 %v1317, %v1375
  %1377 = vdwg.mxu0
  %1378 = vmatpush.msra.mxu0 0.0
  %1379 = vmatpush.msra.mxu0 0.0
  %1380 = vmatpush.msra.mxu0 0.0
  %1381 = vmatpush.msra.mxu0 0.0
  %1382 = vmatpush.msra.mxu0 0.0
  %1383 = vmatpush.msra.mxu0 0.0
  %1384 = vmatpush.msra.mxu0 0.0
  %1385 = vmatpush.msra.mxu0 0.0
  %1386 = vmatpush.msra.mxu0 0.0
  %1387 = vmatpush.msra.mxu0 0.0
  %1388 = vmatpush.msra.mxu0 0.0
  %1389 = vmatpush.msra.mxu0 0.0
  %v1390 = vand.u32 %v1235, 4294901760
  %v1391 = vsub.f32 %v1235, %v1390
  %1392 = vmatpush.msra.mxu0 %v1391
  %v1393 = vand.u32 %v1234, 4294901760
  %v1394 = vsub.f32 %v1234, %v1393
  %1395 = vmatpush.msra.mxu0 %v1394
  %1396 = vmatpush.msra.mxu0 0.0
  %1397 = vmatpush.msra.mxu0 0.0
  %v1398 = vand.u32 %v148, 4294901760
  %v1399 = vsub.f32 %v148, %v1398
  %1400 = vmatmul.f32.gmra.mxu0 %v1399
  %v1401 = vpop.f32.mrf.mxu0
  %v1402 = vadd.f32 %v1348, %v1401
  %v1403 = vand.u32 %v151, 4294901760
  %v1404 = vsub.f32 %v151, %v1403
  %1405 = vmatmul.f32.gmra.mxu0 %v1404
  %v1406 = vpop.f32.mrf.mxu0
  %v1407 = vadd.f32 %v1352, %v1406
  %v1408 = vand.u32 %v154, 4294901760
  %v1409 = vsub.f32 %v154, %v1408
  %1410 = vmatmul.f32.gmra.mxu0 %v1409
  %v1411 = vpop.f32.mrf.mxu0
  %v1412 = vadd.f32 %v1356, %v1411
  %v1413 = vand.u32 %v157, 4294901760
  %v1414 = vsub.f32 %v157, %v1413
  %1415 = vmatmul.f32.gmra.mxu0 %v1414
  %v1416 = vpop.f32.mrf.mxu0
  %v1417 = vadd.f32 %v1360, %v1416
  %v1418 = vand.u32 %v160, 4294901760
  %v1419 = vsub.f32 %v160, %v1418
  %1420 = vmatmul.f32.gmra.mxu0 %v1419
  %v1421 = vpop.f32.mrf.mxu0
  %v1422 = vadd.f32 %v1364, %v1421
  %v1423 = vand.u32 %v163, 4294901760
  %v1424 = vsub.f32 %v163, %v1423
  %1425 = vmatmul.f32.gmra.mxu0 %v1424
  %v1426 = vpop.f32.mrf.mxu0
  %v1427 = vadd.f32 %v1368, %v1426
  %v1428 = vand.u32 %v166, 4294901760
  %v1429 = vsub.f32 %v166, %v1428
  %1430 = vmatmul.f32.gmra.mxu0 %v1429
  %v1431 = vpop.f32.mrf.mxu0
  %v1432 = vadd.f32 %v1372, %v1431
  %v1433 = vand.u32 %v169, 4294901760
  %v1434 = vsub.f32 %v169, %v1433
  %1435 = vmatmul.f32.gmra.mxu0 %v1434
  %v1436 = vpop.f32.mrf.mxu0
  %v1437 = vadd.f32 %v1376, %v1436
  %1438 = vdwg.mxu0
  %1439 = vmatpush.msra.mxu0 0.0
  %1440 = vmatpush.msra.mxu0 0.0
  %1441 = vmatpush.msra.mxu0 0.0
  %1442 = vmatpush.msra.mxu0 0.0
  %1443 = vmatpush.msra.mxu0 0.0
  %1444 = vmatpush.msra.mxu0 0.0
  %1445 = vmatpush.msra.mxu0 0.0
  %1446 = vmatpush.msra.mxu0 0.0
  %1447 = vmatpush.msra.mxu0 0.0
  %1448 = vmatpush.msra.mxu0 0.0
  %1449 = vmatpush.msra.mxu0 0.0
  %1450 = vmatpush.msra.mxu0 0.0
  %v1451 = vand.u32 %v1235, 4294901760
  %1452 = vmatpush.msra.mxu0 %v1451
  %v1453 = vand.u32 %v1234, 4294901760
  %1454 = vmatpush.msra.mxu0 %v1453
  %1455 = vmatpush.msra.mxu0 0.0
  %1456 = vmatpush.msra.mxu0 0.0
  %v1457 = vand.u32 %v148, 4294901760
  %v1458 = vsub.f32 %v148, %v1457
  %v1459 = vand.u32 %v1458, 4294901760
  %1460 = vmatmul.f32.gmra.mxu0 %v1459
  %v1461 = vpop.f32.mrf.mxu0
  %v1462 = vadd.f32 %v1402, %v1461
  %v1463 = vand.u32 %v151, 4294901760
  %v1464 = vsub.f32 %v151, %v1463
  %v1465 = vand.u32 %v1464, 4294901760
  %1466 = vmatmul.f32.gmra.mxu0 %v1465
  %v1467 = vpop.f32.mrf.mxu0
  %v1468 = vadd.f32 %v1407, %v1467
  %v1469 = vand.u32 %v154, 4294901760
  %v1470 = vsub.f32 %v154, %v1469
  %v1471 = vand.u32 %v1470, 4294901760
  %1472 = vmatmul.f32.gmra.mxu0 %v1471
  %v1473 = vpop.f32.mrf.mxu0
  %v1474 = vadd.f32 %v1412, %v1473
  %v1475 = vand.u32 %v157, 4294901760
  %v1476 = vsub.f32 %v157, %v1475
  %v1477 = vand.u32 %v1476, 4294901760
  %1478 = vmatmul.f32.gmra.mxu0 %v1477
  %v1479 = vpop.f32.mrf.mxu0
  %v1480 = vadd.f32 %v1417, %v1479
  %v1481 = vand.u32 %v160, 4294901760
  %v1482 = vsub.f32 %v160, %v1481
  %v1483 = vand.u32 %v1482, 4294901760
  %1484 = vmatmul.f32.gmra.mxu0 %v1483
  %v1485 = vpop.f32.mrf.mxu0
  %v1486 = vadd.f32 %v1422, %v1485
  %v1487 = vand.u32 %v163, 4294901760
  %v1488 = vsub.f32 %v163, %v1487
  %v1489 = vand.u32 %v1488, 4294901760
  %1490 = vmatmul.f32.gmra.mxu0 %v1489
  %v1491 = vpop.f32.mrf.mxu0
  %v1492 = vadd.f32 %v1427, %v1491
  %v1493 = vand.u32 %v166, 4294901760
  %v1494 = vsub.f32 %v166, %v1493
  %v1495 = vand.u32 %v1494, 4294901760
  %1496 = vmatmul.f32.gmra.mxu0 %v1495
  %v1497 = vpop.f32.mrf.mxu0
  %v1498 = vadd.f32 %v1432, %v1497
  %v1499 = vand.u32 %v169, 4294901760
  %v1500 = vsub.f32 %v169, %v1499
  %v1501 = vand.u32 %v1500, 4294901760
  %1502 = vmatmul.f32.gmra.mxu0 %v1501
  %v1503 = vpop.f32.mrf.mxu0
  %v1504 = vadd.f32 %v1437, %v1503
  %1505 = vdwg.mxu0
  %1506 = vmatpush.msra.mxu0 0.0
  %1507 = vmatpush.msra.mxu0 0.0
  %1508 = vmatpush.msra.mxu0 0.0
  %1509 = vmatpush.msra.mxu0 0.0
  %1510 = vmatpush.msra.mxu0 0.0
  %1511 = vmatpush.msra.mxu0 0.0
  %1512 = vmatpush.msra.mxu0 0.0
  %1513 = vmatpush.msra.mxu0 0.0
  %1514 = vmatpush.msra.mxu0 0.0
  %1515 = vmatpush.msra.mxu0 0.0
  %1516 = vmatpush.msra.mxu0 0.0
  %1517 = vmatpush.msra.mxu0 0.0
  %v1518 = vand.u32 %v1235, 4294901760
  %v1519 = vsub.f32 %v1235, %v1518
  %v1520 = vand.u32 %v1519, 4294901760
  %1521 = vmatpush.msra.mxu0 %v1520
  %v1522 = vand.u32 %v1234, 4294901760
  %v1523 = vsub.f32 %v1234, %v1522
  %v1524 = vand.u32 %v1523, 4294901760
  %1525 = vmatpush.msra.mxu0 %v1524
  %1526 = vmatpush.msra.mxu0 0.0
  %1527 = vmatpush.msra.mxu0 0.0
  %v1528 = vand.u32 %v148, 4294901760
  %1529 = vmatmul.f32.gmra.mxu0 %v1528
  %v1530 = vpop.f32.mrf.mxu0
  %v1531 = vadd.f32 %v1462, %v1530
  %v1532 = vand.u32 %v151, 4294901760
  %1533 = vmatmul.f32.gmra.mxu0 %v1532
  %v1534 = vpop.f32.mrf.mxu0
  %v1535 = vadd.f32 %v1468, %v1534
  %v1536 = vand.u32 %v154, 4294901760
  %1537 = vmatmul.f32.gmra.mxu0 %v1536
  %v1538 = vpop.f32.mrf.mxu0
  %v1539 = vadd.f32 %v1474, %v1538
  %v1540 = vand.u32 %v157, 4294901760
  %1541 = vmatmul.f32.gmra.mxu0 %v1540
  %v1542 = vpop.f32.mrf.mxu0
  %v1543 = vadd.f32 %v1480, %v1542
  %v1544 = vand.u32 %v160, 4294901760
  %1545 = vmatmul.f32.gmra.mxu0 %v1544
  %v1546 = vpop.f32.mrf.mxu0
  %v1547 = vadd.f32 %v1486, %v1546
  %v1548 = vand.u32 %v163, 4294901760
  %1549 = vmatmul.f32.gmra.mxu0 %v1548
  %v1550 = vpop.f32.mrf.mxu0
  %v1551 = vadd.f32 %v1492, %v1550
  %v1552 = vand.u32 %v166, 4294901760
  %1553 = vmatmul.f32.gmra.mxu0 %v1552
  %v1554 = vpop.f32.mrf.mxu0
  %v1555 = vadd.f32 %v1498, %v1554
  %v1556 = vand.u32 %v169, 4294901760
  %1557 = vmatmul.f32.gmra.mxu0 %v1556
  %v1558 = vpop.f32.mrf.mxu0
  %v1559 = vadd.f32 %v1504, %v1558
  %1560 = vdwg.mxu0
  %1561 = vmatpush.msra.mxu0 0.0
  %1562 = vmatpush.msra.mxu0 0.0
  %1563 = vmatpush.msra.mxu0 0.0
  %1564 = vmatpush.msra.mxu0 0.0
  %1565 = vmatpush.msra.mxu0 0.0
  %1566 = vmatpush.msra.mxu0 0.0
  %1567 = vmatpush.msra.mxu0 0.0
  %1568 = vmatpush.msra.mxu0 0.0
  %1569 = vmatpush.msra.mxu0 0.0
  %1570 = vmatpush.msra.mxu0 0.0
  %1571 = vmatpush.msra.mxu0 0.0
  %1572 = vmatpush.msra.mxu0 0.0
  %v1573 = vand.u32 %v1235, 4294901760
  %1574 = vmatpush.msra.mxu0 %v1573
  %v1575 = vand.u32 %v1234, 4294901760
  %1576 = vmatpush.msra.mxu0 %v1575
  %1577 = vmatpush.msra.mxu0 0.0
  %1578 = vmatpush.msra.mxu0 0.0
  %v1579 = vand.u32 %v148, 4294901760
  %1580 = vmatmul.f32.gmra.mxu0 %v1579
  %v1581 = vpop.f32.mrf.mxu0
  %v1582 = vadd.f32 %v1531, %v1581
  %v1583 = vand.u32 %v151, 4294901760
  %1584 = vmatmul.f32.gmra.mxu0 %v1583
  %v1585 = vpop.f32.mrf.mxu0
  %v1586 = vadd.f32 %v1535, %v1585
  %v1587 = vand.u32 %v154, 4294901760
  %1588 = vmatmul.f32.gmra.mxu0 %v1587
  %v1589 = vpop.f32.mrf.mxu0
  %v1590 = vadd.f32 %v1539, %v1589
  %v1591 = vand.u32 %v157, 4294901760
  %1592 = vmatmul.f32.gmra.mxu0 %v1591
  %v1593 = vpop.f32.mrf.mxu0
  %v1594 = vadd.f32 %v1543, %v1593
  %v1595 = vand.u32 %v160, 4294901760
  %1596 = vmatmul.f32.gmra.mxu0 %v1595
  %v1597 = vpop.f32.mrf.mxu0
  %v1598 = vadd.f32 %v1547, %v1597
  %v1599 = vand.u32 %v163, 4294901760
  %1600 = vmatmul.f32.gmra.mxu0 %v1599
  %v1601 = vpop.f32.mrf.mxu0
  %v1602 = vadd.f32 %v1551, %v1601
  %v1603 = vand.u32 %v166, 4294901760
  %1604 = vmatmul.f32.gmra.mxu0 %v1603
  %v1605 = vpop.f32.mrf.mxu0
  %v1606 = vadd.f32 %v1555, %v1605
  %v1607 = vand.u32 %v169, 4294901760
  %1608 = vmatmul.f32.gmra.mxu0 %v1607
  %v1609 = vpop.f32.mrf.mxu0
  %v1610 = vadd.f32 %v1559, %v1609
  %1611 = vdwg.mxu0
  %v1613 = vsel %vm521, %v1582, 0
  %v1616 = vsel %vm521, %v1586, 0
  %v1619 = vsel %vm521, %v1590, 0
  %v1622 = vsel %vm521, %v1594, 0
  %v1625 = vsel %vm521, %v1598, 0
  %v1628 = vsel %vm521, %v1602, 0
  %v1631 = vsel %vm521, %v1606, 0
  %v1634 = vsel %vm521, %v1610, 0
  %1636 = vmatpush.msra.mxu0 0.0
  %1637 = vmatpush.msra.mxu0 0.0
  %1638 = vmatpush.msra.mxu0 0.0
  %1639 = vmatpush.msra.mxu0 0.0
  %1640 = vmatpush.msra.mxu0 0.0
  %1641 = vmatpush.msra.mxu0 0.0
  %1642 = vmatpush.msra.mxu0 0.0
  %1643 = vmatpush.msra.mxu0 0.0
  %1644 = vmatpush.msra.mxu0 0.0
  %1645 = vmatpush.msra.mxu0 0.0
  %1646 = vmatpush.msra.mxu0 0.0
  %1647 = vmatpush.msra.mxu0 0.0
  %1648 = vmatpush.msra.mxu0 0.0
  %1649 = vmatpush.msra.mxu0 0.0
  %1650 = vmatpush.msra.mxu0 0.0
  %1651 = vmatpush.msra.mxu0 %v547
  %1652 = vmatmul.f32.gmra.mxu0 %v1613
  %v1653 = vpop.f32.mrf.mxu0
  %v1654 = vadd.f32 %v135, %v1653
  %1655 = vmatmul.f32.gmra.mxu0 %v1616
  %v1656 = vpop.f32.mrf.mxu0
  %v1657 = vadd.f32 %v138, %v1656
  %1658 = vmatmul.f32.gmra.mxu0 %v1619
  %v1659 = vpop.f32.mrf.mxu0
  %v1660 = vadd.f32 %v141, %v1659
  %1661 = vmatmul.f32.gmra.mxu0 %v1622
  %v1662 = vpop.f32.mrf.mxu0
  %v1663 = vadd.f32 %v144, %v1662
  %1664 = vmatmul.f32.gmra.mxu0 %v1625
  %v1665 = vpop.f32.mrf.mxu0
  %v1666 = vadd.f32 %v135, %v1665
  %1667 = vmatmul.f32.gmra.mxu0 %v1628
  %v1668 = vpop.f32.mrf.mxu0
  %v1669 = vadd.f32 %v138, %v1668
  %1670 = vmatmul.f32.gmra.mxu0 %v1631
  %v1671 = vpop.f32.mrf.mxu0
  %v1672 = vadd.f32 %v141, %v1671
  %1673 = vmatmul.f32.gmra.mxu0 %v1634
  %v1674 = vpop.f32.mrf.mxu0
  %v1675 = vadd.f32 %v144, %v1674
  %1676 = vdwg.mxu0
  %v1677 = vmax.f32 %v1654, 0.0
  %v1678 = vmax.f32 %v1657, 0.0
  %v1679 = vmax.f32 %v1660, 0.0
  %v1680 = vmax.f32 %v1663, 0.0
  %v1681 = vmax.f32 %v1666, 0.0
  %v1682 = vmax.f32 %v1669, 0.0
  %v1683 = vmax.f32 %v1672, 0.0
  %v1684 = vmax.f32 %v1675, 0.0
  %v1686 = vsel %vm599, %v1677, 0
  %v1689 = vsel %vm599, %v1678, 0
  %v1692 = vsel %vm599, %v1679, 0
  %v1695 = vsel %vm599, %v1680, 0
  %v1698 = vsel %vm599, %v1681, 0
  %v1701 = vsel %vm599, %v1682, 0
  %v1704 = vsel %vm599, %v1683, 0
  %v1707 = vsel %vm599, %v1684, 0
  %1709 = vmatpush.msra.mxu0 0.0
  %1710 = vmatpush.msra.mxu0 0.0
  %1711 = vmatpush.msra.mxu0 0.0
  %1712 = vmatpush.msra.mxu0 0.0
  %1713 = vmatpush.msra.mxu0 0.0
  %1714 = vmatpush.msra.mxu0 0.0
  %1715 = vmatpush.msra.mxu0 0.0
  %1716 = vmatpush.msra.mxu0 0.0
  %1717 = vmatpush.msra.mxu0 %v68
  %1718 = vmatpush.msra.mxu0 %v67
  %1719 = vmatpush.msra.mxu0 %v66
  %1720 = vmatpush.msra.mxu0 %v65
  %1721 = vmatpush.msra.mxu0 %v64
  %1722 = vmatpush.msra.mxu0 %v63
  %1723 = vmatpush.msra.mxu0 %v62
  %1724 = vmatpush.msra.mxu0 %v61
  %1725 = vmatmul.f32.gmra.mxu0 %v1686
  %v1726 = vpop.f32.mrf.mxu0
  %v1727 = vadd.f32 %v598, %v1726
  %1728 = vmatmul.f32.gmra.mxu0 %v1689
  %v1729 = vpop.f32.mrf.mxu0
  %v1730 = vadd.f32 %v598, %v1729
  %1731 = vmatmul.f32.gmra.mxu0 %v1692
  %v1732 = vpop.f32.mrf.mxu0
  %v1733 = vadd.f32 %v598, %v1732
  %1734 = vmatmul.f32.gmra.mxu0 %v1695
  %v1735 = vpop.f32.mrf.mxu0
  %v1736 = vadd.f32 %v598, %v1735
  %1737 = vmatmul.f32.gmra.mxu0 %v1698
  %v1738 = vpop.f32.mrf.mxu0
  %v1739 = vadd.f32 %v598, %v1738
  %1740 = vmatmul.f32.gmra.mxu0 %v1701
  %v1741 = vpop.f32.mrf.mxu0
  %v1742 = vadd.f32 %v598, %v1741
  %1743 = vmatmul.f32.gmra.mxu0 %v1704
  %v1744 = vpop.f32.mrf.mxu0
  %v1745 = vadd.f32 %v598, %v1744
  %1746 = vmatmul.f32.gmra.mxu0 %v1707
  %v1747 = vpop.f32.mrf.mxu0
  %v1748 = vadd.f32 %v598, %v1747
  %1749 = vdwg.mxu0
  %v1750 = vmax.f32 %v1727, 0.0
  %v1751 = vmax.f32 %v1730, 0.0
  %v1752 = vmax.f32 %v1733, 0.0
  %v1753 = vmax.f32 %v1736, 0.0
  %v1754 = vmax.f32 %v1739, 0.0
  %v1755 = vmax.f32 %v1742, 0.0
  %v1756 = vmax.f32 %v1745, 0.0
  %v1757 = vmax.f32 %v1748, 0.0
  %v1759 = vsel %vm599, %v1750, 0
  %v1762 = vsel %vm599, %v1751, 0
  %v1765 = vsel %vm599, %v1752, 0
  %v1768 = vsel %vm599, %v1753, 0
  %v1771 = vsel %vm599, %v1754, 0
  %v1774 = vsel %vm599, %v1755, 0
  %v1777 = vsel %vm599, %v1756, 0
  %v1780 = vsel %vm599, %v1757, 0
  %1782 = vmatpush.msra.mxu0 0.0
  %1783 = vmatpush.msra.mxu0 0.0
  %1784 = vmatpush.msra.mxu0 0.0
  %1785 = vmatpush.msra.mxu0 0.0
  %1786 = vmatpush.msra.mxu0 0.0
  %1787 = vmatpush.msra.mxu0 0.0
  %1788 = vmatpush.msra.mxu0 0.0
  %1789 = vmatpush.msra.mxu0 0.0
  %1790 = vmatpush.msra.mxu0 %v77
  %1791 = vmatpush.msra.mxu0 %v76
  %1792 = vmatpush.msra.mxu0 %v75
  %1793 = vmatpush.msra.mxu0 %v74
  %1794 = vmatpush.msra.mxu0 %v73
  %1795 = vmatpush.msra.mxu0 %v72
  %1796 = vmatpush.msra.mxu0 %v71
  %1797 = vmatpush.msra.mxu0 %v70
  %1798 = vmatmul.f32.gmra.mxu0 %v1759
  %v1799 = vpop.f32.mrf.mxu0
  %v1800 = vadd.f32 %v673, %v1799
  %1801 = vmatmul.f32.gmra.mxu0 %v1762
  %v1802 = vpop.f32.mrf.mxu0
  %v1803 = vadd.f32 %v673, %v1802
  %1804 = vmatmul.f32.gmra.mxu0 %v1765
  %v1805 = vpop.f32.mrf.mxu0
  %v1806 = vadd.f32 %v673, %v1805
  %1807 = vmatmul.f32.gmra.mxu0 %v1768
  %v1808 = vpop.f32.mrf.mxu0
  %v1809 = vadd.f32 %v673, %v1808
  %1810 = vmatmul.f32.gmra.mxu0 %v1771
  %v1811 = vpop.f32.mrf.mxu0
  %v1812 = vadd.f32 %v673, %v1811
  %1813 = vmatmul.f32.gmra.mxu0 %v1774
  %v1814 = vpop.f32.mrf.mxu0
  %v1815 = vadd.f32 %v673, %v1814
  %1816 = vmatmul.f32.gmra.mxu0 %v1777
  %v1817 = vpop.f32.mrf.mxu0
  %v1818 = vadd.f32 %v673, %v1817
  %1819 = vmatmul.f32.gmra.mxu0 %v1780
  %v1820 = vpop.f32.mrf.mxu0
  %v1821 = vadd.f32 %v673, %v1820
  %1822 = vdwg.mxu0
  %1823 = vmatpush.msra.mxu0 0.0
  %1824 = vmatpush.msra.mxu0 0.0
  %1825 = vmatpush.msra.mxu0 0.0
  %1826 = vmatpush.msra.mxu0 0.0
  %1827 = vmatpush.msra.mxu0 0.0
  %1828 = vmatpush.msra.mxu0 0.0
  %1829 = vmatpush.msra.mxu0 0.0
  %1830 = vmatpush.msra.mxu0 0.0
  %v1831 = vand.u32 %v1821, 4294901760
  %1832 = vmatpush.msra.mxu0 %v1831
  %v1833 = vand.u32 %v1818, 4294901760
  %1834 = vmatpush.msra.mxu0 %v1833
  %v1835 = vand.u32 %v1815, 4294901760
  %1836 = vmatpush.msra.mxu0 %v1835
  %v1837 = vand.u32 %v1812, 4294901760
  %1838 = vmatpush.msra.mxu0 %v1837
  %v1839 = vand.u32 %v1809, 4294901760
  %1840 = vmatpush.msra.mxu0 %v1839
  %v1841 = vand.u32 %v1806, 4294901760
  %1842 = vmatpush.msra.mxu0 %v1841
  %v1843 = vand.u32 %v1803, 4294901760
  %1844 = vmatpush.msra.mxu0 %v1843
  %v1845 = vand.u32 %v1800, 4294901760
  %1846 = vmatpush.msra.mxu0 %v1845
  %v1847 = vand.u32 %v740, 4294901760
  %v1848 = vsub.f32 %v740, %v1847
  %v1849 = vand.u32 %v1848, 4294901760
  %v1850 = vsub.f32 %v1848, %v1849
  %v1851 = vand.u32 %v1850, 4294901760
  %1852 = vmatmul.f32.gmra.mxu0 %v1851
  %v1853 = vpop.f32.mrf.mxu0
  %v1854 = vadd.f32 0.0, %v1853
  %v1855 = vand.u32 %v743, 4294901760
  %v1856 = vsub.f32 %v743, %v1855
  %v1857 = vand.u32 %v1856, 4294901760
  %v1858 = vsub.f32 %v1856, %v1857
  %v1859 = vand.u32 %v1858, 4294901760
  %1860 = vmatmul.f32.gmra.mxu0 %v1859
  %v1861 = vpop.f32.mrf.mxu0
  %v1862 = vadd.f32 0.0, %v1861
  %v1863 = vand.u32 %v746, 4294901760
  %v1864 = vsub.f32 %v746, %v1863
  %v1865 = vand.u32 %v1864, 4294901760
  %v1866 = vsub.f32 %v1864, %v1865
  %v1867 = vand.u32 %v1866, 4294901760
  %1868 = vmatmul.f32.gmra.mxu0 %v1867
  %v1869 = vpop.f32.mrf.mxu0
  %v1870 = vadd.f32 0.0, %v1869
  %v1871 = vand.u32 %v749, 4294901760
  %v1872 = vsub.f32 %v749, %v1871
  %v1873 = vand.u32 %v1872, 4294901760
  %v1874 = vsub.f32 %v1872, %v1873
  %v1875 = vand.u32 %v1874, 4294901760
  %1876 = vmatmul.f32.gmra.mxu0 %v1875
  %v1877 = vpop.f32.mrf.mxu0
  %v1878 = vadd.f32 0.0, %v1877
  %1879 = vdwg.mxu0
  %1880 = vmatpush.msra.mxu0 0.0
  %1881 = vmatpush.msra.mxu0 0.0
  %1882 = vmatpush.msra.mxu0 0.0
  %1883 = vmatpush.msra.mxu0 0.0
  %1884 = vmatpush.msra.mxu0 0.0
  %1885 = vmatpush.msra.mxu0 0.0
  %1886 = vmatpush.msra.mxu0 0.0
  %1887 = vmatpush.msra.mxu0 0.0
  %v1888 = vand.u32 %v1821, 4294901760
  %v1889 = vsub.f32 %v1821, %v1888
  %v1890 = vand.u32 %v1889, 4294901760
  %v1891 = vsub.f32 %v1889, %v1890
  %v1892 = vand.u32 %v1891, 4294901760
  %1893 = vmatpush.msra.mxu0 %v1892
  %v1894 = vand.u32 %v1818, 4294901760
  %v1895 = vsub.f32 %v1818, %v1894
  %v1896 = vand.u32 %v1895, 4294901760
  %v1897 = vsub.f32 %v1895, %v1896
  %v1898 = vand.u32 %v1897, 4294901760
  %1899 = vmatpush.msra.mxu0 %v1898
  %v1900 = vand.u32 %v1815, 4294901760
  %v1901 = vsub.f32 %v1815, %v1900
  %v1902 = vand.u32 %v1901, 4294901760
  %v1903 = vsub.f32 %v1901, %v1902
  %v1904 = vand.u32 %v1903, 4294901760
  %1905 = vmatpush.msra.mxu0 %v1904
  %v1906 = vand.u32 %v1812, 4294901760
  %v1907 = vsub.f32 %v1812, %v1906
  %v1908 = vand.u32 %v1907, 4294901760
  %v1909 = vsub.f32 %v1907, %v1908
  %v1910 = vand.u32 %v1909, 4294901760
  %1911 = vmatpush.msra.mxu0 %v1910
  %v1912 = vand.u32 %v1809, 4294901760
  %v1913 = vsub.f32 %v1809, %v1912
  %v1914 = vand.u32 %v1913, 4294901760
  %v1915 = vsub.f32 %v1913, %v1914
  %v1916 = vand.u32 %v1915, 4294901760
  %1917 = vmatpush.msra.mxu0 %v1916
  %v1918 = vand.u32 %v1806, 4294901760
  %v1919 = vsub.f32 %v1806, %v1918
  %v1920 = vand.u32 %v1919, 4294901760
  %v1921 = vsub.f32 %v1919, %v1920
  %v1922 = vand.u32 %v1921, 4294901760
  %1923 = vmatpush.msra.mxu0 %v1922
  %v1924 = vand.u32 %v1803, 4294901760
  %v1925 = vsub.f32 %v1803, %v1924
  %v1926 = vand.u32 %v1925, 4294901760
  %v1927 = vsub.f32 %v1925, %v1926
  %v1928 = vand.u32 %v1927, 4294901760
  %1929 = vmatpush.msra.mxu0 %v1928
  %v1930 = vand.u32 %v1800, 4294901760
  %v1931 = vsub.f32 %v1800, %v1930
  %v1932 = vand.u32 %v1931, 4294901760
  %v1933 = vsub.f32 %v1931, %v1932
  %v1934 = vand.u32 %v1933, 4294901760
  %1935 = vmatpush.msra.mxu0 %v1934
  %v1936 = vand.u32 %v740, 4294901760
  %1937 = vmatmul.f32.gmra.mxu0 %v1936
  %v1938 = vpop.f32.mrf.mxu0
  %v1939 = vadd.f32 %v1854, %v1938
  %v1940 = vand.u32 %v743, 4294901760
  %1941 = vmatmul.f32.gmra.mxu0 %v1940
  %v1942 = vpop.f32.mrf.mxu0
  %v1943 = vadd.f32 %v1862, %v1942
  %v1944 = vand.u32 %v746, 4294901760
  %1945 = vmatmul.f32.gmra.mxu0 %v1944
  %v1946 = vpop.f32.mrf.mxu0
  %v1947 = vadd.f32 %v1870, %v1946
  %v1948 = vand.u32 %v749, 4294901760
  %1949 = vmatmul.f32.gmra.mxu0 %v1948
  %v1950 = vpop.f32.mrf.mxu0
  %v1951 = vadd.f32 %v1878, %v1950
  %1952 = vdwg.mxu0
  %1953 = vmatpush.msra.mxu0 0.0
  %1954 = vmatpush.msra.mxu0 0.0
  %1955 = vmatpush.msra.mxu0 0.0
  %1956 = vmatpush.msra.mxu0 0.0
  %1957 = vmatpush.msra.mxu0 0.0
  %1958 = vmatpush.msra.mxu0 0.0
  %1959 = vmatpush.msra.mxu0 0.0
  %1960 = vmatpush.msra.mxu0 0.0
  %v1961 = vand.u32 %v1821, 4294901760
  %v1962 = vsub.f32 %v1821, %v1961
  %1963 = vmatpush.msra.mxu0 %v1962
  %v1964 = vand.u32 %v1818, 4294901760
  %v1965 = vsub.f32 %v1818, %v1964
  %1966 = vmatpush.msra.mxu0 %v1965
  %v1967 = vand.u32 %v1815, 4294901760
  %v1968 = vsub.f32 %v1815, %v1967
  %1969 = vmatpush.msra.mxu0 %v1968
  %v1970 = vand.u32 %v1812, 4294901760
  %v1971 = vsub.f32 %v1812, %v1970
  %1972 = vmatpush.msra.mxu0 %v1971
  %v1973 = vand.u32 %v1809, 4294901760
  %v1974 = vsub.f32 %v1809, %v1973
  %1975 = vmatpush.msra.mxu0 %v1974
  %v1976 = vand.u32 %v1806, 4294901760
  %v1977 = vsub.f32 %v1806, %v1976
  %1978 = vmatpush.msra.mxu0 %v1977
  %v1979 = vand.u32 %v1803, 4294901760
  %v1980 = vsub.f32 %v1803, %v1979
  %1981 = vmatpush.msra.mxu0 %v1980
  %v1982 = vand.u32 %v1800, 4294901760
  %v1983 = vsub.f32 %v1800, %v1982
  %1984 = vmatpush.msra.mxu0 %v1983
  %v1985 = vand.u32 %v740, 4294901760
  %v1986 = vsub.f32 %v740, %v1985
  %1987 = vmatmul.f32.gmra.mxu0 %v1986
  %v1988 = vpop.f32.mrf.mxu0
  %v1989 = vadd.f32 %v1939, %v1988
  %v1990 = vand.u32 %v743, 4294901760
  %v1991 = vsub.f32 %v743, %v1990
  %1992 = vmatmul.f32.gmra.mxu0 %v1991
  %v1993 = vpop.f32.mrf.mxu0
  %v1994 = vadd.f32 %v1943, %v1993
  %v1995 = vand.u32 %v746, 4294901760
  %v1996 = vsub.f32 %v746, %v1995
  %1997 = vmatmul.f32.gmra.mxu0 %v1996
  %v1998 = vpop.f32.mrf.mxu0
  %v1999 = vadd.f32 %v1947, %v1998
  %v2000 = vand.u32 %v749, 4294901760
  %v2001 = vsub.f32 %v749, %v2000
  %2002 = vmatmul.f32.gmra.mxu0 %v2001
  %v2003 = vpop.f32.mrf.mxu0
  %v2004 = vadd.f32 %v1951, %v2003
  %2005 = vdwg.mxu0
  %2006 = vmatpush.msra.mxu0 0.0
  %2007 = vmatpush.msra.mxu0 0.0
  %2008 = vmatpush.msra.mxu0 0.0
  %2009 = vmatpush.msra.mxu0 0.0
  %2010 = vmatpush.msra.mxu0 0.0
  %2011 = vmatpush.msra.mxu0 0.0
  %2012 = vmatpush.msra.mxu0 0.0
  %2013 = vmatpush.msra.mxu0 0.0
  %v2014 = vand.u32 %v1821, 4294901760
  %2015 = vmatpush.msra.mxu0 %v2014
  %v2016 = vand.u32 %v1818, 4294901760
  %2017 = vmatpush.msra.mxu0 %v2016
  %v2018 = vand.u32 %v1815, 4294901760
  %2019 = vmatpush.msra.mxu0 %v2018
  %v2020 = vand.u32 %v1812, 4294901760
  %2021 = vmatpush.msra.mxu0 %v2020
  %v2022 = vand.u32 %v1809, 4294901760
  %2023 = vmatpush.msra.mxu0 %v2022
  %v2024 = vand.u32 %v1806, 4294901760
  %2025 = vmatpush.msra.mxu0 %v2024
  %v2026 = vand.u32 %v1803, 4294901760
  %2027 = vmatpush.msra.mxu0 %v2026
  %v2028 = vand.u32 %v1800, 4294901760
  %2029 = vmatpush.msra.mxu0 %v2028
  %v2030 = vand.u32 %v740, 4294901760
  %v2031 = vsub.f32 %v740, %v2030
  %v2032 = vand.u32 %v2031, 4294901760
  %2033 = vmatmul.f32.gmra.mxu0 %v2032
  %v2034 = vpop.f32.mrf.mxu0
  %v2035 = vadd.f32 %v1989, %v2034
  %v2036 = vand.u32 %v743, 4294901760
  %v2037 = vsub.f32 %v743, %v2036
  %v2038 = vand.u32 %v2037, 4294901760
  %2039 = vmatmul.f32.gmra.mxu0 %v2038
  %v2040 = vpop.f32.mrf.mxu0
  %v2041 = vadd.f32 %v1994, %v2040
  %v2042 = vand.u32 %v746, 4294901760
  %v2043 = vsub.f32 %v746, %v2042
  %v2044 = vand.u32 %v2043, 4294901760
  %2045 = vmatmul.f32.gmra.mxu0 %v2044
  %v2046 = vpop.f32.mrf.mxu0
  %v2047 = vadd.f32 %v1999, %v2046
  %v2048 = vand.u32 %v749, 4294901760
  %v2049 = vsub.f32 %v749, %v2048
  %v2050 = vand.u32 %v2049, 4294901760
  %2051 = vmatmul.f32.gmra.mxu0 %v2050
  %v2052 = vpop.f32.mrf.mxu0
  %v2053 = vadd.f32 %v2004, %v2052
  %2054 = vdwg.mxu0
  %2055 = vmatpush.msra.mxu0 0.0
  %2056 = vmatpush.msra.mxu0 0.0
  %2057 = vmatpush.msra.mxu0 0.0
  %2058 = vmatpush.msra.mxu0 0.0
  %2059 = vmatpush.msra.mxu0 0.0
  %2060 = vmatpush.msra.mxu0 0.0
  %2061 = vmatpush.msra.mxu0 0.0
  %2062 = vmatpush.msra.mxu0 0.0
  %v2063 = vand.u32 %v1821, 4294901760
  %v2064 = vsub.f32 %v1821, %v2063
  %v2065 = vand.u32 %v2064, 4294901760
  %2066 = vmatpush.msra.mxu0 %v2065
  %v2067 = vand.u32 %v1818, 4294901760
  %v2068 = vsub.f32 %v1818, %v2067
  %v2069 = vand.u32 %v2068, 4294901760
  %2070 = vmatpush.msra.mxu0 %v2069
  %v2071 = vand.u32 %v1815, 4294901760
  %v2072 = vsub.f32 %v1815, %v2071
  %v2073 = vand.u32 %v2072, 4294901760
  %2074 = vmatpush.msra.mxu0 %v2073
  %v2075 = vand.u32 %v1812, 4294901760
  %v2076 = vsub.f32 %v1812, %v2075
  %v2077 = vand.u32 %v2076, 4294901760
  %2078 = vmatpush.msra.mxu0 %v2077
  %v2079 = vand.u32 %v1809, 4294901760
  %v2080 = vsub.f32 %v1809, %v2079
  %v2081 = vand.u32 %v2080, 4294901760
  %2082 = vmatpush.msra.mxu0 %v2081
  %v2083 = vand.u32 %v1806, 4294901760
  %v2084 = vsub.f32 %v1806, %v2083
  %v2085 = vand.u32 %v2084, 4294901760
  %2086 = vmatpush.msra.mxu0 %v2085
  %v2087 = vand.u32 %v1803, 4294901760
  %v2088 = vsub.f32 %v1803, %v2087
  %v2089 = vand.u32 %v2088, 4294901760
  %2090 = vmatpush.msra.mxu0 %v2089
  %v2091 = vand.u32 %v1800, 4294901760
  %v2092 = vsub.f32 %v1800, %v2091
  %v2093 = vand.u32 %v2092, 4294901760
  %2094 = vmatpush.msra.mxu0 %v2093
  %v2095 = vand.u32 %v740, 4294901760
  %2096 = vmatmul.f32.gmra.mxu0 %v2095
  %v2097 = vpop.f32.mrf.mxu0
  %v2098 = vadd.f32 %v2035, %v2097
  %v2099 = vand.u32 %v743, 4294901760
  %2100 = vmatmul.f32.gmra.mxu0 %v2099
  %v2101 = vpop.f32.mrf.mxu0
  %v2102 = vadd.f32 %v2041, %v2101
  %v2103 = vand.u32 %v746, 4294901760
  %2104 = vmatmul.f32.gmra.mxu0 %v2103
  %v2105 = vpop.f32.mrf.mxu0
  %v2106 = vadd.f32 %v2047, %v2105
  %v2107 = vand.u32 %v749, 4294901760
  %2108 = vmatmul.f32.gmra.mxu0 %v2107
  %v2109 = vpop.f32.mrf.mxu0
  %v2110 = vadd.f32 %v2053, %v2109
  %2111 = vdwg.mxu0
  %2112 = vmatpush.msra.mxu0 0.0
  %2113 = vmatpush.msra.mxu0 0.0
  %2114 = vmatpush.msra.mxu0 0.0
  %2115 = vmatpush.msra.mxu0 0.0
  %2116 = vmatpush.msra.mxu0 0.0
  %2117 = vmatpush.msra.mxu0 0.0
  %2118 = vmatpush.msra.mxu0 0.0
  %2119 = vmatpush.msra.mxu0 0.0
  %v2120 = vand.u32 %v1821, 4294901760
  %2121 = vmatpush.msra.mxu0 %v2120
  %v2122 = vand.u32 %v1818, 4294901760
  %2123 = vmatpush.msra.mxu0 %v2122
  %v2124 = vand.u32 %v1815, 4294901760
  %2125 = vmatpush.msra.mxu0 %v2124
  %v2126 = vand.u32 %v1812, 4294901760
  %2127 = vmatpush.msra.mxu0 %v2126
  %v2128 = vand.u32 %v1809, 4294901760
  %2129 = vmatpush.msra.mxu0 %v2128
  %v2130 = vand.u32 %v1806, 4294901760
  %2131 = vmatpush.msra.mxu0 %v2130
  %v2132 = vand.u32 %v1803, 4294901760
  %2133 = vmatpush.msra.mxu0 %v2132
  %v2134 = vand.u32 %v1800, 4294901760
  %2135 = vmatpush.msra.mxu0 %v2134
  %v2136 = vand.u32 %v740, 4294901760
  %2137 = vmatmul.f32.gmra.mxu0 %v2136
  %v2138 = vpop.f32.mrf.mxu0
  %v2139 = vadd.f32 %v2098, %v2138
  %v2140 = vand.u32 %v743, 4294901760
  %2141 = vmatmul.f32.gmra.mxu0 %v2140
  %v2142 = vpop.f32.mrf.mxu0
  %v2143 = vadd.f32 %v2102, %v2142
  %v2144 = vand.u32 %v746, 4294901760
  %2145 = vmatmul.f32.gmra.mxu0 %v2144
  %v2146 = vpop.f32.mrf.mxu0
  %v2147 = vadd.f32 %v2106, %v2146
  %v2148 = vand.u32 %v749, 4294901760
  %2149 = vmatmul.f32.gmra.mxu0 %v2148
  %v2150 = vpop.f32.mrf.mxu0
  %v2151 = vadd.f32 %v2110, %v2150
  %2152 = vdwg.mxu0
  %v2153 = vadd.f32 %v1081, %v2139
  %v2154 = vadd.f32 %v1082, %v2143
  %v2155 = vadd.f32 %v2153, %v2147
  %v2156 = vadd.f32 %v2154, %v2151
  %2159 = vrot.lane.b32.xlu0 %v2153, 5
  %v2160 = vpop.permute.xlu0 %2159
  %2161 = vrot.lane.b32.xlu0 %v2154, 5
  %v2162 = vpop.permute.xlu0 %2161
  %2167 = vrot.lane.b32.xlu0 %v2155, 10
  %v2168 = vpop.permute.xlu0 %2167
  %2169 = vrot.lane.b32.xlu0 %v2156, 10
  %v2170 = vpop.permute.xlu0 %2169
  %v2173 = vsel %vm521, %v1234, %v2160
  %v2174 = vsel %vm521, %v1235, %v2162
  %v2175 = vsel %vm1103, %v2173, %v2168
  %v2176 = vsel %vm1103, %v2174, %v2170
  %v2178 = vsel %vm1107, %v2175, 0
  %v2181 = vsel %vm1107, %v2176, 0
  %2183 = vmatpush.msra.mxu0 0.0
  %2184 = vmatpush.msra.mxu0 0.0
  %2185 = vmatpush.msra.mxu0 0.0
  %2186 = vmatpush.msra.mxu0 0.0
  %2187 = vmatpush.msra.mxu0 0.0
  %2188 = vmatpush.msra.mxu0 0.0
  %2189 = vmatpush.msra.mxu0 0.0
  %2190 = vmatpush.msra.mxu0 0.0
  %2191 = vmatpush.msra.mxu0 0.0
  %2192 = vmatpush.msra.mxu0 0.0
  %2193 = vmatpush.msra.mxu0 0.0
  %2194 = vmatpush.msra.mxu0 0.0
  %2195 = vmatpush.msra.mxu0 0.0
  %2196 = vmatpush.msra.mxu0 0.0
  %2197 = vmatpush.msra.mxu0 %v1116
  %2198 = vmatpush.msra.mxu0 %v79
  %2199 = vmatmul.f32.gmra.mxu0 %v2178
  %v2200 = vpop.f32.mrf.mxu0
  %v2201 = vadd.f32 %v1106, %v2200
  %2202 = vmatmul.f32.gmra.mxu0 %v2181
  %v2203 = vpop.f32.mrf.mxu0
  %v2204 = vadd.f32 %v1106, %v2203
  %2205 = vdwg.mxu0
  %v2206 = vxor.u32 %v2201, 2147483648
  %v2207 = vxor.u32 %v2204, 2147483648
  %v2208 = vmul.f32 %v2206, 1.442695
  %v2209 = vpow.pop %v2208
  %v2210 = vmul.f32 %v2207, 1.442695
  %v2211 = vpow.pop %v2210
  %v2212 = vadd.f32 %v2209, 1.0
  %v2213 = vadd.f32 %v2211, 1.0
  %v2214 = vrcp.pop %v2212
  %v2215 = vmul.f32 %v2212, %v2214
  %v2216 = vsub.f32 1.0, %v2215
  %v2217 = vmul.f32 %v2214, %v2216
  %v2218 = vadd.f32 %v2214, %v2217
  %vm2219 = vweird.f32 %v2212
  %vm2220 = vweird.f32 %v2214
  %vm2221 = vmor %vm2219, %vm2220
  %v2222 = vsel %vm2221, %v2214, %v2218
  %v2223 = vand.u32 2147483647, %v2212
  %vm2224 = vcmp.eq.f32.partialorder %v2223, 8.507059e+37
  %v2225 = vand.u32 %v2212, 2147483648
  %v2226 = vor.u32 1.1754944e-38, %v2225
  %v2227 = vsel %vm2224, %v2226, %v2222
  %v2228 = vmul.f32 1.0, %v2227
  %v2229 = vrcp.pop %v2213
  %v2230 = vmul.f32 %v2213, %v2229
  %v2231 = vsub.f32 1.0, %v2230
  %v2232 = vmul.f32 %v2229, %v2231
  %v2233 = vadd.f32 %v2229, %v2232
  %vm2234 = vweird.f32 %v2213
  %vm2235 = vweird.f32 %v2229
  %vm2236 = vmor %vm2234, %vm2235
  %v2237 = vsel %vm2236, %v2229, %v2233
  %v2238 = vand.u32 2147483647, %v2213
  %vm2239 = vcmp.eq.f32.partialorder %v2238, 8.507059e+37
  %v2240 = vand.u32 %v2213, 2147483648
  %v2241 = vor.u32 1.1754944e-38, %v2240
  %v2242 = vsel %vm2239, %v2241, %v2237
  %v2243 = vmul.f32 1.0, %v2242
  %2246 = vrot.lane.b32.xlu0 %v1234, 5
  %v2247 = vpop.permute.xlu0 %2246
  %2248 = vrot.lane.b32.xlu0 %v1235, 5
  %v2249 = vpop.permute.xlu0 %2248
  %v2252 = vmul.f32 %v2228, %v2247
  %v2253 = vmul.f32 %v2243, %v2249
  %2256 = vrot.lane.b32.xlu0 %v2252, 123
  %v2257 = vpop.permute.xlu0 %2256
  %2258 = vrot.lane.b32.xlu0 %v2253, 123
  %v2259 = vpop.permute.xlu0 %2258
  %v2262 = vsel %vm521, %v2257, %v2160
  %v2263 = vsel %vm521, %v2259, %v2162
  %v2264 = vsel %vm1103, %v2262, %v2168
  %v2265 = vsel %vm1103, %v2263, %v2170
  %v2267 = vsel %vm1107, %v2264, 0
  %v2270 = vsel %vm1107, %v2265, 0
  %2272 = vmatpush.msra.mxu0 0.0
  %2273 = vmatpush.msra.mxu0 0.0
  %2274 = vmatpush.msra.mxu0 0.0
  %2275 = vmatpush.msra.mxu0 0.0
  %2276 = vmatpush.msra.mxu0 0.0
  %2277 = vmatpush.msra.mxu0 0.0
  %2278 = vmatpush.msra.mxu0 0.0
  %2279 = vmatpush.msra.mxu0 0.0
  %2280 = vmatpush.msra.mxu0 0.0
  %2281 = vmatpush.msra.mxu0 0.0
  %2282 = vmatpush.msra.mxu0 0.0
  %2283 = vmatpush.msra.mxu0 0.0
  %2284 = vmatpush.msra.mxu0 0.0
  %2285 = vmatpush.msra.mxu0 0.0
  %2286 = vmatpush.msra.mxu0 %v1201
  %2287 = vmatpush.msra.mxu0 %v81
  %2288 = vmatmul.f32.gmra.mxu0 %v2267
  %v2289 = vpop.f32.mrf.mxu0
  %v2290 = vadd.f32 %v1193, %v2289
  %2291 = vmatmul.f32.gmra.mxu0 %v2270
  %v2292 = vpop.f32.mrf.mxu0
  %v2293 = vadd.f32 %v1193, %v2292
  %2294 = vdwg.mxu0
  %v2295 = vtanh.pop %v2290
  %v2296 = vtanh.pop %v2293
  %v2297 = vsub.f32 1.0, %v2228
  %v2298 = vsub.f32 1.0, %v2243
  %v2299 = vmul.f32 %v2297, %v1234
  %v2300 = vmul.f32 %v2298, %v1235
  %v2301 = vmul.f32 %v2228, %v2295
  %v2302 = vmul.f32 %v2243, %v2296
  %v2303 = vadd.f32 %v2299, %v2301
  %v2304 = vadd.f32 %v2300, %v2302
  %2305 = vmatpush.msra.mxu0 0.0
  %2306 = vmatpush.msra.mxu0 0.0
  %2307 = vmatpush.msra.mxu0 0.0
  %2308 = vmatpush.msra.mxu0 0.0
  %2309 = vmatpush.msra.mxu0 0.0
  %2310 = vmatpush.msra.mxu0 0.0
  %2311 = vmatpush.msra.mxu0 0.0
  %2312 = vmatpush.msra.mxu0 0.0
  %2313 = vmatpush.msra.mxu0 0.0
  %2314 = vmatpush.msra.mxu0 0.0
  %2315 = vmatpush.msra.mxu0 0.0
  %2316 = vmatpush.msra.mxu0 0.0
  %v2317 = vand.u32 %v2304, 4294901760
  %2318 = vmatpush.msra.mxu0 %v2317
  %v2319 = vand.u32 %v2303, 4294901760
  %2320 = vmatpush.msra.mxu0 %v2319
  %v2321 = vand.u32 %v1235, 4294901760
  %2322 = vmatpush.msra.mxu0 %v2321
  %v2323 = vand.u32 %v1234, 4294901760
  %2324 = vmatpush.msra.mxu0 %v2323
  %v2325 = vand.u32 %v148, 4294901760
  %v2326 = vsub.f32 %v148, %v2325
  %v2327 = vand.u32 %v2326, 4294901760
  %v2328 = vsub.f32 %v2326, %v2327
  %v2329 = vand.u32 %v2328, 4294901760
  %2330 = vmatmul.f32.gmra.mxu0 %v2329
  %v2331 = vpop.f32.mrf.mxu0
  %v2332 = vadd.f32 0.0, %v2331
  %v2333 = vand.u32 %v151, 4294901760
  %v2334 = vsub.f32 %v151, %v2333
  %v2335 = vand.u32 %v2334, 4294901760
  %v2336 = vsub.f32 %v2334, %v2335
  %v2337 = vand.u32 %v2336, 4294901760
  %2338 = vmatmul.f32.gmra.mxu0 %v2337
  %v2339 = vpop.f32.mrf.mxu0
  %v2340 = vadd.f32 0.0, %v2339
  %v2341 = vand.u32 %v154, 4294901760
  %v2342 = vsub.f32 %v154, %v2341
  %v2343 = vand.u32 %v2342, 4294901760
  %v2344 = vsub.f32 %v2342, %v2343
  %v2345 = vand.u32 %v2344, 4294901760
  %2346 = vmatmul.f32.gmra.mxu0 %v2345
  %v2347 = vpop.f32.mrf.mxu0
  %v2348 = vadd.f32 0.0, %v2347
  %v2349 = vand.u32 %v157, 4294901760
  %v2350 = vsub.f32 %v157, %v2349
  %v2351 = vand.u32 %v2350, 4294901760
  %v2352 = vsub.f32 %v2350, %v2351
  %v2353 = vand.u32 %v2352, 4294901760
  %2354 = vmatmul.f32.gmra.mxu0 %v2353
  %v2355 = vpop.f32.mrf.mxu0
  %v2356 = vadd.f32 0.0, %v2355
  %v2357 = vand.u32 %v160, 4294901760
  %v2358 = vsub.f32 %v160, %v2357
  %v2359 = vand.u32 %v2358, 4294901760
  %v2360 = vsub.f32 %v2358, %v2359
  %v2361 = vand.u32 %v2360, 4294901760
  %2362 = vmatmul.f32.gmra.mxu0 %v2361
  %v2363 = vpop.f32.mrf.mxu0
  %v2364 = vadd.f32 0.0, %v2363
  %v2365 = vand.u32 %v163, 4294901760
  %v2366 = vsub.f32 %v163, %v2365
  %v2367 = vand.u32 %v2366, 4294901760
  %v2368 = vsub.f32 %v2366, %v2367
  %v2369 = vand.u32 %v2368, 4294901760
  %2370 = vmatmul.f32.gmra.mxu0 %v2369
  %v2371 = vpop.f32.mrf.mxu0
  %v2372 = vadd.f32 0.0, %v2371
  %v2373 = vand.u32 %v166, 4294901760
  %v2374 = vsub.f32 %v166, %v2373
  %v2375 = vand.u32 %v2374, 4294901760
  %v2376 = vsub.f32 %v2374, %v2375
  %v2377 = vand.u32 %v2376, 4294901760
  %2378 = vmatmul.f32.gmra.mxu0 %v2377
  %v2379 = vpop.f32.mrf.mxu0
  %v2380 = vadd.f32 0.0, %v2379
  %v2381 = vand.u32 %v169, 4294901760
  %v2382 = vsub.f32 %v169, %v2381
  %v2383 = vand.u32 %v2382, 4294901760
  %v2384 = vsub.f32 %v2382, %v2383
  %v2385 = vand.u32 %v2384, 4294901760
  %2386 = vmatmul.f32.gmra.mxu0 %v2385
  %v2387 = vpop.f32.mrf.mxu0
  %v2388 = vadd.f32 0.0, %v2387
  %2389 = vdwg.mxu0
  %2390 = vmatpush.msra.mxu0 0.0
  %2391 = vmatpush.msra.mxu0 0.0
  %2392 = vmatpush.msra.mxu0 0.0
  %2393 = vmatpush.msra.mxu0 0.0
  %2394 = vmatpush.msra.mxu0 0.0
  %2395 = vmatpush.msra.mxu0 0.0
  %2396 = vmatpush.msra.mxu0 0.0
  %2397 = vmatpush.msra.mxu0 0.0
  %2398 = vmatpush.msra.mxu0 0.0
  %2399 = vmatpush.msra.mxu0 0.0
  %2400 = vmatpush.msra.mxu0 0.0
  %2401 = vmatpush.msra.mxu0 0.0
  %v2402 = vand.u32 %v2304, 4294901760
  %v2403 = vsub.f32 %v2304, %v2402
  %v2404 = vand.u32 %v2403, 4294901760
  %v2405 = vsub.f32 %v2403, %v2404
  %v2406 = vand.u32 %v2405, 4294901760
  %2407 = vmatpush.msra.mxu0 %v2406
  %v2408 = vand.u32 %v2303, 4294901760
  %v2409 = vsub.f32 %v2303, %v2408
  %v2410 = vand.u32 %v2409, 4294901760
  %v2411 = vsub.f32 %v2409, %v2410
  %v2412 = vand.u32 %v2411, 4294901760
  %2413 = vmatpush.msra.mxu0 %v2412
  %v2414 = vand.u32 %v1235, 4294901760
  %v2415 = vsub.f32 %v1235, %v2414
  %v2416 = vand.u32 %v2415, 4294901760
  %v2417 = vsub.f32 %v2415, %v2416
  %v2418 = vand.u32 %v2417, 4294901760
  %2419 = vmatpush.msra.mxu0 %v2418
  %v2420 = vand.u32 %v1234, 4294901760
  %v2421 = vsub.f32 %v1234, %v2420
  %v2422 = vand.u32 %v2421, 4294901760
  %v2423 = vsub.f32 %v2421, %v2422
  %v2424 = vand.u32 %v2423, 4294901760
  %2425 = vmatpush.msra.mxu0 %v2424
  %v2426 = vand.u32 %v148, 4294901760
  %2427 = vmatmul.f32.gmra.mxu0 %v2426
  %v2428 = vpop.f32.mrf.mxu0
  %v2429 = vadd.f32 %v2332, %v2428
  %v2430 = vand.u32 %v151, 4294901760
  %2431 = vmatmul.f32.gmra.mxu0 %v2430
  %v2432 = vpop.f32.mrf.mxu0
  %v2433 = vadd.f32 %v2340, %v2432
  %v2434 = vand.u32 %v154, 4294901760
  %2435 = vmatmul.f32.gmra.mxu0 %v2434
  %v2436 = vpop.f32.mrf.mxu0
  %v2437 = vadd.f32 %v2348, %v2436
  %v2438 = vand.u32 %v157, 4294901760
  %2439 = vmatmul.f32.gmra.mxu0 %v2438
  %v2440 = vpop.f32.mrf.mxu0
  %v2441 = vadd.f32 %v2356, %v2440
  %v2442 = vand.u32 %v160, 4294901760
  %2443 = vmatmul.f32.gmra.mxu0 %v2442
  %v2444 = vpop.f32.mrf.mxu0
  %v2445 = vadd.f32 %v2364, %v2444
  %v2446 = vand.u32 %v163, 4294901760
  %2447 = vmatmul.f32.gmra.mxu0 %v2446
  %v2448 = vpop.f32.mrf.mxu0
  %v2449 = vadd.f32 %v2372, %v2448
  %v2450 = vand.u32 %v166, 4294901760
  %2451 = vmatmul.f32.gmra.mxu0 %v2450
  %v2452 = vpop.f32.mrf.mxu0
  %v2453 = vadd.f32 %v2380, %v2452
  %v2454 = vand.u32 %v169, 4294901760
  %2455 = vmatmul.f32.gmra.mxu0 %v2454
  %v2456 = vpop.f32.mrf.mxu0
  %v2457 = vadd.f32 %v2388, %v2456
  %2458 = vdwg.mxu0
  %2459 = vmatpush.msra.mxu0 0.0
  %2460 = vmatpush.msra.mxu0 0.0
  %2461 = vmatpush.msra.mxu0 0.0
  %2462 = vmatpush.msra.mxu0 0.0
  %2463 = vmatpush.msra.mxu0 0.0
  %2464 = vmatpush.msra.mxu0 0.0
  %2465 = vmatpush.msra.mxu0 0.0
  %2466 = vmatpush.msra.mxu0 0.0
  %2467 = vmatpush.msra.mxu0 0.0
  %2468 = vmatpush.msra.mxu0 0.0
  %2469 = vmatpush.msra.mxu0 0.0
  %2470 = vmatpush.msra.mxu0 0.0
  %v2471 = vand.u32 %v2304, 4294901760
  %v2472 = vsub.f32 %v2304, %v2471
  %2473 = vmatpush.msra.mxu0 %v2472
  %v2474 = vand.u32 %v2303, 4294901760
  %v2475 = vsub.f32 %v2303, %v2474
  %2476 = vmatpush.msra.mxu0 %v2475
  %v2477 = vand.u32 %v1235, 4294901760
  %v2478 = vsub.f32 %v1235, %v2477
  %2479 = vmatpush.msra.mxu0 %v2478
  %v2480 = vand.u32 %v1234, 4294901760
  %v2481 = vsub.f32 %v1234, %v2480
  %2482 = vmatpush.msra.mxu0 %v2481
  %v2483 = vand.u32 %v148, 4294901760
  %v2484 = vsub.f32 %v148, %v2483
  %2485 = vmatmul.f32.gmra.mxu0 %v2484
  %v2486 = vpop.f32.mrf.mxu0
  %v2487 = vadd.f32 %v2429, %v2486
  %v2488 = vand.u32 %v151, 4294901760
  %v2489 = vsub.f32 %v151, %v2488
  %2490 = vmatmul.f32.gmra.mxu0 %v2489
  %v2491 = vpop.f32.mrf.mxu0
  %v2492 = vadd.f32 %v2433, %v2491
  %v2493 = vand.u32 %v154, 4294901760
  %v2494 = vsub.f32 %v154, %v2493
  %2495 = vmatmul.f32.gmra.mxu0 %v2494
  %v2496 = vpop.f32.mrf.mxu0
  %v2497 = vadd.f32 %v2437, %v2496
  %v2498 = vand.u32 %v157, 4294901760
  %v2499 = vsub.f32 %v157, %v2498
  %2500 = vmatmul.f32.gmra.mxu0 %v2499
  %v2501 = vpop.f32.mrf.mxu0
  %v2502 = vadd.f32 %v2441, %v2501
  %v2503 = vand.u32 %v160, 4294901760
  %v2504 = vsub.f32 %v160, %v2503
  %2505 = vmatmul.f32.gmra.mxu0 %v2504
  %v2506 = vpop.f32.mrf.mxu0
  %v2507 = vadd.f32 %v2445, %v2506
  %v2508 = vand.u32 %v163, 4294901760
  %v2509 = vsub.f32 %v163, %v2508
  %2510 = vmatmul.f32.gmra.mxu0 %v2509
  %v2511 = vpop.f32.mrf.mxu0
  %v2512 = vadd.f32 %v2449, %v2511
  %v2513 = vand.u32 %v166, 4294901760
  %v2514 = vsub.f32 %v166, %v2513
  %2515 = vmatmul.f32.gmra.mxu0 %v2514
  %v2516 = vpop.f32.mrf.mxu0
  %v2517 = vadd.f32 %v2453, %v2516
  %v2518 = vand.u32 %v169, 4294901760
  %v2519 = vsub.f32 %v169, %v2518
  %2520 = vmatmul.f32.gmra.mxu0 %v2519
  %v2521 = vpop.f32.mrf.mxu0
  %v2522 = vadd.f32 %v2457, %v2521
  %2523 = vdwg.mxu0
  %2524 = vmatpush.msra.mxu0 0.0
  %2525 = vmatpush.msra.mxu0 0.0
  %2526 = vmatpush.msra.mxu0 0.0
  %2527 = vmatpush.msra.mxu0 0.0
  %2528 = vmatpush.msra.mxu0 0.0
  %2529 = vmatpush.msra.mxu0 0.0
  %2530 = vmatpush.msra.mxu0 0.0
  %2531 = vmatpush.msra.mxu0 0.0
  %2532 = vmatpush.msra.mxu0 0.0
  %2533 = vmatpush.msra.mxu0 0.0
  %2534 = vmatpush.msra.mxu0 0.0
  %2535 = vmatpush.msra.mxu0 0.0
  %v2536 = vand.u32 %v2304, 4294901760
  %2537 = vmatpush.msra.mxu0 %v2536
  %v2538 = vand.u32 %v2303, 4294901760
  %2539 = vmatpush.msra.mxu0 %v2538
  %v2540 = vand.u32 %v1235, 4294901760
  %2541 = vmatpush.msra.mxu0 %v2540
  %v2542 = vand.u32 %v1234, 4294901760
  %2543 = vmatpush.msra.mxu0 %v2542
  %v2544 = vand.u32 %v148, 4294901760
  %v2545 = vsub.f32 %v148, %v2544
  %v2546 = vand.u32 %v2545, 4294901760
  %2547 = vmatmul.f32.gmra.mxu0 %v2546
  %v2548 = vpop.f32.mrf.mxu0
  %v2549 = vadd.f32 %v2487, %v2548
  %v2550 = vand.u32 %v151, 4294901760
  %v2551 = vsub.f32 %v151, %v2550
  %v2552 = vand.u32 %v2551, 4294901760
  %2553 = vmatmul.f32.gmra.mxu0 %v2552
  %v2554 = vpop.f32.mrf.mxu0
  %v2555 = vadd.f32 %v2492, %v2554
  %v2556 = vand.u32 %v154, 4294901760
  %v2557 = vsub.f32 %v154, %v2556
  %v2558 = vand.u32 %v2557, 4294901760
  %2559 = vmatmul.f32.gmra.mxu0 %v2558
  %v2560 = vpop.f32.mrf.mxu0
  %v2561 = vadd.f32 %v2497, %v2560
  %v2562 = vand.u32 %v157, 4294901760
  %v2563 = vsub.f32 %v157, %v2562
  %v2564 = vand.u32 %v2563, 4294901760
  %2565 = vmatmul.f32.gmra.mxu0 %v2564
  %v2566 = vpop.f32.mrf.mxu0
  %v2567 = vadd.f32 %v2502, %v2566
  %v2568 = vand.u32 %v160, 4294901760
  %v2569 = vsub.f32 %v160, %v2568
  %v2570 = vand.u32 %v2569, 4294901760
  %2571 = vmatmul.f32.gmra.mxu0 %v2570
  %v2572 = vpop.f32.mrf.mxu0
  %v2573 = vadd.f32 %v2507, %v2572
  %v2574 = vand.u32 %v163, 4294901760
  %v2575 = vsub.f32 %v163, %v2574
  %v2576 = vand.u32 %v2575, 4294901760
  %2577 = vmatmul.f32.gmra.mxu0 %v2576
  %v2578 = vpop.f32.mrf.mxu0
  %v2579 = vadd.f32 %v2512, %v2578
  %v2580 = vand.u32 %v166, 4294901760
  %v2581 = vsub.f32 %v166, %v2580
  %v2582 = vand.u32 %v2581, 4294901760
  %2583 = vmatmul.f32.gmra.mxu0 %v2582
  %v2584 = vpop.f32.mrf.mxu0
  %v2585 = vadd.f32 %v2517, %v2584
  %v2586 = vand.u32 %v169, 4294901760
  %v2587 = vsub.f32 %v169, %v2586
  %v2588 = vand.u32 %v2587, 4294901760
  %2589 = vmatmul.f32.gmra.mxu0 %v2588
  %v2590 = vpop.f32.mrf.mxu0
  %v2591 = vadd.f32 %v2522, %v2590
  %2592 = vdwg.mxu0
  %2593 = vmatpush.msra.mxu0 0.0
  %2594 = vmatpush.msra.mxu0 0.0
  %2595 = vmatpush.msra.mxu0 0.0
  %2596 = vmatpush.msra.mxu0 0.0
  %2597 = vmatpush.msra.mxu0 0.0
  %2598 = vmatpush.msra.mxu0 0.0
  %2599 = vmatpush.msra.mxu0 0.0
  %2600 = vmatpush.msra.mxu0 0.0
  %2601 = vmatpush.msra.mxu0 0.0
  %2602 = vmatpush.msra.mxu0 0.0
  %2603 = vmatpush.msra.mxu0 0.0
  %2604 = vmatpush.msra.mxu0 0.0
  %v2605 = vand.u32 %v2304, 4294901760
  %v2606 = vsub.f32 %v2304, %v2605
  %v2607 = vand.u32 %v2606, 4294901760
  %2608 = vmatpush.msra.mxu0 %v2607
  %v2609 = vand.u32 %v2303, 4294901760
  %v2610 = vsub.f32 %v2303, %v2609
  %v2611 = vand.u32 %v2610, 4294901760
  %2612 = vmatpush.msra.mxu0 %v2611
  %v2613 = vand.u32 %v1235, 4294901760
  %v2614 = vsub.f32 %v1235, %v2613
  %v2615 = vand.u32 %v2614, 4294901760
  %2616 = vmatpush.msra.mxu0 %v2615
  %v2617 = vand.u32 %v1234, 4294901760
  %v2618 = vsub.f32 %v1234, %v2617
  %v2619 = vand.u32 %v2618, 4294901760
  %2620 = vmatpush.msra.mxu0 %v2619
  %v2621 = vand.u32 %v148, 4294901760
  %2622 = vmatmul.f32.gmra.mxu0 %v2621
  %v2623 = vpop.f32.mrf.mxu0
  %v2624 = vadd.f32 %v2549, %v2623
  %v2625 = vand.u32 %v151, 4294901760
  %2626 = vmatmul.f32.gmra.mxu0 %v2625
  %v2627 = vpop.f32.mrf.mxu0
  %v2628 = vadd.f32 %v2555, %v2627
  %v2629 = vand.u32 %v154, 4294901760
  %2630 = vmatmul.f32.gmra.mxu0 %v2629
  %v2631 = vpop.f32.mrf.mxu0
  %v2632 = vadd.f32 %v2561, %v2631
  %v2633 = vand.u32 %v157, 4294901760
  %2634 = vmatmul.f32.gmra.mxu0 %v2633
  %v2635 = vpop.f32.mrf.mxu0
  %v2636 = vadd.f32 %v2567, %v2635
  %v2637 = vand.u32 %v160, 4294901760
  %2638 = vmatmul.f32.gmra.mxu0 %v2637
  %v2639 = vpop.f32.mrf.mxu0
  %v2640 = vadd.f32 %v2573, %v2639
  %v2641 = vand.u32 %v163, 4294901760
  %2642 = vmatmul.f32.gmra.mxu0 %v2641
  %v2643 = vpop.f32.mrf.mxu0
  %v2644 = vadd.f32 %v2579, %v2643
  %v2645 = vand.u32 %v166, 4294901760
  %2646 = vmatmul.f32.gmra.mxu0 %v2645
  %v2647 = vpop.f32.mrf.mxu0
  %v2648 = vadd.f32 %v2585, %v2647
  %v2649 = vand.u32 %v169, 4294901760
  %2650 = vmatmul.f32.gmra.mxu0 %v2649
  %v2651 = vpop.f32.mrf.mxu0
  %v2652 = vadd.f32 %v2591, %v2651
  %2653 = vdwg.mxu0
  %2654 = vmatpush.msra.mxu0 0.0
  %2655 = vmatpush.msra.mxu0 0.0
  %2656 = vmatpush.msra.mxu0 0.0
  %2657 = vmatpush.msra.mxu0 0.0
  %2658 = vmatpush.msra.mxu0 0.0
  %2659 = vmatpush.msra.mxu0 0.0
  %2660 = vmatpush.msra.mxu0 0.0
  %2661 = vmatpush.msra.mxu0 0.0
  %2662 = vmatpush.msra.mxu0 0.0
  %2663 = vmatpush.msra.mxu0 0.0
  %2664 = vmatpush.msra.mxu0 0.0
  %2665 = vmatpush.msra.mxu0 0.0
  %v2666 = vand.u32 %v2304, 4294901760
  %2667 = vmatpush.msra.mxu0 %v2666
  %v2668 = vand.u32 %v2303, 4294901760
  %2669 = vmatpush.msra.mxu0 %v2668
  %v2670 = vand.u32 %v1235, 4294901760
  %2671 = vmatpush.msra.mxu0 %v2670
  %v2672 = vand.u32 %v1234, 4294901760
  %2673 = vmatpush.msra.mxu0 %v2672
  %v2674 = vand.u32 %v148, 4294901760
  %2675 = vmatmul.f32.gmra.mxu0 %v2674
  %v2676 = vpop.f32.mrf.mxu0
  %v2677 = vadd.f32 %v2624, %v2676
  %v2678 = vand.u32 %v151, 4294901760
  %2679 = vmatmul.f32.gmra.mxu0 %v2678
  %v2680 = vpop.f32.mrf.mxu0
  %v2681 = vadd.f32 %v2628, %v2680
  %v2682 = vand.u32 %v154, 4294901760
  %2683 = vmatmul.f32.gmra.mxu0 %v2682
  %v2684 = vpop.f32.mrf.mxu0
  %v2685 = vadd.f32 %v2632, %v2684
  %v2686 = vand.u32 %v157, 4294901760
  %2687 = vmatmul.f32.gmra.mxu0 %v2686
  %v2688 = vpop.f32.mrf.mxu0
  %v2689 = vadd.f32 %v2636, %v2688
  %v2690 = vand.u32 %v160, 4294901760
  %2691 = vmatmul.f32.gmra.mxu0 %v2690
  %v2692 = vpop.f32.mrf.mxu0
  %v2693 = vadd.f32 %v2640, %v2692
  %v2694 = vand.u32 %v163, 4294901760
  %2695 = vmatmul.f32.gmra.mxu0 %v2694
  %v2696 = vpop.f32.mrf.mxu0
  %v2697 = vadd.f32 %v2644, %v2696
  %v2698 = vand.u32 %v166, 4294901760
  %2699 = vmatmul.f32.gmra.mxu0 %v2698
  %v2700 = vpop.f32.mrf.mxu0
  %v2701 = vadd.f32 %v2648, %v2700
  %v2702 = vand.u32 %v169, 4294901760
  %2703 = vmatmul.f32.gmra.mxu0 %v2702
  %v2704 = vpop.f32.mrf.mxu0
  %v2705 = vadd.f32 %v2652, %v2704
  %2706 = vdwg.mxu0
  %v2708 = vsel %vm521, %v2677, 0
  %v2711 = vsel %vm521, %v2681, 0
  %v2714 = vsel %vm521, %v2685, 0
  %v2717 = vsel %vm521, %v2689, 0
  %v2720 = vsel %vm521, %v2693, 0
  %v2723 = vsel %vm521, %v2697, 0
  %v2726 = vsel %vm521, %v2701, 0
  %v2729 = vsel %vm521, %v2705, 0
  %2731 = vmatpush.msra.mxu0 0.0
  %2732 = vmatpush.msra.mxu0 0.0
  %2733 = vmatpush.msra.mxu0 0.0
  %2734 = vmatpush.msra.mxu0 0.0
  %2735 = vmatpush.msra.mxu0 0.0
  %2736 = vmatpush.msra.mxu0 0.0
  %2737 = vmatpush.msra.mxu0 0.0
  %2738 = vmatpush.msra.mxu0 0.0
  %2739 = vmatpush.msra.mxu0 0.0
  %2740 = vmatpush.msra.mxu0 0.0
  %2741 = vmatpush.msra.mxu0 0.0
  %2742 = vmatpush.msra.mxu0 0.0
  %2743 = vmatpush.msra.mxu0 0.0
  %2744 = vmatpush.msra.mxu0 0.0
  %2745 = vmatpush.msra.mxu0 0.0
  %2746 = vmatpush.msra.mxu0 %v547
  %2747 = vmatmul.f32.gmra.mxu0 %v2708
  %v2748 = vpop.f32.mrf.mxu0
  %v2749 = vadd.f32 %v135, %v2748
  %2750 = vmatmul.f32.gmra.mxu0 %v2711
  %v2751 = vpop.f32.mrf.mxu0
  %v2752 = vadd.f32 %v138, %v2751
  %2753 = vmatmul.f32.gmra.mxu0 %v2714
  %v2754 = vpop.f32.mrf.mxu0
  %v2755 = vadd.f32 %v141, %v2754
  %2756 = vmatmul.f32.gmra.mxu0 %v2717
  %v2757 = vpop.f32.mrf.mxu0
  %v2758 = vadd.f32 %v144, %v2757
  %2759 = vmatmul.f32.gmra.mxu0 %v2720
  %v2760 = vpop.f32.mrf.mxu0
  %v2761 = vadd.f32 %v135, %v2760
  %2762 = vmatmul.f32.gmra.mxu0 %v2723
  %v2763 = vpop.f32.mrf.mxu0
  %v2764 = vadd.f32 %v138, %v2763
  %2765 = vmatmul.f32.gmra.mxu0 %v2726
  %v2766 = vpop.f32.mrf.mxu0
  %v2767 = vadd.f32 %v141, %v2766
  %2768 = vmatmul.f32.gmra.mxu0 %v2729
  %v2769 = vpop.f32.mrf.mxu0
  %v2770 = vadd.f32 %v144, %v2769
  %2771 = vdwg.mxu0
  %v2772 = vmax.f32 %v2749, 0.0
  %v2773 = vmax.f32 %v2752, 0.0
  %v2774 = vmax.f32 %v2755, 0.0
  %v2775 = vmax.f32 %v2758, 0.0
  %v2776 = vmax.f32 %v2761, 0.0
  %v2777 = vmax.f32 %v2764, 0.0
  %v2778 = vmax.f32 %v2767, 0.0
  %v2779 = vmax.f32 %v2770, 0.0
  %v2781 = vsel %vm599, %v2772, 0
  %v2784 = vsel %vm599, %v2773, 0
  %v2787 = vsel %vm599, %v2774, 0
  %v2790 = vsel %vm599, %v2775, 0
  %v2793 = vsel %vm599, %v2776, 0
  %v2796 = vsel %vm599, %v2777, 0
  %v2799 = vsel %vm599, %v2778, 0
  %v2802 = vsel %vm599, %v2779, 0
  %2804 = vmatpush.msra.mxu0 0.0
  %2805 = vmatpush.msra.mxu0 0.0
  %2806 = vmatpush.msra.mxu0 0.0
  %2807 = vmatpush.msra.mxu0 0.0
  %2808 = vmatpush.msra.mxu0 0.0
  %2809 = vmatpush.msra.mxu0 0.0
  %2810 = vmatpush.msra.mxu0 0.0
  %2811 = vmatpush.msra.mxu0 0.0
  %2812 = vmatpush.msra.mxu0 %v68
  %2813 = vmatpush.msra.mxu0 %v67
  %2814 = vmatpush.msra.mxu0 %v66
  %2815 = vmatpush.msra.mxu0 %v65
  %2816 = vmatpush.msra.mxu0 %v64
  %2817 = vmatpush.msra.mxu0 %v63
  %2818 = vmatpush.msra.mxu0 %v62
  %2819 = vmatpush.msra.mxu0 %v61
  %2820 = vmatmul.f32.gmra.mxu0 %v2781
  %v2821 = vpop.f32.mrf.mxu0
  %v2822 = vadd.f32 %v598, %v2821
  %2823 = vmatmul.f32.gmra.mxu0 %v2784
  %v2824 = vpop.f32.mrf.mxu0
  %v2825 = vadd.f32 %v598, %v2824
  %2826 = vmatmul.f32.gmra.mxu0 %v2787
  %v2827 = vpop.f32.mrf.mxu0
  %v2828 = vadd.f32 %v598, %v2827
  %2829 = vmatmul.f32.gmra.mxu0 %v2790
  %v2830 = vpop.f32.mrf.mxu0
  %v2831 = vadd.f32 %v598, %v2830
  %2832 = vmatmul.f32.gmra.mxu0 %v2793
  %v2833 = vpop.f32.mrf.mxu0
  %v2834 = vadd.f32 %v598, %v2833
  %2835 = vmatmul.f32.gmra.mxu0 %v2796
  %v2836 = vpop.f32.mrf.mxu0
  %v2837 = vadd.f32 %v598, %v2836
  %2838 = vmatmul.f32.gmra.mxu0 %v2799
  %v2839 = vpop.f32.mrf.mxu0
  %v2840 = vadd.f32 %v598, %v2839
  %2841 = vmatmul.f32.gmra.mxu0 %v2802
  %v2842 = vpop.f32.mrf.mxu0
  %v2843 = vadd.f32 %v598, %v2842
  %2844 = vdwg.mxu0
  %v2845 = vmax.f32 %v2822, 0.0
  %v2846 = vmax.f32 %v2825, 0.0
  %v2847 = vmax.f32 %v2828, 0.0
  %v2848 = vmax.f32 %v2831, 0.0
  %v2849 = vmax.f32 %v2834, 0.0
  %v2850 = vmax.f32 %v2837, 0.0
  %v2851 = vmax.f32 %v2840, 0.0
  %v2852 = vmax.f32 %v2843, 0.0
  %v2854 = vsel %vm599, %v2845, 0
  %v2857 = vsel %vm599, %v2846, 0
  %v2860 = vsel %vm599, %v2847, 0
  %v2863 = vsel %vm599, %v2848, 0
  %v2866 = vsel %vm599, %v2849, 0
  %v2869 = vsel %vm599, %v2850, 0
  %v2872 = vsel %vm599, %v2851, 0
  %v2875 = vsel %vm599, %v2852, 0
  %2877 = vmatpush.msra.mxu0 0.0
  %2878 = vmatpush.msra.mxu0 0.0
  %2879 = vmatpush.msra.mxu0 0.0
  %2880 = vmatpush.msra.mxu0 0.0
  %2881 = vmatpush.msra.mxu0 0.0
  %2882 = vmatpush.msra.mxu0 0.0
  %2883 = vmatpush.msra.mxu0 0.0
  %2884 = vmatpush.msra.mxu0 0.0
  %2885 = vmatpush.msra.mxu0 %v77
  %2886 = vmatpush.msra.mxu0 %v76
  %2887 = vmatpush.msra.mxu0 %v75
  %2888 = vmatpush.msra.mxu0 %v74
  %2889 = vmatpush.msra.mxu0 %v73
  %2890 = vmatpush.msra.mxu0 %v72
  %2891 = vmatpush.msra.mxu0 %v71
  %2892 = vmatpush.msra.mxu0 %v70
  %2893 = vmatmul.f32.gmra.mxu0 %v2854
  %v2894 = vpop.f32.mrf.mxu0
  %v2895 = vadd.f32 %v673, %v2894
  %2896 = vmatmul.f32.gmra.mxu0 %v2857
  %v2897 = vpop.f32.mrf.mxu0
  %v2898 = vadd.f32 %v673, %v2897
  %2899 = vmatmul.f32.gmra.mxu0 %v2860
  %v2900 = vpop.f32.mrf.mxu0
  %v2901 = vadd.f32 %v673, %v2900
  %2902 = vmatmul.f32.gmra.mxu0 %v2863
  %v2903 = vpop.f32.mrf.mxu0
  %v2904 = vadd.f32 %v673, %v2903
  %2905 = vmatmul.f32.gmra.mxu0 %v2866
  %v2906 = vpop.f32.mrf.mxu0
  %v2907 = vadd.f32 %v673, %v2906
  %2908 = vmatmul.f32.gmra.mxu0 %v2869
  %v2909 = vpop.f32.mrf.mxu0
  %v2910 = vadd.f32 %v673, %v2909
  %2911 = vmatmul.f32.gmra.mxu0 %v2872
  %v2912 = vpop.f32.mrf.mxu0
  %v2913 = vadd.f32 %v673, %v2912
  %2914 = vmatmul.f32.gmra.mxu0 %v2875
  %v2915 = vpop.f32.mrf.mxu0
  %v2916 = vadd.f32 %v673, %v2915
  %2917 = vdwg.mxu0
  %2918 = vmatpush.msra.mxu0 0.0
  %2919 = vmatpush.msra.mxu0 0.0
  %2920 = vmatpush.msra.mxu0 0.0
  %2921 = vmatpush.msra.mxu0 0.0
  %2922 = vmatpush.msra.mxu0 0.0
  %2923 = vmatpush.msra.mxu0 0.0
  %2924 = vmatpush.msra.mxu0 0.0
  %2925 = vmatpush.msra.mxu0 0.0
  %v2926 = vand.u32 %v2916, 4294901760
  %2927 = vmatpush.msra.mxu0 %v2926
  %v2928 = vand.u32 %v2913, 4294901760
  %2929 = vmatpush.msra.mxu0 %v2928
  %v2930 = vand.u32 %v2910, 4294901760
  %2931 = vmatpush.msra.mxu0 %v2930
  %v2932 = vand.u32 %v2907, 4294901760
  %2933 = vmatpush.msra.mxu0 %v2932
  %v2934 = vand.u32 %v2904, 4294901760
  %2935 = vmatpush.msra.mxu0 %v2934
  %v2936 = vand.u32 %v2901, 4294901760
  %2937 = vmatpush.msra.mxu0 %v2936
  %v2938 = vand.u32 %v2898, 4294901760
  %2939 = vmatpush.msra.mxu0 %v2938
  %v2940 = vand.u32 %v2895, 4294901760
  %2941 = vmatpush.msra.mxu0 %v2940
  %v2942 = vand.u32 %v740, 4294901760
  %v2943 = vsub.f32 %v740, %v2942
  %v2944 = vand.u32 %v2943, 4294901760
  %v2945 = vsub.f32 %v2943, %v2944
  %v2946 = vand.u32 %v2945, 4294901760
  %2947 = vmatmul.f32.gmra.mxu0 %v2946
  %v2948 = vpop.f32.mrf.mxu0
  %v2949 = vadd.f32 0.0, %v2948
  %v2950 = vand.u32 %v743, 4294901760
  %v2951 = vsub.f32 %v743, %v2950
  %v2952 = vand.u32 %v2951, 4294901760
  %v2953 = vsub.f32 %v2951, %v2952
  %v2954 = vand.u32 %v2953, 4294901760
  %2955 = vmatmul.f32.gmra.mxu0 %v2954
  %v2956 = vpop.f32.mrf.mxu0
  %v2957 = vadd.f32 0.0, %v2956
  %v2958 = vand.u32 %v746, 4294901760
  %v2959 = vsub.f32 %v746, %v2958
  %v2960 = vand.u32 %v2959, 4294901760
  %v2961 = vsub.f32 %v2959, %v2960
  %v2962 = vand.u32 %v2961, 4294901760
  %2963 = vmatmul.f32.gmra.mxu0 %v2962
  %v2964 = vpop.f32.mrf.mxu0
  %v2965 = vadd.f32 0.0, %v2964
  %v2966 = vand.u32 %v749, 4294901760
  %v2967 = vsub.f32 %v749, %v2966
  %v2968 = vand.u32 %v2967, 4294901760
  %v2969 = vsub.f32 %v2967, %v2968
  %v2970 = vand.u32 %v2969, 4294901760
  %2971 = vmatmul.f32.gmra.mxu0 %v2970
  %v2972 = vpop.f32.mrf.mxu0
  %v2973 = vadd.f32 0.0, %v2972
  %2974 = vdwg.mxu0
  %2975 = vmatpush.msra.mxu0 0.0
  %2976 = vmatpush.msra.mxu0 0.0
  %2977 = vmatpush.msra.mxu0 0.0
  %2978 = vmatpush.msra.mxu0 0.0
  %2979 = vmatpush.msra.mxu0 0.0
  %2980 = vmatpush.msra.mxu0 0.0
  %2981 = vmatpush.msra.mxu0 0.0
  %2982 = vmatpush.msra.mxu0 0.0
  %v2983 = vand.u32 %v2916, 4294901760
  %v2984 = vsub.f32 %v2916, %v2983
  %v2985 = vand.u32 %v2984, 4294901760
  %v2986 = vsub.f32 %v2984, %v2985
  %v2987 = vand.u32 %v2986, 4294901760
  %2988 = vmatpush.msra.mxu0 %v2987
  %v2989 = vand.u32 %v2913, 4294901760
  %v2990 = vsub.f32 %v2913, %v2989
  %v2991 = vand.u32 %v2990, 4294901760
  %v2992 = vsub.f32 %v2990, %v2991
  %v2993 = vand.u32 %v2992, 4294901760
  %2994 = vmatpush.msra.mxu0 %v2993
  %v2995 = vand.u32 %v2910, 4294901760
  %v2996 = vsub.f32 %v2910, %v2995
  %v2997 = vand.u32 %v2996, 4294901760
  %v2998 = vsub.f32 %v2996, %v2997
  %v2999 = vand.u32 %v2998, 4294901760
  %3000 = vmatpush.msra.mxu0 %v2999
  %v3001 = vand.u32 %v2907, 4294901760
  %v3002 = vsub.f32 %v2907, %v3001
  %v3003 = vand.u32 %v3002, 4294901760
  %v3004 = vsub.f32 %v3002, %v3003
  %v3005 = vand.u32 %v3004, 4294901760
  %3006 = vmatpush.msra.mxu0 %v3005
  %v3007 = vand.u32 %v2904, 4294901760
  %v3008 = vsub.f32 %v2904, %v3007
  %v3009 = vand.u32 %v3008, 4294901760
  %v3010 = vsub.f32 %v3008, %v3009
  %v3011 = vand.u32 %v3010, 4294901760
  %3012 = vmatpush.msra.mxu0 %v3011
  %v3013 = vand.u32 %v2901, 4294901760
  %v3014 = vsub.f32 %v2901, %v3013
  %v3015 = vand.u32 %v3014, 4294901760
  %v3016 = vsub.f32 %v3014, %v3015
  %v3017 = vand.u32 %v3016, 4294901760
  %3018 = vmatpush.msra.mxu0 %v3017
  %v3019 = vand.u32 %v2898, 4294901760
  %v3020 = vsub.f32 %v2898, %v3019
  %v3021 = vand.u32 %v3020, 4294901760
  %v3022 = vsub.f32 %v3020, %v3021
  %v3023 = vand.u32 %v3022, 4294901760
  %3024 = vmatpush.msra.mxu0 %v3023
  %v3025 = vand.u32 %v2895, 4294901760
  %v3026 = vsub.f32 %v2895, %v3025
  %v3027 = vand.u32 %v3026, 4294901760
  %v3028 = vsub.f32 %v3026, %v3027
  %v3029 = vand.u32 %v3028, 4294901760
  %3030 = vmatpush.msra.mxu0 %v3029
  %v3031 = vand.u32 %v740, 4294901760
  %3032 = vmatmul.f32.gmra.mxu0 %v3031
  %v3033 = vpop.f32.mrf.mxu0
  %v3034 = vadd.f32 %v2949, %v3033
  %v3035 = vand.u32 %v743, 4294901760
  %3036 = vmatmul.f32.gmra.mxu0 %v3035
  %v3037 = vpop.f32.mrf.mxu0
  %v3038 = vadd.f32 %v2957, %v3037
  %v3039 = vand.u32 %v746, 4294901760
  %3040 = vmatmul.f32.gmra.mxu0 %v3039
  %v3041 = vpop.f32.mrf.mxu0
  %v3042 = vadd.f32 %v2965, %v3041
  %v3043 = vand.u32 %v749, 4294901760
  %3044 = vmatmul.f32.gmra.mxu0 %v3043
  %v3045 = vpop.f32.mrf.mxu0
  %v3046 = vadd.f32 %v2973, %v3045
  %3047 = vdwg.mxu0
  %3048 = vmatpush.msra.mxu0 0.0
  %3049 = vmatpush.msra.mxu0 0.0
  %3050 = vmatpush.msra.mxu0 0.0
  %3051 = vmatpush.msra.mxu0 0.0
  %3052 = vmatpush.msra.mxu0 0.0
  %3053 = vmatpush.msra.mxu0 0.0
  %3054 = vmatpush.msra.mxu0 0.0
  %3055 = vmatpush.msra.mxu0 0.0
  %v3056 = vand.u32 %v2916, 4294901760
  %v3057 = vsub.f32 %v2916, %v3056
  %3058 = vmatpush.msra.mxu0 %v3057
  %v3059 = vand.u32 %v2913, 4294901760
  %v3060 = vsub.f32 %v2913, %v3059
  %3061 = vmatpush.msra.mxu0 %v3060
  %v3062 = vand.u32 %v2910, 4294901760
  %v3063 = vsub.f32 %v2910, %v3062
  %3064 = vmatpush.msra.mxu0 %v3063
  %v3065 = vand.u32 %v2907, 4294901760
  %v3066 = vsub.f32 %v2907, %v3065
  %3067 = vmatpush.msra.mxu0 %v3066
  %v3068 = vand.u32 %v2904, 4294901760
  %v3069 = vsub.f32 %v2904, %v3068
  %3070 = vmatpush.msra.mxu0 %v3069
  %v3071 = vand.u32 %v2901, 4294901760
  %v3072 = vsub.f32 %v2901, %v3071
  %3073 = vmatpush.msra.mxu0 %v3072
  %v3074 = vand.u32 %v2898, 4294901760
  %v3075 = vsub.f32 %v2898, %v3074
  %3076 = vmatpush.msra.mxu0 %v3075
  %v3077 = vand.u32 %v2895, 4294901760
  %v3078 = vsub.f32 %v2895, %v3077
  %3079 = vmatpush.msra.mxu0 %v3078
  %v3080 = vand.u32 %v740, 4294901760
  %v3081 = vsub.f32 %v740, %v3080
  %3082 = vmatmul.f32.gmra.mxu0 %v3081
  %v3083 = vpop.f32.mrf.mxu0
  %v3084 = vadd.f32 %v3034, %v3083
  %v3085 = vand.u32 %v743, 4294901760
  %v3086 = vsub.f32 %v743, %v3085
  %3087 = vmatmul.f32.gmra.mxu0 %v3086
  %v3088 = vpop.f32.mrf.mxu0
  %v3089 = vadd.f32 %v3038, %v3088
  %v3090 = vand.u32 %v746, 4294901760
  %v3091 = vsub.f32 %v746, %v3090
  %3092 = vmatmul.f32.gmra.mxu0 %v3091
  %v3093 = vpop.f32.mrf.mxu0
  %v3094 = vadd.f32 %v3042, %v3093
  %v3095 = vand.u32 %v749, 4294901760
  %v3096 = vsub.f32 %v749, %v3095
  %3097 = vmatmul.f32.gmra.mxu0 %v3096
  %v3098 = vpop.f32.mrf.mxu0
  %v3099 = vadd.f32 %v3046, %v3098
  %3100 = vdwg.mxu0
  %3101 = vmatpush.msra.mxu0 0.0
  %3102 = vmatpush.msra.mxu0 0.0
  %3103 = vmatpush.msra.mxu0 0.0
  %3104 = vmatpush.msra.mxu0 0.0
  %3105 = vmatpush.msra.mxu0 0.0
  %3106 = vmatpush.msra.mxu0 0.0
  %3107 = vmatpush.msra.mxu0 0.0
  %3108 = vmatpush.msra.mxu0 0.0
  %v3109 = vand.u32 %v2916, 4294901760
  %3110 = vmatpush.msra.mxu0 %v3109
  %v3111 = vand.u32 %v2913, 4294901760
  %3112 = vmatpush.msra.mxu0 %v3111
  %v3113 = vand.u32 %v2910, 4294901760
  %3114 = vmatpush.msra.mxu0 %v3113
  %v3115 = vand.u32 %v2907, 4294901760
  %3116 = vmatpush.msra.mxu0 %v3115
  %v3117 = vand.u32 %v2904, 4294901760
  %3118 = vmatpush.msra.mxu0 %v3117
  %v3119 = vand.u32 %v2901, 4294901760
  %3120 = vmatpush.msra.mxu0 %v3119
  %v3121 = vand.u32 %v2898, 4294901760
  %3122 = vmatpush.msra.mxu0 %v3121
  %v3123 = vand.u32 %v2895, 4294901760
  %3124 = vmatpush.msra.mxu0 %v3123
  %v3125 = vand.u32 %v740, 4294901760
  %v3126 = vsub.f32 %v740, %v3125
  %v3127 = vand.u32 %v3126, 4294901760
  %3128 = vmatmul.f32.gmra.mxu0 %v3127
  %v3129 = vpop.f32.mrf.mxu0
  %v3130 = vadd.f32 %v3084, %v3129
  %v3131 = vand.u32 %v743, 4294901760
  %v3132 = vsub.f32 %v743, %v3131
  %v3133 = vand.u32 %v3132, 4294901760
  %3134 = vmatmul.f32.gmra.mxu0 %v3133
  %v3135 = vpop.f32.mrf.mxu0
  %v3136 = vadd.f32 %v3089, %v3135
  %v3137 = vand.u32 %v746, 4294901760
  %v3138 = vsub.f32 %v746, %v3137
  %v3139 = vand.u32 %v3138, 4294901760
  %3140 = vmatmul.f32.gmra.mxu0 %v3139
  %v3141 = vpop.f32.mrf.mxu0
  %v3142 = vadd.f32 %v3094, %v3141
  %v3143 = vand.u32 %v749, 4294901760
  %v3144 = vsub.f32 %v749, %v3143
  %v3145 = vand.u32 %v3144, 4294901760
  %3146 = vmatmul.f32.gmra.mxu0 %v3145
  %v3147 = vpop.f32.mrf.mxu0
  %v3148 = vadd.f32 %v3099, %v3147
  %3149 = vdwg.mxu0
  %3150 = vmatpush.msra.mxu0 0.0
  %3151 = vmatpush.msra.mxu0 0.0
  %3152 = vmatpush.msra.mxu0 0.0
  %3153 = vmatpush.msra.mxu0 0.0
  %3154 = vmatpush.msra.mxu0 0.0
  %3155 = vmatpush.msra.mxu0 0.0
  %3156 = vmatpush.msra.mxu0 0.0
  %3157 = vmatpush.msra.mxu0 0.0
  %v3158 = vand.u32 %v2916, 4294901760
  %v3159 = vsub.f32 %v2916, %v3158
  %v3160 = vand.u32 %v3159, 4294901760
  %3161 = vmatpush.msra.mxu0 %v3160
  %v3162 = vand.u32 %v2913, 4294901760
  %v3163 = vsub.f32 %v2913, %v3162
  %v3164 = vand.u32 %v3163, 4294901760
  %3165 = vmatpush.msra.mxu0 %v3164
  %v3166 = vand.u32 %v2910, 4294901760
  %v3167 = vsub.f32 %v2910, %v3166
  %v3168 = vand.u32 %v3167, 4294901760
  %3169 = vmatpush.msra.mxu0 %v3168
  %v3170 = vand.u32 %v2907, 4294901760
  %v3171 = vsub.f32 %v2907, %v3170
  %v3172 = vand.u32 %v3171, 4294901760
  %3173 = vmatpush.msra.mxu0 %v3172
  %v3174 = vand.u32 %v2904, 4294901760
  %v3175 = vsub.f32 %v2904, %v3174
  %v3176 = vand.u32 %v3175, 4294901760
  %3177 = vmatpush.msra.mxu0 %v3176
  %v3178 = vand.u32 %v2901, 4294901760
  %v3179 = vsub.f32 %v2901, %v3178
  %v3180 = vand.u32 %v3179, 4294901760
  %3181 = vmatpush.msra.mxu0 %v3180
  %v3182 = vand.u32 %v2898, 4294901760
  %v3183 = vsub.f32 %v2898, %v3182
  %v3184 = vand.u32 %v3183, 4294901760
  %3185 = vmatpush.msra.mxu0 %v3184
  %v3186 = vand.u32 %v2895, 4294901760
  %v3187 = vsub.f32 %v2895, %v3186
  %v3188 = vand.u32 %v3187, 4294901760
  %3189 = vmatpush.msra.mxu0 %v3188
  %v3190 = vand.u32 %v740, 4294901760
  %3191 = vmatmul.f32.gmra.mxu0 %v3190
  %v3192 = vpop.f32.mrf.mxu0
  %v3193 = vadd.f32 %v3130, %v3192
  %v3194 = vand.u32 %v743, 4294901760
  %3195 = vmatmul.f32.gmra.mxu0 %v3194
  %v3196 = vpop.f32.mrf.mxu0
  %v3197 = vadd.f32 %v3136, %v3196
  %v3198 = vand.u32 %v746, 4294901760
  %3199 = vmatmul.f32.gmra.mxu0 %v3198
  %v3200 = vpop.f32.mrf.mxu0
  %v3201 = vadd.f32 %v3142, %v3200
  %v3202 = vand.u32 %v749, 4294901760
  %3203 = vmatmul.f32.gmra.mxu0 %v3202
  %v3204 = vpop.f32.mrf.mxu0
  %v3205 = vadd.f32 %v3148, %v3204
  %3206 = vdwg.mxu0
  %3207 = vmatpush.msra.mxu0 0.0
  %3208 = vmatpush.msra.mxu0 0.0
  %3209 = vmatpush.msra.mxu0 0.0
  %3210 = vmatpush.msra.mxu0 0.0
  %3211 = vmatpush.msra.mxu0 0.0
  %3212 = vmatpush.msra.mxu0 0.0
  %3213 = vmatpush.msra.mxu0 0.0
  %3214 = vmatpush.msra.mxu0 0.0
  %v3215 = vand.u32 %v2916, 4294901760
  %3216 = vmatpush.msra.mxu0 %v3215
  %v3217 = vand.u32 %v2913, 4294901760
  %3218 = vmatpush.msra.mxu0 %v3217
  %v3219 = vand.u32 %v2910, 4294901760
  %3220 = vmatpush.msra.mxu0 %v3219
  %v3221 = vand.u32 %v2907, 4294901760
  %3222 = vmatpush.msra.mxu0 %v3221
  %v3223 = vand.u32 %v2904, 4294901760
  %3224 = vmatpush.msra.mxu0 %v3223
  %v3225 = vand.u32 %v2901, 4294901760
  %3226 = vmatpush.msra.mxu0 %v3225
  %v3227 = vand.u32 %v2898, 4294901760
  %3228 = vmatpush.msra.mxu0 %v3227
  %v3229 = vand.u32 %v2895, 4294901760
  %3230 = vmatpush.msra.mxu0 %v3229
  %v3231 = vand.u32 %v740, 4294901760
  %3232 = vmatmul.f32.gmra.mxu0 %v3231
  %v3233 = vpop.f32.mrf.mxu0
  %v3234 = vadd.f32 %v3193, %v3233
  %v3235 = vand.u32 %v743, 4294901760
  %3236 = vmatmul.f32.gmra.mxu0 %v3235
  %v3237 = vpop.f32.mrf.mxu0
  %v3238 = vadd.f32 %v3197, %v3237
  %v3239 = vand.u32 %v746, 4294901760
  %3240 = vmatmul.f32.gmra.mxu0 %v3239
  %v3241 = vpop.f32.mrf.mxu0
  %v3242 = vadd.f32 %v3201, %v3241
  %v3243 = vand.u32 %v749, 4294901760
  %3244 = vmatmul.f32.gmra.mxu0 %v3243
  %v3245 = vpop.f32.mrf.mxu0
  %v3246 = vadd.f32 %v3205, %v3245
  %3247 = vdwg.mxu0
  %v3248 = vadd.f32 %v2153, %v3234
  %v3249 = vadd.f32 %v2154, %v3238
  %v3250 = vadd.f32 %v3248, %v3242
  %v3251 = vadd.f32 %v3249, %v3246
  %3254 = vrot.lane.b32.xlu0 %v3248, 5
  %v3255 = vpop.permute.xlu0 %3254
  %3256 = vrot.lane.b32.xlu0 %v3249, 5
  %v3257 = vpop.permute.xlu0 %3256
  %3262 = vrot.lane.b32.xlu0 %v3250, 10
  %v3263 = vpop.permute.xlu0 %3262
  %3264 = vrot.lane.b32.xlu0 %v3251, 10
  %v3265 = vpop.permute.xlu0 %3264
  %v3268 = vsel %vm521, %v2303, %v3255
  %v3269 = vsel %vm521, %v2304, %v3257
  %v3270 = vsel %vm1103, %v3268, %v3263
  %v3271 = vsel %vm1103, %v3269, %v3265
  %v3273 = vsel %vm1107, %v3270, 0
  %v3276 = vsel %vm1107, %v3271, 0
  %3278 = vmatpush.msra.mxu0 0.0
  %3279 = vmatpush.msra.mxu0 0.0
  %3280 = vmatpush.msra.mxu0 0.0
  %3281 = vmatpush.msra.mxu0 0.0
  %3282 = vmatpush.msra.mxu0 0.0
  %3283 = vmatpush.msra.mxu0 0.0
  %3284 = vmatpush.msra.mxu0 0.0
  %3285 = vmatpush.msra.mxu0 0.0
  %3286 = vmatpush.msra.mxu0 0.0
  %3287 = vmatpush.msra.mxu0 0.0
  %3288 = vmatpush.msra.mxu0 0.0
  %3289 = vmatpush.msra.mxu0 0.0
  %3290 = vmatpush.msra.mxu0 0.0
  %3291 = vmatpush.msra.mxu0 0.0
  %3292 = vmatpush.msra.mxu0 %v1116
  %3293 = vmatpush.msra.mxu0 %v79
  %3294 = vmatmul.f32.gmra.mxu0 %v3273
  %v3295 = vpop.f32.mrf.mxu0
  %v3296 = vadd.f32 %v1106, %v3295
  %3297 = vmatmul.f32.gmra.mxu0 %v3276
  %v3298 = vpop.f32.mrf.mxu0
  %v3299 = vadd.f32 %v1106, %v3298
  %3300 = vdwg.mxu0
  %v3301 = vxor.u32 %v3296, 2147483648
  %v3302 = vxor.u32 %v3299, 2147483648
  %v3303 = vmul.f32 %v3301, 1.442695
  %v3304 = vpow.pop %v3303
  %v3305 = vmul.f32 %v3302, 1.442695
  %v3306 = vpow.pop %v3305
  %v3307 = vadd.f32 %v3304, 1.0
  %v3308 = vadd.f32 %v3306, 1.0
  %v3309 = vrcp.pop %v3307
  %v3310 = vmul.f32 %v3307, %v3309
  %v3311 = vsub.f32 1.0, %v3310
  %v3312 = vmul.f32 %v3309, %v3311
  %v3313 = vadd.f32 %v3309, %v3312
  %vm3314 = vweird.f32 %v3307
  %vm3315 = vweird.f32 %v3309
  %vm3316 = vmor %vm3314, %vm3315
  %v3317 = vsel %vm3316, %v3309, %v3313
  %v3318 = vand.u32 2147483647, %v3307
  %vm3319 = vcmp.eq.f32.partialorder %v3318, 8.507059e+37
  %v3320 = vand.u32 %v3307, 2147483648
  %v3321 = vor.u32 1.1754944e-38, %v3320
  %v3322 = vsel %vm3319, %v3321, %v3317
  %v3323 = vmul.f32 1.0, %v3322
  %v3324 = vrcp.pop %v3308
  %v3325 = vmul.f32 %v3308, %v3324
  %v3326 = vsub.f32 1.0, %v3325
  %v3327 = vmul.f32 %v3324, %v3326
  %v3328 = vadd.f32 %v3324, %v3327
  %vm3329 = vweird.f32 %v3308
  %vm3330 = vweird.f32 %v3324
  %vm3331 = vmor %vm3329, %vm3330
  %v3332 = vsel %vm3331, %v3324, %v3328
  %v3333 = vand.u32 2147483647, %v3308
  %vm3334 = vcmp.eq.f32.partialorder %v3333, 8.507059e+37
  %v3335 = vand.u32 %v3308, 2147483648
  %v3336 = vor.u32 1.1754944e-38, %v3335
  %v3337 = vsel %vm3334, %v3336, %v3332
  %v3338 = vmul.f32 1.0, %v3337
  %3341 = vrot.lane.b32.xlu0 %v2303, 5
  %v3342 = vpop.permute.xlu0 %3341
  %3343 = vrot.lane.b32.xlu0 %v2304, 5
  %v3344 = vpop.permute.xlu0 %3343
  %v3347 = vmul.f32 %v3323, %v3342
  %v3348 = vmul.f32 %v3338, %v3344
  %3351 = vrot.lane.b32.xlu0 %v3347, 123
  %v3352 = vpop.permute.xlu0 %3351
  %3353 = vrot.lane.b32.xlu0 %v3348, 123
  %v3354 = vpop.permute.xlu0 %3353
  %v3357 = vsel %vm521, %v3352, %v3255
  %v3358 = vsel %vm521, %v3354, %v3257
  %v3359 = vsel %vm1103, %v3357, %v3263
  %v3360 = vsel %vm1103, %v3358, %v3265
  %v3362 = vsel %vm1107, %v3359, 0
  %v3365 = vsel %vm1107, %v3360, 0
  %3367 = vmatpush.msra.mxu0 0.0
  %3368 = vmatpush.msra.mxu0 0.0
  %3369 = vmatpush.msra.mxu0 0.0
  %3370 = vmatpush.msra.mxu0 0.0
  %3371 = vmatpush.msra.mxu0 0.0
  %3372 = vmatpush.msra.mxu0 0.0
  %3373 = vmatpush.msra.mxu0 0.0
  %3374 = vmatpush.msra.mxu0 0.0
  %3375 = vmatpush.msra.mxu0 0.0
  %3376 = vmatpush.msra.mxu0 0.0
  %3377 = vmatpush.msra.mxu0 0.0
  %3378 = vmatpush.msra.mxu0 0.0
  %3379 = vmatpush.msra.mxu0 0.0
  %3380 = vmatpush.msra.mxu0 0.0
  %3381 = vmatpush.msra.mxu0 %v1201
  %3382 = vmatpush.msra.mxu0 %v81
  %3383 = vmatmul.f32.gmra.mxu0 %v3362
  %v3384 = vpop.f32.mrf.mxu0
  %v3385 = vadd.f32 %v1193, %v3384
  %3386 = vmatmul.f32.gmra.mxu0 %v3365
  %v3387 = vpop.f32.mrf.mxu0
  %v3388 = vadd.f32 %v1193, %v3387
  %3389 = vdwg.mxu0
  %v3390 = vtanh.pop %v3385
  %v3391 = vtanh.pop %v3388
  %v3392 = vsub.f32 1.0, %v3323
  %v3393 = vsub.f32 1.0, %v3338
  %v3394 = vmul.f32 %v3392, %v2303
  %v3395 = vmul.f32 %v3393, %v2304
  %v3396 = vmul.f32 %v3323, %v3390
  %v3397 = vmul.f32 %v3338, %v3391
  %v3398 = vadd.f32 %v3394, %v3396
  %v3399 = vadd.f32 %v3395, %v3397
  %3400 = vmatpush.msra.mxu0 0.0
  %3401 = vmatpush.msra.mxu0 0.0
  %3402 = vmatpush.msra.mxu0 0.0
  %3403 = vmatpush.msra.mxu0 0.0
  %3404 = vmatpush.msra.mxu0 0.0
  %3405 = vmatpush.msra.mxu0 0.0
  %3406 = vmatpush.msra.mxu0 0.0
  %3407 = vmatpush.msra.mxu0 0.0
  %3408 = vmatpush.msra.mxu0 0.0
  %3409 = vmatpush.msra.mxu0 0.0
  %3410 = vmatpush.msra.mxu0 0.0
  %3411 = vmatpush.msra.mxu0 0.0
  %v3412 = vand.u32 %v3399, 4294901760
  %3413 = vmatpush.msra.mxu0 %v3412
  %v3414 = vand.u32 %v3398, 4294901760
  %3415 = vmatpush.msra.mxu0 %v3414
  %v3416 = vand.u32 %v2304, 4294901760
  %3417 = vmatpush.msra.mxu0 %v3416
  %v3418 = vand.u32 %v2303, 4294901760
  %3419 = vmatpush.msra.mxu0 %v3418
  %v3420 = vand.u32 %v148, 4294901760
  %v3421 = vsub.f32 %v148, %v3420
  %v3422 = vand.u32 %v3421, 4294901760
  %v3423 = vsub.f32 %v3421, %v3422
  %v3424 = vand.u32 %v3423, 4294901760
  %3425 = vmatmul.f32.gmra.mxu0 %v3424
  %v3426 = vpop.f32.mrf.mxu0
  %v3427 = vadd.f32 0.0, %v3426
  %v3428 = vand.u32 %v151, 4294901760
  %v3429 = vsub.f32 %v151, %v3428
  %v3430 = vand.u32 %v3429, 4294901760
  %v3431 = vsub.f32 %v3429, %v3430
  %v3432 = vand.u32 %v3431, 4294901760
  %3433 = vmatmul.f32.gmra.mxu0 %v3432
  %v3434 = vpop.f32.mrf.mxu0
  %v3435 = vadd.f32 0.0, %v3434
  %v3436 = vand.u32 %v154, 4294901760
  %v3437 = vsub.f32 %v154, %v3436
  %v3438 = vand.u32 %v3437, 4294901760
  %v3439 = vsub.f32 %v3437, %v3438
  %v3440 = vand.u32 %v3439, 4294901760
  %3441 = vmatmul.f32.gmra.mxu0 %v3440
  %v3442 = vpop.f32.mrf.mxu0
  %v3443 = vadd.f32 0.0, %v3442
  %v3444 = vand.u32 %v157, 4294901760
  %v3445 = vsub.f32 %v157, %v3444
  %v3446 = vand.u32 %v3445, 4294901760
  %v3447 = vsub.f32 %v3445, %v3446
  %v3448 = vand.u32 %v3447, 4294901760
  %3449 = vmatmul.f32.gmra.mxu0 %v3448
  %v3450 = vpop.f32.mrf.mxu0
  %v3451 = vadd.f32 0.0, %v3450
  %v3452 = vand.u32 %v160, 4294901760
  %v3453 = vsub.f32 %v160, %v3452
  %v3454 = vand.u32 %v3453, 4294901760
  %v3455 = vsub.f32 %v3453, %v3454
  %v3456 = vand.u32 %v3455, 4294901760
  %3457 = vmatmul.f32.gmra.mxu0 %v3456
  %v3458 = vpop.f32.mrf.mxu0
  %v3459 = vadd.f32 0.0, %v3458
  %v3460 = vand.u32 %v163, 4294901760
  %v3461 = vsub.f32 %v163, %v3460
  %v3462 = vand.u32 %v3461, 4294901760
  %v3463 = vsub.f32 %v3461, %v3462
  %v3464 = vand.u32 %v3463, 4294901760
  %3465 = vmatmul.f32.gmra.mxu0 %v3464
  %v3466 = vpop.f32.mrf.mxu0
  %v3467 = vadd.f32 0.0, %v3466
  %v3468 = vand.u32 %v166, 4294901760
  %v3469 = vsub.f32 %v166, %v3468
  %v3470 = vand.u32 %v3469, 4294901760
  %v3471 = vsub.f32 %v3469, %v3470
  %v3472 = vand.u32 %v3471, 4294901760
  %3473 = vmatmul.f32.gmra.mxu0 %v3472
  %v3474 = vpop.f32.mrf.mxu0
  %v3475 = vadd.f32 0.0, %v3474
  %v3476 = vand.u32 %v169, 4294901760
  %v3477 = vsub.f32 %v169, %v3476
  %v3478 = vand.u32 %v3477, 4294901760
  %v3479 = vsub.f32 %v3477, %v3478
  %v3480 = vand.u32 %v3479, 4294901760
  %3481 = vmatmul.f32.gmra.mxu0 %v3480
  %v3482 = vpop.f32.mrf.mxu0
  %v3483 = vadd.f32 0.0, %v3482
  %3484 = vdwg.mxu0
  %3485 = vmatpush.msra.mxu0 0.0
  %3486 = vmatpush.msra.mxu0 0.0
  %3487 = vmatpush.msra.mxu0 0.0
  %3488 = vmatpush.msra.mxu0 0.0
  %3489 = vmatpush.msra.mxu0 0.0
  %3490 = vmatpush.msra.mxu0 0.0
  %3491 = vmatpush.msra.mxu0 0.0
  %3492 = vmatpush.msra.mxu0 0.0
  %3493 = vmatpush.msra.mxu0 0.0
  %3494 = vmatpush.msra.mxu0 0.0
  %3495 = vmatpush.msra.mxu0 0.0
  %3496 = vmatpush.msra.mxu0 0.0
  %v3497 = vand.u32 %v3399, 4294901760
  %v3498 = vsub.f32 %v3399, %v3497
  %v3499 = vand.u32 %v3498, 4294901760
  %v3500 = vsub.f32 %v3498, %v3499
  %v3501 = vand.u32 %v3500, 4294901760
  %3502 = vmatpush.msra.mxu0 %v3501
  %v3503 = vand.u32 %v3398, 4294901760
  %v3504 = vsub.f32 %v3398, %v3503
  %v3505 = vand.u32 %v3504, 4294901760
  %v3506 = vsub.f32 %v3504, %v3505
  %v3507 = vand.u32 %v3506, 4294901760
  %3508 = vmatpush.msra.mxu0 %v3507
  %v3509 = vand.u32 %v2304, 4294901760
  %v3510 = vsub.f32 %v2304, %v3509
  %v3511 = vand.u32 %v3510, 4294901760
  %v3512 = vsub.f32 %v3510, %v3511
  %v3513 = vand.u32 %v3512, 4294901760
  %3514 = vmatpush.msra.mxu0 %v3513
  %v3515 = vand.u32 %v2303, 4294901760
  %v3516 = vsub.f32 %v2303, %v3515
  %v3517 = vand.u32 %v3516, 4294901760
  %v3518 = vsub.f32 %v3516, %v3517
  %v3519 = vand.u32 %v3518, 4294901760
  %3520 = vmatpush.msra.mxu0 %v3519
  %v3521 = vand.u32 %v148, 4294901760
  %3522 = vmatmul.f32.gmra.mxu0 %v3521
  %v3523 = vpop.f32.mrf.mxu0
  %v3524 = vadd.f32 %v3427, %v3523
  %v3525 = vand.u32 %v151, 4294901760
  %3526 = vmatmul.f32.gmra.mxu0 %v3525
  %v3527 = vpop.f32.mrf.mxu0
  %v3528 = vadd.f32 %v3435, %v3527
  %v3529 = vand.u32 %v154, 4294901760
  %3530 = vmatmul.f32.gmra.mxu0 %v3529
  %v3531 = vpop.f32.mrf.mxu0
  %v3532 = vadd.f32 %v3443, %v3531
  %v3533 = vand.u32 %v157, 4294901760
  %3534 = vmatmul.f32.gmra.mxu0 %v3533
  %v3535 = vpop.f32.mrf.mxu0
  %v3536 = vadd.f32 %v3451, %v3535
  %v3537 = vand.u32 %v160, 4294901760
  %3538 = vmatmul.f32.gmra.mxu0 %v3537
  %v3539 = vpop.f32.mrf.mxu0
  %v3540 = vadd.f32 %v3459, %v3539
  %v3541 = vand.u32 %v163, 4294901760
  %3542 = vmatmul.f32.gmra.mxu0 %v3541
  %v3543 = vpop.f32.mrf.mxu0
  %v3544 = vadd.f32 %v3467, %v3543
  %v3545 = vand.u32 %v166, 4294901760
  %3546 = vmatmul.f32.gmra.mxu0 %v3545
  %v3547 = vpop.f32.mrf.mxu0
  %v3548 = vadd.f32 %v3475, %v3547
  %v3549 = vand.u32 %v169, 4294901760
  %3550 = vmatmul.f32.gmra.mxu0 %v3549
  %v3551 = vpop.f32.mrf.mxu0
  %v3552 = vadd.f32 %v3483, %v3551
  %3553 = vdwg.mxu0
  %3554 = vmatpush.msra.mxu0 0.0
  %3555 = vmatpush.msra.mxu0 0.0
  %3556 = vmatpush.msra.mxu0 0.0
  %3557 = vmatpush.msra.mxu0 0.0
  %3558 = vmatpush.msra.mxu0 0.0
  %3559 = vmatpush.msra.mxu0 0.0
  %3560 = vmatpush.msra.mxu0 0.0
  %3561 = vmatpush.msra.mxu0 0.0
  %3562 = vmatpush.msra.mxu0 0.0
  %3563 = vmatpush.msra.mxu0 0.0
  %3564 = vmatpush.msra.mxu0 0.0
  %3565 = vmatpush.msra.mxu0 0.0
  %v3566 = vand.u32 %v3399, 4294901760
  %v3567 = vsub.f32 %v3399, %v3566
  %3568 = vmatpush.msra.mxu0 %v3567
  %v3569 = vand.u32 %v3398, 4294901760
  %v3570 = vsub.f32 %v3398, %v3569
  %3571 = vmatpush.msra.mxu0 %v3570
  %v3572 = vand.u32 %v2304, 4294901760
  %v3573 = vsub.f32 %v2304, %v3572
  %3574 = vmatpush.msra.mxu0 %v3573
  %v3575 = vand.u32 %v2303, 4294901760
  %v3576 = vsub.f32 %v2303, %v3575
  %3577 = vmatpush.msra.mxu0 %v3576
  %v3578 = vand.u32 %v148, 4294901760
  %v3579 = vsub.f32 %v148, %v3578
  %3580 = vmatmul.f32.gmra.mxu0 %v3579
  %v3581 = vpop.f32.mrf.mxu0
  %v3582 = vadd.f32 %v3524, %v3581
  %v3583 = vand.u32 %v151, 4294901760
  %v3584 = vsub.f32 %v151, %v3583
  %3585 = vmatmul.f32.gmra.mxu0 %v3584
  %v3586 = vpop.f32.mrf.mxu0
  %v3587 = vadd.f32 %v3528, %v3586
  %v3588 = vand.u32 %v154, 4294901760
  %v3589 = vsub.f32 %v154, %v3588
  %3590 = vmatmul.f32.gmra.mxu0 %v3589
  %v3591 = vpop.f32.mrf.mxu0
  %v3592 = vadd.f32 %v3532, %v3591
  %v3593 = vand.u32 %v157, 4294901760
  %v3594 = vsub.f32 %v157, %v3593
  %3595 = vmatmul.f32.gmra.mxu0 %v3594
  %v3596 = vpop.f32.mrf.mxu0
  %v3597 = vadd.f32 %v3536, %v3596
  %v3598 = vand.u32 %v160, 4294901760
  %v3599 = vsub.f32 %v160, %v3598
  %3600 = vmatmul.f32.gmra.mxu0 %v3599
  %v3601 = vpop.f32.mrf.mxu0
  %v3602 = vadd.f32 %v3540, %v3601
  %v3603 = vand.u32 %v163, 4294901760
  %v3604 = vsub.f32 %v163, %v3603
  %3605 = vmatmul.f32.gmra.mxu0 %v3604
  %v3606 = vpop.f32.mrf.mxu0
  %v3607 = vadd.f32 %v3544, %v3606
  %v3608 = vand.u32 %v166, 4294901760
  %v3609 = vsub.f32 %v166, %v3608
  %3610 = vmatmul.f32.gmra.mxu0 %v3609
  %v3611 = vpop.f32.mrf.mxu0
  %v3612 = vadd.f32 %v3548, %v3611
  %v3613 = vand.u32 %v169, 4294901760
  %v3614 = vsub.f32 %v169, %v3613
  %3615 = vmatmul.f32.gmra.mxu0 %v3614
  %v3616 = vpop.f32.mrf.mxu0
  %v3617 = vadd.f32 %v3552, %v3616
  %3618 = vdwg.mxu0
  %3619 = vmatpush.msra.mxu0 0.0
  %3620 = vmatpush.msra.mxu0 0.0
  %3621 = vmatpush.msra.mxu0 0.0
  %3622 = vmatpush.msra.mxu0 0.0
  %3623 = vmatpush.msra.mxu0 0.0
  %3624 = vmatpush.msra.mxu0 0.0
  %3625 = vmatpush.msra.mxu0 0.0
  %3626 = vmatpush.msra.mxu0 0.0
  %3627 = vmatpush.msra.mxu0 0.0
  %3628 = vmatpush.msra.mxu0 0.0
  %3629 = vmatpush.msra.mxu0 0.0
  %3630 = vmatpush.msra.mxu0 0.0
  %v3631 = vand.u32 %v3399, 4294901760
  %3632 = vmatpush.msra.mxu0 %v3631
  %v3633 = vand.u32 %v3398, 4294901760
  %3634 = vmatpush.msra.mxu0 %v3633
  %v3635 = vand.u32 %v2304, 4294901760
  %3636 = vmatpush.msra.mxu0 %v3635
  %v3637 = vand.u32 %v2303, 4294901760
  %3638 = vmatpush.msra.mxu0 %v3637
  %v3639 = vand.u32 %v148, 4294901760
  %v3640 = vsub.f32 %v148, %v3639
  %v3641 = vand.u32 %v3640, 4294901760
  %3642 = vmatmul.f32.gmra.mxu0 %v3641
  %v3643 = vpop.f32.mrf.mxu0
  %v3644 = vadd.f32 %v3582, %v3643
  %v3645 = vand.u32 %v151, 4294901760
  %v3646 = vsub.f32 %v151, %v3645
  %v3647 = vand.u32 %v3646, 4294901760
  %3648 = vmatmul.f32.gmra.mxu0 %v3647
  %v3649 = vpop.f32.mrf.mxu0
  %v3650 = vadd.f32 %v3587, %v3649
  %v3651 = vand.u32 %v154, 4294901760
  %v3652 = vsub.f32 %v154, %v3651
  %v3653 = vand.u32 %v3652, 4294901760
  %3654 = vmatmul.f32.gmra.mxu0 %v3653
  %v3655 = vpop.f32.mrf.mxu0
  %v3656 = vadd.f32 %v3592, %v3655
  %v3657 = vand.u32 %v157, 4294901760
  %v3658 = vsub.f32 %v157, %v3657
  %v3659 = vand.u32 %v3658, 4294901760
  %3660 = vmatmul.f32.gmra.mxu0 %v3659
  %v3661 = vpop.f32.mrf.mxu0
  %v3662 = vadd.f32 %v3597, %v3661
  %v3663 = vand.u32 %v160, 4294901760
  %v3664 = vsub.f32 %v160, %v3663
  %v3665 = vand.u32 %v3664, 4294901760
  %3666 = vmatmul.f32.gmra.mxu0 %v3665
  %v3667 = vpop.f32.mrf.mxu0
  %v3668 = vadd.f32 %v3602, %v3667
  %v3669 = vand.u32 %v163, 4294901760
  %v3670 = vsub.f32 %v163, %v3669
  %v3671 = vand.u32 %v3670, 4294901760
  %3672 = vmatmul.f32.gmra.mxu0 %v3671
  %v3673 = vpop.f32.mrf.mxu0
  %v3674 = vadd.f32 %v3607, %v3673
  %v3675 = vand.u32 %v166, 4294901760
  %v3676 = vsub.f32 %v166, %v3675
  %v3677 = vand.u32 %v3676, 4294901760
  %3678 = vmatmul.f32.gmra.mxu0 %v3677
  %v3679 = vpop.f32.mrf.mxu0
  %v3680 = vadd.f32 %v3612, %v3679
  %v3681 = vand.u32 %v169, 4294901760
  %v3682 = vsub.f32 %v169, %v3681
  %v3683 = vand.u32 %v3682, 4294901760
  %3684 = vmatmul.f32.gmra.mxu0 %v3683
  %v3685 = vpop.f32.mrf.mxu0
  %v3686 = vadd.f32 %v3617, %v3685
  %3687 = vdwg.mxu0
  %3688 = vmatpush.msra.mxu0 0.0
  %3689 = vmatpush.msra.mxu0 0.0
  %3690 = vmatpush.msra.mxu0 0.0
  %3691 = vmatpush.msra.mxu0 0.0
  %3692 = vmatpush.msra.mxu0 0.0
  %3693 = vmatpush.msra.mxu0 0.0
  %3694 = vmatpush.msra.mxu0 0.0
  %3695 = vmatpush.msra.mxu0 0.0
  %3696 = vmatpush.msra.mxu0 0.0
  %3697 = vmatpush.msra.mxu0 0.0
  %3698 = vmatpush.msra.mxu0 0.0
  %3699 = vmatpush.msra.mxu0 0.0
  %v3700 = vand.u32 %v3399, 4294901760
  %v3701 = vsub.f32 %v3399, %v3700
  %v3702 = vand.u32 %v3701, 4294901760
  %3703 = vmatpush.msra.mxu0 %v3702
  %v3704 = vand.u32 %v3398, 4294901760
  %v3705 = vsub.f32 %v3398, %v3704
  %v3706 = vand.u32 %v3705, 4294901760
  %3707 = vmatpush.msra.mxu0 %v3706
  %v3708 = vand.u32 %v2304, 4294901760
  %v3709 = vsub.f32 %v2304, %v3708
  %v3710 = vand.u32 %v3709, 4294901760
  %3711 = vmatpush.msra.mxu0 %v3710
  %v3712 = vand.u32 %v2303, 4294901760
  %v3713 = vsub.f32 %v2303, %v3712
  %v3714 = vand.u32 %v3713, 4294901760
  %3715 = vmatpush.msra.mxu0 %v3714
  %v3716 = vand.u32 %v148, 4294901760
  %3717 = vmatmul.f32.gmra.mxu0 %v3716
  %v3718 = vpop.f32.mrf.mxu0
  %v3719 = vadd.f32 %v3644, %v3718
  %v3720 = vand.u32 %v151, 4294901760
  %3721 = vmatmul.f32.gmra.mxu0 %v3720
  %v3722 = vpop.f32.mrf.mxu0
  %v3723 = vadd.f32 %v3650, %v3722
  %v3724 = vand.u32 %v154, 4294901760
  %3725 = vmatmul.f32.gmra.mxu0 %v3724
  %v3726 = vpop.f32.mrf.mxu0
  %v3727 = vadd.f32 %v3656, %v3726
  %v3728 = vand.u32 %v157, 4294901760
  %3729 = vmatmul.f32.gmra.mxu0 %v3728
  %v3730 = vpop.f32.mrf.mxu0
  %v3731 = vadd.f32 %v3662, %v3730
  %v3732 = vand.u32 %v160, 4294901760
  %3733 = vmatmul.f32.gmra.mxu0 %v3732
  %v3734 = vpop.f32.mrf.mxu0
  %v3735 = vadd.f32 %v3668, %v3734
  %v3736 = vand.u32 %v163, 4294901760
  %3737 = vmatmul.f32.gmra.mxu0 %v3736
  %v3738 = vpop.f32.mrf.mxu0
  %v3739 = vadd.f32 %v3674, %v3738
  %v3740 = vand.u32 %v166, 4294901760
  %3741 = vmatmul.f32.gmra.mxu0 %v3740
  %v3742 = vpop.f32.mrf.mxu0
  %v3743 = vadd.f32 %v3680, %v3742
  %v3744 = vand.u32 %v169, 4294901760
  %3745 = vmatmul.f32.gmra.mxu0 %v3744
  %v3746 = vpop.f32.mrf.mxu0
  %v3747 = vadd.f32 %v3686, %v3746
  %3748 = vdwg.mxu0
  %3749 = vmatpush.msra.mxu0 0.0
  %3750 = vmatpush.msra.mxu0 0.0
  %3751 = vmatpush.msra.mxu0 0.0
  %3752 = vmatpush.msra.mxu0 0.0
  %3753 = vmatpush.msra.mxu0 0.0
  %3754 = vmatpush.msra.mxu0 0.0
  %3755 = vmatpush.msra.mxu0 0.0
  %3756 = vmatpush.msra.mxu0 0.0
  %3757 = vmatpush.msra.mxu0 0.0
  %3758 = vmatpush.msra.mxu0 0.0
  %3759 = vmatpush.msra.mxu0 0.0
  %3760 = vmatpush.msra.mxu0 0.0
  %v3761 = vand.u32 %v3399, 4294901760
  %3762 = vmatpush.msra.mxu0 %v3761
  %v3763 = vand.u32 %v3398, 4294901760
  %3764 = vmatpush.msra.mxu0 %v3763
  %v3765 = vand.u32 %v2304, 4294901760
  %3766 = vmatpush.msra.mxu0 %v3765
  %v3767 = vand.u32 %v2303, 4294901760
  %3768 = vmatpush.msra.mxu0 %v3767
  %v3769 = vand.u32 %v148, 4294901760
  %3770 = vmatmul.f32.gmra.mxu0 %v3769
  %v3771 = vpop.f32.mrf.mxu0
  %v3772 = vadd.f32 %v3719, %v3771
  %v3773 = vand.u32 %v151, 4294901760
  %3774 = vmatmul.f32.gmra.mxu0 %v3773
  %v3775 = vpop.f32.mrf.mxu0
  %v3776 = vadd.f32 %v3723, %v3775
  %v3777 = vand.u32 %v154, 4294901760
  %3778 = vmatmul.f32.gmra.mxu0 %v3777
  %v3779 = vpop.f32.mrf.mxu0
  %v3780 = vadd.f32 %v3727, %v3779
  %v3781 = vand.u32 %v157, 4294901760
  %3782 = vmatmul.f32.gmra.mxu0 %v3781
  %v3783 = vpop.f32.mrf.mxu0
  %v3784 = vadd.f32 %v3731, %v3783
  %v3785 = vand.u32 %v160, 4294901760
  %3786 = vmatmul.f32.gmra.mxu0 %v3785
  %v3787 = vpop.f32.mrf.mxu0
  %v3788 = vadd.f32 %v3735, %v3787
  %v3789 = vand.u32 %v163, 4294901760
  %3790 = vmatmul.f32.gmra.mxu0 %v3789
  %v3791 = vpop.f32.mrf.mxu0
  %v3792 = vadd.f32 %v3739, %v3791
  %v3793 = vand.u32 %v166, 4294901760
  %3794 = vmatmul.f32.gmra.mxu0 %v3793
  %v3795 = vpop.f32.mrf.mxu0
  %v3796 = vadd.f32 %v3743, %v3795
  %v3797 = vand.u32 %v169, 4294901760
  %3798 = vmatmul.f32.gmra.mxu0 %v3797
  %v3799 = vpop.f32.mrf.mxu0
  %v3800 = vadd.f32 %v3747, %v3799
  %3801 = vdwg.mxu0
  %v3803 = vsel %vm521, %v3772, 0
  %v3806 = vsel %vm521, %v3776, 0
  %v3809 = vsel %vm521, %v3780, 0
  %v3812 = vsel %vm521, %v3784, 0
  %v3815 = vsel %vm521, %v3788, 0
  %v3818 = vsel %vm521, %v3792, 0
  %v3821 = vsel %vm521, %v3796, 0
  %v3824 = vsel %vm521, %v3800, 0
  %3826 = vmatpush.msra.mxu0 0.0
  %3827 = vmatpush.msra.mxu0 0.0
  %3828 = vmatpush.msra.mxu0 0.0
  %3829 = vmatpush.msra.mxu0 0.0
  %3830 = vmatpush.msra.mxu0 0.0
  %3831 = vmatpush.msra.mxu0 0.0
  %3832 = vmatpush.msra.mxu0 0.0
  %3833 = vmatpush.msra.mxu0 0.0
  %3834 = vmatpush.msra.mxu0 0.0
  %3835 = vmatpush.msra.mxu0 0.0
  %3836 = vmatpush.msra.mxu0 0.0
  %3837 = vmatpush.msra.mxu0 0.0
  %3838 = vmatpush.msra.mxu0 0.0
  %3839 = vmatpush.msra.mxu0 0.0
  %3840 = vmatpush.msra.mxu0 0.0
  %3841 = vmatpush.msra.mxu0 %v547
  %3842 = vmatmul.f32.gmra.mxu0 %v3803
  %v3843 = vpop.f32.mrf.mxu0
  %v3844 = vadd.f32 %v135, %v3843
  %3845 = vmatmul.f32.gmra.mxu0 %v3806
  %v3846 = vpop.f32.mrf.mxu0
  %v3847 = vadd.f32 %v138, %v3846
  %3848 = vmatmul.f32.gmra.mxu0 %v3809
  %v3849 = vpop.f32.mrf.mxu0
  %v3850 = vadd.f32 %v141, %v3849
  %3851 = vmatmul.f32.gmra.mxu0 %v3812
  %v3852 = vpop.f32.mrf.mxu0
  %v3853 = vadd.f32 %v144, %v3852
  %3854 = vmatmul.f32.gmra.mxu0 %v3815
  %v3855 = vpop.f32.mrf.mxu0
  %v3856 = vadd.f32 %v135, %v3855
  %3857 = vmatmul.f32.gmra.mxu0 %v3818
  %v3858 = vpop.f32.mrf.mxu0
  %v3859 = vadd.f32 %v138, %v3858
  %3860 = vmatmul.f32.gmra.mxu0 %v3821
  %v3861 = vpop.f32.mrf.mxu0
  %v3862 = vadd.f32 %v141, %v3861
  %3863 = vmatmul.f32.gmra.mxu0 %v3824
  %v3864 = vpop.f32.mrf.mxu0
  %v3865 = vadd.f32 %v144, %v3864
  %3866 = vdwg.mxu0
  %v3867 = vmax.f32 %v3844, 0.0
  %v3868 = vmax.f32 %v3847, 0.0
  %v3869 = vmax.f32 %v3850, 0.0
  %v3870 = vmax.f32 %v3853, 0.0
  %v3871 = vmax.f32 %v3856, 0.0
  %v3872 = vmax.f32 %v3859, 0.0
  %v3873 = vmax.f32 %v3862, 0.0
  %v3874 = vmax.f32 %v3865, 0.0
  %v3876 = vsel %vm599, %v3867, 0
  %v3879 = vsel %vm599, %v3868, 0
  %v3882 = vsel %vm599, %v3869, 0
  %v3885 = vsel %vm599, %v3870, 0
  %v3888 = vsel %vm599, %v3871, 0
  %v3891 = vsel %vm599, %v3872, 0
  %v3894 = vsel %vm599, %v3873, 0
  %v3897 = vsel %vm599, %v3874, 0
  %3899 = vmatpush.msra.mxu0 0.0
  %3900 = vmatpush.msra.mxu0 0.0
  %3901 = vmatpush.msra.mxu0 0.0
  %3902 = vmatpush.msra.mxu0 0.0
  %3903 = vmatpush.msra.mxu0 0.0
  %3904 = vmatpush.msra.mxu0 0.0
  %3905 = vmatpush.msra.mxu0 0.0
  %3906 = vmatpush.msra.mxu0 0.0
  %3907 = vmatpush.msra.mxu0 %v68
  %3908 = vmatpush.msra.mxu0 %v67
  %3909 = vmatpush.msra.mxu0 %v66
  %3910 = vmatpush.msra.mxu0 %v65
  %3911 = vmatpush.msra.mxu0 %v64
  %3912 = vmatpush.msra.mxu0 %v63
  %3913 = vmatpush.msra.mxu0 %v62
  %3914 = vmatpush.msra.mxu0 %v61
  %3915 = vmatmul.f32.gmra.mxu0 %v3876
  %v3916 = vpop.f32.mrf.mxu0
  %v3917 = vadd.f32 %v598, %v3916
  %3918 = vmatmul.f32.gmra.mxu0 %v3879
  %v3919 = vpop.f32.mrf.mxu0
  %v3920 = vadd.f32 %v598, %v3919
  %3921 = vmatmul.f32.gmra.mxu0 %v3882
  %v3922 = vpop.f32.mrf.mxu0
  %v3923 = vadd.f32 %v598, %v3922
  %3924 = vmatmul.f32.gmra.mxu0 %v3885
  %v3925 = vpop.f32.mrf.mxu0
  %v3926 = vadd.f32 %v598, %v3925
  %3927 = vmatmul.f32.gmra.mxu0 %v3888
  %v3928 = vpop.f32.mrf.mxu0
  %v3929 = vadd.f32 %v598, %v3928
  %3930 = vmatmul.f32.gmra.mxu0 %v3891
  %v3931 = vpop.f32.mrf.mxu0
  %v3932 = vadd.f32 %v598, %v3931
  %3933 = vmatmul.f32.gmra.mxu0 %v3894
  %v3934 = vpop.f32.mrf.mxu0
  %v3935 = vadd.f32 %v598, %v3934
  %3936 = vmatmul.f32.gmra.mxu0 %v3897
  %v3937 = vpop.f32.mrf.mxu0
  %v3938 = vadd.f32 %v598, %v3937
  %3939 = vdwg.mxu0
  %v3940 = vmax.f32 %v3917, 0.0
  %v3941 = vmax.f32 %v3920, 0.0
  %v3942 = vmax.f32 %v3923, 0.0
  %v3943 = vmax.f32 %v3926, 0.0
  %v3944 = vmax.f32 %v3929, 0.0
  %v3945 = vmax.f32 %v3932, 0.0
  %v3946 = vmax.f32 %v3935, 0.0
  %v3947 = vmax.f32 %v3938, 0.0
  %v3949 = vsel %vm599, %v3940, 0
  %v3952 = vsel %vm599, %v3941, 0
  %v3955 = vsel %vm599, %v3942, 0
  %v3958 = vsel %vm599, %v3943, 0
  %v3961 = vsel %vm599, %v3944, 0
  %v3964 = vsel %vm599, %v3945, 0
  %v3967 = vsel %vm599, %v3946, 0
  %v3970 = vsel %vm599, %v3947, 0
  %3972 = vmatpush.msra.mxu0 0.0
  %3973 = vmatpush.msra.mxu0 0.0
  %3974 = vmatpush.msra.mxu0 0.0
  %3975 = vmatpush.msra.mxu0 0.0
  %3976 = vmatpush.msra.mxu0 0.0
  %3977 = vmatpush.msra.mxu0 0.0
  %3978 = vmatpush.msra.mxu0 0.0
  %3979 = vmatpush.msra.mxu0 0.0
  %3980 = vmatpush.msra.mxu0 %v77
  %3981 = vmatpush.msra.mxu0 %v76
  %3982 = vmatpush.msra.mxu0 %v75
  %3983 = vmatpush.msra.mxu0 %v74
  %3984 = vmatpush.msra.mxu0 %v73
  %3985 = vmatpush.msra.mxu0 %v72
  %3986 = vmatpush.msra.mxu0 %v71
  %3987 = vmatpush.msra.mxu0 %v70
  %3988 = vmatmul.f32.gmra.mxu0 %v3949
  %v3989 = vpop.f32.mrf.mxu0
  %v3990 = vadd.f32 %v673, %v3989
  %3991 = vmatmul.f32.gmra.mxu0 %v3952
  %v3992 = vpop.f32.mrf.mxu0
  %v3993 = vadd.f32 %v673, %v3992
  %3994 = vmatmul.f32.gmra.mxu0 %v3955
  %v3995 = vpop.f32.mrf.mxu0
  %v3996 = vadd.f32 %v673, %v3995
  %3997 = vmatmul.f32.gmra.mxu0 %v3958
  %v3998 = vpop.f32.mrf.mxu0
  %v3999 = vadd.f32 %v673, %v3998
  %4000 = vmatmul.f32.gmra.mxu0 %v3961
  %v4001 = vpop.f32.mrf.mxu0
  %v4002 = vadd.f32 %v673, %v4001
  %4003 = vmatmul.f32.gmra.mxu0 %v3964
  %v4004 = vpop.f32.mrf.mxu0
  %v4005 = vadd.f32 %v673, %v4004
  %4006 = vmatmul.f32.gmra.mxu0 %v3967
  %v4007 = vpop.f32.mrf.mxu0
  %v4008 = vadd.f32 %v673, %v4007
  %4009 = vmatmul.f32.gmra.mxu0 %v3970
  %v4010 = vpop.f32.mrf.mxu0
  %v4011 = vadd.f32 %v673, %v4010
  %4012 = vdwg.mxu0
  %4013 = vmatpush.msra.mxu0 0.0
  %4014 = vmatpush.msra.mxu0 0.0
  %4015 = vmatpush.msra.mxu0 0.0
  %4016 = vmatpush.msra.mxu0 0.0
  %4017 = vmatpush.msra.mxu0 0.0
  %4018 = vmatpush.msra.mxu0 0.0
  %4019 = vmatpush.msra.mxu0 0.0
  %4020 = vmatpush.msra.mxu0 0.0
  %v4021 = vand.u32 %v4011, 4294901760
  %4022 = vmatpush.msra.mxu0 %v4021
  %v4023 = vand.u32 %v4008, 4294901760
  %4024 = vmatpush.msra.mxu0 %v4023
  %v4025 = vand.u32 %v4005, 4294901760
  %4026 = vmatpush.msra.mxu0 %v4025
  %v4027 = vand.u32 %v4002, 4294901760
  %4028 = vmatpush.msra.mxu0 %v4027
  %v4029 = vand.u32 %v3999, 4294901760
  %4030 = vmatpush.msra.mxu0 %v4029
  %v4031 = vand.u32 %v3996, 4294901760
  %4032 = vmatpush.msra.mxu0 %v4031
  %v4033 = vand.u32 %v3993, 4294901760
  %4034 = vmatpush.msra.mxu0 %v4033
  %v4035 = vand.u32 %v3990, 4294901760
  %4036 = vmatpush.msra.mxu0 %v4035
  %v4037 = vand.u32 %v740, 4294901760
  %v4038 = vsub.f32 %v740, %v4037
  %v4039 = vand.u32 %v4038, 4294901760
  %v4040 = vsub.f32 %v4038, %v4039
  %v4041 = vand.u32 %v4040, 4294901760
  %4042 = vmatmul.f32.gmra.mxu0 %v4041
  %v4043 = vpop.f32.mrf.mxu0
  %v4044 = vadd.f32 0.0, %v4043
  %v4045 = vand.u32 %v743, 4294901760
  %v4046 = vsub.f32 %v743, %v4045
  %v4047 = vand.u32 %v4046, 4294901760
  %v4048 = vsub.f32 %v4046, %v4047
  %v4049 = vand.u32 %v4048, 4294901760
  %4050 = vmatmul.f32.gmra.mxu0 %v4049
  %v4051 = vpop.f32.mrf.mxu0
  %v4052 = vadd.f32 0.0, %v4051
  %v4053 = vand.u32 %v746, 4294901760
  %v4054 = vsub.f32 %v746, %v4053
  %v4055 = vand.u32 %v4054, 4294901760
  %v4056 = vsub.f32 %v4054, %v4055
  %v4057 = vand.u32 %v4056, 4294901760
  %4058 = vmatmul.f32.gmra.mxu0 %v4057
  %v4059 = vpop.f32.mrf.mxu0
  %v4060 = vadd.f32 0.0, %v4059
  %v4061 = vand.u32 %v749, 4294901760
  %v4062 = vsub.f32 %v749, %v4061
  %v4063 = vand.u32 %v4062, 4294901760
  %v4064 = vsub.f32 %v4062, %v4063
  %v4065 = vand.u32 %v4064, 4294901760
  %4066 = vmatmul.f32.gmra.mxu0 %v4065
  %v4067 = vpop.f32.mrf.mxu0
  %v4068 = vadd.f32 0.0, %v4067
  %4069 = vdwg.mxu0
  %4070 = vmatpush.msra.mxu0 0.0
  %4071 = vmatpush.msra.mxu0 0.0
  %4072 = vmatpush.msra.mxu0 0.0
  %4073 = vmatpush.msra.mxu0 0.0
  %4074 = vmatpush.msra.mxu0 0.0
  %4075 = vmatpush.msra.mxu0 0.0
  %4076 = vmatpush.msra.mxu0 0.0
  %4077 = vmatpush.msra.mxu0 0.0
  %v4078 = vand.u32 %v4011, 4294901760
  %v4079 = vsub.f32 %v4011, %v4078
  %v4080 = vand.u32 %v4079, 4294901760
  %v4081 = vsub.f32 %v4079, %v4080
  %v4082 = vand.u32 %v4081, 4294901760
  %4083 = vmatpush.msra.mxu0 %v4082
  %v4084 = vand.u32 %v4008, 4294901760
  %v4085 = vsub.f32 %v4008, %v4084
  %v4086 = vand.u32 %v4085, 4294901760
  %v4087 = vsub.f32 %v4085, %v4086
  %v4088 = vand.u32 %v4087, 4294901760
  %4089 = vmatpush.msra.mxu0 %v4088
  %v4090 = vand.u32 %v4005, 4294901760
  %v4091 = vsub.f32 %v4005, %v4090
  %v4092 = vand.u32 %v4091, 4294901760
  %v4093 = vsub.f32 %v4091, %v4092
  %v4094 = vand.u32 %v4093, 4294901760
  %4095 = vmatpush.msra.mxu0 %v4094
  %v4096 = vand.u32 %v4002, 4294901760
  %v4097 = vsub.f32 %v4002, %v4096
  %v4098 = vand.u32 %v4097, 4294901760
  %v4099 = vsub.f32 %v4097, %v4098
  %v4100 = vand.u32 %v4099, 4294901760
  %4101 = vmatpush.msra.mxu0 %v4100
  %v4102 = vand.u32 %v3999, 4294901760
  %v4103 = vsub.f32 %v3999, %v4102
  %v4104 = vand.u32 %v4103, 4294901760
  %v4105 = vsub.f32 %v4103, %v4104
  %v4106 = vand.u32 %v4105, 4294901760
  %4107 = vmatpush.msra.mxu0 %v4106
  %v4108 = vand.u32 %v3996, 4294901760
  %v4109 = vsub.f32 %v3996, %v4108
  %v4110 = vand.u32 %v4109, 4294901760
  %v4111 = vsub.f32 %v4109, %v4110
  %v4112 = vand.u32 %v4111, 4294901760
  %4113 = vmatpush.msra.mxu0 %v4112
  %v4114 = vand.u32 %v3993, 4294901760
  %v4115 = vsub.f32 %v3993, %v4114
  %v4116 = vand.u32 %v4115, 4294901760
  %v4117 = vsub.f32 %v4115, %v4116
  %v4118 = vand.u32 %v4117, 4294901760
  %4119 = vmatpush.msra.mxu0 %v4118
  %v4120 = vand.u32 %v3990, 4294901760
  %v4121 = vsub.f32 %v3990, %v4120
  %v4122 = vand.u32 %v4121, 4294901760
  %v4123 = vsub.f32 %v4121, %v4122
  %v4124 = vand.u32 %v4123, 4294901760
  %4125 = vmatpush.msra.mxu0 %v4124
  %v4126 = vand.u32 %v740, 4294901760
  %4127 = vmatmul.f32.gmra.mxu0 %v4126
  %v4128 = vpop.f32.mrf.mxu0
  %v4129 = vadd.f32 %v4044, %v4128
  %v4130 = vand.u32 %v743, 4294901760
  %4131 = vmatmul.f32.gmra.mxu0 %v4130
  %v4132 = vpop.f32.mrf.mxu0
  %v4133 = vadd.f32 %v4052, %v4132
  %v4134 = vand.u32 %v746, 4294901760
  %4135 = vmatmul.f32.gmra.mxu0 %v4134
  %v4136 = vpop.f32.mrf.mxu0
  %v4137 = vadd.f32 %v4060, %v4136
  %v4138 = vand.u32 %v749, 4294901760
  %4139 = vmatmul.f32.gmra.mxu0 %v4138
  %v4140 = vpop.f32.mrf.mxu0
  %v4141 = vadd.f32 %v4068, %v4140
  %4142 = vdwg.mxu0
  %4143 = vmatpush.msra.mxu0 0.0
  %4144 = vmatpush.msra.mxu0 0.0
  %4145 = vmatpush.msra.mxu0 0.0
  %4146 = vmatpush.msra.mxu0 0.0
  %4147 = vmatpush.msra.mxu0 0.0
  %4148 = vmatpush.msra.mxu0 0.0
  %4149 = vmatpush.msra.mxu0 0.0
  %4150 = vmatpush.msra.mxu0 0.0
  %v4151 = vand.u32 %v4011, 4294901760
  %v4152 = vsub.f32 %v4011, %v4151
  %4153 = vmatpush.msra.mxu0 %v4152
  %v4154 = vand.u32 %v4008, 4294901760
  %v4155 = vsub.f32 %v4008, %v4154
  %4156 = vmatpush.msra.mxu0 %v4155
  %v4157 = vand.u32 %v4005, 4294901760
  %v4158 = vsub.f32 %v4005, %v4157
  %4159 = vmatpush.msra.mxu0 %v4158
  %v4160 = vand.u32 %v4002, 4294901760
  %v4161 = vsub.f32 %v4002, %v4160
  %4162 = vmatpush.msra.mxu0 %v4161
  %v4163 = vand.u32 %v3999, 4294901760
  %v4164 = vsub.f32 %v3999, %v4163
  %4165 = vmatpush.msra.mxu0 %v4164
  %v4166 = vand.u32 %v3996, 4294901760
  %v4167 = vsub.f32 %v3996, %v4166
  %4168 = vmatpush.msra.mxu0 %v4167
  %v4169 = vand.u32 %v3993, 4294901760
  %v4170 = vsub.f32 %v3993, %v4169
  %4171 = vmatpush.msra.mxu0 %v4170
  %v4172 = vand.u32 %v3990, 4294901760
  %v4173 = vsub.f32 %v3990, %v4172
  %4174 = vmatpush.msra.mxu0 %v4173
  %v4175 = vand.u32 %v740, 4294901760
  %v4176 = vsub.f32 %v740, %v4175
  %4177 = vmatmul.f32.gmra.mxu0 %v4176
  %v4178 = vpop.f32.mrf.mxu0
  %v4179 = vadd.f32 %v4129, %v4178
  %v4180 = vand.u32 %v743, 4294901760
  %v4181 = vsub.f32 %v743, %v4180
  %4182 = vmatmul.f32.gmra.mxu0 %v4181
  %v4183 = vpop.f32.mrf.mxu0
  %v4184 = vadd.f32 %v4133, %v4183
  %v4185 = vand.u32 %v746, 4294901760
  %v4186 = vsub.f32 %v746, %v4185
  %4187 = vmatmul.f32.gmra.mxu0 %v4186
  %v4188 = vpop.f32.mrf.mxu0
  %v4189 = vadd.f32 %v4137, %v4188
  %v4190 = vand.u32 %v749, 4294901760
  %v4191 = vsub.f32 %v749, %v4190
  %4192 = vmatmul.f32.gmra.mxu0 %v4191
  %v4193 = vpop.f32.mrf.mxu0
  %v4194 = vadd.f32 %v4141, %v4193
  %4195 = vdwg.mxu0
  %4196 = vmatpush.msra.mxu0 0.0
  %4197 = vmatpush.msra.mxu0 0.0
  %4198 = vmatpush.msra.mxu0 0.0
  %4199 = vmatpush.msra.mxu0 0.0
  %4200 = vmatpush.msra.mxu0 0.0
  %4201 = vmatpush.msra.mxu0 0.0
  %4202 = vmatpush.msra.mxu0 0.0
  %4203 = vmatpush.msra.mxu0 0.0
  %v4204 = vand.u32 %v4011, 4294901760
  %4205 = vmatpush.msra.mxu0 %v4204
  %v4206 = vand.u32 %v4008, 4294901760
  %4207 = vmatpush.msra.mxu0 %v4206
  %v4208 = vand.u32 %v4005, 4294901760
  %4209 = vmatpush.msra.mxu0 %v4208
  %v4210 = vand.u32 %v4002, 4294901760
  %4211 = vmatpush.msra.mxu0 %v4210
  %v4212 = vand.u32 %v3999, 4294901760
  %4213 = vmatpush.msra.mxu0 %v4212
  %v4214 = vand.u32 %v3996, 4294901760
  %4215 = vmatpush.msra.mxu0 %v4214
  %v4216 = vand.u32 %v3993, 4294901760
  %4217 = vmatpush.msra.mxu0 %v4216
  %v4218 = vand.u32 %v3990, 4294901760
  %4219 = vmatpush.msra.mxu0 %v4218
  %v4220 = vand.u32 %v740, 4294901760
  %v4221 = vsub.f32 %v740, %v4220
  %v4222 = vand.u32 %v4221, 4294901760
  %4223 = vmatmul.f32.gmra.mxu0 %v4222
  %v4224 = vpop.f32.mrf.mxu0
  %v4225 = vadd.f32 %v4179, %v4224
  %v4226 = vand.u32 %v743, 4294901760
  %v4227 = vsub.f32 %v743, %v4226
  %v4228 = vand.u32 %v4227, 4294901760
  %4229 = vmatmul.f32.gmra.mxu0 %v4228
  %v4230 = vpop.f32.mrf.mxu0
  %v4231 = vadd.f32 %v4184, %v4230
  %v4232 = vand.u32 %v746, 4294901760
  %v4233 = vsub.f32 %v746, %v4232
  %v4234 = vand.u32 %v4233, 4294901760
  %4235 = vmatmul.f32.gmra.mxu0 %v4234
  %v4236 = vpop.f32.mrf.mxu0
  %v4237 = vadd.f32 %v4189, %v4236
  %v4238 = vand.u32 %v749, 4294901760
  %v4239 = vsub.f32 %v749, %v4238
  %v4240 = vand.u32 %v4239, 4294901760
  %4241 = vmatmul.f32.gmra.mxu0 %v4240
  %v4242 = vpop.f32.mrf.mxu0
  %v4243 = vadd.f32 %v4194, %v4242
  %4244 = vdwg.mxu0
  %4245 = vmatpush.msra.mxu0 0.0
  %4246 = vmatpush.msra.mxu0 0.0
  %4247 = vmatpush.msra.mxu0 0.0
  %4248 = vmatpush.msra.mxu0 0.0
  %4249 = vmatpush.msra.mxu0 0.0
  %4250 = vmatpush.msra.mxu0 0.0
  %4251 = vmatpush.msra.mxu0 0.0
  %4252 = vmatpush.msra.mxu0 0.0
  %v4253 = vand.u32 %v4011, 4294901760
  %v4254 = vsub.f32 %v4011, %v4253
  %v4255 = vand.u32 %v4254, 4294901760
  %4256 = vmatpush.msra.mxu0 %v4255
  %v4257 = vand.u32 %v4008, 4294901760
  %v4258 = vsub.f32 %v4008, %v4257
  %v4259 = vand.u32 %v4258, 4294901760
  %4260 = vmatpush.msra.mxu0 %v4259
  %v4261 = vand.u32 %v4005, 4294901760
  %v4262 = vsub.f32 %v4005, %v4261
  %v4263 = vand.u32 %v4262, 4294901760
  %4264 = vmatpush.msra.mxu0 %v4263
  %v4265 = vand.u32 %v4002, 4294901760
  %v4266 = vsub.f32 %v4002, %v4265
  %v4267 = vand.u32 %v4266, 4294901760
  %4268 = vmatpush.msra.mxu0 %v4267
  %v4269 = vand.u32 %v3999, 4294901760
  %v4270 = vsub.f32 %v3999, %v4269
  %v4271 = vand.u32 %v4270, 4294901760
  %4272 = vmatpush.msra.mxu0 %v4271
  %v4273 = vand.u32 %v3996, 4294901760
  %v4274 = vsub.f32 %v3996, %v4273
  %v4275 = vand.u32 %v4274, 4294901760
  %4276 = vmatpush.msra.mxu0 %v4275
  %v4277 = vand.u32 %v3993, 4294901760
  %v4278 = vsub.f32 %v3993, %v4277
  %v4279 = vand.u32 %v4278, 4294901760
  %4280 = vmatpush.msra.mxu0 %v4279
  %v4281 = vand.u32 %v3990, 4294901760
  %v4282 = vsub.f32 %v3990, %v4281
  %v4283 = vand.u32 %v4282, 4294901760
  %4284 = vmatpush.msra.mxu0 %v4283
  %v4285 = vand.u32 %v740, 4294901760
  %4286 = vmatmul.f32.gmra.mxu0 %v4285
  %v4287 = vpop.f32.mrf.mxu0
  %v4288 = vadd.f32 %v4225, %v4287
  %v4289 = vand.u32 %v743, 4294901760
  %4290 = vmatmul.f32.gmra.mxu0 %v4289
  %v4291 = vpop.f32.mrf.mxu0
  %v4292 = vadd.f32 %v4231, %v4291
  %v4293 = vand.u32 %v746, 4294901760
  %4294 = vmatmul.f32.gmra.mxu0 %v4293
  %v4295 = vpop.f32.mrf.mxu0
  %v4296 = vadd.f32 %v4237, %v4295
  %v4297 = vand.u32 %v749, 4294901760
  %4298 = vmatmul.f32.gmra.mxu0 %v4297
  %v4299 = vpop.f32.mrf.mxu0
  %v4300 = vadd.f32 %v4243, %v4299
  %4301 = vdwg.mxu0
  %4302 = vmatpush.msra.mxu0 0.0
  %4303 = vmatpush.msra.mxu0 0.0
  %4304 = vmatpush.msra.mxu0 0.0
  %4305 = vmatpush.msra.mxu0 0.0
  %4306 = vmatpush.msra.mxu0 0.0
  %4307 = vmatpush.msra.mxu0 0.0
  %4308 = vmatpush.msra.mxu0 0.0
  %4309 = vmatpush.msra.mxu0 0.0
  %v4310 = vand.u32 %v4011, 4294901760
  %4311 = vmatpush.msra.mxu0 %v4310
  %v4312 = vand.u32 %v4008, 4294901760
  %4313 = vmatpush.msra.mxu0 %v4312
  %v4314 = vand.u32 %v4005, 4294901760
  %4315 = vmatpush.msra.mxu0 %v4314
  %v4316 = vand.u32 %v4002, 4294901760
  %4317 = vmatpush.msra.mxu0 %v4316
  %v4318 = vand.u32 %v3999, 4294901760
  %4319 = vmatpush.msra.mxu0 %v4318
  %v4320 = vand.u32 %v3996, 4294901760
  %4321 = vmatpush.msra.mxu0 %v4320
  %v4322 = vand.u32 %v3993, 4294901760
  %4323 = vmatpush.msra.mxu0 %v4322
  %v4324 = vand.u32 %v3990, 4294901760
  %4325 = vmatpush.msra.mxu0 %v4324
  %v4326 = vand.u32 %v740, 4294901760
  %4327 = vmatmul.f32.gmra.mxu0 %v4326
  %v4328 = vpop.f32.mrf.mxu0
  %v4329 = vadd.f32 %v4288, %v4328
  %v4330 = vand.u32 %v743, 4294901760
  %4331 = vmatmul.f32.gmra.mxu0 %v4330
  %v4332 = vpop.f32.mrf.mxu0
  %v4333 = vadd.f32 %v4292, %v4332
  %v4334 = vand.u32 %v746, 4294901760
  %4335 = vmatmul.f32.gmra.mxu0 %v4334
  %v4336 = vpop.f32.mrf.mxu0
  %v4337 = vadd.f32 %v4296, %v4336
  %v4338 = vand.u32 %v749, 4294901760
  %4339 = vmatmul.f32.gmra.mxu0 %v4338
  %v4340 = vpop.f32.mrf.mxu0
  %v4341 = vadd.f32 %v4300, %v4340
  %4342 = vdwg.mxu0
  %v4343 = vadd.f32 %v3248, %v4329
  %v4344 = vadd.f32 %v3249, %v4333
  %v4345 = vadd.f32 %v4343, %v4337
  %v4346 = vadd.f32 %v4344, %v4341
  %4349 = vrot.lane.b32.xlu0 %v4343, 5
  %v4350 = vpop.permute.xlu0 %4349
  %4351 = vrot.lane.b32.xlu0 %v4344, 5
  %v4352 = vpop.permute.xlu0 %4351
  %4357 = vrot.lane.b32.xlu0 %v4345, 10
  %v4358 = vpop.permute.xlu0 %4357
  %4359 = vrot.lane.b32.xlu0 %v4346, 10
  %v4360 = vpop.permute.xlu0 %4359
  %v4363 = vsel %vm521, %v3398, %v4350
  %v4364 = vsel %vm521, %v3399, %v4352
  %v4365 = vsel %vm1103, %v4363, %v4358
  %v4366 = vsel %vm1103, %v4364, %v4360
  %v4368 = vsel %vm1107, %v4365, 0
  %v4371 = vsel %vm1107, %v4366, 0
  %4373 = vmatpush.msra.mxu0 0.0
  %4374 = vmatpush.msra.mxu0 0.0
  %4375 = vmatpush.msra.mxu0 0.0
  %4376 = vmatpush.msra.mxu0 0.0
  %4377 = vmatpush.msra.mxu0 0.0
  %4378 = vmatpush.msra.mxu0 0.0
  %4379 = vmatpush.msra.mxu0 0.0
  %4380 = vmatpush.msra.mxu0 0.0
  %4381 = vmatpush.msra.mxu0 0.0
  %4382 = vmatpush.msra.mxu0 0.0
  %4383 = vmatpush.msra.mxu0 0.0
  %4384 = vmatpush.msra.mxu0 0.0
  %4385 = vmatpush.msra.mxu0 0.0
  %4386 = vmatpush.msra.mxu0 0.0
  %4387 = vmatpush.msra.mxu0 %v1116
  %4388 = vmatpush.msra.mxu0 %v79
  %4389 = vmatmul.f32.gmra.mxu0 %v4368
  %v4390 = vpop.f32.mrf.mxu0
  %v4391 = vadd.f32 %v1106, %v4390
  %4392 = vmatmul.f32.gmra.mxu0 %v4371
  %v4393 = vpop.f32.mrf.mxu0
  %v4394 = vadd.f32 %v1106, %v4393
  %4395 = vdwg.mxu0
  %v4396 = vxor.u32 %v4391, 2147483648
  %v4397 = vxor.u32 %v4394, 2147483648
  %v4398 = vmul.f32 %v4396, 1.442695
  %v4399 = vpow.pop %v4398
  %v4400 = vmul.f32 %v4397, 1.442695
  %v4401 = vpow.pop %v4400
  %v4402 = vadd.f32 %v4399, 1.0
  %v4403 = vadd.f32 %v4401, 1.0
  %v4404 = vrcp.pop %v4402
  %v4405 = vmul.f32 %v4402, %v4404
  %v4406 = vsub.f32 1.0, %v4405
  %v4407 = vmul.f32 %v4404, %v4406
  %v4408 = vadd.f32 %v4404, %v4407
  %vm4409 = vweird.f32 %v4402
  %vm4410 = vweird.f32 %v4404
  %vm4411 = vmor %vm4409, %vm4410
  %v4412 = vsel %vm4411, %v4404, %v4408
  %v4413 = vand.u32 2147483647, %v4402
  %vm4414 = vcmp.eq.f32.partialorder %v4413, 8.507059e+37
  %v4415 = vand.u32 %v4402, 2147483648
  %v4416 = vor.u32 1.1754944e-38, %v4415
  %v4417 = vsel %vm4414, %v4416, %v4412
  %v4418 = vmul.f32 1.0, %v4417
  %v4419 = vrcp.pop %v4403
  %v4420 = vmul.f32 %v4403, %v4419
  %v4421 = vsub.f32 1.0, %v4420
  %v4422 = vmul.f32 %v4419, %v4421
  %v4423 = vadd.f32 %v4419, %v4422
  %vm4424 = vweird.f32 %v4403
  %vm4425 = vweird.f32 %v4419
  %vm4426 = vmor %vm4424, %vm4425
  %v4427 = vsel %vm4426, %v4419, %v4423
  %v4428 = vand.u32 2147483647, %v4403
  %vm4429 = vcmp.eq.f32.partialorder %v4428, 8.507059e+37
  %v4430 = vand.u32 %v4403, 2147483648
  %v4431 = vor.u32 1.1754944e-38, %v4430
  %v4432 = vsel %vm4429, %v4431, %v4427
  %v4433 = vmul.f32 1.0, %v4432
  %4436 = vrot.lane.b32.xlu0 %v3398, 5
  %v4437 = vpop.permute.xlu0 %4436
  %4438 = vrot.lane.b32.xlu0 %v3399, 5
  %v4439 = vpop.permute.xlu0 %4438
  %v4442 = vmul.f32 %v4418, %v4437
  %v4443 = vmul.f32 %v4433, %v4439
  %4446 = vrot.lane.b32.xlu0 %v4442, 123
  %v4447 = vpop.permute.xlu0 %4446
  %4448 = vrot.lane.b32.xlu0 %v4443, 123
  %v4449 = vpop.permute.xlu0 %4448
  %v4452 = vsel %vm521, %v4447, %v4350
  %v4453 = vsel %vm521, %v4449, %v4352
  %v4454 = vsel %vm1103, %v4452, %v4358
  %v4455 = vsel %vm1103, %v4453, %v4360
  %v4457 = vsel %vm1107, %v4454, 0
  %v4460 = vsel %vm1107, %v4455, 0
  %4462 = vmatpush.msra.mxu0 0.0
  %4463 = vmatpush.msra.mxu0 0.0
  %4464 = vmatpush.msra.mxu0 0.0
  %4465 = vmatpush.msra.mxu0 0.0
  %4466 = vmatpush.msra.mxu0 0.0
  %4467 = vmatpush.msra.mxu0 0.0
  %4468 = vmatpush.msra.mxu0 0.0
  %4469 = vmatpush.msra.mxu0 0.0
  %4470 = vmatpush.msra.mxu0 0.0
  %4471 = vmatpush.msra.mxu0 0.0
  %4472 = vmatpush.msra.mxu0 0.0
  %4473 = vmatpush.msra.mxu0 0.0
  %4474 = vmatpush.msra.mxu0 0.0
  %4475 = vmatpush.msra.mxu0 0.0
  %4476 = vmatpush.msra.mxu0 %v1201
  %4477 = vmatpush.msra.mxu0 %v81
  %4478 = vmatmul.f32.gmra.mxu0 %v4457
  %v4479 = vpop.f32.mrf.mxu0
  %v4480 = vadd.f32 %v1193, %v4479
  %4481 = vmatmul.f32.gmra.mxu0 %v4460
  %v4482 = vpop.f32.mrf.mxu0
  %v4483 = vadd.f32 %v1193, %v4482
  %4484 = vdwg.mxu0
  %v4485 = vtanh.pop %v4480
  %v4486 = vtanh.pop %v4483
  %v4487 = vsub.f32 1.0, %v4418
  %v4488 = vsub.f32 1.0, %v4433
  %v4489 = vmul.f32 %v4487, %v3398
  %v4490 = vmul.f32 %v4488, %v3399
  %v4491 = vmul.f32 %v4418, %v4485
  %v4492 = vmul.f32 %v4433, %v4486
  %v4493 = vadd.f32 %v4489, %v4491
  %v4494 = vadd.f32 %v4490, %v4492
  %4495 = vmatpush.msra.mxu0 0.0
  %4496 = vmatpush.msra.mxu0 0.0
  %4497 = vmatpush.msra.mxu0 0.0
  %4498 = vmatpush.msra.mxu0 0.0
  %4499 = vmatpush.msra.mxu0 0.0
  %4500 = vmatpush.msra.mxu0 0.0
  %4501 = vmatpush.msra.mxu0 0.0
  %4502 = vmatpush.msra.mxu0 0.0
  %4503 = vmatpush.msra.mxu0 0.0
  %4504 = vmatpush.msra.mxu0 0.0
  %4505 = vmatpush.msra.mxu0 0.0
  %4506 = vmatpush.msra.mxu0 0.0
  %v4507 = vand.u32 %v4494, 4294901760
  %4508 = vmatpush.msra.mxu0 %v4507
  %v4509 = vand.u32 %v4493, 4294901760
  %4510 = vmatpush.msra.mxu0 %v4509
  %v4511 = vand.u32 %v3399, 4294901760
  %4512 = vmatpush.msra.mxu0 %v4511
  %v4513 = vand.u32 %v3398, 4294901760
  %4514 = vmatpush.msra.mxu0 %v4513
  %v4515 = vand.u32 %v148, 4294901760
  %v4516 = vsub.f32 %v148, %v4515
  %v4517 = vand.u32 %v4516, 4294901760
  %v4518 = vsub.f32 %v4516, %v4517
  %v4519 = vand.u32 %v4518, 4294901760
  %4520 = vmatmul.f32.gmra.mxu0 %v4519
  %v4521 = vpop.f32.mrf.mxu0
  %v4522 = vadd.f32 0.0, %v4521
  %v4523 = vand.u32 %v151, 4294901760
  %v4524 = vsub.f32 %v151, %v4523
  %v4525 = vand.u32 %v4524, 4294901760
  %v4526 = vsub.f32 %v4524, %v4525
  %v4527 = vand.u32 %v4526, 4294901760
  %4528 = vmatmul.f32.gmra.mxu0 %v4527
  %v4529 = vpop.f32.mrf.mxu0
  %v4530 = vadd.f32 0.0, %v4529
  %v4531 = vand.u32 %v154, 4294901760
  %v4532 = vsub.f32 %v154, %v4531
  %v4533 = vand.u32 %v4532, 4294901760
  %v4534 = vsub.f32 %v4532, %v4533
  %v4535 = vand.u32 %v4534, 4294901760
  %4536 = vmatmul.f32.gmra.mxu0 %v4535
  %v4537 = vpop.f32.mrf.mxu0
  %v4538 = vadd.f32 0.0, %v4537
  %v4539 = vand.u32 %v157, 4294901760
  %v4540 = vsub.f32 %v157, %v4539
  %v4541 = vand.u32 %v4540, 4294901760
  %v4542 = vsub.f32 %v4540, %v4541
  %v4543 = vand.u32 %v4542, 4294901760
  %4544 = vmatmul.f32.gmra.mxu0 %v4543
  %v4545 = vpop.f32.mrf.mxu0
  %v4546 = vadd.f32 0.0, %v4545
  %v4547 = vand.u32 %v160, 4294901760
  %v4548 = vsub.f32 %v160, %v4547
  %v4549 = vand.u32 %v4548, 4294901760
  %v4550 = vsub.f32 %v4548, %v4549
  %v4551 = vand.u32 %v4550, 4294901760
  %4552 = vmatmul.f32.gmra.mxu0 %v4551
  %v4553 = vpop.f32.mrf.mxu0
  %v4554 = vadd.f32 0.0, %v4553
  %v4555 = vand.u32 %v163, 4294901760
  %v4556 = vsub.f32 %v163, %v4555
  %v4557 = vand.u32 %v4556, 4294901760
  %v4558 = vsub.f32 %v4556, %v4557
  %v4559 = vand.u32 %v4558, 4294901760
  %4560 = vmatmul.f32.gmra.mxu0 %v4559
  %v4561 = vpop.f32.mrf.mxu0
  %v4562 = vadd.f32 0.0, %v4561
  %v4563 = vand.u32 %v166, 4294901760
  %v4564 = vsub.f32 %v166, %v4563
  %v4565 = vand.u32 %v4564, 4294901760
  %v4566 = vsub.f32 %v4564, %v4565
  %v4567 = vand.u32 %v4566, 4294901760
  %4568 = vmatmul.f32.gmra.mxu0 %v4567
  %v4569 = vpop.f32.mrf.mxu0
  %v4570 = vadd.f32 0.0, %v4569
  %v4571 = vand.u32 %v169, 4294901760
  %v4572 = vsub.f32 %v169, %v4571
  %v4573 = vand.u32 %v4572, 4294901760
  %v4574 = vsub.f32 %v4572, %v4573
  %v4575 = vand.u32 %v4574, 4294901760
  %4576 = vmatmul.f32.gmra.mxu0 %v4575
  %v4577 = vpop.f32.mrf.mxu0
  %v4578 = vadd.f32 0.0, %v4577
  %4579 = vdwg.mxu0
  %4580 = vmatpush.msra.mxu0 0.0
  %4581 = vmatpush.msra.mxu0 0.0
  %4582 = vmatpush.msra.mxu0 0.0
  %4583 = vmatpush.msra.mxu0 0.0
  %4584 = vmatpush.msra.mxu0 0.0
  %4585 = vmatpush.msra.mxu0 0.0
  %4586 = vmatpush.msra.mxu0 0.0
  %4587 = vmatpush.msra.mxu0 0.0
  %4588 = vmatpush.msra.mxu0 0.0
  %4589 = vmatpush.msra.mxu0 0.0
  %4590 = vmatpush.msra.mxu0 0.0
  %4591 = vmatpush.msra.mxu0 0.0
  %v4592 = vand.u32 %v4494, 4294901760
  %v4593 = vsub.f32 %v4494, %v4592
  %v4594 = vand.u32 %v4593, 4294901760
  %v4595 = vsub.f32 %v4593, %v4594
  %v4596 = vand.u32 %v4595, 4294901760
  %4597 = vmatpush.msra.mxu0 %v4596
  %v4598 = vand.u32 %v4493, 4294901760
  %v4599 = vsub.f32 %v4493, %v4598
  %v4600 = vand.u32 %v4599, 4294901760
  %v4601 = vsub.f32 %v4599, %v4600
  %v4602 = vand.u32 %v4601, 4294901760
  %4603 = vmatpush.msra.mxu0 %v4602
  %v4604 = vand.u32 %v3399, 4294901760
  %v4605 = vsub.f32 %v3399, %v4604
  %v4606 = vand.u32 %v4605, 4294901760
  %v4607 = vsub.f32 %v4605, %v4606
  %v4608 = vand.u32 %v4607, 4294901760
  %4609 = vmatpush.msra.mxu0 %v4608
  %v4610 = vand.u32 %v3398, 4294901760
  %v4611 = vsub.f32 %v3398, %v4610
  %v4612 = vand.u32 %v4611, 4294901760
  %v4613 = vsub.f32 %v4611, %v4612
  %v4614 = vand.u32 %v4613, 4294901760
  %4615 = vmatpush.msra.mxu0 %v4614
  %v4616 = vand.u32 %v148, 4294901760
  %4617 = vmatmul.f32.gmra.mxu0 %v4616
  %v4618 = vpop.f32.mrf.mxu0
  %v4619 = vadd.f32 %v4522, %v4618
  %v4620 = vand.u32 %v151, 4294901760
  %4621 = vmatmul.f32.gmra.mxu0 %v4620
  %v4622 = vpop.f32.mrf.mxu0
  %v4623 = vadd.f32 %v4530, %v4622
  %v4624 = vand.u32 %v154, 4294901760
  %4625 = vmatmul.f32.gmra.mxu0 %v4624
  %v4626 = vpop.f32.mrf.mxu0
  %v4627 = vadd.f32 %v4538, %v4626
  %v4628 = vand.u32 %v157, 4294901760
  %4629 = vmatmul.f32.gmra.mxu0 %v4628
  %v4630 = vpop.f32.mrf.mxu0
  %v4631 = vadd.f32 %v4546, %v4630
  %v4632 = vand.u32 %v160, 4294901760
  %4633 = vmatmul.f32.gmra.mxu0 %v4632
  %v4634 = vpop.f32.mrf.mxu0
  %v4635 = vadd.f32 %v4554, %v4634
  %v4636 = vand.u32 %v163, 4294901760
  %4637 = vmatmul.f32.gmra.mxu0 %v4636
  %v4638 = vpop.f32.mrf.mxu0
  %v4639 = vadd.f32 %v4562, %v4638
  %v4640 = vand.u32 %v166, 4294901760
  %4641 = vmatmul.f32.gmra.mxu0 %v4640
  %v4642 = vpop.f32.mrf.mxu0
  %v4643 = vadd.f32 %v4570, %v4642
  %v4644 = vand.u32 %v169, 4294901760
  %4645 = vmatmul.f32.gmra.mxu0 %v4644
  %v4646 = vpop.f32.mrf.mxu0
  %v4647 = vadd.f32 %v4578, %v4646
  %4648 = vdwg.mxu0
  %4649 = vmatpush.msra.mxu0 0.0
  %4650 = vmatpush.msra.mxu0 0.0
  %4651 = vmatpush.msra.mxu0 0.0
  %4652 = vmatpush.msra.mxu0 0.0
  %4653 = vmatpush.msra.mxu0 0.0
  %4654 = vmatpush.msra.mxu0 0.0
  %4655 = vmatpush.msra.mxu0 0.0
  %4656 = vmatpush.msra.mxu0 0.0
  %4657 = vmatpush.msra.mxu0 0.0
  %4658 = vmatpush.msra.mxu0 0.0
  %4659 = vmatpush.msra.mxu0 0.0
  %4660 = vmatpush.msra.mxu0 0.0
  %v4661 = vand.u32 %v4494, 4294901760
  %v4662 = vsub.f32 %v4494, %v4661
  %4663 = vmatpush.msra.mxu0 %v4662
  %v4664 = vand.u32 %v4493, 4294901760
  %v4665 = vsub.f32 %v4493, %v4664
  %4666 = vmatpush.msra.mxu0 %v4665
  %v4667 = vand.u32 %v3399, 4294901760
  %v4668 = vsub.f32 %v3399, %v4667
  %4669 = vmatpush.msra.mxu0 %v4668
  %v4670 = vand.u32 %v3398, 4294901760
  %v4671 = vsub.f32 %v3398, %v4670
  %4672 = vmatpush.msra.mxu0 %v4671
  %v4673 = vand.u32 %v148, 4294901760
  %v4674 = vsub.f32 %v148, %v4673
  %4675 = vmatmul.f32.gmra.mxu0 %v4674
  %v4676 = vpop.f32.mrf.mxu0
  %v4677 = vadd.f32 %v4619, %v4676
  %v4678 = vand.u32 %v151, 4294901760
  %v4679 = vsub.f32 %v151, %v4678
  %4680 = vmatmul.f32.gmra.mxu0 %v4679
  %v4681 = vpop.f32.mrf.mxu0
  %v4682 = vadd.f32 %v4623, %v4681
  %v4683 = vand.u32 %v154, 4294901760
  %v4684 = vsub.f32 %v154, %v4683
  %4685 = vmatmul.f32.gmra.mxu0 %v4684
  %v4686 = vpop.f32.mrf.mxu0
  %v4687 = vadd.f32 %v4627, %v4686
  %v4688 = vand.u32 %v157, 4294901760
  %v4689 = vsub.f32 %v157, %v4688
  %4690 = vmatmul.f32.gmra.mxu0 %v4689
  %v4691 = vpop.f32.mrf.mxu0
  %v4692 = vadd.f32 %v4631, %v4691
  %v4693 = vand.u32 %v160, 4294901760
  %v4694 = vsub.f32 %v160, %v4693
  %4695 = vmatmul.f32.gmra.mxu0 %v4694
  %v4696 = vpop.f32.mrf.mxu0
  %v4697 = vadd.f32 %v4635, %v4696
  %v4698 = vand.u32 %v163, 4294901760
  %v4699 = vsub.f32 %v163, %v4698
  %4700 = vmatmul.f32.gmra.mxu0 %v4699
  %v4701 = vpop.f32.mrf.mxu0
  %v4702 = vadd.f32 %v4639, %v4701
  %v4703 = vand.u32 %v166, 4294901760
  %v4704 = vsub.f32 %v166, %v4703
  %4705 = vmatmul.f32.gmra.mxu0 %v4704
  %v4706 = vpop.f32.mrf.mxu0
  %v4707 = vadd.f32 %v4643, %v4706
  %v4708 = vand.u32 %v169, 4294901760
  %v4709 = vsub.f32 %v169, %v4708
  %4710 = vmatmul.f32.gmra.mxu0 %v4709
  %v4711 = vpop.f32.mrf.mxu0
  %v4712 = vadd.f32 %v4647, %v4711
  %4713 = vdwg.mxu0
  %4714 = vmatpush.msra.mxu0 0.0
  %4715 = vmatpush.msra.mxu0 0.0
  %4716 = vmatpush.msra.mxu0 0.0
  %4717 = vmatpush.msra.mxu0 0.0
  %4718 = vmatpush.msra.mxu0 0.0
  %4719 = vmatpush.msra.mxu0 0.0
  %4720 = vmatpush.msra.mxu0 0.0
  %4721 = vmatpush.msra.mxu0 0.0
  %4722 = vmatpush.msra.mxu0 0.0
  %4723 = vmatpush.msra.mxu0 0.0
  %4724 = vmatpush.msra.mxu0 0.0
  %4725 = vmatpush.msra.mxu0 0.0
  %v4726 = vand.u32 %v4494, 4294901760
  %4727 = vmatpush.msra.mxu0 %v4726
  %v4728 = vand.u32 %v4493, 4294901760
  %4729 = vmatpush.msra.mxu0 %v4728
  %v4730 = vand.u32 %v3399, 4294901760
  %4731 = vmatpush.msra.mxu0 %v4730
  %v4732 = vand.u32 %v3398, 4294901760
  %4733 = vmatpush.msra.mxu0 %v4732
  %v4734 = vand.u32 %v148, 4294901760
  %v4735 = vsub.f32 %v148, %v4734
  %v4736 = vand.u32 %v4735, 4294901760
  %4737 = vmatmul.f32.gmra.mxu0 %v4736
  %v4738 = vpop.f32.mrf.mxu0
  %v4739 = vadd.f32 %v4677, %v4738
  %v4740 = vand.u32 %v151, 4294901760
  %v4741 = vsub.f32 %v151, %v4740
  %v4742 = vand.u32 %v4741, 4294901760
  %4743 = vmatmul.f32.gmra.mxu0 %v4742
  %v4744 = vpop.f32.mrf.mxu0
  %v4745 = vadd.f32 %v4682, %v4744
  %v4746 = vand.u32 %v154, 4294901760
  %v4747 = vsub.f32 %v154, %v4746
  %v4748 = vand.u32 %v4747, 4294901760
  %4749 = vmatmul.f32.gmra.mxu0 %v4748
  %v4750 = vpop.f32.mrf.mxu0
  %v4751 = vadd.f32 %v4687, %v4750
  %v4752 = vand.u32 %v157, 4294901760
  %v4753 = vsub.f32 %v157, %v4752
  %v4754 = vand.u32 %v4753, 4294901760
  %4755 = vmatmul.f32.gmra.mxu0 %v4754
  %v4756 = vpop.f32.mrf.mxu0
  %v4757 = vadd.f32 %v4692, %v4756
  %v4758 = vand.u32 %v160, 4294901760
  %v4759 = vsub.f32 %v160, %v4758
  %v4760 = vand.u32 %v4759, 4294901760
  %4761 = vmatmul.f32.gmra.mxu0 %v4760
  %v4762 = vpop.f32.mrf.mxu0
  %v4763 = vadd.f32 %v4697, %v4762
  %v4764 = vand.u32 %v163, 4294901760
  %v4765 = vsub.f32 %v163, %v4764
  %v4766 = vand.u32 %v4765, 4294901760
  %4767 = vmatmul.f32.gmra.mxu0 %v4766
  %v4768 = vpop.f32.mrf.mxu0
  %v4769 = vadd.f32 %v4702, %v4768
  %v4770 = vand.u32 %v166, 4294901760
  %v4771 = vsub.f32 %v166, %v4770
  %v4772 = vand.u32 %v4771, 4294901760
  %4773 = vmatmul.f32.gmra.mxu0 %v4772
  %v4774 = vpop.f32.mrf.mxu0
  %v4775 = vadd.f32 %v4707, %v4774
  %v4776 = vand.u32 %v169, 4294901760
  %v4777 = vsub.f32 %v169, %v4776
  %v4778 = vand.u32 %v4777, 4294901760
  %4779 = vmatmul.f32.gmra.mxu0 %v4778
  %v4780 = vpop.f32.mrf.mxu0
  %v4781 = vadd.f32 %v4712, %v4780
  %4782 = vdwg.mxu0
  %4783 = vmatpush.msra.mxu0 0.0
  %4784 = vmatpush.msra.mxu0 0.0
  %4785 = vmatpush.msra.mxu0 0.0
  %4786 = vmatpush.msra.mxu0 0.0
  %4787 = vmatpush.msra.mxu0 0.0
  %4788 = vmatpush.msra.mxu0 0.0
  %4789 = vmatpush.msra.mxu0 0.0
  %4790 = vmatpush.msra.mxu0 0.0
  %4791 = vmatpush.msra.mxu0 0.0
  %4792 = vmatpush.msra.mxu0 0.0
  %4793 = vmatpush.msra.mxu0 0.0
  %4794 = vmatpush.msra.mxu0 0.0
  %v4795 = vand.u32 %v4494, 4294901760
  %v4796 = vsub.f32 %v4494, %v4795
  %v4797 = vand.u32 %v4796, 4294901760
  %4798 = vmatpush.msra.mxu0 %v4797
  %v4799 = vand.u32 %v4493, 4294901760
  %v4800 = vsub.f32 %v4493, %v4799
  %v4801 = vand.u32 %v4800, 4294901760
  %4802 = vmatpush.msra.mxu0 %v4801
  %v4803 = vand.u32 %v3399, 4294901760
  %v4804 = vsub.f32 %v3399, %v4803
  %v4805 = vand.u32 %v4804, 4294901760
  %4806 = vmatpush.msra.mxu0 %v4805
  %v4807 = vand.u32 %v3398, 4294901760
  %v4808 = vsub.f32 %v3398, %v4807
  %v4809 = vand.u32 %v4808, 4294901760
  %4810 = vmatpush.msra.mxu0 %v4809
  %v4811 = vand.u32 %v148, 4294901760
  %4812 = vmatmul.f32.gmra.mxu0 %v4811
  %v4813 = vpop.f32.mrf.mxu0
  %v4814 = vadd.f32 %v4739, %v4813
  %v4815 = vand.u32 %v151, 4294901760
  %4816 = vmatmul.f32.gmra.mxu0 %v4815
  %v4817 = vpop.f32.mrf.mxu0
  %v4818 = vadd.f32 %v4745, %v4817
  %v4819 = vand.u32 %v154, 4294901760
  %4820 = vmatmul.f32.gmra.mxu0 %v4819
  %v4821 = vpop.f32.mrf.mxu0
  %v4822 = vadd.f32 %v4751, %v4821
  %v4823 = vand.u32 %v157, 4294901760
  %4824 = vmatmul.f32.gmra.mxu0 %v4823
  %v4825 = vpop.f32.mrf.mxu0
  %v4826 = vadd.f32 %v4757, %v4825
  %v4827 = vand.u32 %v160, 4294901760
  %4828 = vmatmul.f32.gmra.mxu0 %v4827
  %v4829 = vpop.f32.mrf.mxu0
  %v4830 = vadd.f32 %v4763, %v4829
  %v4831 = vand.u32 %v163, 4294901760
  %4832 = vmatmul.f32.gmra.mxu0 %v4831
  %v4833 = vpop.f32.mrf.mxu0
  %v4834 = vadd.f32 %v4769, %v4833
  %v4835 = vand.u32 %v166, 4294901760
  %4836 = vmatmul.f32.gmra.mxu0 %v4835
  %v4837 = vpop.f32.mrf.mxu0
  %v4838 = vadd.f32 %v4775, %v4837
  %v4839 = vand.u32 %v169, 4294901760
  %4840 = vmatmul.f32.gmra.mxu0 %v4839
  %v4841 = vpop.f32.mrf.mxu0
  %v4842 = vadd.f32 %v4781, %v4841
  %4843 = vdwg.mxu0
  %4844 = vmatpush.msra.mxu0 0.0
  %4845 = vmatpush.msra.mxu0 0.0
  %4846 = vmatpush.msra.mxu0 0.0
  %4847 = vmatpush.msra.mxu0 0.0
  %4848 = vmatpush.msra.mxu0 0.0
  %4849 = vmatpush.msra.mxu0 0.0
  %4850 = vmatpush.msra.mxu0 0.0
  %4851 = vmatpush.msra.mxu0 0.0
  %4852 = vmatpush.msra.mxu0 0.0
  %4853 = vmatpush.msra.mxu0 0.0
  %4854 = vmatpush.msra.mxu0 0.0
  %4855 = vmatpush.msra.mxu0 0.0
  %v4856 = vand.u32 %v4494, 4294901760
  %4857 = vmatpush.msra.mxu0 %v4856
  %v4858 = vand.u32 %v4493, 4294901760
  %4859 = vmatpush.msra.mxu0 %v4858
  %v4860 = vand.u32 %v3399, 4294901760
  %4861 = vmatpush.msra.mxu0 %v4860
  %v4862 = vand.u32 %v3398, 4294901760
  %4863 = vmatpush.msra.mxu0 %v4862
  %v4864 = vand.u32 %v148, 4294901760
  %4865 = vmatmul.f32.gmra.mxu0 %v4864
  %v4866 = vpop.f32.mrf.mxu0
  %v4867 = vadd.f32 %v4814, %v4866
  %v4868 = vand.u32 %v151, 4294901760
  %4869 = vmatmul.f32.gmra.mxu0 %v4868
  %v4870 = vpop.f32.mrf.mxu0
  %v4871 = vadd.f32 %v4818, %v4870
  %v4872 = vand.u32 %v154, 4294901760
  %4873 = vmatmul.f32.gmra.mxu0 %v4872
  %v4874 = vpop.f32.mrf.mxu0
  %v4875 = vadd.f32 %v4822, %v4874
  %v4876 = vand.u32 %v157, 4294901760
  %4877 = vmatmul.f32.gmra.mxu0 %v4876
  %v4878 = vpop.f32.mrf.mxu0
  %v4879 = vadd.f32 %v4826, %v4878
  %v4880 = vand.u32 %v160, 4294901760
  %4881 = vmatmul.f32.gmra.mxu0 %v4880
  %v4882 = vpop.f32.mrf.mxu0
  %v4883 = vadd.f32 %v4830, %v4882
  %v4884 = vand.u32 %v163, 4294901760
  %4885 = vmatmul.f32.gmra.mxu0 %v4884
  %v4886 = vpop.f32.mrf.mxu0
  %v4887 = vadd.f32 %v4834, %v4886
  %v4888 = vand.u32 %v166, 4294901760
  %4889 = vmatmul.f32.gmra.mxu0 %v4888
  %v4890 = vpop.f32.mrf.mxu0
  %v4891 = vadd.f32 %v4838, %v4890
  %v4892 = vand.u32 %v169, 4294901760
  %4893 = vmatmul.f32.gmra.mxu0 %v4892
  %v4894 = vpop.f32.mrf.mxu0
  %v4895 = vadd.f32 %v4842, %v4894
  %4896 = vdwg.mxu0
  %v4898 = vsel %vm521, %v4867, 0
  %v4901 = vsel %vm521, %v4871, 0
  %v4904 = vsel %vm521, %v4875, 0
  %v4907 = vsel %vm521, %v4879, 0
  %v4910 = vsel %vm521, %v4883, 0
  %v4913 = vsel %vm521, %v4887, 0
  %v4916 = vsel %vm521, %v4891, 0
  %v4919 = vsel %vm521, %v4895, 0
  %4921 = vmatpush.msra.mxu0 0.0
  %4922 = vmatpush.msra.mxu0 0.0
  %4923 = vmatpush.msra.mxu0 0.0
  %4924 = vmatpush.msra.mxu0 0.0
  %4925 = vmatpush.msra.mxu0 0.0
  %4926 = vmatpush.msra.mxu0 0.0
  %4927 = vmatpush.msra.mxu0 0.0
  %4928 = vmatpush.msra.mxu0 0.0
  %4929 = vmatpush.msra.mxu0 0.0
  %4930 = vmatpush.msra.mxu0 0.0
  %4931 = vmatpush.msra.mxu0 0.0
  %4932 = vmatpush.msra.mxu0 0.0
  %4933 = vmatpush.msra.mxu0 0.0
  %4934 = vmatpush.msra.mxu0 0.0
  %4935 = vmatpush.msra.mxu0 0.0
  %4936 = vmatpush.msra.mxu0 %v547
  %4937 = vmatmul.f32.gmra.mxu0 %v4898
  %v4938 = vpop.f32.mrf.mxu0
  %v4939 = vadd.f32 %v135, %v4938
  %4940 = vmatmul.f32.gmra.mxu0 %v4901
  %v4941 = vpop.f32.mrf.mxu0
  %v4942 = vadd.f32 %v138, %v4941
  %4943 = vmatmul.f32.gmra.mxu0 %v4904
  %v4944 = vpop.f32.mrf.mxu0
  %v4945 = vadd.f32 %v141, %v4944
  %4946 = vmatmul.f32.gmra.mxu0 %v4907
  %v4947 = vpop.f32.mrf.mxu0
  %v4948 = vadd.f32 %v144, %v4947
  %4949 = vmatmul.f32.gmra.mxu0 %v4910
  %v4950 = vpop.f32.mrf.mxu0
  %v4951 = vadd.f32 %v135, %v4950
  %4952 = vmatmul.f32.gmra.mxu0 %v4913
  %v4953 = vpop.f32.mrf.mxu0
  %v4954 = vadd.f32 %v138, %v4953
  %4955 = vmatmul.f32.gmra.mxu0 %v4916
  %v4956 = vpop.f32.mrf.mxu0
  %v4957 = vadd.f32 %v141, %v4956
  %4958 = vmatmul.f32.gmra.mxu0 %v4919
  %v4959 = vpop.f32.mrf.mxu0
  %v4960 = vadd.f32 %v144, %v4959
  %4961 = vdwg.mxu0
  %v4962 = vmax.f32 %v4939, 0.0
  %v4963 = vmax.f32 %v4942, 0.0
  %v4964 = vmax.f32 %v4945, 0.0
  %v4965 = vmax.f32 %v4948, 0.0
  %v4966 = vmax.f32 %v4951, 0.0
  %v4967 = vmax.f32 %v4954, 0.0
  %v4968 = vmax.f32 %v4957, 0.0
  %v4969 = vmax.f32 %v4960, 0.0
  %v4971 = vsel %vm599, %v4962, 0
  %v4974 = vsel %vm599, %v4963, 0
  %v4977 = vsel %vm599, %v4964, 0
  %v4980 = vsel %vm599, %v4965, 0
  %v4983 = vsel %vm599, %v4966, 0
  %v4986 = vsel %vm599, %v4967, 0
  %v4989 = vsel %vm599, %v4968, 0
  %v4992 = vsel %vm599, %v4969, 0
  %4994 = vmatpush.msra.mxu0 0.0
  %4995 = vmatpush.msra.mxu0 0.0
  %4996 = vmatpush.msra.mxu0 0.0
  %4997 = vmatpush.msra.mxu0 0.0
  %4998 = vmatpush.msra.mxu0 0.0
  %4999 = vmatpush.msra.mxu0 0.0
  %5000 = vmatpush.msra.mxu0 0.0
  %5001 = vmatpush.msra.mxu0 0.0
  %5002 = vmatpush.msra.mxu0 %v68
  %5003 = vmatpush.msra.mxu0 %v67
  %5004 = vmatpush.msra.mxu0 %v66
  %5005 = vmatpush.msra.mxu0 %v65
  %5006 = vmatpush.msra.mxu0 %v64
  %5007 = vmatpush.msra.mxu0 %v63
  %5008 = vmatpush.msra.mxu0 %v62
  %5009 = vmatpush.msra.mxu0 %v61
  %5010 = vmatmul.f32.gmra.mxu0 %v4971
  %v5011 = vpop.f32.mrf.mxu0
  %v5012 = vadd.f32 %v598, %v5011
  %5013 = vmatmul.f32.gmra.mxu0 %v4974
  %v5014 = vpop.f32.mrf.mxu0
  %v5015 = vadd.f32 %v598, %v5014
  %5016 = vmatmul.f32.gmra.mxu0 %v4977
  %v5017 = vpop.f32.mrf.mxu0
  %v5018 = vadd.f32 %v598, %v5017
  %5019 = vmatmul.f32.gmra.mxu0 %v4980
  %v5020 = vpop.f32.mrf.mxu0
  %v5021 = vadd.f32 %v598, %v5020
  %5022 = vmatmul.f32.gmra.mxu0 %v4983
  %v5023 = vpop.f32.mrf.mxu0
  %v5024 = vadd.f32 %v598, %v5023
  %5025 = vmatmul.f32.gmra.mxu0 %v4986
  %v5026 = vpop.f32.mrf.mxu0
  %v5027 = vadd.f32 %v598, %v5026
  %5028 = vmatmul.f32.gmra.mxu0 %v4989
  %v5029 = vpop.f32.mrf.mxu0
  %v5030 = vadd.f32 %v598, %v5029
  %5031 = vmatmul.f32.gmra.mxu0 %v4992
  %v5032 = vpop.f32.mrf.mxu0
  %v5033 = vadd.f32 %v598, %v5032
  %5034 = vdwg.mxu0
  %v5035 = vmax.f32 %v5012, 0.0
  %v5036 = vmax.f32 %v5015, 0.0
  %v5037 = vmax.f32 %v5018, 0.0
  %v5038 = vmax.f32 %v5021, 0.0
  %v5039 = vmax.f32 %v5024, 0.0
  %v5040 = vmax.f32 %v5027, 0.0
  %v5041 = vmax.f32 %v5030, 0.0
  %v5042 = vmax.f32 %v5033, 0.0
  %v5044 = vsel %vm599, %v5035, 0
  %v5047 = vsel %vm599, %v5036, 0
  %v5050 = vsel %vm599, %v5037, 0
  %v5053 = vsel %vm599, %v5038, 0
  %v5056 = vsel %vm599, %v5039, 0
  %v5059 = vsel %vm599, %v5040, 0
  %v5062 = vsel %vm599, %v5041, 0
  %v5065 = vsel %vm599, %v5042, 0
  %5067 = vmatpush.msra.mxu0 0.0
  %5068 = vmatpush.msra.mxu0 0.0
  %5069 = vmatpush.msra.mxu0 0.0
  %5070 = vmatpush.msra.mxu0 0.0
  %5071 = vmatpush.msra.mxu0 0.0
  %5072 = vmatpush.msra.mxu0 0.0
  %5073 = vmatpush.msra.mxu0 0.0
  %5074 = vmatpush.msra.mxu0 0.0
  %5075 = vmatpush.msra.mxu0 %v77
  %5076 = vmatpush.msra.mxu0 %v76
  %5077 = vmatpush.msra.mxu0 %v75
  %5078 = vmatpush.msra.mxu0 %v74
  %5079 = vmatpush.msra.mxu0 %v73
  %5080 = vmatpush.msra.mxu0 %v72
  %5081 = vmatpush.msra.mxu0 %v71
  %5082 = vmatpush.msra.mxu0 %v70
  %5083 = vmatmul.f32.gmra.mxu0 %v5044
  %v5084 = vpop.f32.mrf.mxu0
  %v5085 = vadd.f32 %v673, %v5084
  %5086 = vmatmul.f32.gmra.mxu0 %v5047
  %v5087 = vpop.f32.mrf.mxu0
  %v5088 = vadd.f32 %v673, %v5087
  %5089 = vmatmul.f32.gmra.mxu0 %v5050
  %v5090 = vpop.f32.mrf.mxu0
  %v5091 = vadd.f32 %v673, %v5090
  %5092 = vmatmul.f32.gmra.mxu0 %v5053
  %v5093 = vpop.f32.mrf.mxu0
  %v5094 = vadd.f32 %v673, %v5093
  %5095 = vmatmul.f32.gmra.mxu0 %v5056
  %v5096 = vpop.f32.mrf.mxu0
  %v5097 = vadd.f32 %v673, %v5096
  %5098 = vmatmul.f32.gmra.mxu0 %v5059
  %v5099 = vpop.f32.mrf.mxu0
  %v5100 = vadd.f32 %v673, %v5099
  %5101 = vmatmul.f32.gmra.mxu0 %v5062
  %v5102 = vpop.f32.mrf.mxu0
  %v5103 = vadd.f32 %v673, %v5102
  %5104 = vmatmul.f32.gmra.mxu0 %v5065
  %v5105 = vpop.f32.mrf.mxu0
  %v5106 = vadd.f32 %v673, %v5105
  %5107 = vdwg.mxu0
  %5108 = vmatpush.msra.mxu0 0.0
  %5109 = vmatpush.msra.mxu0 0.0
  %5110 = vmatpush.msra.mxu0 0.0
  %5111 = vmatpush.msra.mxu0 0.0
  %5112 = vmatpush.msra.mxu0 0.0
  %5113 = vmatpush.msra.mxu0 0.0
  %5114 = vmatpush.msra.mxu0 0.0
  %5115 = vmatpush.msra.mxu0 0.0
  %v5116 = vand.u32 %v5106, 4294901760
  %5117 = vmatpush.msra.mxu0 %v5116
  %v5118 = vand.u32 %v5103, 4294901760
  %5119 = vmatpush.msra.mxu0 %v5118
  %v5120 = vand.u32 %v5100, 4294901760
  %5121 = vmatpush.msra.mxu0 %v5120
  %v5122 = vand.u32 %v5097, 4294901760
  %5123 = vmatpush.msra.mxu0 %v5122
  %v5124 = vand.u32 %v5094, 4294901760
  %5125 = vmatpush.msra.mxu0 %v5124
  %v5126 = vand.u32 %v5091, 4294901760
  %5127 = vmatpush.msra.mxu0 %v5126
  %v5128 = vand.u32 %v5088, 4294901760
  %5129 = vmatpush.msra.mxu0 %v5128
  %v5130 = vand.u32 %v5085, 4294901760
  %5131 = vmatpush.msra.mxu0 %v5130
  %v5132 = vand.u32 %v740, 4294901760
  %v5133 = vsub.f32 %v740, %v5132
  %v5134 = vand.u32 %v5133, 4294901760
  %v5135 = vsub.f32 %v5133, %v5134
  %v5136 = vand.u32 %v5135, 4294901760
  %5137 = vmatmul.f32.gmra.mxu0 %v5136
  %v5138 = vpop.f32.mrf.mxu0
  %v5139 = vadd.f32 0.0, %v5138
  %v5140 = vand.u32 %v743, 4294901760
  %v5141 = vsub.f32 %v743, %v5140
  %v5142 = vand.u32 %v5141, 4294901760
  %v5143 = vsub.f32 %v5141, %v5142
  %v5144 = vand.u32 %v5143, 4294901760
  %5145 = vmatmul.f32.gmra.mxu0 %v5144
  %v5146 = vpop.f32.mrf.mxu0
  %v5147 = vadd.f32 0.0, %v5146
  %v5148 = vand.u32 %v746, 4294901760
  %v5149 = vsub.f32 %v746, %v5148
  %v5150 = vand.u32 %v5149, 4294901760
  %v5151 = vsub.f32 %v5149, %v5150
  %v5152 = vand.u32 %v5151, 4294901760
  %5153 = vmatmul.f32.gmra.mxu0 %v5152
  %v5154 = vpop.f32.mrf.mxu0
  %v5155 = vadd.f32 0.0, %v5154
  %v5156 = vand.u32 %v749, 4294901760
  %v5157 = vsub.f32 %v749, %v5156
  %v5158 = vand.u32 %v5157, 4294901760
  %v5159 = vsub.f32 %v5157, %v5158
  %v5160 = vand.u32 %v5159, 4294901760
  %5161 = vmatmul.f32.gmra.mxu0 %v5160
  %v5162 = vpop.f32.mrf.mxu0
  %v5163 = vadd.f32 0.0, %v5162
  %5164 = vdwg.mxu0
  %5165 = vmatpush.msra.mxu0 0.0
  %5166 = vmatpush.msra.mxu0 0.0
  %5167 = vmatpush.msra.mxu0 0.0
  %5168 = vmatpush.msra.mxu0 0.0
  %5169 = vmatpush.msra.mxu0 0.0
  %5170 = vmatpush.msra.mxu0 0.0
  %5171 = vmatpush.msra.mxu0 0.0
  %5172 = vmatpush.msra.mxu0 0.0
  %v5173 = vand.u32 %v5106, 4294901760
  %v5174 = vsub.f32 %v5106, %v5173
  %v5175 = vand.u32 %v5174, 4294901760
  %v5176 = vsub.f32 %v5174, %v5175
  %v5177 = vand.u32 %v5176, 4294901760
  %5178 = vmatpush.msra.mxu0 %v5177
  %v5179 = vand.u32 %v5103, 4294901760
  %v5180 = vsub.f32 %v5103, %v5179
  %v5181 = vand.u32 %v5180, 4294901760
  %v5182 = vsub.f32 %v5180, %v5181
  %v5183 = vand.u32 %v5182, 4294901760
  %5184 = vmatpush.msra.mxu0 %v5183
  %v5185 = vand.u32 %v5100, 4294901760
  %v5186 = vsub.f32 %v5100, %v5185
  %v5187 = vand.u32 %v5186, 4294901760
  %v5188 = vsub.f32 %v5186, %v5187
  %v5189 = vand.u32 %v5188, 4294901760
  %5190 = vmatpush.msra.mxu0 %v5189
  %v5191 = vand.u32 %v5097, 4294901760
  %v5192 = vsub.f32 %v5097, %v5191
  %v5193 = vand.u32 %v5192, 4294901760
  %v5194 = vsub.f32 %v5192, %v5193
  %v5195 = vand.u32 %v5194, 4294901760
  %5196 = vmatpush.msra.mxu0 %v5195
  %v5197 = vand.u32 %v5094, 4294901760
  %v5198 = vsub.f32 %v5094, %v5197
  %v5199 = vand.u32 %v5198, 4294901760
  %v5200 = vsub.f32 %v5198, %v5199
  %v5201 = vand.u32 %v5200, 4294901760
  %5202 = vmatpush.msra.mxu0 %v5201
  %v5203 = vand.u32 %v5091, 4294901760
  %v5204 = vsub.f32 %v5091, %v5203
  %v5205 = vand.u32 %v5204, 4294901760
  %v5206 = vsub.f32 %v5204, %v5205
  %v5207 = vand.u32 %v5206, 4294901760
  %5208 = vmatpush.msra.mxu0 %v5207
  %v5209 = vand.u32 %v5088, 4294901760
  %v5210 = vsub.f32 %v5088, %v5209
  %v5211 = vand.u32 %v5210, 4294901760
  %v5212 = vsub.f32 %v5210, %v5211
  %v5213 = vand.u32 %v5212, 4294901760
  %5214 = vmatpush.msra.mxu0 %v5213
  %v5215 = vand.u32 %v5085, 4294901760
  %v5216 = vsub.f32 %v5085, %v5215
  %v5217 = vand.u32 %v5216, 4294901760
  %v5218 = vsub.f32 %v5216, %v5217
  %v5219 = vand.u32 %v5218, 4294901760
  %5220 = vmatpush.msra.mxu0 %v5219
  %v5221 = vand.u32 %v740, 4294901760
  %5222 = vmatmul.f32.gmra.mxu0 %v5221
  %v5223 = vpop.f32.mrf.mxu0
  %v5224 = vadd.f32 %v5139, %v5223
  %v5225 = vand.u32 %v743, 4294901760
  %5226 = vmatmul.f32.gmra.mxu0 %v5225
  %v5227 = vpop.f32.mrf.mxu0
  %v5228 = vadd.f32 %v5147, %v5227
  %v5229 = vand.u32 %v746, 4294901760
  %5230 = vmatmul.f32.gmra.mxu0 %v5229
  %v5231 = vpop.f32.mrf.mxu0
  %v5232 = vadd.f32 %v5155, %v5231
  %v5233 = vand.u32 %v749, 4294901760
  %5234 = vmatmul.f32.gmra.mxu0 %v5233
  %v5235 = vpop.f32.mrf.mxu0
  %v5236 = vadd.f32 %v5163, %v5235
  %5237 = vdwg.mxu0
  %5238 = vmatpush.msra.mxu0 0.0
  %5239 = vmatpush.msra.mxu0 0.0
  %5240 = vmatpush.msra.mxu0 0.0
  %5241 = vmatpush.msra.mxu0 0.0
  %5242 = vmatpush.msra.mxu0 0.0
  %5243 = vmatpush.msra.mxu0 0.0
  %5244 = vmatpush.msra.mxu0 0.0
  %5245 = vmatpush.msra.mxu0 0.0
  %v5246 = vand.u32 %v5106, 4294901760
  %v5247 = vsub.f32 %v5106, %v5246
  %5248 = vmatpush.msra.mxu0 %v5247
  %v5249 = vand.u32 %v5103, 4294901760
  %v5250 = vsub.f32 %v5103, %v5249
  %5251 = vmatpush.msra.mxu0 %v5250
  %v5252 = vand.u32 %v5100, 4294901760
  %v5253 = vsub.f32 %v5100, %v5252
  %5254 = vmatpush.msra.mxu0 %v5253
  %v5255 = vand.u32 %v5097, 4294901760
  %v5256 = vsub.f32 %v5097, %v5255
  %5257 = vmatpush.msra.mxu0 %v5256
  %v5258 = vand.u32 %v5094, 4294901760
  %v5259 = vsub.f32 %v5094, %v5258
  %5260 = vmatpush.msra.mxu0 %v5259
  %v5261 = vand.u32 %v5091, 4294901760
  %v5262 = vsub.f32 %v5091, %v5261
  %5263 = vmatpush.msra.mxu0 %v5262
  %v5264 = vand.u32 %v5088, 4294901760
  %v5265 = vsub.f32 %v5088, %v5264
  %5266 = vmatpush.msra.mxu0 %v5265
  %v5267 = vand.u32 %v5085, 4294901760
  %v5268 = vsub.f32 %v5085, %v5267
  %5269 = vmatpush.msra.mxu0 %v5268
  %v5270 = vand.u32 %v740, 4294901760
  %v5271 = vsub.f32 %v740, %v5270
  %5272 = vmatmul.f32.gmra.mxu0 %v5271
  %v5273 = vpop.f32.mrf.mxu0
  %v5274 = vadd.f32 %v5224, %v5273
  %v5275 = vand.u32 %v743, 4294901760
  %v5276 = vsub.f32 %v743, %v5275
  %5277 = vmatmul.f32.gmra.mxu0 %v5276
  %v5278 = vpop.f32.mrf.mxu0
  %v5279 = vadd.f32 %v5228, %v5278
  %v5280 = vand.u32 %v746, 4294901760
  %v5281 = vsub.f32 %v746, %v5280
  %5282 = vmatmul.f32.gmra.mxu0 %v5281
  %v5283 = vpop.f32.mrf.mxu0
  %v5284 = vadd.f32 %v5232, %v5283
  %v5285 = vand.u32 %v749, 4294901760
  %v5286 = vsub.f32 %v749, %v5285
  %5287 = vmatmul.f32.gmra.mxu0 %v5286
  %v5288 = vpop.f32.mrf.mxu0
  %v5289 = vadd.f32 %v5236, %v5288
  %5290 = vdwg.mxu0
  %5291 = vmatpush.msra.mxu0 0.0
  %5292 = vmatpush.msra.mxu0 0.0
  %5293 = vmatpush.msra.mxu0 0.0
  %5294 = vmatpush.msra.mxu0 0.0
  %5295 = vmatpush.msra.mxu0 0.0
  %5296 = vmatpush.msra.mxu0 0.0
  %5297 = vmatpush.msra.mxu0 0.0
  %5298 = vmatpush.msra.mxu0 0.0
  %v5299 = vand.u32 %v5106, 4294901760
  %5300 = vmatpush.msra.mxu0 %v5299
  %v5301 = vand.u32 %v5103, 4294901760
  %5302 = vmatpush.msra.mxu0 %v5301
  %v5303 = vand.u32 %v5100, 4294901760
  %5304 = vmatpush.msra.mxu0 %v5303
  %v5305 = vand.u32 %v5097, 4294901760
  %5306 = vmatpush.msra.mxu0 %v5305
  %v5307 = vand.u32 %v5094, 4294901760
  %5308 = vmatpush.msra.mxu0 %v5307
  %v5309 = vand.u32 %v5091, 4294901760
  %5310 = vmatpush.msra.mxu0 %v5309
  %v5311 = vand.u32 %v5088, 4294901760
  %5312 = vmatpush.msra.mxu0 %v5311
  %v5313 = vand.u32 %v5085, 4294901760
  %5314 = vmatpush.msra.mxu0 %v5313
  %v5315 = vand.u32 %v740, 4294901760
  %v5316 = vsub.f32 %v740, %v5315
  %v5317 = vand.u32 %v5316, 4294901760
  %5318 = vmatmul.f32.gmra.mxu0 %v5317
  %v5319 = vpop.f32.mrf.mxu0
  %v5320 = vadd.f32 %v5274, %v5319
  %v5321 = vand.u32 %v743, 4294901760
  %v5322 = vsub.f32 %v743, %v5321
  %v5323 = vand.u32 %v5322, 4294901760
  %5324 = vmatmul.f32.gmra.mxu0 %v5323
  %v5325 = vpop.f32.mrf.mxu0
  %v5326 = vadd.f32 %v5279, %v5325
  %v5327 = vand.u32 %v746, 4294901760
  %v5328 = vsub.f32 %v746, %v5327
  %v5329 = vand.u32 %v5328, 4294901760
  %5330 = vmatmul.f32.gmra.mxu0 %v5329
  %v5331 = vpop.f32.mrf.mxu0
  %v5332 = vadd.f32 %v5284, %v5331
  %v5333 = vand.u32 %v749, 4294901760
  %v5334 = vsub.f32 %v749, %v5333
  %v5335 = vand.u32 %v5334, 4294901760
  %5336 = vmatmul.f32.gmra.mxu0 %v5335
  %v5337 = vpop.f32.mrf.mxu0
  %v5338 = vadd.f32 %v5289, %v5337
  %5339 = vdwg.mxu0
  %5340 = vmatpush.msra.mxu0 0.0
  %5341 = vmatpush.msra.mxu0 0.0
  %5342 = vmatpush.msra.mxu0 0.0
  %5343 = vmatpush.msra.mxu0 0.0
  %5344 = vmatpush.msra.mxu0 0.0
  %5345 = vmatpush.msra.mxu0 0.0
  %5346 = vmatpush.msra.mxu0 0.0
  %5347 = vmatpush.msra.mxu0 0.0
  %v5348 = vand.u32 %v5106, 4294901760
  %v5349 = vsub.f32 %v5106, %v5348
  %v5350 = vand.u32 %v5349, 4294901760
  %5351 = vmatpush.msra.mxu0 %v5350
  %v5352 = vand.u32 %v5103, 4294901760
  %v5353 = vsub.f32 %v5103, %v5352
  %v5354 = vand.u32 %v5353, 4294901760
  %5355 = vmatpush.msra.mxu0 %v5354
  %v5356 = vand.u32 %v5100, 4294901760
  %v5357 = vsub.f32 %v5100, %v5356
  %v5358 = vand.u32 %v5357, 4294901760
  %5359 = vmatpush.msra.mxu0 %v5358
  %v5360 = vand.u32 %v5097, 4294901760
  %v5361 = vsub.f32 %v5097, %v5360
  %v5362 = vand.u32 %v5361, 4294901760
  %5363 = vmatpush.msra.mxu0 %v5362
  %v5364 = vand.u32 %v5094, 4294901760
  %v5365 = vsub.f32 %v5094, %v5364
  %v5366 = vand.u32 %v5365, 4294901760
  %5367 = vmatpush.msra.mxu0 %v5366
  %v5368 = vand.u32 %v5091, 4294901760
  %v5369 = vsub.f32 %v5091, %v5368
  %v5370 = vand.u32 %v5369, 4294901760
  %5371 = vmatpush.msra.mxu0 %v5370
  %v5372 = vand.u32 %v5088, 4294901760
  %v5373 = vsub.f32 %v5088, %v5372
  %v5374 = vand.u32 %v5373, 4294901760
  %5375 = vmatpush.msra.mxu0 %v5374
  %v5376 = vand.u32 %v5085, 4294901760
  %v5377 = vsub.f32 %v5085, %v5376
  %v5378 = vand.u32 %v5377, 4294901760
  %5379 = vmatpush.msra.mxu0 %v5378
  %v5380 = vand.u32 %v740, 4294901760
  %5381 = vmatmul.f32.gmra.mxu0 %v5380
  %v5382 = vpop.f32.mrf.mxu0
  %v5383 = vadd.f32 %v5320, %v5382
  %v5384 = vand.u32 %v743, 4294901760
  %5385 = vmatmul.f32.gmra.mxu0 %v5384
  %v5386 = vpop.f32.mrf.mxu0
  %v5387 = vadd.f32 %v5326, %v5386
  %v5388 = vand.u32 %v746, 4294901760
  %5389 = vmatmul.f32.gmra.mxu0 %v5388
  %v5390 = vpop.f32.mrf.mxu0
  %v5391 = vadd.f32 %v5332, %v5390
  %v5392 = vand.u32 %v749, 4294901760
  %5393 = vmatmul.f32.gmra.mxu0 %v5392
  %v5394 = vpop.f32.mrf.mxu0
  %v5395 = vadd.f32 %v5338, %v5394
  %5396 = vdwg.mxu0
  %5397 = vmatpush.msra.mxu0 0.0
  %5398 = vmatpush.msra.mxu0 0.0
  %5399 = vmatpush.msra.mxu0 0.0
  %5400 = vmatpush.msra.mxu0 0.0
  %5401 = vmatpush.msra.mxu0 0.0
  %5402 = vmatpush.msra.mxu0 0.0
  %5403 = vmatpush.msra.mxu0 0.0
  %5404 = vmatpush.msra.mxu0 0.0
  %v5405 = vand.u32 %v5106, 4294901760
  %5406 = vmatpush.msra.mxu0 %v5405
  %v5407 = vand.u32 %v5103, 4294901760
  %5408 = vmatpush.msra.mxu0 %v5407
  %v5409 = vand.u32 %v5100, 4294901760
  %5410 = vmatpush.msra.mxu0 %v5409
  %v5411 = vand.u32 %v5097, 4294901760
  %5412 = vmatpush.msra.mxu0 %v5411
  %v5413 = vand.u32 %v5094, 4294901760
  %5414 = vmatpush.msra.mxu0 %v5413
  %v5415 = vand.u32 %v5091, 4294901760
  %5416 = vmatpush.msra.mxu0 %v5415
  %v5417 = vand.u32 %v5088, 4294901760
  %5418 = vmatpush.msra.mxu0 %v5417
  %v5419 = vand.u32 %v5085, 4294901760
  %5420 = vmatpush.msra.mxu0 %v5419
  %v5421 = vand.u32 %v740, 4294901760
  %5422 = vmatmul.f32.gmra.mxu0 %v5421
  %v5423 = vpop.f32.mrf.mxu0
  %v5424 = vadd.f32 %v5383, %v5423
  %v5425 = vand.u32 %v743, 4294901760
  %5426 = vmatmul.f32.gmra.mxu0 %v5425
  %v5427 = vpop.f32.mrf.mxu0
  %v5428 = vadd.f32 %v5387, %v5427
  %v5429 = vand.u32 %v746, 4294901760
  %5430 = vmatmul.f32.gmra.mxu0 %v5429
  %v5431 = vpop.f32.mrf.mxu0
  %v5432 = vadd.f32 %v5391, %v5431
  %v5433 = vand.u32 %v749, 4294901760
  %5434 = vmatmul.f32.gmra.mxu0 %v5433
  %v5435 = vpop.f32.mrf.mxu0
  %v5436 = vadd.f32 %v5395, %v5435
  %5437 = vdwg.mxu0
  %v5438 = vadd.f32 %v4343, %v5424
  %v5439 = vadd.f32 %v4344, %v5428
  %v5440 = vadd.f32 %v5438, %v5432
  %v5441 = vadd.f32 %v5439, %v5436
  %5444 = vrot.lane.b32.xlu0 %v5438, 5
  %v5445 = vpop.permute.xlu0 %5444
  %5446 = vrot.lane.b32.xlu0 %v5439, 5
  %v5447 = vpop.permute.xlu0 %5446
  %5452 = vrot.lane.b32.xlu0 %v5440, 10
  %v5453 = vpop.permute.xlu0 %5452
  %5454 = vrot.lane.b32.xlu0 %v5441, 10
  %v5455 = vpop.permute.xlu0 %5454
  %v5458 = vsel %vm521, %v4493, %v5445
  %v5459 = vsel %vm521, %v4494, %v5447
  %v5460 = vsel %vm1103, %v5458, %v5453
  %v5461 = vsel %vm1103, %v5459, %v5455
  %v5463 = vsel %vm1107, %v5460, 0
  %v5466 = vsel %vm1107, %v5461, 0
  %5468 = vmatpush.msra.mxu0 0.0
  %5469 = vmatpush.msra.mxu0 0.0
  %5470 = vmatpush.msra.mxu0 0.0
  %5471 = vmatpush.msra.mxu0 0.0
  %5472 = vmatpush.msra.mxu0 0.0
  %5473 = vmatpush.msra.mxu0 0.0
  %5474 = vmatpush.msra.mxu0 0.0
  %5475 = vmatpush.msra.mxu0 0.0
  %5476 = vmatpush.msra.mxu0 0.0
  %5477 = vmatpush.msra.mxu0 0.0
  %5478 = vmatpush.msra.mxu0 0.0
  %5479 = vmatpush.msra.mxu0 0.0
  %5480 = vmatpush.msra.mxu0 0.0
  %5481 = vmatpush.msra.mxu0 0.0
  %5482 = vmatpush.msra.mxu0 %v1116
  %5483 = vmatpush.msra.mxu0 %v79
  %5484 = vmatmul.f32.gmra.mxu0 %v5463
  %v5485 = vpop.f32.mrf.mxu0
  %v5486 = vadd.f32 %v1106, %v5485
  %5487 = vmatmul.f32.gmra.mxu0 %v5466
  %v5488 = vpop.f32.mrf.mxu0
  %v5489 = vadd.f32 %v1106, %v5488
  %5490 = vdwg.mxu0
  %v5491 = vxor.u32 %v5486, 2147483648
  %v5492 = vxor.u32 %v5489, 2147483648
  %v5493 = vmul.f32 %v5491, 1.442695
  %v5494 = vpow.pop %v5493
  %v5495 = vmul.f32 %v5492, 1.442695
  %v5496 = vpow.pop %v5495
  %v5497 = vadd.f32 %v5494, 1.0
  %v5498 = vadd.f32 %v5496, 1.0
  %v5499 = vrcp.pop %v5497
  %v5500 = vmul.f32 %v5497, %v5499
  %v5501 = vsub.f32 1.0, %v5500
  %v5502 = vmul.f32 %v5499, %v5501
  %v5503 = vadd.f32 %v5499, %v5502
  %vm5504 = vweird.f32 %v5497
  %vm5505 = vweird.f32 %v5499
  %vm5506 = vmor %vm5504, %vm5505
  %v5507 = vsel %vm5506, %v5499, %v5503
  %v5508 = vand.u32 2147483647, %v5497
  %vm5509 = vcmp.eq.f32.partialorder %v5508, 8.507059e+37
  %v5510 = vand.u32 %v5497, 2147483648
  %v5511 = vor.u32 1.1754944e-38, %v5510
  %v5512 = vsel %vm5509, %v5511, %v5507
  %v5513 = vmul.f32 1.0, %v5512
  %v5514 = vrcp.pop %v5498
  %v5515 = vmul.f32 %v5498, %v5514
  %v5516 = vsub.f32 1.0, %v5515
  %v5517 = vmul.f32 %v5514, %v5516
  %v5518 = vadd.f32 %v5514, %v5517
  %vm5519 = vweird.f32 %v5498
  %vm5520 = vweird.f32 %v5514
  %vm5521 = vmor %vm5519, %vm5520
  %v5522 = vsel %vm5521, %v5514, %v5518
  %v5523 = vand.u32 2147483647, %v5498
  %vm5524 = vcmp.eq.f32.partialorder %v5523, 8.507059e+37
  %v5525 = vand.u32 %v5498, 2147483648
  %v5526 = vor.u32 1.1754944e-38, %v5525
  %v5527 = vsel %vm5524, %v5526, %v5522
  %v5528 = vmul.f32 1.0, %v5527
  %5531 = vrot.lane.b32.xlu0 %v4493, 5
  %v5532 = vpop.permute.xlu0 %5531
  %5533 = vrot.lane.b32.xlu0 %v4494, 5
  %v5534 = vpop.permute.xlu0 %5533
  %v5537 = vmul.f32 %v5513, %v5532
  %v5538 = vmul.f32 %v5528, %v5534
  %5541 = vrot.lane.b32.xlu0 %v5537, 123
  %v5542 = vpop.permute.xlu0 %5541
  %5543 = vrot.lane.b32.xlu0 %v5538, 123
  %v5544 = vpop.permute.xlu0 %5543
  %v5547 = vsel %vm521, %v5542, %v5445
  %v5548 = vsel %vm521, %v5544, %v5447
  %v5549 = vsel %vm1103, %v5547, %v5453
  %v5550 = vsel %vm1103, %v5548, %v5455
  %v5552 = vsel %vm1107, %v5549, 0
  %v5555 = vsel %vm1107, %v5550, 0
  %5557 = vmatpush.msra.mxu0 0.0
  %5558 = vmatpush.msra.mxu0 0.0
  %5559 = vmatpush.msra.mxu0 0.0
  %5560 = vmatpush.msra.mxu0 0.0
  %5561 = vmatpush.msra.mxu0 0.0
  %5562 = vmatpush.msra.mxu0 0.0
  %5563 = vmatpush.msra.mxu0 0.0
  %5564 = vmatpush.msra.mxu0 0.0
  %5565 = vmatpush.msra.mxu0 0.0
  %5566 = vmatpush.msra.mxu0 0.0
  %5567 = vmatpush.msra.mxu0 0.0
  %5568 = vmatpush.msra.mxu0 0.0
  %5569 = vmatpush.msra.mxu0 0.0
  %5570 = vmatpush.msra.mxu0 0.0
  %5571 = vmatpush.msra.mxu0 %v1201
  %5572 = vmatpush.msra.mxu0 %v81
  %5573 = vmatmul.f32.gmra.mxu0 %v5552
  %v5574 = vpop.f32.mrf.mxu0
  %v5575 = vadd.f32 %v1193, %v5574
  %5576 = vmatmul.f32.gmra.mxu0 %v5555
  %v5577 = vpop.f32.mrf.mxu0
  %v5578 = vadd.f32 %v1193, %v5577
  %5579 = vdwg.mxu0
  %v5580 = vtanh.pop %v5575
  %v5581 = vtanh.pop %v5578
  %v5582 = vsub.f32 1.0, %v5513
  %v5583 = vsub.f32 1.0, %v5528
  %v5584 = vmul.f32 %v5582, %v4493
  %v5585 = vmul.f32 %v5583, %v4494
  %v5586 = vmul.f32 %v5513, %v5580
  %v5587 = vmul.f32 %v5528, %v5581
  %v5588 = vadd.f32 %v5584, %v5586
  %v5589 = vadd.f32 %v5585, %v5587
  %5590 = vmatpush.msra.mxu0 0.0
  %5591 = vmatpush.msra.mxu0 0.0
  %5592 = vmatpush.msra.mxu0 0.0
  %5593 = vmatpush.msra.mxu0 0.0
  %5594 = vmatpush.msra.mxu0 0.0
  %5595 = vmatpush.msra.mxu0 0.0
  %5596 = vmatpush.msra.mxu0 0.0
  %5597 = vmatpush.msra.mxu0 0.0
  %5598 = vmatpush.msra.mxu0 0.0
  %5599 = vmatpush.msra.mxu0 0.0
  %5600 = vmatpush.msra.mxu0 0.0
  %5601 = vmatpush.msra.mxu0 0.0
  %v5602 = vand.u32 %v5589, 4294901760
  %5603 = vmatpush.msra.mxu0 %v5602
  %v5604 = vand.u32 %v5588, 4294901760
  %5605 = vmatpush.msra.mxu0 %v5604
  %v5606 = vand.u32 %v4494, 4294901760
  %5607 = vmatpush.msra.mxu0 %v5606
  %v5608 = vand.u32 %v4493, 4294901760
  %5609 = vmatpush.msra.mxu0 %v5608
  %v5610 = vand.u32 %v148, 4294901760
  %v5611 = vsub.f32 %v148, %v5610
  %v5612 = vand.u32 %v5611, 4294901760
  %v5613 = vsub.f32 %v5611, %v5612
  %v5614 = vand.u32 %v5613, 4294901760
  %5615 = vmatmul.f32.gmra.mxu0 %v5614
  %v5616 = vpop.f32.mrf.mxu0
  %v5617 = vadd.f32 0.0, %v5616
  %v5618 = vand.u32 %v151, 4294901760
  %v5619 = vsub.f32 %v151, %v5618
  %v5620 = vand.u32 %v5619, 4294901760
  %v5621 = vsub.f32 %v5619, %v5620
  %v5622 = vand.u32 %v5621, 4294901760
  %5623 = vmatmul.f32.gmra.mxu0 %v5622
  %v5624 = vpop.f32.mrf.mxu0
  %v5625 = vadd.f32 0.0, %v5624
  %v5626 = vand.u32 %v154, 4294901760
  %v5627 = vsub.f32 %v154, %v5626
  %v5628 = vand.u32 %v5627, 4294901760
  %v5629 = vsub.f32 %v5627, %v5628
  %v5630 = vand.u32 %v5629, 4294901760
  %5631 = vmatmul.f32.gmra.mxu0 %v5630
  %v5632 = vpop.f32.mrf.mxu0
  %v5633 = vadd.f32 0.0, %v5632
  %v5634 = vand.u32 %v157, 4294901760
  %v5635 = vsub.f32 %v157, %v5634
  %v5636 = vand.u32 %v5635, 4294901760
  %v5637 = vsub.f32 %v5635, %v5636
  %v5638 = vand.u32 %v5637, 4294901760
  %5639 = vmatmul.f32.gmra.mxu0 %v5638
  %v5640 = vpop.f32.mrf.mxu0
  %v5641 = vadd.f32 0.0, %v5640
  %v5642 = vand.u32 %v160, 4294901760
  %v5643 = vsub.f32 %v160, %v5642
  %v5644 = vand.u32 %v5643, 4294901760
  %v5645 = vsub.f32 %v5643, %v5644
  %v5646 = vand.u32 %v5645, 4294901760
  %5647 = vmatmul.f32.gmra.mxu0 %v5646
  %v5648 = vpop.f32.mrf.mxu0
  %v5649 = vadd.f32 0.0, %v5648
  %v5650 = vand.u32 %v163, 4294901760
  %v5651 = vsub.f32 %v163, %v5650
  %v5652 = vand.u32 %v5651, 4294901760
  %v5653 = vsub.f32 %v5651, %v5652
  %v5654 = vand.u32 %v5653, 4294901760
  %5655 = vmatmul.f32.gmra.mxu0 %v5654
  %v5656 = vpop.f32.mrf.mxu0
  %v5657 = vadd.f32 0.0, %v5656
  %v5658 = vand.u32 %v166, 4294901760
  %v5659 = vsub.f32 %v166, %v5658
  %v5660 = vand.u32 %v5659, 4294901760
  %v5661 = vsub.f32 %v5659, %v5660
  %v5662 = vand.u32 %v5661, 4294901760
  %5663 = vmatmul.f32.gmra.mxu0 %v5662
  %v5664 = vpop.f32.mrf.mxu0
  %v5665 = vadd.f32 0.0, %v5664
  %v5666 = vand.u32 %v169, 4294901760
  %v5667 = vsub.f32 %v169, %v5666
  %v5668 = vand.u32 %v5667, 4294901760
  %v5669 = vsub.f32 %v5667, %v5668
  %v5670 = vand.u32 %v5669, 4294901760
  %5671 = vmatmul.f32.gmra.mxu0 %v5670
  %v5672 = vpop.f32.mrf.mxu0
  %v5673 = vadd.f32 0.0, %v5672
  %5674 = vdwg.mxu0
  %5675 = vmatpush.msra.mxu0 0.0
  %5676 = vmatpush.msra.mxu0 0.0
  %5677 = vmatpush.msra.mxu0 0.0
  %5678 = vmatpush.msra.mxu0 0.0
  %5679 = vmatpush.msra.mxu0 0.0
  %5680 = vmatpush.msra.mxu0 0.0
  %5681 = vmatpush.msra.mxu0 0.0
  %5682 = vmatpush.msra.mxu0 0.0
  %5683 = vmatpush.msra.mxu0 0.0
  %5684 = vmatpush.msra.mxu0 0.0
  %5685 = vmatpush.msra.mxu0 0.0
  %5686 = vmatpush.msra.mxu0 0.0
  %v5687 = vand.u32 %v5589, 4294901760
  %v5688 = vsub.f32 %v5589, %v5687
  %v5689 = vand.u32 %v5688, 4294901760
  %v5690 = vsub.f32 %v5688, %v5689
  %v5691 = vand.u32 %v5690, 4294901760
  %5692 = vmatpush.msra.mxu0 %v5691
  %v5693 = vand.u32 %v5588, 4294901760
  %v5694 = vsub.f32 %v5588, %v5693
  %v5695 = vand.u32 %v5694, 4294901760
  %v5696 = vsub.f32 %v5694, %v5695
  %v5697 = vand.u32 %v5696, 4294901760
  %5698 = vmatpush.msra.mxu0 %v5697
  %v5699 = vand.u32 %v4494, 4294901760
  %v5700 = vsub.f32 %v4494, %v5699
  %v5701 = vand.u32 %v5700, 4294901760
  %v5702 = vsub.f32 %v5700, %v5701
  %v5703 = vand.u32 %v5702, 4294901760
  %5704 = vmatpush.msra.mxu0 %v5703
  %v5705 = vand.u32 %v4493, 4294901760
  %v5706 = vsub.f32 %v4493, %v5705
  %v5707 = vand.u32 %v5706, 4294901760
  %v5708 = vsub.f32 %v5706, %v5707
  %v5709 = vand.u32 %v5708, 4294901760
  %5710 = vmatpush.msra.mxu0 %v5709
  %v5711 = vand.u32 %v148, 4294901760
  %5712 = vmatmul.f32.gmra.mxu0 %v5711
  %v5713 = vpop.f32.mrf.mxu0
  %v5714 = vadd.f32 %v5617, %v5713
  %v5715 = vand.u32 %v151, 4294901760
  %5716 = vmatmul.f32.gmra.mxu0 %v5715
  %v5717 = vpop.f32.mrf.mxu0
  %v5718 = vadd.f32 %v5625, %v5717
  %v5719 = vand.u32 %v154, 4294901760
  %5720 = vmatmul.f32.gmra.mxu0 %v5719
  %v5721 = vpop.f32.mrf.mxu0
  %v5722 = vadd.f32 %v5633, %v5721
  %v5723 = vand.u32 %v157, 4294901760
  %5724 = vmatmul.f32.gmra.mxu0 %v5723
  %v5725 = vpop.f32.mrf.mxu0
  %v5726 = vadd.f32 %v5641, %v5725
  %v5727 = vand.u32 %v160, 4294901760
  %5728 = vmatmul.f32.gmra.mxu0 %v5727
  %v5729 = vpop.f32.mrf.mxu0
  %v5730 = vadd.f32 %v5649, %v5729
  %v5731 = vand.u32 %v163, 4294901760
  %5732 = vmatmul.f32.gmra.mxu0 %v5731
  %v5733 = vpop.f32.mrf.mxu0
  %v5734 = vadd.f32 %v5657, %v5733
  %v5735 = vand.u32 %v166, 4294901760
  %5736 = vmatmul.f32.gmra.mxu0 %v5735
  %v5737 = vpop.f32.mrf.mxu0
  %v5738 = vadd.f32 %v5665, %v5737
  %v5739 = vand.u32 %v169, 4294901760
  %5740 = vmatmul.f32.gmra.mxu0 %v5739
  %v5741 = vpop.f32.mrf.mxu0
  %v5742 = vadd.f32 %v5673, %v5741
  %5743 = vdwg.mxu0
  %5744 = vmatpush.msra.mxu0 0.0
  %5745 = vmatpush.msra.mxu0 0.0
  %5746 = vmatpush.msra.mxu0 0.0
  %5747 = vmatpush.msra.mxu0 0.0
  %5748 = vmatpush.msra.mxu0 0.0
  %5749 = vmatpush.msra.mxu0 0.0
  %5750 = vmatpush.msra.mxu0 0.0
  %5751 = vmatpush.msra.mxu0 0.0
  %5752 = vmatpush.msra.mxu0 0.0
  %5753 = vmatpush.msra.mxu0 0.0
  %5754 = vmatpush.msra.mxu0 0.0
  %5755 = vmatpush.msra.mxu0 0.0
  %v5756 = vand.u32 %v5589, 4294901760
  %v5757 = vsub.f32 %v5589, %v5756
  %5758 = vmatpush.msra.mxu0 %v5757
  %v5759 = vand.u32 %v5588, 4294901760
  %v5760 = vsub.f32 %v5588, %v5759
  %5761 = vmatpush.msra.mxu0 %v5760
  %v5762 = vand.u32 %v4494, 4294901760
  %v5763 = vsub.f32 %v4494, %v5762
  %5764 = vmatpush.msra.mxu0 %v5763
  %v5765 = vand.u32 %v4493, 4294901760
  %v5766 = vsub.f32 %v4493, %v5765
  %5767 = vmatpush.msra.mxu0 %v5766
  %v5768 = vand.u32 %v148, 4294901760
  %v5769 = vsub.f32 %v148, %v5768
  %5770 = vmatmul.f32.gmra.mxu0 %v5769
  %v5771 = vpop.f32.mrf.mxu0
  %v5772 = vadd.f32 %v5714, %v5771
  %v5773 = vand.u32 %v151, 4294901760
  %v5774 = vsub.f32 %v151, %v5773
  %5775 = vmatmul.f32.gmra.mxu0 %v5774
  %v5776 = vpop.f32.mrf.mxu0
  %v5777 = vadd.f32 %v5718, %v5776
  %v5778 = vand.u32 %v154, 4294901760
  %v5779 = vsub.f32 %v154, %v5778
  %5780 = vmatmul.f32.gmra.mxu0 %v5779
  %v5781 = vpop.f32.mrf.mxu0
  %v5782 = vadd.f32 %v5722, %v5781
  %v5783 = vand.u32 %v157, 4294901760
  %v5784 = vsub.f32 %v157, %v5783
  %5785 = vmatmul.f32.gmra.mxu0 %v5784
  %v5786 = vpop.f32.mrf.mxu0
  %v5787 = vadd.f32 %v5726, %v5786
  %v5788 = vand.u32 %v160, 4294901760
  %v5789 = vsub.f32 %v160, %v5788
  %5790 = vmatmul.f32.gmra.mxu0 %v5789
  %v5791 = vpop.f32.mrf.mxu0
  %v5792 = vadd.f32 %v5730, %v5791
  %v5793 = vand.u32 %v163, 4294901760
  %v5794 = vsub.f32 %v163, %v5793
  %5795 = vmatmul.f32.gmra.mxu0 %v5794
  %v5796 = vpop.f32.mrf.mxu0
  %v5797 = vadd.f32 %v5734, %v5796
  %v5798 = vand.u32 %v166, 4294901760
  %v5799 = vsub.f32 %v166, %v5798
  %5800 = vmatmul.f32.gmra.mxu0 %v5799
  %v5801 = vpop.f32.mrf.mxu0
  %v5802 = vadd.f32 %v5738, %v5801
  %v5803 = vand.u32 %v169, 4294901760
  %v5804 = vsub.f32 %v169, %v5803
  %5805 = vmatmul.f32.gmra.mxu0 %v5804
  %v5806 = vpop.f32.mrf.mxu0
  %v5807 = vadd.f32 %v5742, %v5806
  %5808 = vdwg.mxu0
  %5809 = vmatpush.msra.mxu0 0.0
  %5810 = vmatpush.msra.mxu0 0.0
  %5811 = vmatpush.msra.mxu0 0.0
  %5812 = vmatpush.msra.mxu0 0.0
  %5813 = vmatpush.msra.mxu0 0.0
  %5814 = vmatpush.msra.mxu0 0.0
  %5815 = vmatpush.msra.mxu0 0.0
  %5816 = vmatpush.msra.mxu0 0.0
  %5817 = vmatpush.msra.mxu0 0.0
  %5818 = vmatpush.msra.mxu0 0.0
  %5819 = vmatpush.msra.mxu0 0.0
  %5820 = vmatpush.msra.mxu0 0.0
  %v5821 = vand.u32 %v5589, 4294901760
  %5822 = vmatpush.msra.mxu0 %v5821
  %v5823 = vand.u32 %v5588, 4294901760
  %5824 = vmatpush.msra.mxu0 %v5823
  %v5825 = vand.u32 %v4494, 4294901760
  %5826 = vmatpush.msra.mxu0 %v5825
  %v5827 = vand.u32 %v4493, 4294901760
  %5828 = vmatpush.msra.mxu0 %v5827
  %v5829 = vand.u32 %v148, 4294901760
  %v5830 = vsub.f32 %v148, %v5829
  %v5831 = vand.u32 %v5830, 4294901760
  %5832 = vmatmul.f32.gmra.mxu0 %v5831
  %v5833 = vpop.f32.mrf.mxu0
  %v5834 = vadd.f32 %v5772, %v5833
  %v5835 = vand.u32 %v151, 4294901760
  %v5836 = vsub.f32 %v151, %v5835
  %v5837 = vand.u32 %v5836, 4294901760
  %5838 = vmatmul.f32.gmra.mxu0 %v5837
  %v5839 = vpop.f32.mrf.mxu0
  %v5840 = vadd.f32 %v5777, %v5839
  %v5841 = vand.u32 %v154, 4294901760
  %v5842 = vsub.f32 %v154, %v5841
  %v5843 = vand.u32 %v5842, 4294901760
  %5844 = vmatmul.f32.gmra.mxu0 %v5843
  %v5845 = vpop.f32.mrf.mxu0
  %v5846 = vadd.f32 %v5782, %v5845
  %v5847 = vand.u32 %v157, 4294901760
  %v5848 = vsub.f32 %v157, %v5847
  %v5849 = vand.u32 %v5848, 4294901760
  %5850 = vmatmul.f32.gmra.mxu0 %v5849
  %v5851 = vpop.f32.mrf.mxu0
  %v5852 = vadd.f32 %v5787, %v5851
  %v5853 = vand.u32 %v160, 4294901760
  %v5854 = vsub.f32 %v160, %v5853
  %v5855 = vand.u32 %v5854, 4294901760
  %5856 = vmatmul.f32.gmra.mxu0 %v5855
  %v5857 = vpop.f32.mrf.mxu0
  %v5858 = vadd.f32 %v5792, %v5857
  %v5859 = vand.u32 %v163, 4294901760
  %v5860 = vsub.f32 %v163, %v5859
  %v5861 = vand.u32 %v5860, 4294901760
  %5862 = vmatmul.f32.gmra.mxu0 %v5861
  %v5863 = vpop.f32.mrf.mxu0
  %v5864 = vadd.f32 %v5797, %v5863
  %v5865 = vand.u32 %v166, 4294901760
  %v5866 = vsub.f32 %v166, %v5865
  %v5867 = vand.u32 %v5866, 4294901760
  %5868 = vmatmul.f32.gmra.mxu0 %v5867
  %v5869 = vpop.f32.mrf.mxu0
  %v5870 = vadd.f32 %v5802, %v5869
  %v5871 = vand.u32 %v169, 4294901760
  %v5872 = vsub.f32 %v169, %v5871
  %v5873 = vand.u32 %v5872, 4294901760
  %5874 = vmatmul.f32.gmra.mxu0 %v5873
  %v5875 = vpop.f32.mrf.mxu0
  %v5876 = vadd.f32 %v5807, %v5875
  %5877 = vdwg.mxu0
  %5878 = vmatpush.msra.mxu0 0.0
  %5879 = vmatpush.msra.mxu0 0.0
  %5880 = vmatpush.msra.mxu0 0.0
  %5881 = vmatpush.msra.mxu0 0.0
  %5882 = vmatpush.msra.mxu0 0.0
  %5883 = vmatpush.msra.mxu0 0.0
  %5884 = vmatpush.msra.mxu0 0.0
  %5885 = vmatpush.msra.mxu0 0.0
  %5886 = vmatpush.msra.mxu0 0.0
  %5887 = vmatpush.msra.mxu0 0.0
  %5888 = vmatpush.msra.mxu0 0.0
  %5889 = vmatpush.msra.mxu0 0.0
  %v5890 = vand.u32 %v5589, 4294901760
  %v5891 = vsub.f32 %v5589, %v5890
  %v5892 = vand.u32 %v5891, 4294901760
  %5893 = vmatpush.msra.mxu0 %v5892
  %v5894 = vand.u32 %v5588, 4294901760
  %v5895 = vsub.f32 %v5588, %v5894
  %v5896 = vand.u32 %v5895, 4294901760
  %5897 = vmatpush.msra.mxu0 %v5896
  %v5898 = vand.u32 %v4494, 4294901760
  %v5899 = vsub.f32 %v4494, %v5898
  %v5900 = vand.u32 %v5899, 4294901760
  %5901 = vmatpush.msra.mxu0 %v5900
  %v5902 = vand.u32 %v4493, 4294901760
  %v5903 = vsub.f32 %v4493, %v5902
  %v5904 = vand.u32 %v5903, 4294901760
  %5905 = vmatpush.msra.mxu0 %v5904
  %v5906 = vand.u32 %v148, 4294901760
  %5907 = vmatmul.f32.gmra.mxu0 %v5906
  %v5908 = vpop.f32.mrf.mxu0
  %v5909 = vadd.f32 %v5834, %v5908
  %v5910 = vand.u32 %v151, 4294901760
  %5911 = vmatmul.f32.gmra.mxu0 %v5910
  %v5912 = vpop.f32.mrf.mxu0
  %v5913 = vadd.f32 %v5840, %v5912
  %v5914 = vand.u32 %v154, 4294901760
  %5915 = vmatmul.f32.gmra.mxu0 %v5914
  %v5916 = vpop.f32.mrf.mxu0
  %v5917 = vadd.f32 %v5846, %v5916
  %v5918 = vand.u32 %v157, 4294901760
  %5919 = vmatmul.f32.gmra.mxu0 %v5918
  %v5920 = vpop.f32.mrf.mxu0
  %v5921 = vadd.f32 %v5852, %v5920
  %v5922 = vand.u32 %v160, 4294901760
  %5923 = vmatmul.f32.gmra.mxu0 %v5922
  %v5924 = vpop.f32.mrf.mxu0
  %v5925 = vadd.f32 %v5858, %v5924
  %v5926 = vand.u32 %v163, 4294901760
  %5927 = vmatmul.f32.gmra.mxu0 %v5926
  %v5928 = vpop.f32.mrf.mxu0
  %v5929 = vadd.f32 %v5864, %v5928
  %v5930 = vand.u32 %v166, 4294901760
  %5931 = vmatmul.f32.gmra.mxu0 %v5930
  %v5932 = vpop.f32.mrf.mxu0
  %v5933 = vadd.f32 %v5870, %v5932
  %v5934 = vand.u32 %v169, 4294901760
  %5935 = vmatmul.f32.gmra.mxu0 %v5934
  %v5936 = vpop.f32.mrf.mxu0
  %v5937 = vadd.f32 %v5876, %v5936
  %5938 = vdwg.mxu0
  %5939 = vmatpush.msra.mxu0 0.0
  %5940 = vmatpush.msra.mxu0 0.0
  %5941 = vmatpush.msra.mxu0 0.0
  %5942 = vmatpush.msra.mxu0 0.0
  %5943 = vmatpush.msra.mxu0 0.0
  %5944 = vmatpush.msra.mxu0 0.0
  %5945 = vmatpush.msra.mxu0 0.0
  %5946 = vmatpush.msra.mxu0 0.0
  %5947 = vmatpush.msra.mxu0 0.0
  %5948 = vmatpush.msra.mxu0 0.0
  %5949 = vmatpush.msra.mxu0 0.0
  %5950 = vmatpush.msra.mxu0 0.0
  %v5951 = vand.u32 %v5589, 4294901760
  %5952 = vmatpush.msra.mxu0 %v5951
  %v5953 = vand.u32 %v5588, 4294901760
  %5954 = vmatpush.msra.mxu0 %v5953
  %v5955 = vand.u32 %v4494, 4294901760
  %5956 = vmatpush.msra.mxu0 %v5955
  %v5957 = vand.u32 %v4493, 4294901760
  %5958 = vmatpush.msra.mxu0 %v5957
  %v5959 = vand.u32 %v148, 4294901760
  %5960 = vmatmul.f32.gmra.mxu0 %v5959
  %v5961 = vpop.f32.mrf.mxu0
  %v5962 = vadd.f32 %v5909, %v5961
  %v5963 = vand.u32 %v151, 4294901760
  %5964 = vmatmul.f32.gmra.mxu0 %v5963
  %v5965 = vpop.f32.mrf.mxu0
  %v5966 = vadd.f32 %v5913, %v5965
  %v5967 = vand.u32 %v154, 4294901760
  %5968 = vmatmul.f32.gmra.mxu0 %v5967
  %v5969 = vpop.f32.mrf.mxu0
  %v5970 = vadd.f32 %v5917, %v5969
  %v5971 = vand.u32 %v157, 4294901760
  %5972 = vmatmul.f32.gmra.mxu0 %v5971
  %v5973 = vpop.f32.mrf.mxu0
  %v5974 = vadd.f32 %v5921, %v5973
  %v5975 = vand.u32 %v160, 4294901760
  %5976 = vmatmul.f32.gmra.mxu0 %v5975
  %v5977 = vpop.f32.mrf.mxu0
  %v5978 = vadd.f32 %v5925, %v5977
  %v5979 = vand.u32 %v163, 4294901760
  %5980 = vmatmul.f32.gmra.mxu0 %v5979
  %v5981 = vpop.f32.mrf.mxu0
  %v5982 = vadd.f32 %v5929, %v5981
  %v5983 = vand.u32 %v166, 4294901760
  %5984 = vmatmul.f32.gmra.mxu0 %v5983
  %v5985 = vpop.f32.mrf.mxu0
  %v5986 = vadd.f32 %v5933, %v5985
  %v5987 = vand.u32 %v169, 4294901760
  %5988 = vmatmul.f32.gmra.mxu0 %v5987
  %v5989 = vpop.f32.mrf.mxu0
  %v5990 = vadd.f32 %v5937, %v5989
  %5991 = vdwg.mxu0
  %v5993 = vsel %vm521, %v5962, 0
  %v5996 = vsel %vm521, %v5966, 0
  %v5999 = vsel %vm521, %v5970, 0
  %v6002 = vsel %vm521, %v5974, 0
  %v6005 = vsel %vm521, %v5978, 0
  %v6008 = vsel %vm521, %v5982, 0
  %v6011 = vsel %vm521, %v5986, 0
  %v6014 = vsel %vm521, %v5990, 0
  %6016 = vmatpush.msra.mxu0 0.0
  %6017 = vmatpush.msra.mxu0 0.0
  %6018 = vmatpush.msra.mxu0 0.0
  %6019 = vmatpush.msra.mxu0 0.0
  %6020 = vmatpush.msra.mxu0 0.0
  %6021 = vmatpush.msra.mxu0 0.0
  %6022 = vmatpush.msra.mxu0 0.0
  %6023 = vmatpush.msra.mxu0 0.0
  %6024 = vmatpush.msra.mxu0 0.0
  %6025 = vmatpush.msra.mxu0 0.0
  %6026 = vmatpush.msra.mxu0 0.0
  %6027 = vmatpush.msra.mxu0 0.0
  %6028 = vmatpush.msra.mxu0 0.0
  %6029 = vmatpush.msra.mxu0 0.0
  %6030 = vmatpush.msra.mxu0 0.0
  %6031 = vmatpush.msra.mxu0 %v547
  %6032 = vmatmul.f32.gmra.mxu0 %v5993
  %v6033 = vpop.f32.mrf.mxu0
  %v6034 = vadd.f32 %v135, %v6033
  %6035 = vmatmul.f32.gmra.mxu0 %v5996
  %v6036 = vpop.f32.mrf.mxu0
  %v6037 = vadd.f32 %v138, %v6036
  %6038 = vmatmul.f32.gmra.mxu0 %v5999
  %v6039 = vpop.f32.mrf.mxu0
  %v6040 = vadd.f32 %v141, %v6039
  %6041 = vmatmul.f32.gmra.mxu0 %v6002
  %v6042 = vpop.f32.mrf.mxu0
  %v6043 = vadd.f32 %v144, %v6042
  %6044 = vmatmul.f32.gmra.mxu0 %v6005
  %v6045 = vpop.f32.mrf.mxu0
  %v6046 = vadd.f32 %v135, %v6045
  %6047 = vmatmul.f32.gmra.mxu0 %v6008
  %v6048 = vpop.f32.mrf.mxu0
  %v6049 = vadd.f32 %v138, %v6048
  %6050 = vmatmul.f32.gmra.mxu0 %v6011
  %v6051 = vpop.f32.mrf.mxu0
  %v6052 = vadd.f32 %v141, %v6051
  %6053 = vmatmul.f32.gmra.mxu0 %v6014
  %v6054 = vpop.f32.mrf.mxu0
  %v6055 = vadd.f32 %v144, %v6054
  %6056 = vdwg.mxu0
  %v6057 = vmax.f32 %v6034, 0.0
  %v6058 = vmax.f32 %v6037, 0.0
  %v6059 = vmax.f32 %v6040, 0.0
  %v6060 = vmax.f32 %v6043, 0.0
  %v6061 = vmax.f32 %v6046, 0.0
  %v6062 = vmax.f32 %v6049, 0.0
  %v6063 = vmax.f32 %v6052, 0.0
  %v6064 = vmax.f32 %v6055, 0.0
  %v6066 = vsel %vm599, %v6057, 0
  %v6069 = vsel %vm599, %v6058, 0
  %v6072 = vsel %vm599, %v6059, 0
  %v6075 = vsel %vm599, %v6060, 0
  %v6078 = vsel %vm599, %v6061, 0
  %v6081 = vsel %vm599, %v6062, 0
  %v6084 = vsel %vm599, %v6063, 0
  %v6087 = vsel %vm599, %v6064, 0
  %6089 = vmatpush.msra.mxu0 0.0
  %6090 = vmatpush.msra.mxu0 0.0
  %6091 = vmatpush.msra.mxu0 0.0
  %6092 = vmatpush.msra.mxu0 0.0
  %6093 = vmatpush.msra.mxu0 0.0
  %6094 = vmatpush.msra.mxu0 0.0
  %6095 = vmatpush.msra.mxu0 0.0
  %6096 = vmatpush.msra.mxu0 0.0
  %6097 = vmatpush.msra.mxu0 %v68
  %6098 = vmatpush.msra.mxu0 %v67
  %6099 = vmatpush.msra.mxu0 %v66
  %6100 = vmatpush.msra.mxu0 %v65
  %6101 = vmatpush.msra.mxu0 %v64
  %6102 = vmatpush.msra.mxu0 %v63
  %6103 = vmatpush.msra.mxu0 %v62
  %6104 = vmatpush.msra.mxu0 %v61
  %6105 = vmatmul.f32.gmra.mxu0 %v6066
  %v6106 = vpop.f32.mrf.mxu0
  %v6107 = vadd.f32 %v598, %v6106
  %6108 = vmatmul.f32.gmra.mxu0 %v6069
  %v6109 = vpop.f32.mrf.mxu0
  %v6110 = vadd.f32 %v598, %v6109
  %6111 = vmatmul.f32.gmra.mxu0 %v6072
  %v6112 = vpop.f32.mrf.mxu0
  %v6113 = vadd.f32 %v598, %v6112
  %6114 = vmatmul.f32.gmra.mxu0 %v6075
  %v6115 = vpop.f32.mrf.mxu0
  %v6116 = vadd.f32 %v598, %v6115
  %6117 = vmatmul.f32.gmra.mxu0 %v6078
  %v6118 = vpop.f32.mrf.mxu0
  %v6119 = vadd.f32 %v598, %v6118
  %6120 = vmatmul.f32.gmra.mxu0 %v6081
  %v6121 = vpop.f32.mrf.mxu0
  %v6122 = vadd.f32 %v598, %v6121
  %6123 = vmatmul.f32.gmra.mxu0 %v6084
  %v6124 = vpop.f32.mrf.mxu0
  %v6125 = vadd.f32 %v598, %v6124
  %6126 = vmatmul.f32.gmra.mxu0 %v6087
  %v6127 = vpop.f32.mrf.mxu0
  %v6128 = vadd.f32 %v598, %v6127
  %6129 = vdwg.mxu0
  %v6130 = vmax.f32 %v6107, 0.0
  %v6131 = vmax.f32 %v6110, 0.0
  %v6132 = vmax.f32 %v6113, 0.0
  %v6133 = vmax.f32 %v6116, 0.0
  %v6134 = vmax.f32 %v6119, 0.0
  %v6135 = vmax.f32 %v6122, 0.0
  %v6136 = vmax.f32 %v6125, 0.0
  %v6137 = vmax.f32 %v6128, 0.0
  %v6139 = vsel %vm599, %v6130, 0
  %v6142 = vsel %vm599, %v6131, 0
  %v6145 = vsel %vm599, %v6132, 0
  %v6148 = vsel %vm599, %v6133, 0
  %v6151 = vsel %vm599, %v6134, 0
  %v6154 = vsel %vm599, %v6135, 0
  %v6157 = vsel %vm599, %v6136, 0
  %v6160 = vsel %vm599, %v6137, 0
  %6162 = vmatpush.msra.mxu0 0.0
  %6163 = vmatpush.msra.mxu0 0.0
  %6164 = vmatpush.msra.mxu0 0.0
  %6165 = vmatpush.msra.mxu0 0.0
  %6166 = vmatpush.msra.mxu0 0.0
  %6167 = vmatpush.msra.mxu0 0.0
  %6168 = vmatpush.msra.mxu0 0.0
  %6169 = vmatpush.msra.mxu0 0.0
  %6170 = vmatpush.msra.mxu0 %v77
  %6171 = vmatpush.msra.mxu0 %v76
  %6172 = vmatpush.msra.mxu0 %v75
  %6173 = vmatpush.msra.mxu0 %v74
  %6174 = vmatpush.msra.mxu0 %v73
  %6175 = vmatpush.msra.mxu0 %v72
  %6176 = vmatpush.msra.mxu0 %v71
  %6177 = vmatpush.msra.mxu0 %v70
  %6178 = vmatmul.f32.gmra.mxu0 %v6139
  %v6179 = vpop.f32.mrf.mxu0
  %v6180 = vadd.f32 %v673, %v6179
  %6181 = vmatmul.f32.gmra.mxu0 %v6142
  %v6182 = vpop.f32.mrf.mxu0
  %v6183 = vadd.f32 %v673, %v6182
  %6184 = vmatmul.f32.gmra.mxu0 %v6145
  %v6185 = vpop.f32.mrf.mxu0
  %v6186 = vadd.f32 %v673, %v6185
  %6187 = vmatmul.f32.gmra.mxu0 %v6148
  %v6188 = vpop.f32.mrf.mxu0
  %v6189 = vadd.f32 %v673, %v6188
  %6190 = vmatmul.f32.gmra.mxu0 %v6151
  %v6191 = vpop.f32.mrf.mxu0
  %v6192 = vadd.f32 %v673, %v6191
  %6193 = vmatmul.f32.gmra.mxu0 %v6154
  %v6194 = vpop.f32.mrf.mxu0
  %v6195 = vadd.f32 %v673, %v6194
  %6196 = vmatmul.f32.gmra.mxu0 %v6157
  %v6197 = vpop.f32.mrf.mxu0
  %v6198 = vadd.f32 %v673, %v6197
  %6199 = vmatmul.f32.gmra.mxu0 %v6160
  %v6200 = vpop.f32.mrf.mxu0
  %v6201 = vadd.f32 %v673, %v6200
  %6202 = vdwg.mxu0
  %6203 = vmatpush.msra.mxu0 0.0
  %6204 = vmatpush.msra.mxu0 0.0
  %6205 = vmatpush.msra.mxu0 0.0
  %6206 = vmatpush.msra.mxu0 0.0
  %6207 = vmatpush.msra.mxu0 0.0
  %6208 = vmatpush.msra.mxu0 0.0
  %6209 = vmatpush.msra.mxu0 0.0
  %6210 = vmatpush.msra.mxu0 0.0
  %v6211 = vand.u32 %v6201, 4294901760
  %6212 = vmatpush.msra.mxu0 %v6211
  %v6213 = vand.u32 %v6198, 4294901760
  %6214 = vmatpush.msra.mxu0 %v6213
  %v6215 = vand.u32 %v6195, 4294901760
  %6216 = vmatpush.msra.mxu0 %v6215
  %v6217 = vand.u32 %v6192, 4294901760
  %6218 = vmatpush.msra.mxu0 %v6217
  %v6219 = vand.u32 %v6189, 4294901760
  %6220 = vmatpush.msra.mxu0 %v6219
  %v6221 = vand.u32 %v6186, 4294901760
  %6222 = vmatpush.msra.mxu0 %v6221
  %v6223 = vand.u32 %v6183, 4294901760
  %6224 = vmatpush.msra.mxu0 %v6223
  %v6225 = vand.u32 %v6180, 4294901760
  %6226 = vmatpush.msra.mxu0 %v6225
  %v6227 = vand.u32 %v740, 4294901760
  %v6228 = vsub.f32 %v740, %v6227
  %v6229 = vand.u32 %v6228, 4294901760
  %v6230 = vsub.f32 %v6228, %v6229
  %v6231 = vand.u32 %v6230, 4294901760
  %6232 = vmatmul.f32.gmra.mxu0 %v6231
  %v6233 = vpop.f32.mrf.mxu0
  %v6234 = vadd.f32 0.0, %v6233
  %v6235 = vand.u32 %v743, 4294901760
  %v6236 = vsub.f32 %v743, %v6235
  %v6237 = vand.u32 %v6236, 4294901760
  %v6238 = vsub.f32 %v6236, %v6237
  %v6239 = vand.u32 %v6238, 4294901760
  %6240 = vmatmul.f32.gmra.mxu0 %v6239
  %v6241 = vpop.f32.mrf.mxu0
  %v6242 = vadd.f32 0.0, %v6241
  %v6243 = vand.u32 %v746, 4294901760
  %v6244 = vsub.f32 %v746, %v6243
  %v6245 = vand.u32 %v6244, 4294901760
  %v6246 = vsub.f32 %v6244, %v6245
  %v6247 = vand.u32 %v6246, 4294901760
  %6248 = vmatmul.f32.gmra.mxu0 %v6247
  %v6249 = vpop.f32.mrf.mxu0
  %v6250 = vadd.f32 0.0, %v6249
  %v6251 = vand.u32 %v749, 4294901760
  %v6252 = vsub.f32 %v749, %v6251
  %v6253 = vand.u32 %v6252, 4294901760
  %v6254 = vsub.f32 %v6252, %v6253
  %v6255 = vand.u32 %v6254, 4294901760
  %6256 = vmatmul.f32.gmra.mxu0 %v6255
  %v6257 = vpop.f32.mrf.mxu0
  %v6258 = vadd.f32 0.0, %v6257
  %6259 = vdwg.mxu0
  %6260 = vmatpush.msra.mxu0 0.0
  %6261 = vmatpush.msra.mxu0 0.0
  %6262 = vmatpush.msra.mxu0 0.0
  %6263 = vmatpush.msra.mxu0 0.0
  %6264 = vmatpush.msra.mxu0 0.0
  %6265 = vmatpush.msra.mxu0 0.0
  %6266 = vmatpush.msra.mxu0 0.0
  %6267 = vmatpush.msra.mxu0 0.0
  %v6268 = vand.u32 %v6201, 4294901760
  %v6269 = vsub.f32 %v6201, %v6268
  %v6270 = vand.u32 %v6269, 4294901760
  %v6271 = vsub.f32 %v6269, %v6270
  %v6272 = vand.u32 %v6271, 4294901760
  %6273 = vmatpush.msra.mxu0 %v6272
  %v6274 = vand.u32 %v6198, 4294901760
  %v6275 = vsub.f32 %v6198, %v6274
  %v6276 = vand.u32 %v6275, 4294901760
  %v6277 = vsub.f32 %v6275, %v6276
  %v6278 = vand.u32 %v6277, 4294901760
  %6279 = vmatpush.msra.mxu0 %v6278
  %v6280 = vand.u32 %v6195, 4294901760
  %v6281 = vsub.f32 %v6195, %v6280
  %v6282 = vand.u32 %v6281, 4294901760
  %v6283 = vsub.f32 %v6281, %v6282
  %v6284 = vand.u32 %v6283, 4294901760
  %6285 = vmatpush.msra.mxu0 %v6284
  %v6286 = vand.u32 %v6192, 4294901760
  %v6287 = vsub.f32 %v6192, %v6286
  %v6288 = vand.u32 %v6287, 4294901760
  %v6289 = vsub.f32 %v6287, %v6288
  %v6290 = vand.u32 %v6289, 4294901760
  %6291 = vmatpush.msra.mxu0 %v6290
  %v6292 = vand.u32 %v6189, 4294901760
  %v6293 = vsub.f32 %v6189, %v6292
  %v6294 = vand.u32 %v6293, 4294901760
  %v6295 = vsub.f32 %v6293, %v6294
  %v6296 = vand.u32 %v6295, 4294901760
  %6297 = vmatpush.msra.mxu0 %v6296
  %v6298 = vand.u32 %v6186, 4294901760
  %v6299 = vsub.f32 %v6186, %v6298
  %v6300 = vand.u32 %v6299, 4294901760
  %v6301 = vsub.f32 %v6299, %v6300
  %v6302 = vand.u32 %v6301, 4294901760
  %6303 = vmatpush.msra.mxu0 %v6302
  %v6304 = vand.u32 %v6183, 4294901760
  %v6305 = vsub.f32 %v6183, %v6304
  %v6306 = vand.u32 %v6305, 4294901760
  %v6307 = vsub.f32 %v6305, %v6306
  %v6308 = vand.u32 %v6307, 4294901760
  %6309 = vmatpush.msra.mxu0 %v6308
  %v6310 = vand.u32 %v6180, 4294901760
  %v6311 = vsub.f32 %v6180, %v6310
  %v6312 = vand.u32 %v6311, 4294901760
  %v6313 = vsub.f32 %v6311, %v6312
  %v6314 = vand.u32 %v6313, 4294901760
  %6315 = vmatpush.msra.mxu0 %v6314
  %v6316 = vand.u32 %v740, 4294901760
  %6317 = vmatmul.f32.gmra.mxu0 %v6316
  %v6318 = vpop.f32.mrf.mxu0
  %v6319 = vadd.f32 %v6234, %v6318
  %v6320 = vand.u32 %v743, 4294901760
  %6321 = vmatmul.f32.gmra.mxu0 %v6320
  %v6322 = vpop.f32.mrf.mxu0
  %v6323 = vadd.f32 %v6242, %v6322
  %v6324 = vand.u32 %v746, 4294901760
  %6325 = vmatmul.f32.gmra.mxu0 %v6324
  %v6326 = vpop.f32.mrf.mxu0
  %v6327 = vadd.f32 %v6250, %v6326
  %v6328 = vand.u32 %v749, 4294901760
  %6329 = vmatmul.f32.gmra.mxu0 %v6328
  %v6330 = vpop.f32.mrf.mxu0
  %v6331 = vadd.f32 %v6258, %v6330
  %6332 = vdwg.mxu0
  %6333 = vmatpush.msra.mxu0 0.0
  %6334 = vmatpush.msra.mxu0 0.0
  %6335 = vmatpush.msra.mxu0 0.0
  %6336 = vmatpush.msra.mxu0 0.0
  %6337 = vmatpush.msra.mxu0 0.0
  %6338 = vmatpush.msra.mxu0 0.0
  %6339 = vmatpush.msra.mxu0 0.0
  %6340 = vmatpush.msra.mxu0 0.0
  %v6341 = vand.u32 %v6201, 4294901760
  %v6342 = vsub.f32 %v6201, %v6341
  %6343 = vmatpush.msra.mxu0 %v6342
  %v6344 = vand.u32 %v6198, 4294901760
  %v6345 = vsub.f32 %v6198, %v6344
  %6346 = vmatpush.msra.mxu0 %v6345
  %v6347 = vand.u32 %v6195, 4294901760
  %v6348 = vsub.f32 %v6195, %v6347
  %6349 = vmatpush.msra.mxu0 %v6348
  %v6350 = vand.u32 %v6192, 4294901760
  %v6351 = vsub.f32 %v6192, %v6350
  %6352 = vmatpush.msra.mxu0 %v6351
  %v6353 = vand.u32 %v6189, 4294901760
  %v6354 = vsub.f32 %v6189, %v6353
  %6355 = vmatpush.msra.mxu0 %v6354
  %v6356 = vand.u32 %v6186, 4294901760
  %v6357 = vsub.f32 %v6186, %v6356
  %6358 = vmatpush.msra.mxu0 %v6357
  %v6359 = vand.u32 %v6183, 4294901760
  %v6360 = vsub.f32 %v6183, %v6359
  %6361 = vmatpush.msra.mxu0 %v6360
  %v6362 = vand.u32 %v6180, 4294901760
  %v6363 = vsub.f32 %v6180, %v6362
  %6364 = vmatpush.msra.mxu0 %v6363
  %v6365 = vand.u32 %v740, 4294901760
  %v6366 = vsub.f32 %v740, %v6365
  %6367 = vmatmul.f32.gmra.mxu0 %v6366
  %v6368 = vpop.f32.mrf.mxu0
  %v6369 = vadd.f32 %v6319, %v6368
  %v6370 = vand.u32 %v743, 4294901760
  %v6371 = vsub.f32 %v743, %v6370
  %6372 = vmatmul.f32.gmra.mxu0 %v6371
  %v6373 = vpop.f32.mrf.mxu0
  %v6374 = vadd.f32 %v6323, %v6373
  %v6375 = vand.u32 %v746, 4294901760
  %v6376 = vsub.f32 %v746, %v6375
  %6377 = vmatmul.f32.gmra.mxu0 %v6376
  %v6378 = vpop.f32.mrf.mxu0
  %v6379 = vadd.f32 %v6327, %v6378
  %v6380 = vand.u32 %v749, 4294901760
  %v6381 = vsub.f32 %v749, %v6380
  %6382 = vmatmul.f32.gmra.mxu0 %v6381
  %v6383 = vpop.f32.mrf.mxu0
  %v6384 = vadd.f32 %v6331, %v6383
  %6385 = vdwg.mxu0
  %6386 = vmatpush.msra.mxu0 0.0
  %6387 = vmatpush.msra.mxu0 0.0
  %6388 = vmatpush.msra.mxu0 0.0
  %6389 = vmatpush.msra.mxu0 0.0
  %6390 = vmatpush.msra.mxu0 0.0
  %6391 = vmatpush.msra.mxu0 0.0
  %6392 = vmatpush.msra.mxu0 0.0
  %6393 = vmatpush.msra.mxu0 0.0
  %v6394 = vand.u32 %v6201, 4294901760
  %6395 = vmatpush.msra.mxu0 %v6394
  %v6396 = vand.u32 %v6198, 4294901760
  %6397 = vmatpush.msra.mxu0 %v6396
  %v6398 = vand.u32 %v6195, 4294901760
  %6399 = vmatpush.msra.mxu0 %v6398
  %v6400 = vand.u32 %v6192, 4294901760
  %6401 = vmatpush.msra.mxu0 %v6400
  %v6402 = vand.u32 %v6189, 4294901760
  %6403 = vmatpush.msra.mxu0 %v6402
  %v6404 = vand.u32 %v6186, 4294901760
  %6405 = vmatpush.msra.mxu0 %v6404
  %v6406 = vand.u32 %v6183, 4294901760
  %6407 = vmatpush.msra.mxu0 %v6406
  %v6408 = vand.u32 %v6180, 4294901760
  %6409 = vmatpush.msra.mxu0 %v6408
  %v6410 = vand.u32 %v740, 4294901760
  %v6411 = vsub.f32 %v740, %v6410
  %v6412 = vand.u32 %v6411, 4294901760
  %6413 = vmatmul.f32.gmra.mxu0 %v6412
  %v6414 = vpop.f32.mrf.mxu0
  %v6415 = vadd.f32 %v6369, %v6414
  %v6416 = vand.u32 %v743, 4294901760
  %v6417 = vsub.f32 %v743, %v6416
  %v6418 = vand.u32 %v6417, 4294901760
  %6419 = vmatmul.f32.gmra.mxu0 %v6418
  %v6420 = vpop.f32.mrf.mxu0
  %v6421 = vadd.f32 %v6374, %v6420
  %v6422 = vand.u32 %v746, 4294901760
  %v6423 = vsub.f32 %v746, %v6422
  %v6424 = vand.u32 %v6423, 4294901760
  %6425 = vmatmul.f32.gmra.mxu0 %v6424
  %v6426 = vpop.f32.mrf.mxu0
  %v6427 = vadd.f32 %v6379, %v6426
  %v6428 = vand.u32 %v749, 4294901760
  %v6429 = vsub.f32 %v749, %v6428
  %v6430 = vand.u32 %v6429, 4294901760
  %6431 = vmatmul.f32.gmra.mxu0 %v6430
  %v6432 = vpop.f32.mrf.mxu0
  %v6433 = vadd.f32 %v6384, %v6432
  %6434 = vdwg.mxu0
  %6435 = vmatpush.msra.mxu0 0.0
  %6436 = vmatpush.msra.mxu0 0.0
  %6437 = vmatpush.msra.mxu0 0.0
  %6438 = vmatpush.msra.mxu0 0.0
  %6439 = vmatpush.msra.mxu0 0.0
  %6440 = vmatpush.msra.mxu0 0.0
  %6441 = vmatpush.msra.mxu0 0.0
  %6442 = vmatpush.msra.mxu0 0.0
  %v6443 = vand.u32 %v6201, 4294901760
  %v6444 = vsub.f32 %v6201, %v6443
  %v6445 = vand.u32 %v6444, 4294901760
  %6446 = vmatpush.msra.mxu0 %v6445
  %v6447 = vand.u32 %v6198, 4294901760
  %v6448 = vsub.f32 %v6198, %v6447
  %v6449 = vand.u32 %v6448, 4294901760
  %6450 = vmatpush.msra.mxu0 %v6449
  %v6451 = vand.u32 %v6195, 4294901760
  %v6452 = vsub.f32 %v6195, %v6451
  %v6453 = vand.u32 %v6452, 4294901760
  %6454 = vmatpush.msra.mxu0 %v6453
  %v6455 = vand.u32 %v6192, 4294901760
  %v6456 = vsub.f32 %v6192, %v6455
  %v6457 = vand.u32 %v6456, 4294901760
  %6458 = vmatpush.msra.mxu0 %v6457
  %v6459 = vand.u32 %v6189, 4294901760
  %v6460 = vsub.f32 %v6189, %v6459
  %v6461 = vand.u32 %v6460, 4294901760
  %6462 = vmatpush.msra.mxu0 %v6461
  %v6463 = vand.u32 %v6186, 4294901760
  %v6464 = vsub.f32 %v6186, %v6463
  %v6465 = vand.u32 %v6464, 4294901760
  %6466 = vmatpush.msra.mxu0 %v6465
  %v6467 = vand.u32 %v6183, 4294901760
  %v6468 = vsub.f32 %v6183, %v6467
  %v6469 = vand.u32 %v6468, 4294901760
  %6470 = vmatpush.msra.mxu0 %v6469
  %v6471 = vand.u32 %v6180, 4294901760
  %v6472 = vsub.f32 %v6180, %v6471
  %v6473 = vand.u32 %v6472, 4294901760
  %6474 = vmatpush.msra.mxu0 %v6473
  %v6475 = vand.u32 %v740, 4294901760
  %6476 = vmatmul.f32.gmra.mxu0 %v6475
  %v6477 = vpop.f32.mrf.mxu0
  %v6478 = vadd.f32 %v6415, %v6477
  %v6479 = vand.u32 %v743, 4294901760
  %6480 = vmatmul.f32.gmra.mxu0 %v6479
  %v6481 = vpop.f32.mrf.mxu0
  %v6482 = vadd.f32 %v6421, %v6481
  %v6483 = vand.u32 %v746, 4294901760
  %6484 = vmatmul.f32.gmra.mxu0 %v6483
  %v6485 = vpop.f32.mrf.mxu0
  %v6486 = vadd.f32 %v6427, %v6485
  %v6487 = vand.u32 %v749, 4294901760
  %6488 = vmatmul.f32.gmra.mxu0 %v6487
  %v6489 = vpop.f32.mrf.mxu0
  %v6490 = vadd.f32 %v6433, %v6489
  %6491 = vdwg.mxu0
  %6492 = vmatpush.msra.mxu0 0.0
  %6493 = vmatpush.msra.mxu0 0.0
  %6494 = vmatpush.msra.mxu0 0.0
  %6495 = vmatpush.msra.mxu0 0.0
  %6496 = vmatpush.msra.mxu0 0.0
  %6497 = vmatpush.msra.mxu0 0.0
  %6498 = vmatpush.msra.mxu0 0.0
  %6499 = vmatpush.msra.mxu0 0.0
  %v6500 = vand.u32 %v6201, 4294901760
  %6501 = vmatpush.msra.mxu0 %v6500
  %v6502 = vand.u32 %v6198, 4294901760
  %6503 = vmatpush.msra.mxu0 %v6502
  %v6504 = vand.u32 %v6195, 4294901760
  %6505 = vmatpush.msra.mxu0 %v6504
  %v6506 = vand.u32 %v6192, 4294901760
  %6507 = vmatpush.msra.mxu0 %v6506
  %v6508 = vand.u32 %v6189, 4294901760
  %6509 = vmatpush.msra.mxu0 %v6508
  %v6510 = vand.u32 %v6186, 4294901760
  %6511 = vmatpush.msra.mxu0 %v6510
  %v6512 = vand.u32 %v6183, 4294901760
  %6513 = vmatpush.msra.mxu0 %v6512
  %v6514 = vand.u32 %v6180, 4294901760
  %6515 = vmatpush.msra.mxu0 %v6514
  %v6516 = vand.u32 %v740, 4294901760
  %6517 = vmatmul.f32.gmra.mxu0 %v6516
  %v6518 = vpop.f32.mrf.mxu0
  %v6519 = vadd.f32 %v6478, %v6518
  %v6520 = vand.u32 %v743, 4294901760
  %6521 = vmatmul.f32.gmra.mxu0 %v6520
  %v6522 = vpop.f32.mrf.mxu0
  %v6523 = vadd.f32 %v6482, %v6522
  %v6524 = vand.u32 %v746, 4294901760
  %6525 = vmatmul.f32.gmra.mxu0 %v6524
  %v6526 = vpop.f32.mrf.mxu0
  %v6527 = vadd.f32 %v6486, %v6526
  %v6528 = vand.u32 %v749, 4294901760
  %6529 = vmatmul.f32.gmra.mxu0 %v6528
  %v6530 = vpop.f32.mrf.mxu0
  %v6531 = vadd.f32 %v6490, %v6530
  %6532 = vdwg.mxu0
  %v6533 = vadd.f32 %v5438, %v6519
  %v6534 = vadd.f32 %v5439, %v6523
  %v6535 = vadd.f32 %v6533, %v6527
  %v6536 = vadd.f32 %v6534, %v6531
  %6539 = vrot.lane.b32.xlu0 %v6533, 5
  %v6540 = vpop.permute.xlu0 %6539
  %6541 = vrot.lane.b32.xlu0 %v6534, 5
  %v6542 = vpop.permute.xlu0 %6541
  %6547 = vrot.lane.b32.xlu0 %v6535, 10
  %v6548 = vpop.permute.xlu0 %6547
  %6549 = vrot.lane.b32.xlu0 %v6536, 10
  %v6550 = vpop.permute.xlu0 %6549
  %v6553 = vsel %vm521, %v5588, %v6540
  %v6554 = vsel %vm521, %v5589, %v6542
  %v6555 = vsel %vm1103, %v6553, %v6548
  %v6556 = vsel %vm1103, %v6554, %v6550
  %v6558 = vsel %vm1107, %v6555, 0
  %v6561 = vsel %vm1107, %v6556, 0
  %6563 = vmatpush.msra.mxu0 0.0
  %6564 = vmatpush.msra.mxu0 0.0
  %6565 = vmatpush.msra.mxu0 0.0
  %6566 = vmatpush.msra.mxu0 0.0
  %6567 = vmatpush.msra.mxu0 0.0
  %6568 = vmatpush.msra.mxu0 0.0
  %6569 = vmatpush.msra.mxu0 0.0
  %6570 = vmatpush.msra.mxu0 0.0
  %6571 = vmatpush.msra.mxu0 0.0
  %6572 = vmatpush.msra.mxu0 0.0
  %6573 = vmatpush.msra.mxu0 0.0
  %6574 = vmatpush.msra.mxu0 0.0
  %6575 = vmatpush.msra.mxu0 0.0
  %6576 = vmatpush.msra.mxu0 0.0
  %6577 = vmatpush.msra.mxu0 %v1116
  %6578 = vmatpush.msra.mxu0 %v79
  %6579 = vmatmul.f32.gmra.mxu0 %v6558
  %v6580 = vpop.f32.mrf.mxu0
  %v6581 = vadd.f32 %v1106, %v6580
  %6582 = vmatmul.f32.gmra.mxu0 %v6561
  %v6583 = vpop.f32.mrf.mxu0
  %v6584 = vadd.f32 %v1106, %v6583
  %6585 = vdwg.mxu0
  %v6586 = vxor.u32 %v6581, 2147483648
  %v6587 = vxor.u32 %v6584, 2147483648
  %v6588 = vmul.f32 %v6586, 1.442695
  %v6589 = vpow.pop %v6588
  %v6590 = vmul.f32 %v6587, 1.442695
  %v6591 = vpow.pop %v6590
  %v6592 = vadd.f32 %v6589, 1.0
  %v6593 = vadd.f32 %v6591, 1.0
  %v6594 = vrcp.pop %v6592
  %v6595 = vmul.f32 %v6592, %v6594
  %v6596 = vsub.f32 1.0, %v6595
  %v6597 = vmul.f32 %v6594, %v6596
  %v6598 = vadd.f32 %v6594, %v6597
  %vm6599 = vweird.f32 %v6592
  %vm6600 = vweird.f32 %v6594
  %vm6601 = vmor %vm6599, %vm6600
  %v6602 = vsel %vm6601, %v6594, %v6598
  %v6603 = vand.u32 2147483647, %v6592
  %vm6604 = vcmp.eq.f32.partialorder %v6603, 8.507059e+37
  %v6605 = vand.u32 %v6592, 2147483648
  %v6606 = vor.u32 1.1754944e-38, %v6605
  %v6607 = vsel %vm6604, %v6606, %v6602
  %v6608 = vmul.f32 1.0, %v6607
  %v6609 = vrcp.pop %v6593
  %v6610 = vmul.f32 %v6593, %v6609
  %v6611 = vsub.f32 1.0, %v6610
  %v6612 = vmul.f32 %v6609, %v6611
  %v6613 = vadd.f32 %v6609, %v6612
  %vm6614 = vweird.f32 %v6593
  %vm6615 = vweird.f32 %v6609
  %vm6616 = vmor %vm6614, %vm6615
  %v6617 = vsel %vm6616, %v6609, %v6613
  %v6618 = vand.u32 2147483647, %v6593
  %vm6619 = vcmp.eq.f32.partialorder %v6618, 8.507059e+37
  %v6620 = vand.u32 %v6593, 2147483648
  %v6621 = vor.u32 1.1754944e-38, %v6620
  %v6622 = vsel %vm6619, %v6621, %v6617
  %v6623 = vmul.f32 1.0, %v6622
  %6626 = vrot.lane.b32.xlu0 %v5588, 5
  %v6627 = vpop.permute.xlu0 %6626
  %6628 = vrot.lane.b32.xlu0 %v5589, 5
  %v6629 = vpop.permute.xlu0 %6628
  %v6632 = vmul.f32 %v6608, %v6627
  %v6633 = vmul.f32 %v6623, %v6629
  %6636 = vrot.lane.b32.xlu0 %v6632, 123
  %v6637 = vpop.permute.xlu0 %6636
  %6638 = vrot.lane.b32.xlu0 %v6633, 123
  %v6639 = vpop.permute.xlu0 %6638
  %v6642 = vsel %vm521, %v6637, %v6540
  %v6643 = vsel %vm521, %v6639, %v6542
  %v6644 = vsel %vm1103, %v6642, %v6548
  %v6645 = vsel %vm1103, %v6643, %v6550
  %v6647 = vsel %vm1107, %v6644, 0
  %v6650 = vsel %vm1107, %v6645, 0
  %6652 = vmatpush.msra.mxu0 0.0
  %6653 = vmatpush.msra.mxu0 0.0
  %6654 = vmatpush.msra.mxu0 0.0
  %6655 = vmatpush.msra.mxu0 0.0
  %6656 = vmatpush.msra.mxu0 0.0
  %6657 = vmatpush.msra.mxu0 0.0
  %6658 = vmatpush.msra.mxu0 0.0
  %6659 = vmatpush.msra.mxu0 0.0
  %6660 = vmatpush.msra.mxu0 0.0
  %6661 = vmatpush.msra.mxu0 0.0
  %6662 = vmatpush.msra.mxu0 0.0
  %6663 = vmatpush.msra.mxu0 0.0
  %6664 = vmatpush.msra.mxu0 0.0
  %6665 = vmatpush.msra.mxu0 0.0
  %6666 = vmatpush.msra.mxu0 %v1201
  %6667 = vmatpush.msra.mxu0 %v81
  %6668 = vmatmul.f32.gmra.mxu0 %v6647
  %v6669 = vpop.f32.mrf.mxu0
  %v6670 = vadd.f32 %v1193, %v6669
  %6671 = vmatmul.f32.gmra.mxu0 %v6650
  %v6672 = vpop.f32.mrf.mxu0
  %v6673 = vadd.f32 %v1193, %v6672
  %6674 = vdwg.mxu0
  %v6675 = vtanh.pop %v6670
  %v6676 = vtanh.pop %v6673
  %v6677 = vsub.f32 1.0, %v6608
  %v6678 = vsub.f32 1.0, %v6623
  %v6679 = vmul.f32 %v6677, %v5588
  %v6680 = vmul.f32 %v6678, %v5589
  %v6681 = vmul.f32 %v6608, %v6675
  %v6682 = vmul.f32 %v6623, %v6676
  %v6683 = vadd.f32 %v6679, %v6681
  %v6684 = vadd.f32 %v6680, %v6682
  %6685 = vmatpush.msra.mxu0 0.0
  %6686 = vmatpush.msra.mxu0 0.0
  %6687 = vmatpush.msra.mxu0 0.0
  %6688 = vmatpush.msra.mxu0 0.0
  %6689 = vmatpush.msra.mxu0 0.0
  %6690 = vmatpush.msra.mxu0 0.0
  %6691 = vmatpush.msra.mxu0 0.0
  %6692 = vmatpush.msra.mxu0 0.0
  %6693 = vmatpush.msra.mxu0 0.0
  %6694 = vmatpush.msra.mxu0 0.0
  %6695 = vmatpush.msra.mxu0 0.0
  %6696 = vmatpush.msra.mxu0 0.0
  %v6697 = vand.u32 %v6684, 4294901760
  %6698 = vmatpush.msra.mxu0 %v6697
  %v6699 = vand.u32 %v6683, 4294901760
  %6700 = vmatpush.msra.mxu0 %v6699
  %v6701 = vand.u32 %v5589, 4294901760
  %6702 = vmatpush.msra.mxu0 %v6701
  %v6703 = vand.u32 %v5588, 4294901760
  %6704 = vmatpush.msra.mxu0 %v6703
  %v6705 = vand.u32 %v148, 4294901760
  %v6706 = vsub.f32 %v148, %v6705
  %v6707 = vand.u32 %v6706, 4294901760
  %v6708 = vsub.f32 %v6706, %v6707
  %v6709 = vand.u32 %v6708, 4294901760
  %6710 = vmatmul.f32.gmra.mxu0 %v6709
  %v6711 = vpop.f32.mrf.mxu0
  %v6712 = vadd.f32 0.0, %v6711
  %v6713 = vand.u32 %v151, 4294901760
  %v6714 = vsub.f32 %v151, %v6713
  %v6715 = vand.u32 %v6714, 4294901760
  %v6716 = vsub.f32 %v6714, %v6715
  %v6717 = vand.u32 %v6716, 4294901760
  %6718 = vmatmul.f32.gmra.mxu0 %v6717
  %v6719 = vpop.f32.mrf.mxu0
  %v6720 = vadd.f32 0.0, %v6719
  %v6721 = vand.u32 %v154, 4294901760
  %v6722 = vsub.f32 %v154, %v6721
  %v6723 = vand.u32 %v6722, 4294901760
  %v6724 = vsub.f32 %v6722, %v6723
  %v6725 = vand.u32 %v6724, 4294901760
  %6726 = vmatmul.f32.gmra.mxu0 %v6725
  %v6727 = vpop.f32.mrf.mxu0
  %v6728 = vadd.f32 0.0, %v6727
  %v6729 = vand.u32 %v157, 4294901760
  %v6730 = vsub.f32 %v157, %v6729
  %v6731 = vand.u32 %v6730, 4294901760
  %v6732 = vsub.f32 %v6730, %v6731
  %v6733 = vand.u32 %v6732, 4294901760
  %6734 = vmatmul.f32.gmra.mxu0 %v6733
  %v6735 = vpop.f32.mrf.mxu0
  %v6736 = vadd.f32 0.0, %v6735
  %v6737 = vand.u32 %v160, 4294901760
  %v6738 = vsub.f32 %v160, %v6737
  %v6739 = vand.u32 %v6738, 4294901760
  %v6740 = vsub.f32 %v6738, %v6739
  %v6741 = vand.u32 %v6740, 4294901760
  %6742 = vmatmul.f32.gmra.mxu0 %v6741
  %v6743 = vpop.f32.mrf.mxu0
  %v6744 = vadd.f32 0.0, %v6743
  %v6745 = vand.u32 %v163, 4294901760
  %v6746 = vsub.f32 %v163, %v6745
  %v6747 = vand.u32 %v6746, 4294901760
  %v6748 = vsub.f32 %v6746, %v6747
  %v6749 = vand.u32 %v6748, 4294901760
  %6750 = vmatmul.f32.gmra.mxu0 %v6749
  %v6751 = vpop.f32.mrf.mxu0
  %v6752 = vadd.f32 0.0, %v6751
  %v6753 = vand.u32 %v166, 4294901760
  %v6754 = vsub.f32 %v166, %v6753
  %v6755 = vand.u32 %v6754, 4294901760
  %v6756 = vsub.f32 %v6754, %v6755
  %v6757 = vand.u32 %v6756, 4294901760
  %6758 = vmatmul.f32.gmra.mxu0 %v6757
  %v6759 = vpop.f32.mrf.mxu0
  %v6760 = vadd.f32 0.0, %v6759
  %v6761 = vand.u32 %v169, 4294901760
  %v6762 = vsub.f32 %v169, %v6761
  %v6763 = vand.u32 %v6762, 4294901760
  %v6764 = vsub.f32 %v6762, %v6763
  %v6765 = vand.u32 %v6764, 4294901760
  %6766 = vmatmul.f32.gmra.mxu0 %v6765
  %v6767 = vpop.f32.mrf.mxu0
  %v6768 = vadd.f32 0.0, %v6767
  %6769 = vdwg.mxu0
  %6770 = vmatpush.msra.mxu0 0.0
  %6771 = vmatpush.msra.mxu0 0.0
  %6772 = vmatpush.msra.mxu0 0.0
  %6773 = vmatpush.msra.mxu0 0.0
  %6774 = vmatpush.msra.mxu0 0.0
  %6775 = vmatpush.msra.mxu0 0.0
  %6776 = vmatpush.msra.mxu0 0.0
  %6777 = vmatpush.msra.mxu0 0.0
  %6778 = vmatpush.msra.mxu0 0.0
  %6779 = vmatpush.msra.mxu0 0.0
  %6780 = vmatpush.msra.mxu0 0.0
  %6781 = vmatpush.msra.mxu0 0.0
  %v6782 = vand.u32 %v6684, 4294901760
  %v6783 = vsub.f32 %v6684, %v6782
  %v6784 = vand.u32 %v6783, 4294901760
  %v6785 = vsub.f32 %v6783, %v6784
  %v6786 = vand.u32 %v6785, 4294901760
  %6787 = vmatpush.msra.mxu0 %v6786
  %v6788 = vand.u32 %v6683, 4294901760
  %v6789 = vsub.f32 %v6683, %v6788
  %v6790 = vand.u32 %v6789, 4294901760
  %v6791 = vsub.f32 %v6789, %v6790
  %v6792 = vand.u32 %v6791, 4294901760
  %6793 = vmatpush.msra.mxu0 %v6792
  %v6794 = vand.u32 %v5589, 4294901760
  %v6795 = vsub.f32 %v5589, %v6794
  %v6796 = vand.u32 %v6795, 4294901760
  %v6797 = vsub.f32 %v6795, %v6796
  %v6798 = vand.u32 %v6797, 4294901760
  %6799 = vmatpush.msra.mxu0 %v6798
  %v6800 = vand.u32 %v5588, 4294901760
  %v6801 = vsub.f32 %v5588, %v6800
  %v6802 = vand.u32 %v6801, 4294901760
  %v6803 = vsub.f32 %v6801, %v6802
  %v6804 = vand.u32 %v6803, 4294901760
  %6805 = vmatpush.msra.mxu0 %v6804
  %v6806 = vand.u32 %v148, 4294901760
  %6807 = vmatmul.f32.gmra.mxu0 %v6806
  %v6808 = vpop.f32.mrf.mxu0
  %v6809 = vadd.f32 %v6712, %v6808
  %v6810 = vand.u32 %v151, 4294901760
  %6811 = vmatmul.f32.gmra.mxu0 %v6810
  %v6812 = vpop.f32.mrf.mxu0
  %v6813 = vadd.f32 %v6720, %v6812
  %v6814 = vand.u32 %v154, 4294901760
  %6815 = vmatmul.f32.gmra.mxu0 %v6814
  %v6816 = vpop.f32.mrf.mxu0
  %v6817 = vadd.f32 %v6728, %v6816
  %v6818 = vand.u32 %v157, 4294901760
  %6819 = vmatmul.f32.gmra.mxu0 %v6818
  %v6820 = vpop.f32.mrf.mxu0
  %v6821 = vadd.f32 %v6736, %v6820
  %v6822 = vand.u32 %v160, 4294901760
  %6823 = vmatmul.f32.gmra.mxu0 %v6822
  %v6824 = vpop.f32.mrf.mxu0
  %v6825 = vadd.f32 %v6744, %v6824
  %v6826 = vand.u32 %v163, 4294901760
  %6827 = vmatmul.f32.gmra.mxu0 %v6826
  %v6828 = vpop.f32.mrf.mxu0
  %v6829 = vadd.f32 %v6752, %v6828
  %v6830 = vand.u32 %v166, 4294901760
  %6831 = vmatmul.f32.gmra.mxu0 %v6830
  %v6832 = vpop.f32.mrf.mxu0
  %v6833 = vadd.f32 %v6760, %v6832
  %v6834 = vand.u32 %v169, 4294901760
  %6835 = vmatmul.f32.gmra.mxu0 %v6834
  %v6836 = vpop.f32.mrf.mxu0
  %v6837 = vadd.f32 %v6768, %v6836
  %6838 = vdwg.mxu0
  %6839 = vmatpush.msra.mxu0 0.0
  %6840 = vmatpush.msra.mxu0 0.0
  %6841 = vmatpush.msra.mxu0 0.0
  %6842 = vmatpush.msra.mxu0 0.0
  %6843 = vmatpush.msra.mxu0 0.0
  %6844 = vmatpush.msra.mxu0 0.0
  %6845 = vmatpush.msra.mxu0 0.0
  %6846 = vmatpush.msra.mxu0 0.0
  %6847 = vmatpush.msra.mxu0 0.0
  %6848 = vmatpush.msra.mxu0 0.0
  %6849 = vmatpush.msra.mxu0 0.0
  %6850 = vmatpush.msra.mxu0 0.0
  %v6851 = vand.u32 %v6684, 4294901760
  %v6852 = vsub.f32 %v6684, %v6851
  %6853 = vmatpush.msra.mxu0 %v6852
  %v6854 = vand.u32 %v6683, 4294901760
  %v6855 = vsub.f32 %v6683, %v6854
  %6856 = vmatpush.msra.mxu0 %v6855
  %v6857 = vand.u32 %v5589, 4294901760
  %v6858 = vsub.f32 %v5589, %v6857
  %6859 = vmatpush.msra.mxu0 %v6858
  %v6860 = vand.u32 %v5588, 4294901760
  %v6861 = vsub.f32 %v5588, %v6860
  %6862 = vmatpush.msra.mxu0 %v6861
  %v6863 = vand.u32 %v148, 4294901760
  %v6864 = vsub.f32 %v148, %v6863
  %6865 = vmatmul.f32.gmra.mxu0 %v6864
  %v6866 = vpop.f32.mrf.mxu0
  %v6867 = vadd.f32 %v6809, %v6866
  %v6868 = vand.u32 %v151, 4294901760
  %v6869 = vsub.f32 %v151, %v6868
  %6870 = vmatmul.f32.gmra.mxu0 %v6869
  %v6871 = vpop.f32.mrf.mxu0
  %v6872 = vadd.f32 %v6813, %v6871
  %v6873 = vand.u32 %v154, 4294901760
  %v6874 = vsub.f32 %v154, %v6873
  %6875 = vmatmul.f32.gmra.mxu0 %v6874
  %v6876 = vpop.f32.mrf.mxu0
  %v6877 = vadd.f32 %v6817, %v6876
  %v6878 = vand.u32 %v157, 4294901760
  %v6879 = vsub.f32 %v157, %v6878
  %6880 = vmatmul.f32.gmra.mxu0 %v6879
  %v6881 = vpop.f32.mrf.mxu0
  %v6882 = vadd.f32 %v6821, %v6881
  %v6883 = vand.u32 %v160, 4294901760
  %v6884 = vsub.f32 %v160, %v6883
  %6885 = vmatmul.f32.gmra.mxu0 %v6884
  %v6886 = vpop.f32.mrf.mxu0
  %v6887 = vadd.f32 %v6825, %v6886
  %v6888 = vand.u32 %v163, 4294901760
  %v6889 = vsub.f32 %v163, %v6888
  %6890 = vmatmul.f32.gmra.mxu0 %v6889
  %v6891 = vpop.f32.mrf.mxu0
  %v6892 = vadd.f32 %v6829, %v6891
  %v6893 = vand.u32 %v166, 4294901760
  %v6894 = vsub.f32 %v166, %v6893
  %6895 = vmatmul.f32.gmra.mxu0 %v6894
  %v6896 = vpop.f32.mrf.mxu0
  %v6897 = vadd.f32 %v6833, %v6896
  %v6898 = vand.u32 %v169, 4294901760
  %v6899 = vsub.f32 %v169, %v6898
  %6900 = vmatmul.f32.gmra.mxu0 %v6899
  %v6901 = vpop.f32.mrf.mxu0
  %v6902 = vadd.f32 %v6837, %v6901
  %6903 = vdwg.mxu0
  %6904 = vmatpush.msra.mxu0 0.0
  %6905 = vmatpush.msra.mxu0 0.0
  %6906 = vmatpush.msra.mxu0 0.0
  %6907 = vmatpush.msra.mxu0 0.0
  %6908 = vmatpush.msra.mxu0 0.0
  %6909 = vmatpush.msra.mxu0 0.0
  %6910 = vmatpush.msra.mxu0 0.0
  %6911 = vmatpush.msra.mxu0 0.0
  %6912 = vmatpush.msra.mxu0 0.0
  %6913 = vmatpush.msra.mxu0 0.0
  %6914 = vmatpush.msra.mxu0 0.0
  %6915 = vmatpush.msra.mxu0 0.0
  %v6916 = vand.u32 %v6684, 4294901760
  %6917 = vmatpush.msra.mxu0 %v6916
  %v6918 = vand.u32 %v6683, 4294901760
  %6919 = vmatpush.msra.mxu0 %v6918
  %v6920 = vand.u32 %v5589, 4294901760
  %6921 = vmatpush.msra.mxu0 %v6920
  %v6922 = vand.u32 %v5588, 4294901760
  %6923 = vmatpush.msra.mxu0 %v6922
  %v6924 = vand.u32 %v148, 4294901760
  %v6925 = vsub.f32 %v148, %v6924
  %v6926 = vand.u32 %v6925, 4294901760
  %6927 = vmatmul.f32.gmra.mxu0 %v6926
  %v6928 = vpop.f32.mrf.mxu0
  %v6929 = vadd.f32 %v6867, %v6928
  %v6930 = vand.u32 %v151, 4294901760
  %v6931 = vsub.f32 %v151, %v6930
  %v6932 = vand.u32 %v6931, 4294901760
  %6933 = vmatmul.f32.gmra.mxu0 %v6932
  %v6934 = vpop.f32.mrf.mxu0
  %v6935 = vadd.f32 %v6872, %v6934
  %v6936 = vand.u32 %v154, 4294901760
  %v6937 = vsub.f32 %v154, %v6936
  %v6938 = vand.u32 %v6937, 4294901760
  %6939 = vmatmul.f32.gmra.mxu0 %v6938
  %v6940 = vpop.f32.mrf.mxu0
  %v6941 = vadd.f32 %v6877, %v6940
  %v6942 = vand.u32 %v157, 4294901760
  %v6943 = vsub.f32 %v157, %v6942
  %v6944 = vand.u32 %v6943, 4294901760
  %6945 = vmatmul.f32.gmra.mxu0 %v6944
  %v6946 = vpop.f32.mrf.mxu0
  %v6947 = vadd.f32 %v6882, %v6946
  %v6948 = vand.u32 %v160, 4294901760
  %v6949 = vsub.f32 %v160, %v6948
  %v6950 = vand.u32 %v6949, 4294901760
  %6951 = vmatmul.f32.gmra.mxu0 %v6950
  %v6952 = vpop.f32.mrf.mxu0
  %v6953 = vadd.f32 %v6887, %v6952
  %v6954 = vand.u32 %v163, 4294901760
  %v6955 = vsub.f32 %v163, %v6954
  %v6956 = vand.u32 %v6955, 4294901760
  %6957 = vmatmul.f32.gmra.mxu0 %v6956
  %v6958 = vpop.f32.mrf.mxu0
  %v6959 = vadd.f32 %v6892, %v6958
  %v6960 = vand.u32 %v166, 4294901760
  %v6961 = vsub.f32 %v166, %v6960
  %v6962 = vand.u32 %v6961, 4294901760
  %6963 = vmatmul.f32.gmra.mxu0 %v6962
  %v6964 = vpop.f32.mrf.mxu0
  %v6965 = vadd.f32 %v6897, %v6964
  %v6966 = vand.u32 %v169, 4294901760
  %v6967 = vsub.f32 %v169, %v6966
  %v6968 = vand.u32 %v6967, 4294901760
  %6969 = vmatmul.f32.gmra.mxu0 %v6968
  %v6970 = vpop.f32.mrf.mxu0
  %v6971 = vadd.f32 %v6902, %v6970
  %6972 = vdwg.mxu0
  %6973 = vmatpush.msra.mxu0 0.0
  %6974 = vmatpush.msra.mxu0 0.0
  %6975 = vmatpush.msra.mxu0 0.0
  %6976 = vmatpush.msra.mxu0 0.0
  %6977 = vmatpush.msra.mxu0 0.0
  %6978 = vmatpush.msra.mxu0 0.0
  %6979 = vmatpush.msra.mxu0 0.0
  %6980 = vmatpush.msra.mxu0 0.0
  %6981 = vmatpush.msra.mxu0 0.0
  %6982 = vmatpush.msra.mxu0 0.0
  %6983 = vmatpush.msra.mxu0 0.0
  %6984 = vmatpush.msra.mxu0 0.0
  %v6985 = vand.u32 %v6684, 4294901760
  %v6986 = vsub.f32 %v6684, %v6985
  %v6987 = vand.u32 %v6986, 4294901760
  %6988 = vmatpush.msra.mxu0 %v6987
  %v6989 = vand.u32 %v6683, 4294901760
  %v6990 = vsub.f32 %v6683, %v6989
  %v6991 = vand.u32 %v6990, 4294901760
  %6992 = vmatpush.msra.mxu0 %v6991
  %v6993 = vand.u32 %v5589, 4294901760
  %v6994 = vsub.f32 %v5589, %v6993
  %v6995 = vand.u32 %v6994, 4294901760
  %6996 = vmatpush.msra.mxu0 %v6995
  %v6997 = vand.u32 %v5588, 4294901760
  %v6998 = vsub.f32 %v5588, %v6997
  %v6999 = vand.u32 %v6998, 4294901760
  %7000 = vmatpush.msra.mxu0 %v6999
  %v7001 = vand.u32 %v148, 4294901760
  %7002 = vmatmul.f32.gmra.mxu0 %v7001
  %v7003 = vpop.f32.mrf.mxu0
  %v7004 = vadd.f32 %v6929, %v7003
  %v7005 = vand.u32 %v151, 4294901760
  %7006 = vmatmul.f32.gmra.mxu0 %v7005
  %v7007 = vpop.f32.mrf.mxu0
  %v7008 = vadd.f32 %v6935, %v7007
  %v7009 = vand.u32 %v154, 4294901760
  %7010 = vmatmul.f32.gmra.mxu0 %v7009
  %v7011 = vpop.f32.mrf.mxu0
  %v7012 = vadd.f32 %v6941, %v7011
  %v7013 = vand.u32 %v157, 4294901760
  %7014 = vmatmul.f32.gmra.mxu0 %v7013
  %v7015 = vpop.f32.mrf.mxu0
  %v7016 = vadd.f32 %v6947, %v7015
  %v7017 = vand.u32 %v160, 4294901760
  %7018 = vmatmul.f32.gmra.mxu0 %v7017
  %v7019 = vpop.f32.mrf.mxu0
  %v7020 = vadd.f32 %v6953, %v7019
  %v7021 = vand.u32 %v163, 4294901760
  %7022 = vmatmul.f32.gmra.mxu0 %v7021
  %v7023 = vpop.f32.mrf.mxu0
  %v7024 = vadd.f32 %v6959, %v7023
  %v7025 = vand.u32 %v166, 4294901760
  %7026 = vmatmul.f32.gmra.mxu0 %v7025
  %v7027 = vpop.f32.mrf.mxu0
  %v7028 = vadd.f32 %v6965, %v7027
  %v7029 = vand.u32 %v169, 4294901760
  %7030 = vmatmul.f32.gmra.mxu0 %v7029
  %v7031 = vpop.f32.mrf.mxu0
  %v7032 = vadd.f32 %v6971, %v7031
  %7033 = vdwg.mxu0
  %7034 = vmatpush.msra.mxu0 0.0
  %7035 = vmatpush.msra.mxu0 0.0
  %7036 = vmatpush.msra.mxu0 0.0
  %7037 = vmatpush.msra.mxu0 0.0
  %7038 = vmatpush.msra.mxu0 0.0
  %7039 = vmatpush.msra.mxu0 0.0
  %7040 = vmatpush.msra.mxu0 0.0
  %7041 = vmatpush.msra.mxu0 0.0
  %7042 = vmatpush.msra.mxu0 0.0
  %7043 = vmatpush.msra.mxu0 0.0
  %7044 = vmatpush.msra.mxu0 0.0
  %7045 = vmatpush.msra.mxu0 0.0
  %v7046 = vand.u32 %v6684, 4294901760
  %7047 = vmatpush.msra.mxu0 %v7046
  %v7048 = vand.u32 %v6683, 4294901760
  %7049 = vmatpush.msra.mxu0 %v7048
  %v7050 = vand.u32 %v5589, 4294901760
  %7051 = vmatpush.msra.mxu0 %v7050
  %v7052 = vand.u32 %v5588, 4294901760
  %7053 = vmatpush.msra.mxu0 %v7052
  %v7054 = vand.u32 %v148, 4294901760
  %7055 = vmatmul.f32.gmra.mxu0 %v7054
  %v7056 = vpop.f32.mrf.mxu0
  %v7057 = vadd.f32 %v7004, %v7056
  %v7058 = vand.u32 %v151, 4294901760
  %7059 = vmatmul.f32.gmra.mxu0 %v7058
  %v7060 = vpop.f32.mrf.mxu0
  %v7061 = vadd.f32 %v7008, %v7060
  %v7062 = vand.u32 %v154, 4294901760
  %7063 = vmatmul.f32.gmra.mxu0 %v7062
  %v7064 = vpop.f32.mrf.mxu0
  %v7065 = vadd.f32 %v7012, %v7064
  %v7066 = vand.u32 %v157, 4294901760
  %7067 = vmatmul.f32.gmra.mxu0 %v7066
  %v7068 = vpop.f32.mrf.mxu0
  %v7069 = vadd.f32 %v7016, %v7068
  %v7070 = vand.u32 %v160, 4294901760
  %7071 = vmatmul.f32.gmra.mxu0 %v7070
  %v7072 = vpop.f32.mrf.mxu0
  %v7073 = vadd.f32 %v7020, %v7072
  %v7074 = vand.u32 %v163, 4294901760
  %7075 = vmatmul.f32.gmra.mxu0 %v7074
  %v7076 = vpop.f32.mrf.mxu0
  %v7077 = vadd.f32 %v7024, %v7076
  %v7078 = vand.u32 %v166, 4294901760
  %7079 = vmatmul.f32.gmra.mxu0 %v7078
  %v7080 = vpop.f32.mrf.mxu0
  %v7081 = vadd.f32 %v7028, %v7080
  %v7082 = vand.u32 %v169, 4294901760
  %7083 = vmatmul.f32.gmra.mxu0 %v7082
  %v7084 = vpop.f32.mrf.mxu0
  %v7085 = vadd.f32 %v7032, %v7084
  %7086 = vdwg.mxu0
  %v7088 = vsel %vm521, %v7057, 0
  %v7091 = vsel %vm521, %v7061, 0
  %v7094 = vsel %vm521, %v7065, 0
  %v7097 = vsel %vm521, %v7069, 0
  %v7100 = vsel %vm521, %v7073, 0
  %v7103 = vsel %vm521, %v7077, 0
  %v7106 = vsel %vm521, %v7081, 0
  %v7109 = vsel %vm521, %v7085, 0
  %7111 = vmatpush.msra.mxu0 0.0
  %7112 = vmatpush.msra.mxu0 0.0
  %7113 = vmatpush.msra.mxu0 0.0
  %7114 = vmatpush.msra.mxu0 0.0
  %7115 = vmatpush.msra.mxu0 0.0
  %7116 = vmatpush.msra.mxu0 0.0
  %7117 = vmatpush.msra.mxu0 0.0
  %7118 = vmatpush.msra.mxu0 0.0
  %7119 = vmatpush.msra.mxu0 0.0
  %7120 = vmatpush.msra.mxu0 0.0
  %7121 = vmatpush.msra.mxu0 0.0
  %7122 = vmatpush.msra.mxu0 0.0
  %7123 = vmatpush.msra.mxu0 0.0
  %7124 = vmatpush.msra.mxu0 0.0
  %7125 = vmatpush.msra.mxu0 0.0
  %7126 = vmatpush.msra.mxu0 %v547
  %7127 = vmatmul.f32.gmra.mxu0 %v7088
  %v7128 = vpop.f32.mrf.mxu0
  %v7129 = vadd.f32 %v135, %v7128
  %7130 = vmatmul.f32.gmra.mxu0 %v7091
  %v7131 = vpop.f32.mrf.mxu0
  %v7132 = vadd.f32 %v138, %v7131
  %7133 = vmatmul.f32.gmra.mxu0 %v7094
  %v7134 = vpop.f32.mrf.mxu0
  %v7135 = vadd.f32 %v141, %v7134
  %7136 = vmatmul.f32.gmra.mxu0 %v7097
  %v7137 = vpop.f32.mrf.mxu0
  %v7138 = vadd.f32 %v144, %v7137
  %7139 = vmatmul.f32.gmra.mxu0 %v7100
  %v7140 = vpop.f32.mrf.mxu0
  %v7141 = vadd.f32 %v135, %v7140
  %7142 = vmatmul.f32.gmra.mxu0 %v7103
  %v7143 = vpop.f32.mrf.mxu0
  %v7144 = vadd.f32 %v138, %v7143
  %7145 = vmatmul.f32.gmra.mxu0 %v7106
  %v7146 = vpop.f32.mrf.mxu0
  %v7147 = vadd.f32 %v141, %v7146
  %7148 = vmatmul.f32.gmra.mxu0 %v7109
  %v7149 = vpop.f32.mrf.mxu0
  %v7150 = vadd.f32 %v144, %v7149
  %7151 = vdwg.mxu0
  %v7152 = vmax.f32 %v7129, 0.0
  %v7153 = vmax.f32 %v7132, 0.0
  %v7154 = vmax.f32 %v7135, 0.0
  %v7155 = vmax.f32 %v7138, 0.0
  %v7156 = vmax.f32 %v7141, 0.0
  %v7157 = vmax.f32 %v7144, 0.0
  %v7158 = vmax.f32 %v7147, 0.0
  %v7159 = vmax.f32 %v7150, 0.0
  %v7161 = vsel %vm599, %v7152, 0
  %v7164 = vsel %vm599, %v7153, 0
  %v7167 = vsel %vm599, %v7154, 0
  %v7170 = vsel %vm599, %v7155, 0
  %v7173 = vsel %vm599, %v7156, 0
  %v7176 = vsel %vm599, %v7157, 0
  %v7179 = vsel %vm599, %v7158, 0
  %v7182 = vsel %vm599, %v7159, 0
  %7184 = vmatpush.msra.mxu0 0.0
  %7185 = vmatpush.msra.mxu0 0.0
  %7186 = vmatpush.msra.mxu0 0.0
  %7187 = vmatpush.msra.mxu0 0.0
  %7188 = vmatpush.msra.mxu0 0.0
  %7189 = vmatpush.msra.mxu0 0.0
  %7190 = vmatpush.msra.mxu0 0.0
  %7191 = vmatpush.msra.mxu0 0.0
  %7192 = vmatpush.msra.mxu0 %v68
  %7193 = vmatpush.msra.mxu0 %v67
  %7194 = vmatpush.msra.mxu0 %v66
  %7195 = vmatpush.msra.mxu0 %v65
  %7196 = vmatpush.msra.mxu0 %v64
  %7197 = vmatpush.msra.mxu0 %v63
  %7198 = vmatpush.msra.mxu0 %v62
  %7199 = vmatpush.msra.mxu0 %v61
  %7200 = vmatmul.f32.gmra.mxu0 %v7161
  %v7201 = vpop.f32.mrf.mxu0
  %v7202 = vadd.f32 %v598, %v7201
  %7203 = vmatmul.f32.gmra.mxu0 %v7164
  %v7204 = vpop.f32.mrf.mxu0
  %v7205 = vadd.f32 %v598, %v7204
  %7206 = vmatmul.f32.gmra.mxu0 %v7167
  %v7207 = vpop.f32.mrf.mxu0
  %v7208 = vadd.f32 %v598, %v7207
  %7209 = vmatmul.f32.gmra.mxu0 %v7170
  %v7210 = vpop.f32.mrf.mxu0
  %v7211 = vadd.f32 %v598, %v7210
  %7212 = vmatmul.f32.gmra.mxu0 %v7173
  %v7213 = vpop.f32.mrf.mxu0
  %v7214 = vadd.f32 %v598, %v7213
  %7215 = vmatmul.f32.gmra.mxu0 %v7176
  %v7216 = vpop.f32.mrf.mxu0
  %v7217 = vadd.f32 %v598, %v7216
  %7218 = vmatmul.f32.gmra.mxu0 %v7179
  %v7219 = vpop.f32.mrf.mxu0
  %v7220 = vadd.f32 %v598, %v7219
  %7221 = vmatmul.f32.gmra.mxu0 %v7182
  %v7222 = vpop.f32.mrf.mxu0
  %v7223 = vadd.f32 %v598, %v7222
  %7224 = vdwg.mxu0
  %v7225 = vmax.f32 %v7202, 0.0
  %v7226 = vmax.f32 %v7205, 0.0
  %v7227 = vmax.f32 %v7208, 0.0
  %v7228 = vmax.f32 %v7211, 0.0
  %v7229 = vmax.f32 %v7214, 0.0
  %v7230 = vmax.f32 %v7217, 0.0
  %v7231 = vmax.f32 %v7220, 0.0
  %v7232 = vmax.f32 %v7223, 0.0
  %v7234 = vsel %vm599, %v7225, 0
  %v7237 = vsel %vm599, %v7226, 0
  %v7240 = vsel %vm599, %v7227, 0
  %v7243 = vsel %vm599, %v7228, 0
  %v7246 = vsel %vm599, %v7229, 0
  %v7249 = vsel %vm599, %v7230, 0
  %v7252 = vsel %vm599, %v7231, 0
  %v7255 = vsel %vm599, %v7232, 0
  %7257 = vmatpush.msra.mxu0 0.0
  %7258 = vmatpush.msra.mxu0 0.0
  %7259 = vmatpush.msra.mxu0 0.0
  %7260 = vmatpush.msra.mxu0 0.0
  %7261 = vmatpush.msra.mxu0 0.0
  %7262 = vmatpush.msra.mxu0 0.0
  %7263 = vmatpush.msra.mxu0 0.0
  %7264 = vmatpush.msra.mxu0 0.0
  %7265 = vmatpush.msra.mxu0 %v77
  %7266 = vmatpush.msra.mxu0 %v76
  %7267 = vmatpush.msra.mxu0 %v75
  %7268 = vmatpush.msra.mxu0 %v74
  %7269 = vmatpush.msra.mxu0 %v73
  %7270 = vmatpush.msra.mxu0 %v72
  %7271 = vmatpush.msra.mxu0 %v71
  %7272 = vmatpush.msra.mxu0 %v70
  %7273 = vmatmul.f32.gmra.mxu0 %v7234
  %v7274 = vpop.f32.mrf.mxu0
  %v7275 = vadd.f32 %v673, %v7274
  %7276 = vmatmul.f32.gmra.mxu0 %v7237
  %v7277 = vpop.f32.mrf.mxu0
  %v7278 = vadd.f32 %v673, %v7277
  %7279 = vmatmul.f32.gmra.mxu0 %v7240
  %v7280 = vpop.f32.mrf.mxu0
  %v7281 = vadd.f32 %v673, %v7280
  %7282 = vmatmul.f32.gmra.mxu0 %v7243
  %v7283 = vpop.f32.mrf.mxu0
  %v7284 = vadd.f32 %v673, %v7283
  %7285 = vmatmul.f32.gmra.mxu0 %v7246
  %v7286 = vpop.f32.mrf.mxu0
  %v7287 = vadd.f32 %v673, %v7286
  %7288 = vmatmul.f32.gmra.mxu0 %v7249
  %v7289 = vpop.f32.mrf.mxu0
  %v7290 = vadd.f32 %v673, %v7289
  %7291 = vmatmul.f32.gmra.mxu0 %v7252
  %v7292 = vpop.f32.mrf.mxu0
  %v7293 = vadd.f32 %v673, %v7292
  %7294 = vmatmul.f32.gmra.mxu0 %v7255
  %v7295 = vpop.f32.mrf.mxu0
  %v7296 = vadd.f32 %v673, %v7295
  %7297 = vdwg.mxu0
  %7298 = vmatpush.msra.mxu0 0.0
  %7299 = vmatpush.msra.mxu0 0.0
  %7300 = vmatpush.msra.mxu0 0.0
  %7301 = vmatpush.msra.mxu0 0.0
  %7302 = vmatpush.msra.mxu0 0.0
  %7303 = vmatpush.msra.mxu0 0.0
  %7304 = vmatpush.msra.mxu0 0.0
  %7305 = vmatpush.msra.mxu0 0.0
  %v7306 = vand.u32 %v7296, 4294901760
  %7307 = vmatpush.msra.mxu0 %v7306
  %v7308 = vand.u32 %v7293, 4294901760
  %7309 = vmatpush.msra.mxu0 %v7308
  %v7310 = vand.u32 %v7290, 4294901760
  %7311 = vmatpush.msra.mxu0 %v7310
  %v7312 = vand.u32 %v7287, 4294901760
  %7313 = vmatpush.msra.mxu0 %v7312
  %v7314 = vand.u32 %v7284, 4294901760
  %7315 = vmatpush.msra.mxu0 %v7314
  %v7316 = vand.u32 %v7281, 4294901760
  %7317 = vmatpush.msra.mxu0 %v7316
  %v7318 = vand.u32 %v7278, 4294901760
  %7319 = vmatpush.msra.mxu0 %v7318
  %v7320 = vand.u32 %v7275, 4294901760
  %7321 = vmatpush.msra.mxu0 %v7320
  %v7322 = vand.u32 %v740, 4294901760
  %v7323 = vsub.f32 %v740, %v7322
  %v7324 = vand.u32 %v7323, 4294901760
  %v7325 = vsub.f32 %v7323, %v7324
  %v7326 = vand.u32 %v7325, 4294901760
  %7327 = vmatmul.f32.gmra.mxu0 %v7326
  %v7328 = vpop.f32.mrf.mxu0
  %v7329 = vadd.f32 0.0, %v7328
  %v7330 = vand.u32 %v743, 4294901760
  %v7331 = vsub.f32 %v743, %v7330
  %v7332 = vand.u32 %v7331, 4294901760
  %v7333 = vsub.f32 %v7331, %v7332
  %v7334 = vand.u32 %v7333, 4294901760
  %7335 = vmatmul.f32.gmra.mxu0 %v7334
  %v7336 = vpop.f32.mrf.mxu0
  %v7337 = vadd.f32 0.0, %v7336
  %v7338 = vand.u32 %v746, 4294901760
  %v7339 = vsub.f32 %v746, %v7338
  %v7340 = vand.u32 %v7339, 4294901760
  %v7341 = vsub.f32 %v7339, %v7340
  %v7342 = vand.u32 %v7341, 4294901760
  %7343 = vmatmul.f32.gmra.mxu0 %v7342
  %v7344 = vpop.f32.mrf.mxu0
  %v7345 = vadd.f32 0.0, %v7344
  %v7346 = vand.u32 %v749, 4294901760
  %v7347 = vsub.f32 %v749, %v7346
  %v7348 = vand.u32 %v7347, 4294901760
  %v7349 = vsub.f32 %v7347, %v7348
  %v7350 = vand.u32 %v7349, 4294901760
  %7351 = vmatmul.f32.gmra.mxu0 %v7350
  %v7352 = vpop.f32.mrf.mxu0
  %v7353 = vadd.f32 0.0, %v7352
  %7354 = vdwg.mxu0
  %7355 = vmatpush.msra.mxu0 0.0
  %7356 = vmatpush.msra.mxu0 0.0
  %7357 = vmatpush.msra.mxu0 0.0
  %7358 = vmatpush.msra.mxu0 0.0
  %7359 = vmatpush.msra.mxu0 0.0
  %7360 = vmatpush.msra.mxu0 0.0
  %7361 = vmatpush.msra.mxu0 0.0
  %7362 = vmatpush.msra.mxu0 0.0
  %v7363 = vand.u32 %v7296, 4294901760
  %v7364 = vsub.f32 %v7296, %v7363
  %v7365 = vand.u32 %v7364, 4294901760
  %v7366 = vsub.f32 %v7364, %v7365
  %v7367 = vand.u32 %v7366, 4294901760
  %7368 = vmatpush.msra.mxu0 %v7367
  %v7369 = vand.u32 %v7293, 4294901760
  %v7370 = vsub.f32 %v7293, %v7369
  %v7371 = vand.u32 %v7370, 4294901760
  %v7372 = vsub.f32 %v7370, %v7371
  %v7373 = vand.u32 %v7372, 4294901760
  %7374 = vmatpush.msra.mxu0 %v7373
  %v7375 = vand.u32 %v7290, 4294901760
  %v7376 = vsub.f32 %v7290, %v7375
  %v7377 = vand.u32 %v7376, 4294901760
  %v7378 = vsub.f32 %v7376, %v7377
  %v7379 = vand.u32 %v7378, 4294901760
  %7380 = vmatpush.msra.mxu0 %v7379
  %v7381 = vand.u32 %v7287, 4294901760
  %v7382 = vsub.f32 %v7287, %v7381
  %v7383 = vand.u32 %v7382, 4294901760
  %v7384 = vsub.f32 %v7382, %v7383
  %v7385 = vand.u32 %v7384, 4294901760
  %7386 = vmatpush.msra.mxu0 %v7385
  %v7387 = vand.u32 %v7284, 4294901760
  %v7388 = vsub.f32 %v7284, %v7387
  %v7389 = vand.u32 %v7388, 4294901760
  %v7390 = vsub.f32 %v7388, %v7389
  %v7391 = vand.u32 %v7390, 4294901760
  %7392 = vmatpush.msra.mxu0 %v7391
  %v7393 = vand.u32 %v7281, 4294901760
  %v7394 = vsub.f32 %v7281, %v7393
  %v7395 = vand.u32 %v7394, 4294901760
  %v7396 = vsub.f32 %v7394, %v7395
  %v7397 = vand.u32 %v7396, 4294901760
  %7398 = vmatpush.msra.mxu0 %v7397
  %v7399 = vand.u32 %v7278, 4294901760
  %v7400 = vsub.f32 %v7278, %v7399
  %v7401 = vand.u32 %v7400, 4294901760
  %v7402 = vsub.f32 %v7400, %v7401
  %v7403 = vand.u32 %v7402, 4294901760
  %7404 = vmatpush.msra.mxu0 %v7403
  %v7405 = vand.u32 %v7275, 4294901760
  %v7406 = vsub.f32 %v7275, %v7405
  %v7407 = vand.u32 %v7406, 4294901760
  %v7408 = vsub.f32 %v7406, %v7407
  %v7409 = vand.u32 %v7408, 4294901760
  %7410 = vmatpush.msra.mxu0 %v7409
  %v7411 = vand.u32 %v740, 4294901760
  %7412 = vmatmul.f32.gmra.mxu0 %v7411
  %v7413 = vpop.f32.mrf.mxu0
  %v7414 = vadd.f32 %v7329, %v7413
  %v7415 = vand.u32 %v743, 4294901760
  %7416 = vmatmul.f32.gmra.mxu0 %v7415
  %v7417 = vpop.f32.mrf.mxu0
  %v7418 = vadd.f32 %v7337, %v7417
  %v7419 = vand.u32 %v746, 4294901760
  %7420 = vmatmul.f32.gmra.mxu0 %v7419
  %v7421 = vpop.f32.mrf.mxu0
  %v7422 = vadd.f32 %v7345, %v7421
  %v7423 = vand.u32 %v749, 4294901760
  %7424 = vmatmul.f32.gmra.mxu0 %v7423
  %v7425 = vpop.f32.mrf.mxu0
  %v7426 = vadd.f32 %v7353, %v7425
  %7427 = vdwg.mxu0
  %7428 = vmatpush.msra.mxu0 0.0
  %7429 = vmatpush.msra.mxu0 0.0
  %7430 = vmatpush.msra.mxu0 0.0
  %7431 = vmatpush.msra.mxu0 0.0
  %7432 = vmatpush.msra.mxu0 0.0
  %7433 = vmatpush.msra.mxu0 0.0
  %7434 = vmatpush.msra.mxu0 0.0
  %7435 = vmatpush.msra.mxu0 0.0
  %v7436 = vand.u32 %v7296, 4294901760
  %v7437 = vsub.f32 %v7296, %v7436
  %7438 = vmatpush.msra.mxu0 %v7437
  %v7439 = vand.u32 %v7293, 4294901760
  %v7440 = vsub.f32 %v7293, %v7439
  %7441 = vmatpush.msra.mxu0 %v7440
  %v7442 = vand.u32 %v7290, 4294901760
  %v7443 = vsub.f32 %v7290, %v7442
  %7444 = vmatpush.msra.mxu0 %v7443
  %v7445 = vand.u32 %v7287, 4294901760
  %v7446 = vsub.f32 %v7287, %v7445
  %7447 = vmatpush.msra.mxu0 %v7446
  %v7448 = vand.u32 %v7284, 4294901760
  %v7449 = vsub.f32 %v7284, %v7448
  %7450 = vmatpush.msra.mxu0 %v7449
  %v7451 = vand.u32 %v7281, 4294901760
  %v7452 = vsub.f32 %v7281, %v7451
  %7453 = vmatpush.msra.mxu0 %v7452
  %v7454 = vand.u32 %v7278, 4294901760
  %v7455 = vsub.f32 %v7278, %v7454
  %7456 = vmatpush.msra.mxu0 %v7455
  %v7457 = vand.u32 %v7275, 4294901760
  %v7458 = vsub.f32 %v7275, %v7457
  %7459 = vmatpush.msra.mxu0 %v7458
  %v7460 = vand.u32 %v740, 4294901760
  %v7461 = vsub.f32 %v740, %v7460
  %7462 = vmatmul.f32.gmra.mxu0 %v7461
  %v7463 = vpop.f32.mrf.mxu0
  %v7464 = vadd.f32 %v7414, %v7463
  %v7465 = vand.u32 %v743, 4294901760
  %v7466 = vsub.f32 %v743, %v7465
  %7467 = vmatmul.f32.gmra.mxu0 %v7466
  %v7468 = vpop.f32.mrf.mxu0
  %v7469 = vadd.f32 %v7418, %v7468
  %v7470 = vand.u32 %v746, 4294901760
  %v7471 = vsub.f32 %v746, %v7470
  %7472 = vmatmul.f32.gmra.mxu0 %v7471
  %v7473 = vpop.f32.mrf.mxu0
  %v7474 = vadd.f32 %v7422, %v7473
  %v7475 = vand.u32 %v749, 4294901760
  %v7476 = vsub.f32 %v749, %v7475
  %7477 = vmatmul.f32.gmra.mxu0 %v7476
  %v7478 = vpop.f32.mrf.mxu0
  %v7479 = vadd.f32 %v7426, %v7478
  %7480 = vdwg.mxu0
  %7481 = vmatpush.msra.mxu0 0.0
  %7482 = vmatpush.msra.mxu0 0.0
  %7483 = vmatpush.msra.mxu0 0.0
  %7484 = vmatpush.msra.mxu0 0.0
  %7485 = vmatpush.msra.mxu0 0.0
  %7486 = vmatpush.msra.mxu0 0.0
  %7487 = vmatpush.msra.mxu0 0.0
  %7488 = vmatpush.msra.mxu0 0.0
  %v7489 = vand.u32 %v7296, 4294901760
  %7490 = vmatpush.msra.mxu0 %v7489
  %v7491 = vand.u32 %v7293, 4294901760
  %7492 = vmatpush.msra.mxu0 %v7491
  %v7493 = vand.u32 %v7290, 4294901760
  %7494 = vmatpush.msra.mxu0 %v7493
  %v7495 = vand.u32 %v7287, 4294901760
  %7496 = vmatpush.msra.mxu0 %v7495
  %v7497 = vand.u32 %v7284, 4294901760
  %7498 = vmatpush.msra.mxu0 %v7497
  %v7499 = vand.u32 %v7281, 4294901760
  %7500 = vmatpush.msra.mxu0 %v7499
  %v7501 = vand.u32 %v7278, 4294901760
  %7502 = vmatpush.msra.mxu0 %v7501
  %v7503 = vand.u32 %v7275, 4294901760
  %7504 = vmatpush.msra.mxu0 %v7503
  %v7505 = vand.u32 %v740, 4294901760
  %v7506 = vsub.f32 %v740, %v7505
  %v7507 = vand.u32 %v7506, 4294901760
  %7508 = vmatmul.f32.gmra.mxu0 %v7507
  %v7509 = vpop.f32.mrf.mxu0
  %v7510 = vadd.f32 %v7464, %v7509
  %v7511 = vand.u32 %v743, 4294901760
  %v7512 = vsub.f32 %v743, %v7511
  %v7513 = vand.u32 %v7512, 4294901760
  %7514 = vmatmul.f32.gmra.mxu0 %v7513
  %v7515 = vpop.f32.mrf.mxu0
  %v7516 = vadd.f32 %v7469, %v7515
  %v7517 = vand.u32 %v746, 4294901760
  %v7518 = vsub.f32 %v746, %v7517
  %v7519 = vand.u32 %v7518, 4294901760
  %7520 = vmatmul.f32.gmra.mxu0 %v7519
  %v7521 = vpop.f32.mrf.mxu0
  %v7522 = vadd.f32 %v7474, %v7521
  %v7523 = vand.u32 %v749, 4294901760
  %v7524 = vsub.f32 %v749, %v7523
  %v7525 = vand.u32 %v7524, 4294901760
  %7526 = vmatmul.f32.gmra.mxu0 %v7525
  %v7527 = vpop.f32.mrf.mxu0
  %v7528 = vadd.f32 %v7479, %v7527
  %7529 = vdwg.mxu0
  %7530 = vmatpush.msra.mxu0 0.0
  %7531 = vmatpush.msra.mxu0 0.0
  %7532 = vmatpush.msra.mxu0 0.0
  %7533 = vmatpush.msra.mxu0 0.0
  %7534 = vmatpush.msra.mxu0 0.0
  %7535 = vmatpush.msra.mxu0 0.0
  %7536 = vmatpush.msra.mxu0 0.0
  %7537 = vmatpush.msra.mxu0 0.0
  %v7538 = vand.u32 %v7296, 4294901760
  %v7539 = vsub.f32 %v7296, %v7538
  %v7540 = vand.u32 %v7539, 4294901760
  %7541 = vmatpush.msra.mxu0 %v7540
  %v7542 = vand.u32 %v7293, 4294901760
  %v7543 = vsub.f32 %v7293, %v7542
  %v7544 = vand.u32 %v7543, 4294901760
  %7545 = vmatpush.msra.mxu0 %v7544
  %v7546 = vand.u32 %v7290, 4294901760
  %v7547 = vsub.f32 %v7290, %v7546
  %v7548 = vand.u32 %v7547, 4294901760
  %7549 = vmatpush.msra.mxu0 %v7548
  %v7550 = vand.u32 %v7287, 4294901760
  %v7551 = vsub.f32 %v7287, %v7550
  %v7552 = vand.u32 %v7551, 4294901760
  %7553 = vmatpush.msra.mxu0 %v7552
  %v7554 = vand.u32 %v7284, 4294901760
  %v7555 = vsub.f32 %v7284, %v7554
  %v7556 = vand.u32 %v7555, 4294901760
  %7557 = vmatpush.msra.mxu0 %v7556
  %v7558 = vand.u32 %v7281, 4294901760
  %v7559 = vsub.f32 %v7281, %v7558
  %v7560 = vand.u32 %v7559, 4294901760
  %7561 = vmatpush.msra.mxu0 %v7560
  %v7562 = vand.u32 %v7278, 4294901760
  %v7563 = vsub.f32 %v7278, %v7562
  %v7564 = vand.u32 %v7563, 4294901760
  %7565 = vmatpush.msra.mxu0 %v7564
  %v7566 = vand.u32 %v7275, 4294901760
  %v7567 = vsub.f32 %v7275, %v7566
  %v7568 = vand.u32 %v7567, 4294901760
  %7569 = vmatpush.msra.mxu0 %v7568
  %v7570 = vand.u32 %v740, 4294901760
  %7571 = vmatmul.f32.gmra.mxu0 %v7570
  %v7572 = vpop.f32.mrf.mxu0
  %v7573 = vadd.f32 %v7510, %v7572
  %v7574 = vand.u32 %v743, 4294901760
  %7575 = vmatmul.f32.gmra.mxu0 %v7574
  %v7576 = vpop.f32.mrf.mxu0
  %v7577 = vadd.f32 %v7516, %v7576
  %v7578 = vand.u32 %v746, 4294901760
  %7579 = vmatmul.f32.gmra.mxu0 %v7578
  %v7580 = vpop.f32.mrf.mxu0
  %v7581 = vadd.f32 %v7522, %v7580
  %v7582 = vand.u32 %v749, 4294901760
  %7583 = vmatmul.f32.gmra.mxu0 %v7582
  %v7584 = vpop.f32.mrf.mxu0
  %v7585 = vadd.f32 %v7528, %v7584
  %7586 = vdwg.mxu0
  %7587 = vmatpush.msra.mxu0 0.0
  %7588 = vmatpush.msra.mxu0 0.0
  %7589 = vmatpush.msra.mxu0 0.0
  %7590 = vmatpush.msra.mxu0 0.0
  %7591 = vmatpush.msra.mxu0 0.0
  %7592 = vmatpush.msra.mxu0 0.0
  %7593 = vmatpush.msra.mxu0 0.0
  %7594 = vmatpush.msra.mxu0 0.0
  %v7595 = vand.u32 %v7296, 4294901760
  %7596 = vmatpush.msra.mxu0 %v7595
  %v7597 = vand.u32 %v7293, 4294901760
  %7598 = vmatpush.msra.mxu0 %v7597
  %v7599 = vand.u32 %v7290, 4294901760
  %7600 = vmatpush.msra.mxu0 %v7599
  %v7601 = vand.u32 %v7287, 4294901760
  %7602 = vmatpush.msra.mxu0 %v7601
  %v7603 = vand.u32 %v7284, 4294901760
  %7604 = vmatpush.msra.mxu0 %v7603
  %v7605 = vand.u32 %v7281, 4294901760
  %7606 = vmatpush.msra.mxu0 %v7605
  %v7607 = vand.u32 %v7278, 4294901760
  %7608 = vmatpush.msra.mxu0 %v7607
  %v7609 = vand.u32 %v7275, 4294901760
  %7610 = vmatpush.msra.mxu0 %v7609
  %v7611 = vand.u32 %v740, 4294901760
  %7612 = vmatmul.f32.gmra.mxu0 %v7611
  %v7613 = vpop.f32.mrf.mxu0
  %v7614 = vadd.f32 %v7573, %v7613
  %v7615 = vand.u32 %v743, 4294901760
  %7616 = vmatmul.f32.gmra.mxu0 %v7615
  %v7617 = vpop.f32.mrf.mxu0
  %v7618 = vadd.f32 %v7577, %v7617
  %v7619 = vand.u32 %v746, 4294901760
  %7620 = vmatmul.f32.gmra.mxu0 %v7619
  %v7621 = vpop.f32.mrf.mxu0
  %v7622 = vadd.f32 %v7581, %v7621
  %v7623 = vand.u32 %v749, 4294901760
  %7624 = vmatmul.f32.gmra.mxu0 %v7623
  %v7625 = vpop.f32.mrf.mxu0
  %v7626 = vadd.f32 %v7585, %v7625
  %7627 = vdwg.mxu0
  %v7628 = vadd.f32 %v6533, %v7614
  %v7629 = vadd.f32 %v6534, %v7618
  %v7630 = vadd.f32 %v7628, %v7622
  %v7631 = vadd.f32 %v7629, %v7626
  %7634 = vrot.lane.b32.xlu0 %v7628, 5
  %v7635 = vpop.permute.xlu0 %7634
  %7636 = vrot.lane.b32.xlu0 %v7629, 5
  %v7637 = vpop.permute.xlu0 %7636
  %7642 = vrot.lane.b32.xlu0 %v7630, 10
  %v7643 = vpop.permute.xlu0 %7642
  %7644 = vrot.lane.b32.xlu0 %v7631, 10
  %v7645 = vpop.permute.xlu0 %7644
  %v7648 = vsel %vm521, %v6683, %v7635
  %v7649 = vsel %vm521, %v6684, %v7637
  %v7650 = vsel %vm1103, %v7648, %v7643
  %v7651 = vsel %vm1103, %v7649, %v7645
  %v7653 = vsel %vm1107, %v7650, 0
  %v7656 = vsel %vm1107, %v7651, 0
  %7658 = vmatpush.msra.mxu0 0.0
  %7659 = vmatpush.msra.mxu0 0.0
  %7660 = vmatpush.msra.mxu0 0.0
  %7661 = vmatpush.msra.mxu0 0.0
  %7662 = vmatpush.msra.mxu0 0.0
  %7663 = vmatpush.msra.mxu0 0.0
  %7664 = vmatpush.msra.mxu0 0.0
  %7665 = vmatpush.msra.mxu0 0.0
  %7666 = vmatpush.msra.mxu0 0.0
  %7667 = vmatpush.msra.mxu0 0.0
  %7668 = vmatpush.msra.mxu0 0.0
  %7669 = vmatpush.msra.mxu0 0.0
  %7670 = vmatpush.msra.mxu0 0.0
  %7671 = vmatpush.msra.mxu0 0.0
  %7672 = vmatpush.msra.mxu0 %v1116
  %7673 = vmatpush.msra.mxu0 %v79
  %7674 = vmatmul.f32.gmra.mxu0 %v7653
  %v7675 = vpop.f32.mrf.mxu0
  %v7676 = vadd.f32 %v1106, %v7675
  %7677 = vmatmul.f32.gmra.mxu0 %v7656
  %v7678 = vpop.f32.mrf.mxu0
  %v7679 = vadd.f32 %v1106, %v7678
  %7680 = vdwg.mxu0
  %v7681 = vxor.u32 %v7676, 2147483648
  %v7682 = vxor.u32 %v7679, 2147483648
  %v7683 = vmul.f32 %v7681, 1.442695
  %v7684 = vpow.pop %v7683
  %v7685 = vmul.f32 %v7682, 1.442695
  %v7686 = vpow.pop %v7685
  %v7687 = vadd.f32 %v7684, 1.0
  %v7688 = vadd.f32 %v7686, 1.0
  %v7689 = vrcp.pop %v7687
  %v7690 = vmul.f32 %v7687, %v7689
  %v7691 = vsub.f32 1.0, %v7690
  %v7692 = vmul.f32 %v7689, %v7691
  %v7693 = vadd.f32 %v7689, %v7692
  %vm7694 = vweird.f32 %v7687
  %vm7695 = vweird.f32 %v7689
  %vm7696 = vmor %vm7694, %vm7695
  %v7697 = vsel %vm7696, %v7689, %v7693
  %v7698 = vand.u32 2147483647, %v7687
  %vm7699 = vcmp.eq.f32.partialorder %v7698, 8.507059e+37
  %v7700 = vand.u32 %v7687, 2147483648
  %v7701 = vor.u32 1.1754944e-38, %v7700
  %v7702 = vsel %vm7699, %v7701, %v7697
  %v7703 = vmul.f32 1.0, %v7702
  %v7704 = vrcp.pop %v7688
  %v7705 = vmul.f32 %v7688, %v7704
  %v7706 = vsub.f32 1.0, %v7705
  %v7707 = vmul.f32 %v7704, %v7706
  %v7708 = vadd.f32 %v7704, %v7707
  %vm7709 = vweird.f32 %v7688
  %vm7710 = vweird.f32 %v7704
  %vm7711 = vmor %vm7709, %vm7710
  %v7712 = vsel %vm7711, %v7704, %v7708
  %v7713 = vand.u32 2147483647, %v7688
  %vm7714 = vcmp.eq.f32.partialorder %v7713, 8.507059e+37
  %v7715 = vand.u32 %v7688, 2147483648
  %v7716 = vor.u32 1.1754944e-38, %v7715
  %v7717 = vsel %vm7714, %v7716, %v7712
  %v7718 = vmul.f32 1.0, %v7717
  %7721 = vrot.lane.b32.xlu0 %v6683, 5
  %v7722 = vpop.permute.xlu0 %7721
  %7723 = vrot.lane.b32.xlu0 %v6684, 5
  %v7724 = vpop.permute.xlu0 %7723
  %v7727 = vmul.f32 %v7703, %v7722
  %v7728 = vmul.f32 %v7718, %v7724
  %7731 = vrot.lane.b32.xlu0 %v7727, 123
  %v7732 = vpop.permute.xlu0 %7731
  %7733 = vrot.lane.b32.xlu0 %v7728, 123
  %v7734 = vpop.permute.xlu0 %7733
  %v7737 = vsel %vm521, %v7732, %v7635
  %v7738 = vsel %vm521, %v7734, %v7637
  %v7739 = vsel %vm1103, %v7737, %v7643
  %v7740 = vsel %vm1103, %v7738, %v7645
  %v7742 = vsel %vm1107, %v7739, 0
  %v7745 = vsel %vm1107, %v7740, 0
  %7747 = vmatpush.msra.mxu0 0.0
  %7748 = vmatpush.msra.mxu0 0.0
  %7749 = vmatpush.msra.mxu0 0.0
  %7750 = vmatpush.msra.mxu0 0.0
  %7751 = vmatpush.msra.mxu0 0.0
  %7752 = vmatpush.msra.mxu0 0.0
  %7753 = vmatpush.msra.mxu0 0.0
  %7754 = vmatpush.msra.mxu0 0.0
  %7755 = vmatpush.msra.mxu0 0.0
  %7756 = vmatpush.msra.mxu0 0.0
  %7757 = vmatpush.msra.mxu0 0.0
  %7758 = vmatpush.msra.mxu0 0.0
  %7759 = vmatpush.msra.mxu0 0.0
  %7760 = vmatpush.msra.mxu0 0.0
  %7761 = vmatpush.msra.mxu0 %v1201
  %7762 = vmatpush.msra.mxu0 %v81
  %7763 = vmatmul.f32.gmra.mxu0 %v7742
  %v7764 = vpop.f32.mrf.mxu0
  %v7765 = vadd.f32 %v1193, %v7764
  %7766 = vmatmul.f32.gmra.mxu0 %v7745
  %v7767 = vpop.f32.mrf.mxu0
  %v7768 = vadd.f32 %v1193, %v7767
  %7769 = vdwg.mxu0
  %v7770 = vtanh.pop %v7765
  %v7771 = vtanh.pop %v7768
  %v7772 = vsub.f32 1.0, %v7703
  %v7773 = vsub.f32 1.0, %v7718
  %v7774 = vmul.f32 %v7772, %v6683
  %v7775 = vmul.f32 %v7773, %v6684
  %v7776 = vmul.f32 %v7703, %v7770
  %v7777 = vmul.f32 %v7718, %v7771
  %v7778 = vadd.f32 %v7774, %v7776
  %v7779 = vadd.f32 %v7775, %v7777
  %7780 = vmatpush.msra.mxu0 0.0
  %7781 = vmatpush.msra.mxu0 0.0
  %7782 = vmatpush.msra.mxu0 0.0
  %7783 = vmatpush.msra.mxu0 0.0
  %7784 = vmatpush.msra.mxu0 0.0
  %7785 = vmatpush.msra.mxu0 0.0
  %7786 = vmatpush.msra.mxu0 0.0
  %7787 = vmatpush.msra.mxu0 0.0
  %7788 = vmatpush.msra.mxu0 0.0
  %7789 = vmatpush.msra.mxu0 0.0
  %7790 = vmatpush.msra.mxu0 0.0
  %7791 = vmatpush.msra.mxu0 0.0
  %v7792 = vand.u32 %v7779, 4294901760
  %7793 = vmatpush.msra.mxu0 %v7792
  %v7794 = vand.u32 %v7778, 4294901760
  %7795 = vmatpush.msra.mxu0 %v7794
  %v7796 = vand.u32 %v6684, 4294901760
  %7797 = vmatpush.msra.mxu0 %v7796
  %v7798 = vand.u32 %v6683, 4294901760
  %7799 = vmatpush.msra.mxu0 %v7798
  %v7800 = vand.u32 %v148, 4294901760
  %v7801 = vsub.f32 %v148, %v7800
  %v7802 = vand.u32 %v7801, 4294901760
  %v7803 = vsub.f32 %v7801, %v7802
  %v7804 = vand.u32 %v7803, 4294901760
  %7805 = vmatmul.f32.gmra.mxu0 %v7804
  %v7806 = vpop.f32.mrf.mxu0
  %v7807 = vadd.f32 0.0, %v7806
  %v7808 = vand.u32 %v151, 4294901760
  %v7809 = vsub.f32 %v151, %v7808
  %v7810 = vand.u32 %v7809, 4294901760
  %v7811 = vsub.f32 %v7809, %v7810
  %v7812 = vand.u32 %v7811, 4294901760
  %7813 = vmatmul.f32.gmra.mxu0 %v7812
  %v7814 = vpop.f32.mrf.mxu0
  %v7815 = vadd.f32 0.0, %v7814
  %v7816 = vand.u32 %v154, 4294901760
  %v7817 = vsub.f32 %v154, %v7816
  %v7818 = vand.u32 %v7817, 4294901760
  %v7819 = vsub.f32 %v7817, %v7818
  %v7820 = vand.u32 %v7819, 4294901760
  %7821 = vmatmul.f32.gmra.mxu0 %v7820
  %v7822 = vpop.f32.mrf.mxu0
  %v7823 = vadd.f32 0.0, %v7822
  %v7824 = vand.u32 %v157, 4294901760
  %v7825 = vsub.f32 %v157, %v7824
  %v7826 = vand.u32 %v7825, 4294901760
  %v7827 = vsub.f32 %v7825, %v7826
  %v7828 = vand.u32 %v7827, 4294901760
  %7829 = vmatmul.f32.gmra.mxu0 %v7828
  %v7830 = vpop.f32.mrf.mxu0
  %v7831 = vadd.f32 0.0, %v7830
  %v7832 = vand.u32 %v160, 4294901760
  %v7833 = vsub.f32 %v160, %v7832
  %v7834 = vand.u32 %v7833, 4294901760
  %v7835 = vsub.f32 %v7833, %v7834
  %v7836 = vand.u32 %v7835, 4294901760
  %7837 = vmatmul.f32.gmra.mxu0 %v7836
  %v7838 = vpop.f32.mrf.mxu0
  %v7839 = vadd.f32 0.0, %v7838
  %v7840 = vand.u32 %v163, 4294901760
  %v7841 = vsub.f32 %v163, %v7840
  %v7842 = vand.u32 %v7841, 4294901760
  %v7843 = vsub.f32 %v7841, %v7842
  %v7844 = vand.u32 %v7843, 4294901760
  %7845 = vmatmul.f32.gmra.mxu0 %v7844
  %v7846 = vpop.f32.mrf.mxu0
  %v7847 = vadd.f32 0.0, %v7846
  %v7848 = vand.u32 %v166, 4294901760
  %v7849 = vsub.f32 %v166, %v7848
  %v7850 = vand.u32 %v7849, 4294901760
  %v7851 = vsub.f32 %v7849, %v7850
  %v7852 = vand.u32 %v7851, 4294901760
  %7853 = vmatmul.f32.gmra.mxu0 %v7852
  %v7854 = vpop.f32.mrf.mxu0
  %v7855 = vadd.f32 0.0, %v7854
  %v7856 = vand.u32 %v169, 4294901760
  %v7857 = vsub.f32 %v169, %v7856
  %v7858 = vand.u32 %v7857, 4294901760
  %v7859 = vsub.f32 %v7857, %v7858
  %v7860 = vand.u32 %v7859, 4294901760
  %7861 = vmatmul.f32.gmra.mxu0 %v7860
  %v7862 = vpop.f32.mrf.mxu0
  %v7863 = vadd.f32 0.0, %v7862
  %7864 = vdwg.mxu0
  %7865 = vmatpush.msra.mxu0 0.0
  %7866 = vmatpush.msra.mxu0 0.0
  %7867 = vmatpush.msra.mxu0 0.0
  %7868 = vmatpush.msra.mxu0 0.0
  %7869 = vmatpush.msra.mxu0 0.0
  %7870 = vmatpush.msra.mxu0 0.0
  %7871 = vmatpush.msra.mxu0 0.0
  %7872 = vmatpush.msra.mxu0 0.0
  %7873 = vmatpush.msra.mxu0 0.0
  %7874 = vmatpush.msra.mxu0 0.0
  %7875 = vmatpush.msra.mxu0 0.0
  %7876 = vmatpush.msra.mxu0 0.0
  %v7877 = vand.u32 %v7779, 4294901760
  %v7878 = vsub.f32 %v7779, %v7877
  %v7879 = vand.u32 %v7878, 4294901760
  %v7880 = vsub.f32 %v7878, %v7879
  %v7881 = vand.u32 %v7880, 4294901760
  %7882 = vmatpush.msra.mxu0 %v7881
  %v7883 = vand.u32 %v7778, 4294901760
  %v7884 = vsub.f32 %v7778, %v7883
  %v7885 = vand.u32 %v7884, 4294901760
  %v7886 = vsub.f32 %v7884, %v7885
  %v7887 = vand.u32 %v7886, 4294901760
  %7888 = vmatpush.msra.mxu0 %v7887
  %v7889 = vand.u32 %v6684, 4294901760
  %v7890 = vsub.f32 %v6684, %v7889
  %v7891 = vand.u32 %v7890, 4294901760
  %v7892 = vsub.f32 %v7890, %v7891
  %v7893 = vand.u32 %v7892, 4294901760
  %7894 = vmatpush.msra.mxu0 %v7893
  %v7895 = vand.u32 %v6683, 4294901760
  %v7896 = vsub.f32 %v6683, %v7895
  %v7897 = vand.u32 %v7896, 4294901760
  %v7898 = vsub.f32 %v7896, %v7897
  %v7899 = vand.u32 %v7898, 4294901760
  %7900 = vmatpush.msra.mxu0 %v7899
  %v7901 = vand.u32 %v148, 4294901760
  %7902 = vmatmul.f32.gmra.mxu0 %v7901
  %v7903 = vpop.f32.mrf.mxu0
  %v7904 = vadd.f32 %v7807, %v7903
  %v7905 = vand.u32 %v151, 4294901760
  %7906 = vmatmul.f32.gmra.mxu0 %v7905
  %v7907 = vpop.f32.mrf.mxu0
  %v7908 = vadd.f32 %v7815, %v7907
  %v7909 = vand.u32 %v154, 4294901760
  %7910 = vmatmul.f32.gmra.mxu0 %v7909
  %v7911 = vpop.f32.mrf.mxu0
  %v7912 = vadd.f32 %v7823, %v7911
  %v7913 = vand.u32 %v157, 4294901760
  %7914 = vmatmul.f32.gmra.mxu0 %v7913
  %v7915 = vpop.f32.mrf.mxu0
  %v7916 = vadd.f32 %v7831, %v7915
  %v7917 = vand.u32 %v160, 4294901760
  %7918 = vmatmul.f32.gmra.mxu0 %v7917
  %v7919 = vpop.f32.mrf.mxu0
  %v7920 = vadd.f32 %v7839, %v7919
  %v7921 = vand.u32 %v163, 4294901760
  %7922 = vmatmul.f32.gmra.mxu0 %v7921
  %v7923 = vpop.f32.mrf.mxu0
  %v7924 = vadd.f32 %v7847, %v7923
  %v7925 = vand.u32 %v166, 4294901760
  %7926 = vmatmul.f32.gmra.mxu0 %v7925
  %v7927 = vpop.f32.mrf.mxu0
  %v7928 = vadd.f32 %v7855, %v7927
  %v7929 = vand.u32 %v169, 4294901760
  %7930 = vmatmul.f32.gmra.mxu0 %v7929
  %v7931 = vpop.f32.mrf.mxu0
  %v7932 = vadd.f32 %v7863, %v7931
  %7933 = vdwg.mxu0
  %7934 = vmatpush.msra.mxu0 0.0
  %7935 = vmatpush.msra.mxu0 0.0
  %7936 = vmatpush.msra.mxu0 0.0
  %7937 = vmatpush.msra.mxu0 0.0
  %7938 = vmatpush.msra.mxu0 0.0
  %7939 = vmatpush.msra.mxu0 0.0
  %7940 = vmatpush.msra.mxu0 0.0
  %7941 = vmatpush.msra.mxu0 0.0
  %7942 = vmatpush.msra.mxu0 0.0
  %7943 = vmatpush.msra.mxu0 0.0
  %7944 = vmatpush.msra.mxu0 0.0
  %7945 = vmatpush.msra.mxu0 0.0
  %v7946 = vand.u32 %v7779, 4294901760
  %v7947 = vsub.f32 %v7779, %v7946
  %7948 = vmatpush.msra.mxu0 %v7947
  %v7949 = vand.u32 %v7778, 4294901760
  %v7950 = vsub.f32 %v7778, %v7949
  %7951 = vmatpush.msra.mxu0 %v7950
  %v7952 = vand.u32 %v6684, 4294901760
  %v7953 = vsub.f32 %v6684, %v7952
  %7954 = vmatpush.msra.mxu0 %v7953
  %v7955 = vand.u32 %v6683, 4294901760
  %v7956 = vsub.f32 %v6683, %v7955
  %7957 = vmatpush.msra.mxu0 %v7956
  %v7958 = vand.u32 %v148, 4294901760
  %v7959 = vsub.f32 %v148, %v7958
  %7960 = vmatmul.f32.gmra.mxu0 %v7959
  %v7961 = vpop.f32.mrf.mxu0
  %v7962 = vadd.f32 %v7904, %v7961
  %v7963 = vand.u32 %v151, 4294901760
  %v7964 = vsub.f32 %v151, %v7963
  %7965 = vmatmul.f32.gmra.mxu0 %v7964
  %v7966 = vpop.f32.mrf.mxu0
  %v7967 = vadd.f32 %v7908, %v7966
  %v7968 = vand.u32 %v154, 4294901760
  %v7969 = vsub.f32 %v154, %v7968
  %7970 = vmatmul.f32.gmra.mxu0 %v7969
  %v7971 = vpop.f32.mrf.mxu0
  %v7972 = vadd.f32 %v7912, %v7971
  %v7973 = vand.u32 %v157, 4294901760
  %v7974 = vsub.f32 %v157, %v7973
  %7975 = vmatmul.f32.gmra.mxu0 %v7974
  %v7976 = vpop.f32.mrf.mxu0
  %v7977 = vadd.f32 %v7916, %v7976
  %v7978 = vand.u32 %v160, 4294901760
  %v7979 = vsub.f32 %v160, %v7978
  %7980 = vmatmul.f32.gmra.mxu0 %v7979
  %v7981 = vpop.f32.mrf.mxu0
  %v7982 = vadd.f32 %v7920, %v7981
  %v7983 = vand.u32 %v163, 4294901760
  %v7984 = vsub.f32 %v163, %v7983
  %7985 = vmatmul.f32.gmra.mxu0 %v7984
  %v7986 = vpop.f32.mrf.mxu0
  %v7987 = vadd.f32 %v7924, %v7986
  %v7988 = vand.u32 %v166, 4294901760
  %v7989 = vsub.f32 %v166, %v7988
  %7990 = vmatmul.f32.gmra.mxu0 %v7989
  %v7991 = vpop.f32.mrf.mxu0
  %v7992 = vadd.f32 %v7928, %v7991
  %v7993 = vand.u32 %v169, 4294901760
  %v7994 = vsub.f32 %v169, %v7993
  %7995 = vmatmul.f32.gmra.mxu0 %v7994
  %v7996 = vpop.f32.mrf.mxu0
  %v7997 = vadd.f32 %v7932, %v7996
  %7998 = vdwg.mxu0
  %7999 = vmatpush.msra.mxu0 0.0
  %8000 = vmatpush.msra.mxu0 0.0
  %8001 = vmatpush.msra.mxu0 0.0
  %8002 = vmatpush.msra.mxu0 0.0
  %8003 = vmatpush.msra.mxu0 0.0
  %8004 = vmatpush.msra.mxu0 0.0
  %8005 = vmatpush.msra.mxu0 0.0
  %8006 = vmatpush.msra.mxu0 0.0
  %8007 = vmatpush.msra.mxu0 0.0
  %8008 = vmatpush.msra.mxu0 0.0
  %8009 = vmatpush.msra.mxu0 0.0
  %8010 = vmatpush.msra.mxu0 0.0
  %v8011 = vand.u32 %v7779, 4294901760
  %8012 = vmatpush.msra.mxu0 %v8011
  %v8013 = vand.u32 %v7778, 4294901760
  %8014 = vmatpush.msra.mxu0 %v8013
  %v8015 = vand.u32 %v6684, 4294901760
  %8016 = vmatpush.msra.mxu0 %v8015
  %v8017 = vand.u32 %v6683, 4294901760
  %8018 = vmatpush.msra.mxu0 %v8017
  %v8019 = vand.u32 %v148, 4294901760
  %v8020 = vsub.f32 %v148, %v8019
  %v8021 = vand.u32 %v8020, 4294901760
  %8022 = vmatmul.f32.gmra.mxu0 %v8021
  %v8023 = vpop.f32.mrf.mxu0
  %v8024 = vadd.f32 %v7962, %v8023
  %v8025 = vand.u32 %v151, 4294901760
  %v8026 = vsub.f32 %v151, %v8025
  %v8027 = vand.u32 %v8026, 4294901760
  %8028 = vmatmul.f32.gmra.mxu0 %v8027
  %v8029 = vpop.f32.mrf.mxu0
  %v8030 = vadd.f32 %v7967, %v8029
  %v8031 = vand.u32 %v154, 4294901760
  %v8032 = vsub.f32 %v154, %v8031
  %v8033 = vand.u32 %v8032, 4294901760
  %8034 = vmatmul.f32.gmra.mxu0 %v8033
  %v8035 = vpop.f32.mrf.mxu0
  %v8036 = vadd.f32 %v7972, %v8035
  %v8037 = vand.u32 %v157, 4294901760
  %v8038 = vsub.f32 %v157, %v8037
  %v8039 = vand.u32 %v8038, 4294901760
  %8040 = vmatmul.f32.gmra.mxu0 %v8039
  %v8041 = vpop.f32.mrf.mxu0
  %v8042 = vadd.f32 %v7977, %v8041
  %v8043 = vand.u32 %v160, 4294901760
  %v8044 = vsub.f32 %v160, %v8043
  %v8045 = vand.u32 %v8044, 4294901760
  %8046 = vmatmul.f32.gmra.mxu0 %v8045
  %v8047 = vpop.f32.mrf.mxu0
  %v8048 = vadd.f32 %v7982, %v8047
  %v8049 = vand.u32 %v163, 4294901760
  %v8050 = vsub.f32 %v163, %v8049
  %v8051 = vand.u32 %v8050, 4294901760
  %8052 = vmatmul.f32.gmra.mxu0 %v8051
  %v8053 = vpop.f32.mrf.mxu0
  %v8054 = vadd.f32 %v7987, %v8053
  %v8055 = vand.u32 %v166, 4294901760
  %v8056 = vsub.f32 %v166, %v8055
  %v8057 = vand.u32 %v8056, 4294901760
  %8058 = vmatmul.f32.gmra.mxu0 %v8057
  %v8059 = vpop.f32.mrf.mxu0
  %v8060 = vadd.f32 %v7992, %v8059
  %v8061 = vand.u32 %v169, 4294901760
  %v8062 = vsub.f32 %v169, %v8061
  %v8063 = vand.u32 %v8062, 4294901760
  %8064 = vmatmul.f32.gmra.mxu0 %v8063
  %v8065 = vpop.f32.mrf.mxu0
  %v8066 = vadd.f32 %v7997, %v8065
  %8067 = vdwg.mxu0
  %8068 = vmatpush.msra.mxu0 0.0
  %8069 = vmatpush.msra.mxu0 0.0
  %8070 = vmatpush.msra.mxu0 0.0
  %8071 = vmatpush.msra.mxu0 0.0
  %8072 = vmatpush.msra.mxu0 0.0
  %8073 = vmatpush.msra.mxu0 0.0
  %8074 = vmatpush.msra.mxu0 0.0
  %8075 = vmatpush.msra.mxu0 0.0
  %8076 = vmatpush.msra.mxu0 0.0
  %8077 = vmatpush.msra.mxu0 0.0
  %8078 = vmatpush.msra.mxu0 0.0
  %8079 = vmatpush.msra.mxu0 0.0
  %v8080 = vand.u32 %v7779, 4294901760
  %v8081 = vsub.f32 %v7779, %v8080
  %v8082 = vand.u32 %v8081, 4294901760
  %8083 = vmatpush.msra.mxu0 %v8082
  %v8084 = vand.u32 %v7778, 4294901760
  %v8085 = vsub.f32 %v7778, %v8084
  %v8086 = vand.u32 %v8085, 4294901760
  %8087 = vmatpush.msra.mxu0 %v8086
  %v8088 = vand.u32 %v6684, 4294901760
  %v8089 = vsub.f32 %v6684, %v8088
  %v8090 = vand.u32 %v8089, 4294901760
  %8091 = vmatpush.msra.mxu0 %v8090
  %v8092 = vand.u32 %v6683, 4294901760
  %v8093 = vsub.f32 %v6683, %v8092
  %v8094 = vand.u32 %v8093, 4294901760
  %8095 = vmatpush.msra.mxu0 %v8094
  %v8096 = vand.u32 %v148, 4294901760
  %8097 = vmatmul.f32.gmra.mxu0 %v8096
  %v8098 = vpop.f32.mrf.mxu0
  %v8099 = vadd.f32 %v8024, %v8098
  %v8100 = vand.u32 %v151, 4294901760
  %8101 = vmatmul.f32.gmra.mxu0 %v8100
  %v8102 = vpop.f32.mrf.mxu0
  %v8103 = vadd.f32 %v8030, %v8102
  %v8104 = vand.u32 %v154, 4294901760
  %8105 = vmatmul.f32.gmra.mxu0 %v8104
  %v8106 = vpop.f32.mrf.mxu0
  %v8107 = vadd.f32 %v8036, %v8106
  %v8108 = vand.u32 %v157, 4294901760
  %8109 = vmatmul.f32.gmra.mxu0 %v8108
  %v8110 = vpop.f32.mrf.mxu0
  %v8111 = vadd.f32 %v8042, %v8110
  %v8112 = vand.u32 %v160, 4294901760
  %8113 = vmatmul.f32.gmra.mxu0 %v8112
  %v8114 = vpop.f32.mrf.mxu0
  %v8115 = vadd.f32 %v8048, %v8114
  %v8116 = vand.u32 %v163, 4294901760
  %8117 = vmatmul.f32.gmra.mxu0 %v8116
  %v8118 = vpop.f32.mrf.mxu0
  %v8119 = vadd.f32 %v8054, %v8118
  %v8120 = vand.u32 %v166, 4294901760
  %8121 = vmatmul.f32.gmra.mxu0 %v8120
  %v8122 = vpop.f32.mrf.mxu0
  %v8123 = vadd.f32 %v8060, %v8122
  %v8124 = vand.u32 %v169, 4294901760
  %8125 = vmatmul.f32.gmra.mxu0 %v8124
  %v8126 = vpop.f32.mrf.mxu0
  %v8127 = vadd.f32 %v8066, %v8126
  %8128 = vdwg.mxu0
  %8129 = vmatpush.msra.mxu0 0.0
  %8130 = vmatpush.msra.mxu0 0.0
  %8131 = vmatpush.msra.mxu0 0.0
  %8132 = vmatpush.msra.mxu0 0.0
  %8133 = vmatpush.msra.mxu0 0.0
  %8134 = vmatpush.msra.mxu0 0.0
  %8135 = vmatpush.msra.mxu0 0.0
  %8136 = vmatpush.msra.mxu0 0.0
  %8137 = vmatpush.msra.mxu0 0.0
  %8138 = vmatpush.msra.mxu0 0.0
  %8139 = vmatpush.msra.mxu0 0.0
  %8140 = vmatpush.msra.mxu0 0.0
  %v8141 = vand.u32 %v7779, 4294901760
  %8142 = vmatpush.msra.mxu0 %v8141
  %v8143 = vand.u32 %v7778, 4294901760
  %8144 = vmatpush.msra.mxu0 %v8143
  %v8145 = vand.u32 %v6684, 4294901760
  %8146 = vmatpush.msra.mxu0 %v8145
  %v8147 = vand.u32 %v6683, 4294901760
  %8148 = vmatpush.msra.mxu0 %v8147
  %v8149 = vand.u32 %v148, 4294901760
  %8150 = vmatmul.f32.gmra.mxu0 %v8149
  %v8151 = vpop.f32.mrf.mxu0
  %v8152 = vadd.f32 %v8099, %v8151
  %v8153 = vand.u32 %v151, 4294901760
  %8154 = vmatmul.f32.gmra.mxu0 %v8153
  %v8155 = vpop.f32.mrf.mxu0
  %v8156 = vadd.f32 %v8103, %v8155
  %v8157 = vand.u32 %v154, 4294901760
  %8158 = vmatmul.f32.gmra.mxu0 %v8157
  %v8159 = vpop.f32.mrf.mxu0
  %v8160 = vadd.f32 %v8107, %v8159
  %v8161 = vand.u32 %v157, 4294901760
  %8162 = vmatmul.f32.gmra.mxu0 %v8161
  %v8163 = vpop.f32.mrf.mxu0
  %v8164 = vadd.f32 %v8111, %v8163
  %v8165 = vand.u32 %v160, 4294901760
  %8166 = vmatmul.f32.gmra.mxu0 %v8165
  %v8167 = vpop.f32.mrf.mxu0
  %v8168 = vadd.f32 %v8115, %v8167
  %v8169 = vand.u32 %v163, 4294901760
  %8170 = vmatmul.f32.gmra.mxu0 %v8169
  %v8171 = vpop.f32.mrf.mxu0
  %v8172 = vadd.f32 %v8119, %v8171
  %v8173 = vand.u32 %v166, 4294901760
  %8174 = vmatmul.f32.gmra.mxu0 %v8173
  %v8175 = vpop.f32.mrf.mxu0
  %v8176 = vadd.f32 %v8123, %v8175
  %v8177 = vand.u32 %v169, 4294901760
  %8178 = vmatmul.f32.gmra.mxu0 %v8177
  %v8179 = vpop.f32.mrf.mxu0
  %v8180 = vadd.f32 %v8127, %v8179
  %8181 = vdwg.mxu0
  %v8183 = vsel %vm521, %v8152, 0
  %v8186 = vsel %vm521, %v8156, 0
  %v8189 = vsel %vm521, %v8160, 0
  %v8192 = vsel %vm521, %v8164, 0
  %v8195 = vsel %vm521, %v8168, 0
  %v8198 = vsel %vm521, %v8172, 0
  %v8201 = vsel %vm521, %v8176, 0
  %v8204 = vsel %vm521, %v8180, 0
  %8206 = vmatpush.msra.mxu0 0.0
  %8207 = vmatpush.msra.mxu0 0.0
  %8208 = vmatpush.msra.mxu0 0.0
  %8209 = vmatpush.msra.mxu0 0.0
  %8210 = vmatpush.msra.mxu0 0.0
  %8211 = vmatpush.msra.mxu0 0.0
  %8212 = vmatpush.msra.mxu0 0.0
  %8213 = vmatpush.msra.mxu0 0.0
  %8214 = vmatpush.msra.mxu0 0.0
  %8215 = vmatpush.msra.mxu0 0.0
  %8216 = vmatpush.msra.mxu0 0.0
  %8217 = vmatpush.msra.mxu0 0.0
  %8218 = vmatpush.msra.mxu0 0.0
  %8219 = vmatpush.msra.mxu0 0.0
  %8220 = vmatpush.msra.mxu0 0.0
  %8221 = vmatpush.msra.mxu0 %v547
  %8222 = vmatmul.f32.gmra.mxu0 %v8183
  %v8223 = vpop.f32.mrf.mxu0
  %v8224 = vadd.f32 %v135, %v8223
  %8225 = vmatmul.f32.gmra.mxu0 %v8186
  %v8226 = vpop.f32.mrf.mxu0
  %v8227 = vadd.f32 %v138, %v8226
  %8228 = vmatmul.f32.gmra.mxu0 %v8189
  %v8229 = vpop.f32.mrf.mxu0
  %v8230 = vadd.f32 %v141, %v8229
  %8231 = vmatmul.f32.gmra.mxu0 %v8192
  %v8232 = vpop.f32.mrf.mxu0
  %v8233 = vadd.f32 %v144, %v8232
  %8234 = vmatmul.f32.gmra.mxu0 %v8195
  %v8235 = vpop.f32.mrf.mxu0
  %v8236 = vadd.f32 %v135, %v8235
  %8237 = vmatmul.f32.gmra.mxu0 %v8198
  %v8238 = vpop.f32.mrf.mxu0
  %v8239 = vadd.f32 %v138, %v8238
  %8240 = vmatmul.f32.gmra.mxu0 %v8201
  %v8241 = vpop.f32.mrf.mxu0
  %v8242 = vadd.f32 %v141, %v8241
  %8243 = vmatmul.f32.gmra.mxu0 %v8204
  %v8244 = vpop.f32.mrf.mxu0
  %v8245 = vadd.f32 %v144, %v8244
  %8246 = vdwg.mxu0
  %v8247 = vmax.f32 %v8224, 0.0
  %v8248 = vmax.f32 %v8227, 0.0
  %v8249 = vmax.f32 %v8230, 0.0
  %v8250 = vmax.f32 %v8233, 0.0
  %v8251 = vmax.f32 %v8236, 0.0
  %v8252 = vmax.f32 %v8239, 0.0
  %v8253 = vmax.f32 %v8242, 0.0
  %v8254 = vmax.f32 %v8245, 0.0
  %v8256 = vsel %vm599, %v8247, 0
  %v8259 = vsel %vm599, %v8248, 0
  %v8262 = vsel %vm599, %v8249, 0
  %v8265 = vsel %vm599, %v8250, 0
  %v8268 = vsel %vm599, %v8251, 0
  %v8271 = vsel %vm599, %v8252, 0
  %v8274 = vsel %vm599, %v8253, 0
  %v8277 = vsel %vm599, %v8254, 0
  %8279 = vmatpush.msra.mxu0 0.0
  %8280 = vmatpush.msra.mxu0 0.0
  %8281 = vmatpush.msra.mxu0 0.0
  %8282 = vmatpush.msra.mxu0 0.0
  %8283 = vmatpush.msra.mxu0 0.0
  %8284 = vmatpush.msra.mxu0 0.0
  %8285 = vmatpush.msra.mxu0 0.0
  %8286 = vmatpush.msra.mxu0 0.0
  %8287 = vmatpush.msra.mxu0 %v68
  %8288 = vmatpush.msra.mxu0 %v67
  %8289 = vmatpush.msra.mxu0 %v66
  %8290 = vmatpush.msra.mxu0 %v65
  %8291 = vmatpush.msra.mxu0 %v64
  %8292 = vmatpush.msra.mxu0 %v63
  %8293 = vmatpush.msra.mxu0 %v62
  %8294 = vmatpush.msra.mxu0 %v61
  %8295 = vmatmul.f32.gmra.mxu0 %v8256
  %v8296 = vpop.f32.mrf.mxu0
  %v8297 = vadd.f32 %v598, %v8296
  %8298 = vmatmul.f32.gmra.mxu0 %v8259
  %v8299 = vpop.f32.mrf.mxu0
  %v8300 = vadd.f32 %v598, %v8299
  %8301 = vmatmul.f32.gmra.mxu0 %v8262
  %v8302 = vpop.f32.mrf.mxu0
  %v8303 = vadd.f32 %v598, %v8302
  %8304 = vmatmul.f32.gmra.mxu0 %v8265
  %v8305 = vpop.f32.mrf.mxu0
  %v8306 = vadd.f32 %v598, %v8305
  %8307 = vmatmul.f32.gmra.mxu0 %v8268
  %v8308 = vpop.f32.mrf.mxu0
  %v8309 = vadd.f32 %v598, %v8308
  %8310 = vmatmul.f32.gmra.mxu0 %v8271
  %v8311 = vpop.f32.mrf.mxu0
  %v8312 = vadd.f32 %v598, %v8311
  %8313 = vmatmul.f32.gmra.mxu0 %v8274
  %v8314 = vpop.f32.mrf.mxu0
  %v8315 = vadd.f32 %v598, %v8314
  %8316 = vmatmul.f32.gmra.mxu0 %v8277
  %v8317 = vpop.f32.mrf.mxu0
  %v8318 = vadd.f32 %v598, %v8317
  %8319 = vdwg.mxu0
  %v8320 = vmax.f32 %v8297, 0.0
  %v8321 = vmax.f32 %v8300, 0.0
  %v8322 = vmax.f32 %v8303, 0.0
  %v8323 = vmax.f32 %v8306, 0.0
  %v8324 = vmax.f32 %v8309, 0.0
  %v8325 = vmax.f32 %v8312, 0.0
  %v8326 = vmax.f32 %v8315, 0.0
  %v8327 = vmax.f32 %v8318, 0.0
  %v8329 = vsel %vm599, %v8320, 0
  %v8332 = vsel %vm599, %v8321, 0
  %v8335 = vsel %vm599, %v8322, 0
  %v8338 = vsel %vm599, %v8323, 0
  %v8341 = vsel %vm599, %v8324, 0
  %v8344 = vsel %vm599, %v8325, 0
  %v8347 = vsel %vm599, %v8326, 0
  %v8350 = vsel %vm599, %v8327, 0
  %8352 = vmatpush.msra.mxu0 0.0
  %8353 = vmatpush.msra.mxu0 0.0
  %8354 = vmatpush.msra.mxu0 0.0
  %8355 = vmatpush.msra.mxu0 0.0
  %8356 = vmatpush.msra.mxu0 0.0
  %8357 = vmatpush.msra.mxu0 0.0
  %8358 = vmatpush.msra.mxu0 0.0
  %8359 = vmatpush.msra.mxu0 0.0
  %8360 = vmatpush.msra.mxu0 %v77
  %8361 = vmatpush.msra.mxu0 %v76
  %8362 = vmatpush.msra.mxu0 %v75
  %8363 = vmatpush.msra.mxu0 %v74
  %8364 = vmatpush.msra.mxu0 %v73
  %8365 = vmatpush.msra.mxu0 %v72
  %8366 = vmatpush.msra.mxu0 %v71
  %8367 = vmatpush.msra.mxu0 %v70
  %8368 = vmatmul.f32.gmra.mxu0 %v8329
  %v8369 = vpop.f32.mrf.mxu0
  %v8370 = vadd.f32 %v673, %v8369
  %8371 = vmatmul.f32.gmra.mxu0 %v8332
  %v8372 = vpop.f32.mrf.mxu0
  %v8373 = vadd.f32 %v673, %v8372
  %8374 = vmatmul.f32.gmra.mxu0 %v8335
  %v8375 = vpop.f32.mrf.mxu0
  %v8376 = vadd.f32 %v673, %v8375
  %8377 = vmatmul.f32.gmra.mxu0 %v8338
  %v8378 = vpop.f32.mrf.mxu0
  %v8379 = vadd.f32 %v673, %v8378
  %8380 = vmatmul.f32.gmra.mxu0 %v8341
  %v8381 = vpop.f32.mrf.mxu0
  %v8382 = vadd.f32 %v673, %v8381
  %8383 = vmatmul.f32.gmra.mxu0 %v8344
  %v8384 = vpop.f32.mrf.mxu0
  %v8385 = vadd.f32 %v673, %v8384
  %8386 = vmatmul.f32.gmra.mxu0 %v8347
  %v8387 = vpop.f32.mrf.mxu0
  %v8388 = vadd.f32 %v673, %v8387
  %8389 = vmatmul.f32.gmra.mxu0 %v8350
  %v8390 = vpop.f32.mrf.mxu0
  %v8391 = vadd.f32 %v673, %v8390
  %8392 = vdwg.mxu0
  %8393 = vmatpush.msra.mxu0 0.0
  %8394 = vmatpush.msra.mxu0 0.0
  %8395 = vmatpush.msra.mxu0 0.0
  %8396 = vmatpush.msra.mxu0 0.0
  %8397 = vmatpush.msra.mxu0 0.0
  %8398 = vmatpush.msra.mxu0 0.0
  %8399 = vmatpush.msra.mxu0 0.0
  %8400 = vmatpush.msra.mxu0 0.0
  %v8401 = vand.u32 %v8391, 4294901760
  %8402 = vmatpush.msra.mxu0 %v8401
  %v8403 = vand.u32 %v8388, 4294901760
  %8404 = vmatpush.msra.mxu0 %v8403
  %v8405 = vand.u32 %v8385, 4294901760
  %8406 = vmatpush.msra.mxu0 %v8405
  %v8407 = vand.u32 %v8382, 4294901760
  %8408 = vmatpush.msra.mxu0 %v8407
  %v8409 = vand.u32 %v8379, 4294901760
  %8410 = vmatpush.msra.mxu0 %v8409
  %v8411 = vand.u32 %v8376, 4294901760
  %8412 = vmatpush.msra.mxu0 %v8411
  %v8413 = vand.u32 %v8373, 4294901760
  %8414 = vmatpush.msra.mxu0 %v8413
  %v8415 = vand.u32 %v8370, 4294901760
  %8416 = vmatpush.msra.mxu0 %v8415
  %v8417 = vand.u32 %v740, 4294901760
  %v8418 = vsub.f32 %v740, %v8417
  %v8419 = vand.u32 %v8418, 4294901760
  %v8420 = vsub.f32 %v8418, %v8419
  %v8421 = vand.u32 %v8420, 4294901760
  %8422 = vmatmul.f32.gmra.mxu0 %v8421
  %v8423 = vpop.f32.mrf.mxu0
  %v8424 = vadd.f32 0.0, %v8423
  %v8425 = vand.u32 %v743, 4294901760
  %v8426 = vsub.f32 %v743, %v8425
  %v8427 = vand.u32 %v8426, 4294901760
  %v8428 = vsub.f32 %v8426, %v8427
  %v8429 = vand.u32 %v8428, 4294901760
  %8430 = vmatmul.f32.gmra.mxu0 %v8429
  %v8431 = vpop.f32.mrf.mxu0
  %v8432 = vadd.f32 0.0, %v8431
  %v8433 = vand.u32 %v746, 4294901760
  %v8434 = vsub.f32 %v746, %v8433
  %v8435 = vand.u32 %v8434, 4294901760
  %v8436 = vsub.f32 %v8434, %v8435
  %v8437 = vand.u32 %v8436, 4294901760
  %8438 = vmatmul.f32.gmra.mxu0 %v8437
  %v8439 = vpop.f32.mrf.mxu0
  %v8440 = vadd.f32 0.0, %v8439
  %v8441 = vand.u32 %v749, 4294901760
  %v8442 = vsub.f32 %v749, %v8441
  %v8443 = vand.u32 %v8442, 4294901760
  %v8444 = vsub.f32 %v8442, %v8443
  %v8445 = vand.u32 %v8444, 4294901760
  %8446 = vmatmul.f32.gmra.mxu0 %v8445
  %v8447 = vpop.f32.mrf.mxu0
  %v8448 = vadd.f32 0.0, %v8447
  %8449 = vdwg.mxu0
  %8450 = vmatpush.msra.mxu0 0.0
  %8451 = vmatpush.msra.mxu0 0.0
  %8452 = vmatpush.msra.mxu0 0.0
  %8453 = vmatpush.msra.mxu0 0.0
  %8454 = vmatpush.msra.mxu0 0.0
  %8455 = vmatpush.msra.mxu0 0.0
  %8456 = vmatpush.msra.mxu0 0.0
  %8457 = vmatpush.msra.mxu0 0.0
  %v8458 = vand.u32 %v8391, 4294901760
  %v8459 = vsub.f32 %v8391, %v8458
  %v8460 = vand.u32 %v8459, 4294901760
  %v8461 = vsub.f32 %v8459, %v8460
  %v8462 = vand.u32 %v8461, 4294901760
  %8463 = vmatpush.msra.mxu0 %v8462
  %v8464 = vand.u32 %v8388, 4294901760
  %v8465 = vsub.f32 %v8388, %v8464
  %v8466 = vand.u32 %v8465, 4294901760
  %v8467 = vsub.f32 %v8465, %v8466
  %v8468 = vand.u32 %v8467, 4294901760
  %8469 = vmatpush.msra.mxu0 %v8468
  %v8470 = vand.u32 %v8385, 4294901760
  %v8471 = vsub.f32 %v8385, %v8470
  %v8472 = vand.u32 %v8471, 4294901760
  %v8473 = vsub.f32 %v8471, %v8472
  %v8474 = vand.u32 %v8473, 4294901760
  %8475 = vmatpush.msra.mxu0 %v8474
  %v8476 = vand.u32 %v8382, 4294901760
  %v8477 = vsub.f32 %v8382, %v8476
  %v8478 = vand.u32 %v8477, 4294901760
  %v8479 = vsub.f32 %v8477, %v8478
  %v8480 = vand.u32 %v8479, 4294901760
  %8481 = vmatpush.msra.mxu0 %v8480
  %v8482 = vand.u32 %v8379, 4294901760
  %v8483 = vsub.f32 %v8379, %v8482
  %v8484 = vand.u32 %v8483, 4294901760
  %v8485 = vsub.f32 %v8483, %v8484
  %v8486 = vand.u32 %v8485, 4294901760
  %8487 = vmatpush.msra.mxu0 %v8486
  %v8488 = vand.u32 %v8376, 4294901760
  %v8489 = vsub.f32 %v8376, %v8488
  %v8490 = vand.u32 %v8489, 4294901760
  %v8491 = vsub.f32 %v8489, %v8490
  %v8492 = vand.u32 %v8491, 4294901760
  %8493 = vmatpush.msra.mxu0 %v8492
  %v8494 = vand.u32 %v8373, 4294901760
  %v8495 = vsub.f32 %v8373, %v8494
  %v8496 = vand.u32 %v8495, 4294901760
  %v8497 = vsub.f32 %v8495, %v8496
  %v8498 = vand.u32 %v8497, 4294901760
  %8499 = vmatpush.msra.mxu0 %v8498
  %v8500 = vand.u32 %v8370, 4294901760
  %v8501 = vsub.f32 %v8370, %v8500
  %v8502 = vand.u32 %v8501, 4294901760
  %v8503 = vsub.f32 %v8501, %v8502
  %v8504 = vand.u32 %v8503, 4294901760
  %8505 = vmatpush.msra.mxu0 %v8504
  %v8506 = vand.u32 %v740, 4294901760
  %8507 = vmatmul.f32.gmra.mxu0 %v8506
  %v8508 = vpop.f32.mrf.mxu0
  %v8509 = vadd.f32 %v8424, %v8508
  %v8510 = vand.u32 %v743, 4294901760
  %8511 = vmatmul.f32.gmra.mxu0 %v8510
  %v8512 = vpop.f32.mrf.mxu0
  %v8513 = vadd.f32 %v8432, %v8512
  %v8514 = vand.u32 %v746, 4294901760
  %8515 = vmatmul.f32.gmra.mxu0 %v8514
  %v8516 = vpop.f32.mrf.mxu0
  %v8517 = vadd.f32 %v8440, %v8516
  %v8518 = vand.u32 %v749, 4294901760
  %8519 = vmatmul.f32.gmra.mxu0 %v8518
  %v8520 = vpop.f32.mrf.mxu0
  %v8521 = vadd.f32 %v8448, %v8520
  %8522 = vdwg.mxu0
  %8523 = vmatpush.msra.mxu0 0.0
  %8524 = vmatpush.msra.mxu0 0.0
  %8525 = vmatpush.msra.mxu0 0.0
  %8526 = vmatpush.msra.mxu0 0.0
  %8527 = vmatpush.msra.mxu0 0.0
  %8528 = vmatpush.msra.mxu0 0.0
  %8529 = vmatpush.msra.mxu0 0.0
  %8530 = vmatpush.msra.mxu0 0.0
  %v8531 = vand.u32 %v8391, 4294901760
  %v8532 = vsub.f32 %v8391, %v8531
  %8533 = vmatpush.msra.mxu0 %v8532
  %v8534 = vand.u32 %v8388, 4294901760
  %v8535 = vsub.f32 %v8388, %v8534
  %8536 = vmatpush.msra.mxu0 %v8535
  %v8537 = vand.u32 %v8385, 4294901760
  %v8538 = vsub.f32 %v8385, %v8537
  %8539 = vmatpush.msra.mxu0 %v8538
  %v8540 = vand.u32 %v8382, 4294901760
  %v8541 = vsub.f32 %v8382, %v8540
  %8542 = vmatpush.msra.mxu0 %v8541
  %v8543 = vand.u32 %v8379, 4294901760
  %v8544 = vsub.f32 %v8379, %v8543
  %8545 = vmatpush.msra.mxu0 %v8544
  %v8546 = vand.u32 %v8376, 4294901760
  %v8547 = vsub.f32 %v8376, %v8546
  %8548 = vmatpush.msra.mxu0 %v8547
  %v8549 = vand.u32 %v8373, 4294901760
  %v8550 = vsub.f32 %v8373, %v8549
  %8551 = vmatpush.msra.mxu0 %v8550
  %v8552 = vand.u32 %v8370, 4294901760
  %v8553 = vsub.f32 %v8370, %v8552
  %8554 = vmatpush.msra.mxu0 %v8553
  %v8555 = vand.u32 %v740, 4294901760
  %v8556 = vsub.f32 %v740, %v8555
  %8557 = vmatmul.f32.gmra.mxu0 %v8556
  %v8558 = vpop.f32.mrf.mxu0
  %v8559 = vadd.f32 %v8509, %v8558
  %v8560 = vand.u32 %v743, 4294901760
  %v8561 = vsub.f32 %v743, %v8560
  %8562 = vmatmul.f32.gmra.mxu0 %v8561
  %v8563 = vpop.f32.mrf.mxu0
  %v8564 = vadd.f32 %v8513, %v8563
  %v8565 = vand.u32 %v746, 4294901760
  %v8566 = vsub.f32 %v746, %v8565
  %8567 = vmatmul.f32.gmra.mxu0 %v8566
  %v8568 = vpop.f32.mrf.mxu0
  %v8569 = vadd.f32 %v8517, %v8568
  %v8570 = vand.u32 %v749, 4294901760
  %v8571 = vsub.f32 %v749, %v8570
  %8572 = vmatmul.f32.gmra.mxu0 %v8571
  %v8573 = vpop.f32.mrf.mxu0
  %v8574 = vadd.f32 %v8521, %v8573
  %8575 = vdwg.mxu0
  %8576 = vmatpush.msra.mxu0 0.0
  %8577 = vmatpush.msra.mxu0 0.0
  %8578 = vmatpush.msra.mxu0 0.0
  %8579 = vmatpush.msra.mxu0 0.0
  %8580 = vmatpush.msra.mxu0 0.0
  %8581 = vmatpush.msra.mxu0 0.0
  %8582 = vmatpush.msra.mxu0 0.0
  %8583 = vmatpush.msra.mxu0 0.0
  %v8584 = vand.u32 %v8391, 4294901760
  %8585 = vmatpush.msra.mxu0 %v8584
  %v8586 = vand.u32 %v8388, 4294901760
  %8587 = vmatpush.msra.mxu0 %v8586
  %v8588 = vand.u32 %v8385, 4294901760
  %8589 = vmatpush.msra.mxu0 %v8588
  %v8590 = vand.u32 %v8382, 4294901760
  %8591 = vmatpush.msra.mxu0 %v8590
  %v8592 = vand.u32 %v8379, 4294901760
  %8593 = vmatpush.msra.mxu0 %v8592
  %v8594 = vand.u32 %v8376, 4294901760
  %8595 = vmatpush.msra.mxu0 %v8594
  %v8596 = vand.u32 %v8373, 4294901760
  %8597 = vmatpush.msra.mxu0 %v8596
  %v8598 = vand.u32 %v8370, 4294901760
  %8599 = vmatpush.msra.mxu0 %v8598
  %v8600 = vand.u32 %v740, 4294901760
  %v8601 = vsub.f32 %v740, %v8600
  %v8602 = vand.u32 %v8601, 4294901760
  %8603 = vmatmul.f32.gmra.mxu0 %v8602
  %v8604 = vpop.f32.mrf.mxu0
  %v8605 = vadd.f32 %v8559, %v8604
  %v8606 = vand.u32 %v743, 4294901760
  %v8607 = vsub.f32 %v743, %v8606
  %v8608 = vand.u32 %v8607, 4294901760
  %8609 = vmatmul.f32.gmra.mxu0 %v8608
  %v8610 = vpop.f32.mrf.mxu0
  %v8611 = vadd.f32 %v8564, %v8610
  %v8612 = vand.u32 %v746, 4294901760
  %v8613 = vsub.f32 %v746, %v8612
  %v8614 = vand.u32 %v8613, 4294901760
  %8615 = vmatmul.f32.gmra.mxu0 %v8614
  %v8616 = vpop.f32.mrf.mxu0
  %v8617 = vadd.f32 %v8569, %v8616
  %v8618 = vand.u32 %v749, 4294901760
  %v8619 = vsub.f32 %v749, %v8618
  %v8620 = vand.u32 %v8619, 4294901760
  %8621 = vmatmul.f32.gmra.mxu0 %v8620
  %v8622 = vpop.f32.mrf.mxu0
  %v8623 = vadd.f32 %v8574, %v8622
  %8624 = vdwg.mxu0
  %8625 = vmatpush.msra.mxu0 0.0
  %8626 = vmatpush.msra.mxu0 0.0
  %8627 = vmatpush.msra.mxu0 0.0
  %8628 = vmatpush.msra.mxu0 0.0
  %8629 = vmatpush.msra.mxu0 0.0
  %8630 = vmatpush.msra.mxu0 0.0
  %8631 = vmatpush.msra.mxu0 0.0
  %8632 = vmatpush.msra.mxu0 0.0
  %v8633 = vand.u32 %v8391, 4294901760
  %v8634 = vsub.f32 %v8391, %v8633
  %v8635 = vand.u32 %v8634, 4294901760
  %8636 = vmatpush.msra.mxu0 %v8635
  %v8637 = vand.u32 %v8388, 4294901760
  %v8638 = vsub.f32 %v8388, %v8637
  %v8639 = vand.u32 %v8638, 4294901760
  %8640 = vmatpush.msra.mxu0 %v8639
  %v8641 = vand.u32 %v8385, 4294901760
  %v8642 = vsub.f32 %v8385, %v8641
  %v8643 = vand.u32 %v8642, 4294901760
  %8644 = vmatpush.msra.mxu0 %v8643
  %v8645 = vand.u32 %v8382, 4294901760
  %v8646 = vsub.f32 %v8382, %v8645
  %v8647 = vand.u32 %v8646, 4294901760
  %8648 = vmatpush.msra.mxu0 %v8647
  %v8649 = vand.u32 %v8379, 4294901760
  %v8650 = vsub.f32 %v8379, %v8649
  %v8651 = vand.u32 %v8650, 4294901760
  %8652 = vmatpush.msra.mxu0 %v8651
  %v8653 = vand.u32 %v8376, 4294901760
  %v8654 = vsub.f32 %v8376, %v8653
  %v8655 = vand.u32 %v8654, 4294901760
  %8656 = vmatpush.msra.mxu0 %v8655
  %v8657 = vand.u32 %v8373, 4294901760
  %v8658 = vsub.f32 %v8373, %v8657
  %v8659 = vand.u32 %v8658, 4294901760
  %8660 = vmatpush.msra.mxu0 %v8659
  %v8661 = vand.u32 %v8370, 4294901760
  %v8662 = vsub.f32 %v8370, %v8661
  %v8663 = vand.u32 %v8662, 4294901760
  %8664 = vmatpush.msra.mxu0 %v8663
  %v8665 = vand.u32 %v740, 4294901760
  %8666 = vmatmul.f32.gmra.mxu0 %v8665
  %v8667 = vpop.f32.mrf.mxu0
  %v8668 = vadd.f32 %v8605, %v8667
  %v8669 = vand.u32 %v743, 4294901760
  %8670 = vmatmul.f32.gmra.mxu0 %v8669
  %v8671 = vpop.f32.mrf.mxu0
  %v8672 = vadd.f32 %v8611, %v8671
  %v8673 = vand.u32 %v746, 4294901760
  %8674 = vmatmul.f32.gmra.mxu0 %v8673
  %v8675 = vpop.f32.mrf.mxu0
  %v8676 = vadd.f32 %v8617, %v8675
  %v8677 = vand.u32 %v749, 4294901760
  %8678 = vmatmul.f32.gmra.mxu0 %v8677
  %v8679 = vpop.f32.mrf.mxu0
  %v8680 = vadd.f32 %v8623, %v8679
  %8681 = vdwg.mxu0
  %8682 = vmatpush.msra.mxu0 0.0
  %8683 = vmatpush.msra.mxu0 0.0
  %8684 = vmatpush.msra.mxu0 0.0
  %8685 = vmatpush.msra.mxu0 0.0
  %8686 = vmatpush.msra.mxu0 0.0
  %8687 = vmatpush.msra.mxu0 0.0
  %8688 = vmatpush.msra.mxu0 0.0
  %8689 = vmatpush.msra.mxu0 0.0
  %v8690 = vand.u32 %v8391, 4294901760
  %8691 = vmatpush.msra.mxu0 %v8690
  %v8692 = vand.u32 %v8388, 4294901760
  %8693 = vmatpush.msra.mxu0 %v8692
  %v8694 = vand.u32 %v8385, 4294901760
  %8695 = vmatpush.msra.mxu0 %v8694
  %v8696 = vand.u32 %v8382, 4294901760
  %8697 = vmatpush.msra.mxu0 %v8696
  %v8698 = vand.u32 %v8379, 4294901760
  %8699 = vmatpush.msra.mxu0 %v8698
  %v8700 = vand.u32 %v8376, 4294901760
  %8701 = vmatpush.msra.mxu0 %v8700
  %v8702 = vand.u32 %v8373, 4294901760
  %8703 = vmatpush.msra.mxu0 %v8702
  %v8704 = vand.u32 %v8370, 4294901760
  %8705 = vmatpush.msra.mxu0 %v8704
  %v8706 = vand.u32 %v740, 4294901760
  %8707 = vmatmul.f32.gmra.mxu0 %v8706
  %v8708 = vpop.f32.mrf.mxu0
  %v8709 = vadd.f32 %v8668, %v8708
  %v8710 = vand.u32 %v743, 4294901760
  %8711 = vmatmul.f32.gmra.mxu0 %v8710
  %v8712 = vpop.f32.mrf.mxu0
  %v8713 = vadd.f32 %v8672, %v8712
  %v8714 = vand.u32 %v746, 4294901760
  %8715 = vmatmul.f32.gmra.mxu0 %v8714
  %v8716 = vpop.f32.mrf.mxu0
  %v8717 = vadd.f32 %v8676, %v8716
  %v8718 = vand.u32 %v749, 4294901760
  %8719 = vmatmul.f32.gmra.mxu0 %v8718
  %v8720 = vpop.f32.mrf.mxu0
  %v8721 = vadd.f32 %v8680, %v8720
  %8722 = vdwg.mxu0
  %v8723 = vadd.f32 %v7628, %v8709
  %v8724 = vadd.f32 %v7629, %v8713
  %v8725 = vadd.f32 %v8723, %v8717
  %v8726 = vadd.f32 %v8724, %v8721
  %8729 = vrot.lane.b32.xlu0 %v8723, 5
  %v8730 = vpop.permute.xlu0 %8729
  %8731 = vrot.lane.b32.xlu0 %v8724, 5
  %v8732 = vpop.permute.xlu0 %8731
  %8737 = vrot.lane.b32.xlu0 %v8725, 10
  %v8738 = vpop.permute.xlu0 %8737
  %8739 = vrot.lane.b32.xlu0 %v8726, 10
  %v8740 = vpop.permute.xlu0 %8739
  %v8743 = vsel %vm521, %v7778, %v8730
  %v8744 = vsel %vm521, %v7779, %v8732
  %v8745 = vsel %vm1103, %v8743, %v8738
  %v8746 = vsel %vm1103, %v8744, %v8740
  %v8748 = vsel %vm1107, %v8745, 0
  %v8751 = vsel %vm1107, %v8746, 0
  %8753 = vmatpush.msra.mxu0 0.0
  %8754 = vmatpush.msra.mxu0 0.0
  %8755 = vmatpush.msra.mxu0 0.0
  %8756 = vmatpush.msra.mxu0 0.0
  %8757 = vmatpush.msra.mxu0 0.0
  %8758 = vmatpush.msra.mxu0 0.0
  %8759 = vmatpush.msra.mxu0 0.0
  %8760 = vmatpush.msra.mxu0 0.0
  %8761 = vmatpush.msra.mxu0 0.0
  %8762 = vmatpush.msra.mxu0 0.0
  %8763 = vmatpush.msra.mxu0 0.0
  %8764 = vmatpush.msra.mxu0 0.0
  %8765 = vmatpush.msra.mxu0 0.0
  %8766 = vmatpush.msra.mxu0 0.0
  %8767 = vmatpush.msra.mxu0 %v1116
  %8768 = vmatpush.msra.mxu0 %v79
  %8769 = vmatmul.f32.gmra.mxu0 %v8748
  %v8770 = vpop.f32.mrf.mxu0
  %v8771 = vadd.f32 %v1106, %v8770
  %8772 = vmatmul.f32.gmra.mxu0 %v8751
  %v8773 = vpop.f32.mrf.mxu0
  %v8774 = vadd.f32 %v1106, %v8773
  %8775 = vdwg.mxu0
  %v8776 = vxor.u32 %v8771, 2147483648
  %v8777 = vxor.u32 %v8774, 2147483648
  %v8778 = vmul.f32 %v8776, 1.442695
  %v8779 = vpow.pop %v8778
  %v8780 = vmul.f32 %v8777, 1.442695
  %v8781 = vpow.pop %v8780
  %v8782 = vadd.f32 %v8779, 1.0
  %v8783 = vadd.f32 %v8781, 1.0
  %v8784 = vrcp.pop %v8782
  %v8785 = vmul.f32 %v8782, %v8784
  %v8786 = vsub.f32 1.0, %v8785
  %v8787 = vmul.f32 %v8784, %v8786
  %v8788 = vadd.f32 %v8784, %v8787
  %vm8789 = vweird.f32 %v8782
  %vm8790 = vweird.f32 %v8784
  %vm8791 = vmor %vm8789, %vm8790
  %v8792 = vsel %vm8791, %v8784, %v8788
  %v8793 = vand.u32 2147483647, %v8782
  %vm8794 = vcmp.eq.f32.partialorder %v8793, 8.507059e+37
  %v8795 = vand.u32 %v8782, 2147483648
  %v8796 = vor.u32 1.1754944e-38, %v8795
  %v8797 = vsel %vm8794, %v8796, %v8792
  %v8798 = vmul.f32 1.0, %v8797
  %v8799 = vrcp.pop %v8783
  %v8800 = vmul.f32 %v8783, %v8799
  %v8801 = vsub.f32 1.0, %v8800
  %v8802 = vmul.f32 %v8799, %v8801
  %v8803 = vadd.f32 %v8799, %v8802
  %vm8804 = vweird.f32 %v8783
  %vm8805 = vweird.f32 %v8799
  %vm8806 = vmor %vm8804, %vm8805
  %v8807 = vsel %vm8806, %v8799, %v8803
  %v8808 = vand.u32 2147483647, %v8783
  %vm8809 = vcmp.eq.f32.partialorder %v8808, 8.507059e+37
  %v8810 = vand.u32 %v8783, 2147483648
  %v8811 = vor.u32 1.1754944e-38, %v8810
  %v8812 = vsel %vm8809, %v8811, %v8807
  %v8813 = vmul.f32 1.0, %v8812
  %8816 = vrot.lane.b32.xlu0 %v7778, 5
  %v8817 = vpop.permute.xlu0 %8816
  %8818 = vrot.lane.b32.xlu0 %v7779, 5
  %v8819 = vpop.permute.xlu0 %8818
  %v8822 = vmul.f32 %v8798, %v8817
  %v8823 = vmul.f32 %v8813, %v8819
  %8826 = vrot.lane.b32.xlu0 %v8822, 123
  %v8827 = vpop.permute.xlu0 %8826
  %8828 = vrot.lane.b32.xlu0 %v8823, 123
  %v8829 = vpop.permute.xlu0 %8828
  %v8832 = vsel %vm521, %v8827, %v8730
  %v8833 = vsel %vm521, %v8829, %v8732
  %v8834 = vsel %vm1103, %v8832, %v8738
  %v8835 = vsel %vm1103, %v8833, %v8740
  %v8837 = vsel %vm1107, %v8834, 0
  %v8840 = vsel %vm1107, %v8835, 0
  %8842 = vmatpush.msra.mxu0 0.0
  %8843 = vmatpush.msra.mxu0 0.0
  %8844 = vmatpush.msra.mxu0 0.0
  %8845 = vmatpush.msra.mxu0 0.0
  %8846 = vmatpush.msra.mxu0 0.0
  %8847 = vmatpush.msra.mxu0 0.0
  %8848 = vmatpush.msra.mxu0 0.0
  %8849 = vmatpush.msra.mxu0 0.0
  %8850 = vmatpush.msra.mxu0 0.0
  %8851 = vmatpush.msra.mxu0 0.0
  %8852 = vmatpush.msra.mxu0 0.0
  %8853 = vmatpush.msra.mxu0 0.0
  %8854 = vmatpush.msra.mxu0 0.0
  %8855 = vmatpush.msra.mxu0 0.0
  %8856 = vmatpush.msra.mxu0 %v1201
  %8857 = vmatpush.msra.mxu0 %v81
  %8858 = vmatmul.f32.gmra.mxu0 %v8837
  %v8859 = vpop.f32.mrf.mxu0
  %v8860 = vadd.f32 %v1193, %v8859
  %8861 = vmatmul.f32.gmra.mxu0 %v8840
  %v8862 = vpop.f32.mrf.mxu0
  %v8863 = vadd.f32 %v1193, %v8862
  %8864 = vdwg.mxu0
  %v8865 = vtanh.pop %v8860
  %v8866 = vtanh.pop %v8863
  %v8867 = vsub.f32 1.0, %v8798
  %v8868 = vsub.f32 1.0, %v8813
  %v8869 = vmul.f32 %v8867, %v7778
  %v8870 = vmul.f32 %v8868, %v7779
  %v8871 = vmul.f32 %v8798, %v8865
  %v8872 = vmul.f32 %v8813, %v8866
  %v8873 = vadd.f32 %v8869, %v8871
  %v8874 = vadd.f32 %v8870, %v8872
  %8875 = vmatpush.msra.mxu0 0.0
  %8876 = vmatpush.msra.mxu0 0.0
  %8877 = vmatpush.msra.mxu0 0.0
  %8878 = vmatpush.msra.mxu0 0.0
  %8879 = vmatpush.msra.mxu0 0.0
  %8880 = vmatpush.msra.mxu0 0.0
  %8881 = vmatpush.msra.mxu0 0.0
  %8882 = vmatpush.msra.mxu0 0.0
  %8883 = vmatpush.msra.mxu0 0.0
  %8884 = vmatpush.msra.mxu0 0.0
  %8885 = vmatpush.msra.mxu0 0.0
  %8886 = vmatpush.msra.mxu0 0.0
  %v8887 = vand.u32 %v8874, 4294901760
  %8888 = vmatpush.msra.mxu0 %v8887
  %v8889 = vand.u32 %v8873, 4294901760
  %8890 = vmatpush.msra.mxu0 %v8889
  %v8891 = vand.u32 %v7779, 4294901760
  %8892 = vmatpush.msra.mxu0 %v8891
  %v8893 = vand.u32 %v7778, 4294901760
  %8894 = vmatpush.msra.mxu0 %v8893
  %v8895 = vand.u32 %v148, 4294901760
  %v8896 = vsub.f32 %v148, %v8895
  %v8897 = vand.u32 %v8896, 4294901760
  %v8898 = vsub.f32 %v8896, %v8897
  %v8899 = vand.u32 %v8898, 4294901760
  %8900 = vmatmul.f32.gmra.mxu0 %v8899
  %v8901 = vpop.f32.mrf.mxu0
  %v8902 = vadd.f32 0.0, %v8901
  %v8903 = vand.u32 %v151, 4294901760
  %v8904 = vsub.f32 %v151, %v8903
  %v8905 = vand.u32 %v8904, 4294901760
  %v8906 = vsub.f32 %v8904, %v8905
  %v8907 = vand.u32 %v8906, 4294901760
  %8908 = vmatmul.f32.gmra.mxu0 %v8907
  %v8909 = vpop.f32.mrf.mxu0
  %v8910 = vadd.f32 0.0, %v8909
  %v8911 = vand.u32 %v154, 4294901760
  %v8912 = vsub.f32 %v154, %v8911
  %v8913 = vand.u32 %v8912, 4294901760
  %v8914 = vsub.f32 %v8912, %v8913
  %v8915 = vand.u32 %v8914, 4294901760
  %8916 = vmatmul.f32.gmra.mxu0 %v8915
  %v8917 = vpop.f32.mrf.mxu0
  %v8918 = vadd.f32 0.0, %v8917
  %v8919 = vand.u32 %v157, 4294901760
  %v8920 = vsub.f32 %v157, %v8919
  %v8921 = vand.u32 %v8920, 4294901760
  %v8922 = vsub.f32 %v8920, %v8921
  %v8923 = vand.u32 %v8922, 4294901760
  %8924 = vmatmul.f32.gmra.mxu0 %v8923
  %v8925 = vpop.f32.mrf.mxu0
  %v8926 = vadd.f32 0.0, %v8925
  %v8927 = vand.u32 %v160, 4294901760
  %v8928 = vsub.f32 %v160, %v8927
  %v8929 = vand.u32 %v8928, 4294901760
  %v8930 = vsub.f32 %v8928, %v8929
  %v8931 = vand.u32 %v8930, 4294901760
  %8932 = vmatmul.f32.gmra.mxu0 %v8931
  %v8933 = vpop.f32.mrf.mxu0
  %v8934 = vadd.f32 0.0, %v8933
  %v8935 = vand.u32 %v163, 4294901760
  %v8936 = vsub.f32 %v163, %v8935
  %v8937 = vand.u32 %v8936, 4294901760
  %v8938 = vsub.f32 %v8936, %v8937
  %v8939 = vand.u32 %v8938, 4294901760
  %8940 = vmatmul.f32.gmra.mxu0 %v8939
  %v8941 = vpop.f32.mrf.mxu0
  %v8942 = vadd.f32 0.0, %v8941
  %v8943 = vand.u32 %v166, 4294901760
  %v8944 = vsub.f32 %v166, %v8943
  %v8945 = vand.u32 %v8944, 4294901760
  %v8946 = vsub.f32 %v8944, %v8945
  %v8947 = vand.u32 %v8946, 4294901760
  %8948 = vmatmul.f32.gmra.mxu0 %v8947
  %v8949 = vpop.f32.mrf.mxu0
  %v8950 = vadd.f32 0.0, %v8949
  %v8951 = vand.u32 %v169, 4294901760
  %v8952 = vsub.f32 %v169, %v8951
  %v8953 = vand.u32 %v8952, 4294901760
  %v8954 = vsub.f32 %v8952, %v8953
  %v8955 = vand.u32 %v8954, 4294901760
  %8956 = vmatmul.f32.gmra.mxu0 %v8955
  %v8957 = vpop.f32.mrf.mxu0
  %v8958 = vadd.f32 0.0, %v8957
  %8959 = vdwg.mxu0
  %8960 = vmatpush.msra.mxu0 0.0
  %8961 = vmatpush.msra.mxu0 0.0
  %8962 = vmatpush.msra.mxu0 0.0
  %8963 = vmatpush.msra.mxu0 0.0
  %8964 = vmatpush.msra.mxu0 0.0
  %8965 = vmatpush.msra.mxu0 0.0
  %8966 = vmatpush.msra.mxu0 0.0
  %8967 = vmatpush.msra.mxu0 0.0
  %8968 = vmatpush.msra.mxu0 0.0
  %8969 = vmatpush.msra.mxu0 0.0
  %8970 = vmatpush.msra.mxu0 0.0
  %8971 = vmatpush.msra.mxu0 0.0
  %v8972 = vand.u32 %v8874, 4294901760
  %v8973 = vsub.f32 %v8874, %v8972
  %v8974 = vand.u32 %v8973, 4294901760
  %v8975 = vsub.f32 %v8973, %v8974
  %v8976 = vand.u32 %v8975, 4294901760
  %8977 = vmatpush.msra.mxu0 %v8976
  %v8978 = vand.u32 %v8873, 4294901760
  %v8979 = vsub.f32 %v8873, %v8978
  %v8980 = vand.u32 %v8979, 4294901760
  %v8981 = vsub.f32 %v8979, %v8980
  %v8982 = vand.u32 %v8981, 4294901760
  %8983 = vmatpush.msra.mxu0 %v8982
  %v8984 = vand.u32 %v7779, 4294901760
  %v8985 = vsub.f32 %v7779, %v8984
  %v8986 = vand.u32 %v8985, 4294901760
  %v8987 = vsub.f32 %v8985, %v8986
  %v8988 = vand.u32 %v8987, 4294901760
  %8989 = vmatpush.msra.mxu0 %v8988
  %v8990 = vand.u32 %v7778, 4294901760
  %v8991 = vsub.f32 %v7778, %v8990
  %v8992 = vand.u32 %v8991, 4294901760
  %v8993 = vsub.f32 %v8991, %v8992
  %v8994 = vand.u32 %v8993, 4294901760
  %8995 = vmatpush.msra.mxu0 %v8994
  %v8996 = vand.u32 %v148, 4294901760
  %8997 = vmatmul.f32.gmra.mxu0 %v8996
  %v8998 = vpop.f32.mrf.mxu0
  %v8999 = vadd.f32 %v8902, %v8998
  %v9000 = vand.u32 %v151, 4294901760
  %9001 = vmatmul.f32.gmra.mxu0 %v9000
  %v9002 = vpop.f32.mrf.mxu0
  %v9003 = vadd.f32 %v8910, %v9002
  %v9004 = vand.u32 %v154, 4294901760
  %9005 = vmatmul.f32.gmra.mxu0 %v9004
  %v9006 = vpop.f32.mrf.mxu0
  %v9007 = vadd.f32 %v8918, %v9006
  %v9008 = vand.u32 %v157, 4294901760
  %9009 = vmatmul.f32.gmra.mxu0 %v9008
  %v9010 = vpop.f32.mrf.mxu0
  %v9011 = vadd.f32 %v8926, %v9010
  %v9012 = vand.u32 %v160, 4294901760
  %9013 = vmatmul.f32.gmra.mxu0 %v9012
  %v9014 = vpop.f32.mrf.mxu0
  %v9015 = vadd.f32 %v8934, %v9014
  %v9016 = vand.u32 %v163, 4294901760
  %9017 = vmatmul.f32.gmra.mxu0 %v9016
  %v9018 = vpop.f32.mrf.mxu0
  %v9019 = vadd.f32 %v8942, %v9018
  %v9020 = vand.u32 %v166, 4294901760
  %9021 = vmatmul.f32.gmra.mxu0 %v9020
  %v9022 = vpop.f32.mrf.mxu0
  %v9023 = vadd.f32 %v8950, %v9022
  %v9024 = vand.u32 %v169, 4294901760
  %9025 = vmatmul.f32.gmra.mxu0 %v9024
  %v9026 = vpop.f32.mrf.mxu0
  %v9027 = vadd.f32 %v8958, %v9026
  %9028 = vdwg.mxu0
  %9029 = vmatpush.msra.mxu0 0.0
  %9030 = vmatpush.msra.mxu0 0.0
  %9031 = vmatpush.msra.mxu0 0.0
  %9032 = vmatpush.msra.mxu0 0.0
  %9033 = vmatpush.msra.mxu0 0.0
  %9034 = vmatpush.msra.mxu0 0.0
  %9035 = vmatpush.msra.mxu0 0.0
  %9036 = vmatpush.msra.mxu0 0.0
  %9037 = vmatpush.msra.mxu0 0.0
  %9038 = vmatpush.msra.mxu0 0.0
  %9039 = vmatpush.msra.mxu0 0.0
  %9040 = vmatpush.msra.mxu0 0.0
  %v9041 = vand.u32 %v8874, 4294901760
  %v9042 = vsub.f32 %v8874, %v9041
  %9043 = vmatpush.msra.mxu0 %v9042
  %v9044 = vand.u32 %v8873, 4294901760
  %v9045 = vsub.f32 %v8873, %v9044
  %9046 = vmatpush.msra.mxu0 %v9045
  %v9047 = vand.u32 %v7779, 4294901760
  %v9048 = vsub.f32 %v7779, %v9047
  %9049 = vmatpush.msra.mxu0 %v9048
  %v9050 = vand.u32 %v7778, 4294901760
  %v9051 = vsub.f32 %v7778, %v9050
  %9052 = vmatpush.msra.mxu0 %v9051
  %v9053 = vand.u32 %v148, 4294901760
  %v9054 = vsub.f32 %v148, %v9053
  %9055 = vmatmul.f32.gmra.mxu0 %v9054
  %v9056 = vpop.f32.mrf.mxu0
  %v9057 = vadd.f32 %v8999, %v9056
  %v9058 = vand.u32 %v151, 4294901760
  %v9059 = vsub.f32 %v151, %v9058
  %9060 = vmatmul.f32.gmra.mxu0 %v9059
  %v9061 = vpop.f32.mrf.mxu0
  %v9062 = vadd.f32 %v9003, %v9061
  %v9063 = vand.u32 %v154, 4294901760
  %v9064 = vsub.f32 %v154, %v9063
  %9065 = vmatmul.f32.gmra.mxu0 %v9064
  %v9066 = vpop.f32.mrf.mxu0
  %v9067 = vadd.f32 %v9007, %v9066
  %v9068 = vand.u32 %v157, 4294901760
  %v9069 = vsub.f32 %v157, %v9068
  %9070 = vmatmul.f32.gmra.mxu0 %v9069
  %v9071 = vpop.f32.mrf.mxu0
  %v9072 = vadd.f32 %v9011, %v9071
  %v9073 = vand.u32 %v160, 4294901760
  %v9074 = vsub.f32 %v160, %v9073
  %9075 = vmatmul.f32.gmra.mxu0 %v9074
  %v9076 = vpop.f32.mrf.mxu0
  %v9077 = vadd.f32 %v9015, %v9076
  %v9078 = vand.u32 %v163, 4294901760
  %v9079 = vsub.f32 %v163, %v9078
  %9080 = vmatmul.f32.gmra.mxu0 %v9079
  %v9081 = vpop.f32.mrf.mxu0
  %v9082 = vadd.f32 %v9019, %v9081
  %v9083 = vand.u32 %v166, 4294901760
  %v9084 = vsub.f32 %v166, %v9083
  %9085 = vmatmul.f32.gmra.mxu0 %v9084
  %v9086 = vpop.f32.mrf.mxu0
  %v9087 = vadd.f32 %v9023, %v9086
  %v9088 = vand.u32 %v169, 4294901760
  %v9089 = vsub.f32 %v169, %v9088
  %9090 = vmatmul.f32.gmra.mxu0 %v9089
  %v9091 = vpop.f32.mrf.mxu0
  %v9092 = vadd.f32 %v9027, %v9091
  %9093 = vdwg.mxu0
  %9094 = vmatpush.msra.mxu0 0.0
  %9095 = vmatpush.msra.mxu0 0.0
  %9096 = vmatpush.msra.mxu0 0.0
  %9097 = vmatpush.msra.mxu0 0.0
  %9098 = vmatpush.msra.mxu0 0.0
  %9099 = vmatpush.msra.mxu0 0.0
  %9100 = vmatpush.msra.mxu0 0.0
  %9101 = vmatpush.msra.mxu0 0.0
  %9102 = vmatpush.msra.mxu0 0.0
  %9103 = vmatpush.msra.mxu0 0.0
  %9104 = vmatpush.msra.mxu0 0.0
  %9105 = vmatpush.msra.mxu0 0.0
  %v9106 = vand.u32 %v8874, 4294901760
  %9107 = vmatpush.msra.mxu0 %v9106
  %v9108 = vand.u32 %v8873, 4294901760
  %9109 = vmatpush.msra.mxu0 %v9108
  %v9110 = vand.u32 %v7779, 4294901760
  %9111 = vmatpush.msra.mxu0 %v9110
  %v9112 = vand.u32 %v7778, 4294901760
  %9113 = vmatpush.msra.mxu0 %v9112
  %v9114 = vand.u32 %v148, 4294901760
  %v9115 = vsub.f32 %v148, %v9114
  %v9116 = vand.u32 %v9115, 4294901760
  %9117 = vmatmul.f32.gmra.mxu0 %v9116
  %v9118 = vpop.f32.mrf.mxu0
  %v9119 = vadd.f32 %v9057, %v9118
  %v9120 = vand.u32 %v151, 4294901760
  %v9121 = vsub.f32 %v151, %v9120
  %v9122 = vand.u32 %v9121, 4294901760
  %9123 = vmatmul.f32.gmra.mxu0 %v9122
  %v9124 = vpop.f32.mrf.mxu0
  %v9125 = vadd.f32 %v9062, %v9124
  %v9126 = vand.u32 %v154, 4294901760
  %v9127 = vsub.f32 %v154, %v9126
  %v9128 = vand.u32 %v9127, 4294901760
  %9129 = vmatmul.f32.gmra.mxu0 %v9128
  %v9130 = vpop.f32.mrf.mxu0
  %v9131 = vadd.f32 %v9067, %v9130
  %v9132 = vand.u32 %v157, 4294901760
  %v9133 = vsub.f32 %v157, %v9132
  %v9134 = vand.u32 %v9133, 4294901760
  %9135 = vmatmul.f32.gmra.mxu0 %v9134
  %v9136 = vpop.f32.mrf.mxu0
  %v9137 = vadd.f32 %v9072, %v9136
  %v9138 = vand.u32 %v160, 4294901760
  %v9139 = vsub.f32 %v160, %v9138
  %v9140 = vand.u32 %v9139, 4294901760
  %9141 = vmatmul.f32.gmra.mxu0 %v9140
  %v9142 = vpop.f32.mrf.mxu0
  %v9143 = vadd.f32 %v9077, %v9142
  %v9144 = vand.u32 %v163, 4294901760
  %v9145 = vsub.f32 %v163, %v9144
  %v9146 = vand.u32 %v9145, 4294901760
  %9147 = vmatmul.f32.gmra.mxu0 %v9146
  %v9148 = vpop.f32.mrf.mxu0
  %v9149 = vadd.f32 %v9082, %v9148
  %v9150 = vand.u32 %v166, 4294901760
  %v9151 = vsub.f32 %v166, %v9150
  %v9152 = vand.u32 %v9151, 4294901760
  %9153 = vmatmul.f32.gmra.mxu0 %v9152
  %v9154 = vpop.f32.mrf.mxu0
  %v9155 = vadd.f32 %v9087, %v9154
  %v9156 = vand.u32 %v169, 4294901760
  %v9157 = vsub.f32 %v169, %v9156
  %v9158 = vand.u32 %v9157, 4294901760
  %9159 = vmatmul.f32.gmra.mxu0 %v9158
  %v9160 = vpop.f32.mrf.mxu0
  %v9161 = vadd.f32 %v9092, %v9160
  %9162 = vdwg.mxu0
  %9163 = vmatpush.msra.mxu0 0.0
  %9164 = vmatpush.msra.mxu0 0.0
  %9165 = vmatpush.msra.mxu0 0.0
  %9166 = vmatpush.msra.mxu0 0.0
  %9167 = vmatpush.msra.mxu0 0.0
  %9168 = vmatpush.msra.mxu0 0.0
  %9169 = vmatpush.msra.mxu0 0.0
  %9170 = vmatpush.msra.mxu0 0.0
  %9171 = vmatpush.msra.mxu0 0.0
  %9172 = vmatpush.msra.mxu0 0.0
  %9173 = vmatpush.msra.mxu0 0.0
  %9174 = vmatpush.msra.mxu0 0.0
  %v9175 = vand.u32 %v8874, 4294901760
  %v9176 = vsub.f32 %v8874, %v9175
  %v9177 = vand.u32 %v9176, 4294901760
  %9178 = vmatpush.msra.mxu0 %v9177
  %v9179 = vand.u32 %v8873, 4294901760
  %v9180 = vsub.f32 %v8873, %v9179
  %v9181 = vand.u32 %v9180, 4294901760
  %9182 = vmatpush.msra.mxu0 %v9181
  %v9183 = vand.u32 %v7779, 4294901760
  %v9184 = vsub.f32 %v7779, %v9183
  %v9185 = vand.u32 %v9184, 4294901760
  %9186 = vmatpush.msra.mxu0 %v9185
  %v9187 = vand.u32 %v7778, 4294901760
  %v9188 = vsub.f32 %v7778, %v9187
  %v9189 = vand.u32 %v9188, 4294901760
  %9190 = vmatpush.msra.mxu0 %v9189
  %v9191 = vand.u32 %v148, 4294901760
  %9192 = vmatmul.f32.gmra.mxu0 %v9191
  %v9193 = vpop.f32.mrf.mxu0
  %v9194 = vadd.f32 %v9119, %v9193
  %v9195 = vand.u32 %v151, 4294901760
  %9196 = vmatmul.f32.gmra.mxu0 %v9195
  %v9197 = vpop.f32.mrf.mxu0
  %v9198 = vadd.f32 %v9125, %v9197
  %v9199 = vand.u32 %v154, 4294901760
  %9200 = vmatmul.f32.gmra.mxu0 %v9199
  %v9201 = vpop.f32.mrf.mxu0
  %v9202 = vadd.f32 %v9131, %v9201
  %v9203 = vand.u32 %v157, 4294901760
  %9204 = vmatmul.f32.gmra.mxu0 %v9203
  %v9205 = vpop.f32.mrf.mxu0
  %v9206 = vadd.f32 %v9137, %v9205
  %v9207 = vand.u32 %v160, 4294901760
  %9208 = vmatmul.f32.gmra.mxu0 %v9207
  %v9209 = vpop.f32.mrf.mxu0
  %v9210 = vadd.f32 %v9143, %v9209
  %v9211 = vand.u32 %v163, 4294901760
  %9212 = vmatmul.f32.gmra.mxu0 %v9211
  %v9213 = vpop.f32.mrf.mxu0
  %v9214 = vadd.f32 %v9149, %v9213
  %v9215 = vand.u32 %v166, 4294901760
  %9216 = vmatmul.f32.gmra.mxu0 %v9215
  %v9217 = vpop.f32.mrf.mxu0
  %v9218 = vadd.f32 %v9155, %v9217
  %v9219 = vand.u32 %v169, 4294901760
  %9220 = vmatmul.f32.gmra.mxu0 %v9219
  %v9221 = vpop.f32.mrf.mxu0
  %v9222 = vadd.f32 %v9161, %v9221
  %9223 = vdwg.mxu0
  %9224 = vmatpush.msra.mxu0 0.0
  %9225 = vmatpush.msra.mxu0 0.0
  %9226 = vmatpush.msra.mxu0 0.0
  %9227 = vmatpush.msra.mxu0 0.0
  %9228 = vmatpush.msra.mxu0 0.0
  %9229 = vmatpush.msra.mxu0 0.0
  %9230 = vmatpush.msra.mxu0 0.0
  %9231 = vmatpush.msra.mxu0 0.0
  %9232 = vmatpush.msra.mxu0 0.0
  %9233 = vmatpush.msra.mxu0 0.0
  %9234 = vmatpush.msra.mxu0 0.0
  %9235 = vmatpush.msra.mxu0 0.0
  %v9236 = vand.u32 %v8874, 4294901760
  %9237 = vmatpush.msra.mxu0 %v9236
  %v9238 = vand.u32 %v8873, 4294901760
  %9239 = vmatpush.msra.mxu0 %v9238
  %v9240 = vand.u32 %v7779, 4294901760
  %9241 = vmatpush.msra.mxu0 %v9240
  %v9242 = vand.u32 %v7778, 4294901760
  %9243 = vmatpush.msra.mxu0 %v9242
  %v9244 = vand.u32 %v148, 4294901760
  %9245 = vmatmul.f32.gmra.mxu0 %v9244
  %v9246 = vpop.f32.mrf.mxu0
  %v9247 = vadd.f32 %v9194, %v9246
  %v9248 = vand.u32 %v151, 4294901760
  %9249 = vmatmul.f32.gmra.mxu0 %v9248
  %v9250 = vpop.f32.mrf.mxu0
  %v9251 = vadd.f32 %v9198, %v9250
  %v9252 = vand.u32 %v154, 4294901760
  %9253 = vmatmul.f32.gmra.mxu0 %v9252
  %v9254 = vpop.f32.mrf.mxu0
  %v9255 = vadd.f32 %v9202, %v9254
  %v9256 = vand.u32 %v157, 4294901760
  %9257 = vmatmul.f32.gmra.mxu0 %v9256
  %v9258 = vpop.f32.mrf.mxu0
  %v9259 = vadd.f32 %v9206, %v9258
  %v9260 = vand.u32 %v160, 4294901760
  %9261 = vmatmul.f32.gmra.mxu0 %v9260
  %v9262 = vpop.f32.mrf.mxu0
  %v9263 = vadd.f32 %v9210, %v9262
  %v9264 = vand.u32 %v163, 4294901760
  %9265 = vmatmul.f32.gmra.mxu0 %v9264
  %v9266 = vpop.f32.mrf.mxu0
  %v9267 = vadd.f32 %v9214, %v9266
  %v9268 = vand.u32 %v166, 4294901760
  %9269 = vmatmul.f32.gmra.mxu0 %v9268
  %v9270 = vpop.f32.mrf.mxu0
  %v9271 = vadd.f32 %v9218, %v9270
  %v9272 = vand.u32 %v169, 4294901760
  %9273 = vmatmul.f32.gmra.mxu0 %v9272
  %v9274 = vpop.f32.mrf.mxu0
  %v9275 = vadd.f32 %v9222, %v9274
  %9276 = vdwg.mxu0
  %v9278 = vsel %vm521, %v9247, 0
  %v9281 = vsel %vm521, %v9251, 0
  %v9284 = vsel %vm521, %v9255, 0
  %v9287 = vsel %vm521, %v9259, 0
  %v9290 = vsel %vm521, %v9263, 0
  %v9293 = vsel %vm521, %v9267, 0
  %v9296 = vsel %vm521, %v9271, 0
  %v9299 = vsel %vm521, %v9275, 0
  %9301 = vmatpush.msra.mxu0 0.0
  %9302 = vmatpush.msra.mxu0 0.0
  %9303 = vmatpush.msra.mxu0 0.0
  %9304 = vmatpush.msra.mxu0 0.0
  %9305 = vmatpush.msra.mxu0 0.0
  %9306 = vmatpush.msra.mxu0 0.0
  %9307 = vmatpush.msra.mxu0 0.0
  %9308 = vmatpush.msra.mxu0 0.0
  %9309 = vmatpush.msra.mxu0 0.0
  %9310 = vmatpush.msra.mxu0 0.0
  %9311 = vmatpush.msra.mxu0 0.0
  %9312 = vmatpush.msra.mxu0 0.0
  %9313 = vmatpush.msra.mxu0 0.0
  %9314 = vmatpush.msra.mxu0 0.0
  %9315 = vmatpush.msra.mxu0 0.0
  %9316 = vmatpush.msra.mxu0 %v547
  %9317 = vmatmul.f32.gmra.mxu0 %v9278
  %v9318 = vpop.f32.mrf.mxu0
  %v9319 = vadd.f32 %v135, %v9318
  %9320 = vmatmul.f32.gmra.mxu0 %v9281
  %v9321 = vpop.f32.mrf.mxu0
  %v9322 = vadd.f32 %v138, %v9321
  %9323 = vmatmul.f32.gmra.mxu0 %v9284
  %v9324 = vpop.f32.mrf.mxu0
  %v9325 = vadd.f32 %v141, %v9324
  %9326 = vmatmul.f32.gmra.mxu0 %v9287
  %v9327 = vpop.f32.mrf.mxu0
  %v9328 = vadd.f32 %v144, %v9327
  %9329 = vmatmul.f32.gmra.mxu0 %v9290
  %v9330 = vpop.f32.mrf.mxu0
  %v9331 = vadd.f32 %v135, %v9330
  %9332 = vmatmul.f32.gmra.mxu0 %v9293
  %v9333 = vpop.f32.mrf.mxu0
  %v9334 = vadd.f32 %v138, %v9333
  %9335 = vmatmul.f32.gmra.mxu0 %v9296
  %v9336 = vpop.f32.mrf.mxu0
  %v9337 = vadd.f32 %v141, %v9336
  %9338 = vmatmul.f32.gmra.mxu0 %v9299
  %v9339 = vpop.f32.mrf.mxu0
  %v9340 = vadd.f32 %v144, %v9339
  %9341 = vdwg.mxu0
  %v9342 = vmax.f32 %v9319, 0.0
  %v9343 = vmax.f32 %v9322, 0.0
  %v9344 = vmax.f32 %v9325, 0.0
  %v9345 = vmax.f32 %v9328, 0.0
  %v9346 = vmax.f32 %v9331, 0.0
  %v9347 = vmax.f32 %v9334, 0.0
  %v9348 = vmax.f32 %v9337, 0.0
  %v9349 = vmax.f32 %v9340, 0.0
  %v9351 = vsel %vm599, %v9342, 0
  %v9354 = vsel %vm599, %v9343, 0
  %v9357 = vsel %vm599, %v9344, 0
  %v9360 = vsel %vm599, %v9345, 0
  %v9363 = vsel %vm599, %v9346, 0
  %v9366 = vsel %vm599, %v9347, 0
  %v9369 = vsel %vm599, %v9348, 0
  %v9372 = vsel %vm599, %v9349, 0
  %9374 = vmatpush.msra.mxu0 0.0
  %9375 = vmatpush.msra.mxu0 0.0
  %9376 = vmatpush.msra.mxu0 0.0
  %9377 = vmatpush.msra.mxu0 0.0
  %9378 = vmatpush.msra.mxu0 0.0
  %9379 = vmatpush.msra.mxu0 0.0
  %9380 = vmatpush.msra.mxu0 0.0
  %9381 = vmatpush.msra.mxu0 0.0
  %9382 = vmatpush.msra.mxu0 %v68
  %9383 = vmatpush.msra.mxu0 %v67
  %9384 = vmatpush.msra.mxu0 %v66
  %9385 = vmatpush.msra.mxu0 %v65
  %9386 = vmatpush.msra.mxu0 %v64
  %9387 = vmatpush.msra.mxu0 %v63
  %9388 = vmatpush.msra.mxu0 %v62
  %9389 = vmatpush.msra.mxu0 %v61
  %9390 = vmatmul.f32.gmra.mxu0 %v9351
  %v9391 = vpop.f32.mrf.mxu0
  %v9392 = vadd.f32 %v598, %v9391
  %9393 = vmatmul.f32.gmra.mxu0 %v9354
  %v9394 = vpop.f32.mrf.mxu0
  %v9395 = vadd.f32 %v598, %v9394
  %9396 = vmatmul.f32.gmra.mxu0 %v9357
  %v9397 = vpop.f32.mrf.mxu0
  %v9398 = vadd.f32 %v598, %v9397
  %9399 = vmatmul.f32.gmra.mxu0 %v9360
  %v9400 = vpop.f32.mrf.mxu0
  %v9401 = vadd.f32 %v598, %v9400
  %9402 = vmatmul.f32.gmra.mxu0 %v9363
  %v9403 = vpop.f32.mrf.mxu0
  %v9404 = vadd.f32 %v598, %v9403
  %9405 = vmatmul.f32.gmra.mxu0 %v9366
  %v9406 = vpop.f32.mrf.mxu0
  %v9407 = vadd.f32 %v598, %v9406
  %9408 = vmatmul.f32.gmra.mxu0 %v9369
  %v9409 = vpop.f32.mrf.mxu0
  %v9410 = vadd.f32 %v598, %v9409
  %9411 = vmatmul.f32.gmra.mxu0 %v9372
  %v9412 = vpop.f32.mrf.mxu0
  %v9413 = vadd.f32 %v598, %v9412
  %9414 = vdwg.mxu0
  %v9415 = vmax.f32 %v9392, 0.0
  %v9416 = vmax.f32 %v9395, 0.0
  %v9417 = vmax.f32 %v9398, 0.0
  %v9418 = vmax.f32 %v9401, 0.0
  %v9419 = vmax.f32 %v9404, 0.0
  %v9420 = vmax.f32 %v9407, 0.0
  %v9421 = vmax.f32 %v9410, 0.0
  %v9422 = vmax.f32 %v9413, 0.0
  %v9424 = vsel %vm599, %v9415, 0
  %v9427 = vsel %vm599, %v9416, 0
  %v9430 = vsel %vm599, %v9417, 0
  %v9433 = vsel %vm599, %v9418, 0
  %v9436 = vsel %vm599, %v9419, 0
  %v9439 = vsel %vm599, %v9420, 0
  %v9442 = vsel %vm599, %v9421, 0
  %v9445 = vsel %vm599, %v9422, 0
  %9447 = vmatpush.msra.mxu0 0.0
  %9448 = vmatpush.msra.mxu0 0.0
  %9449 = vmatpush.msra.mxu0 0.0
  %9450 = vmatpush.msra.mxu0 0.0
  %9451 = vmatpush.msra.mxu0 0.0
  %9452 = vmatpush.msra.mxu0 0.0
  %9453 = vmatpush.msra.mxu0 0.0
  %9454 = vmatpush.msra.mxu0 0.0
  %9455 = vmatpush.msra.mxu0 %v77
  %9456 = vmatpush.msra.mxu0 %v76
  %9457 = vmatpush.msra.mxu0 %v75
  %9458 = vmatpush.msra.mxu0 %v74
  %9459 = vmatpush.msra.mxu0 %v73
  %9460 = vmatpush.msra.mxu0 %v72
  %9461 = vmatpush.msra.mxu0 %v71
  %9462 = vmatpush.msra.mxu0 %v70
  %9463 = vmatmul.f32.gmra.mxu0 %v9424
  %v9464 = vpop.f32.mrf.mxu0
  %v9465 = vadd.f32 %v673, %v9464
  %9466 = vmatmul.f32.gmra.mxu0 %v9427
  %v9467 = vpop.f32.mrf.mxu0
  %v9468 = vadd.f32 %v673, %v9467
  %9469 = vmatmul.f32.gmra.mxu0 %v9430
  %v9470 = vpop.f32.mrf.mxu0
  %v9471 = vadd.f32 %v673, %v9470
  %9472 = vmatmul.f32.gmra.mxu0 %v9433
  %v9473 = vpop.f32.mrf.mxu0
  %v9474 = vadd.f32 %v673, %v9473
  %9475 = vmatmul.f32.gmra.mxu0 %v9436
  %v9476 = vpop.f32.mrf.mxu0
  %v9477 = vadd.f32 %v673, %v9476
  %9478 = vmatmul.f32.gmra.mxu0 %v9439
  %v9479 = vpop.f32.mrf.mxu0
  %v9480 = vadd.f32 %v673, %v9479
  %9481 = vmatmul.f32.gmra.mxu0 %v9442
  %v9482 = vpop.f32.mrf.mxu0
  %v9483 = vadd.f32 %v673, %v9482
  %9484 = vmatmul.f32.gmra.mxu0 %v9445
  %v9485 = vpop.f32.mrf.mxu0
  %v9486 = vadd.f32 %v673, %v9485
  %9487 = vdwg.mxu0
  %9488 = vmatpush.msra.mxu0 0.0
  %9489 = vmatpush.msra.mxu0 0.0
  %9490 = vmatpush.msra.mxu0 0.0
  %9491 = vmatpush.msra.mxu0 0.0
  %9492 = vmatpush.msra.mxu0 0.0
  %9493 = vmatpush.msra.mxu0 0.0
  %9494 = vmatpush.msra.mxu0 0.0
  %9495 = vmatpush.msra.mxu0 0.0
  %v9496 = vand.u32 %v9486, 4294901760
  %9497 = vmatpush.msra.mxu0 %v9496
  %v9498 = vand.u32 %v9483, 4294901760
  %9499 = vmatpush.msra.mxu0 %v9498
  %v9500 = vand.u32 %v9480, 4294901760
  %9501 = vmatpush.msra.mxu0 %v9500
  %v9502 = vand.u32 %v9477, 4294901760
  %9503 = vmatpush.msra.mxu0 %v9502
  %v9504 = vand.u32 %v9474, 4294901760
  %9505 = vmatpush.msra.mxu0 %v9504
  %v9506 = vand.u32 %v9471, 4294901760
  %9507 = vmatpush.msra.mxu0 %v9506
  %v9508 = vand.u32 %v9468, 4294901760
  %9509 = vmatpush.msra.mxu0 %v9508
  %v9510 = vand.u32 %v9465, 4294901760
  %9511 = vmatpush.msra.mxu0 %v9510
  %v9512 = vand.u32 %v740, 4294901760
  %v9513 = vsub.f32 %v740, %v9512
  %v9514 = vand.u32 %v9513, 4294901760
  %v9515 = vsub.f32 %v9513, %v9514
  %v9516 = vand.u32 %v9515, 4294901760
  %9517 = vmatmul.f32.gmra.mxu0 %v9516
  %v9518 = vpop.f32.mrf.mxu0
  %v9519 = vadd.f32 0.0, %v9518
  %v9520 = vand.u32 %v743, 4294901760
  %v9521 = vsub.f32 %v743, %v9520
  %v9522 = vand.u32 %v9521, 4294901760
  %v9523 = vsub.f32 %v9521, %v9522
  %v9524 = vand.u32 %v9523, 4294901760
  %9525 = vmatmul.f32.gmra.mxu0 %v9524
  %v9526 = vpop.f32.mrf.mxu0
  %v9527 = vadd.f32 0.0, %v9526
  %v9528 = vand.u32 %v746, 4294901760
  %v9529 = vsub.f32 %v746, %v9528
  %v9530 = vand.u32 %v9529, 4294901760
  %v9531 = vsub.f32 %v9529, %v9530
  %v9532 = vand.u32 %v9531, 4294901760
  %9533 = vmatmul.f32.gmra.mxu0 %v9532
  %v9534 = vpop.f32.mrf.mxu0
  %v9535 = vadd.f32 0.0, %v9534
  %v9536 = vand.u32 %v749, 4294901760
  %v9537 = vsub.f32 %v749, %v9536
  %v9538 = vand.u32 %v9537, 4294901760
  %v9539 = vsub.f32 %v9537, %v9538
  %v9540 = vand.u32 %v9539, 4294901760
  %9541 = vmatmul.f32.gmra.mxu0 %v9540
  %v9542 = vpop.f32.mrf.mxu0
  %v9543 = vadd.f32 0.0, %v9542
  %9544 = vdwg.mxu0
  %9545 = vmatpush.msra.mxu0 0.0
  %9546 = vmatpush.msra.mxu0 0.0
  %9547 = vmatpush.msra.mxu0 0.0
  %9548 = vmatpush.msra.mxu0 0.0
  %9549 = vmatpush.msra.mxu0 0.0
  %9550 = vmatpush.msra.mxu0 0.0
  %9551 = vmatpush.msra.mxu0 0.0
  %9552 = vmatpush.msra.mxu0 0.0
  %v9553 = vand.u32 %v9486, 4294901760
  %v9554 = vsub.f32 %v9486, %v9553
  %v9555 = vand.u32 %v9554, 4294901760
  %v9556 = vsub.f32 %v9554, %v9555
  %v9557 = vand.u32 %v9556, 4294901760
  %9558 = vmatpush.msra.mxu0 %v9557
  %v9559 = vand.u32 %v9483, 4294901760
  %v9560 = vsub.f32 %v9483, %v9559
  %v9561 = vand.u32 %v9560, 4294901760
  %v9562 = vsub.f32 %v9560, %v9561
  %v9563 = vand.u32 %v9562, 4294901760
  %9564 = vmatpush.msra.mxu0 %v9563
  %v9565 = vand.u32 %v9480, 4294901760
  %v9566 = vsub.f32 %v9480, %v9565
  %v9567 = vand.u32 %v9566, 4294901760
  %v9568 = vsub.f32 %v9566, %v9567
  %v9569 = vand.u32 %v9568, 4294901760
  %9570 = vmatpush.msra.mxu0 %v9569
  %v9571 = vand.u32 %v9477, 4294901760
  %v9572 = vsub.f32 %v9477, %v9571
  %v9573 = vand.u32 %v9572, 4294901760
  %v9574 = vsub.f32 %v9572, %v9573
  %v9575 = vand.u32 %v9574, 4294901760
  %9576 = vmatpush.msra.mxu0 %v9575
  %v9577 = vand.u32 %v9474, 4294901760
  %v9578 = vsub.f32 %v9474, %v9577
  %v9579 = vand.u32 %v9578, 4294901760
  %v9580 = vsub.f32 %v9578, %v9579
  %v9581 = vand.u32 %v9580, 4294901760
  %9582 = vmatpush.msra.mxu0 %v9581
  %v9583 = vand.u32 %v9471, 4294901760
  %v9584 = vsub.f32 %v9471, %v9583
  %v9585 = vand.u32 %v9584, 4294901760
  %v9586 = vsub.f32 %v9584, %v9585
  %v9587 = vand.u32 %v9586, 4294901760
  %9588 = vmatpush.msra.mxu0 %v9587
  %v9589 = vand.u32 %v9468, 4294901760
  %v9590 = vsub.f32 %v9468, %v9589
  %v9591 = vand.u32 %v9590, 4294901760
  %v9592 = vsub.f32 %v9590, %v9591
  %v9593 = vand.u32 %v9592, 4294901760
  %9594 = vmatpush.msra.mxu0 %v9593
  %v9595 = vand.u32 %v9465, 4294901760
  %v9596 = vsub.f32 %v9465, %v9595
  %v9597 = vand.u32 %v9596, 4294901760
  %v9598 = vsub.f32 %v9596, %v9597
  %v9599 = vand.u32 %v9598, 4294901760
  %9600 = vmatpush.msra.mxu0 %v9599
  %v9601 = vand.u32 %v740, 4294901760
  %9602 = vmatmul.f32.gmra.mxu0 %v9601
  %v9603 = vpop.f32.mrf.mxu0
  %v9604 = vadd.f32 %v9519, %v9603
  %v9605 = vand.u32 %v743, 4294901760
  %9606 = vmatmul.f32.gmra.mxu0 %v9605
  %v9607 = vpop.f32.mrf.mxu0
  %v9608 = vadd.f32 %v9527, %v9607
  %v9609 = vand.u32 %v746, 4294901760
  %9610 = vmatmul.f32.gmra.mxu0 %v9609
  %v9611 = vpop.f32.mrf.mxu0
  %v9612 = vadd.f32 %v9535, %v9611
  %v9613 = vand.u32 %v749, 4294901760
  %9614 = vmatmul.f32.gmra.mxu0 %v9613
  %v9615 = vpop.f32.mrf.mxu0
  %v9616 = vadd.f32 %v9543, %v9615
  %9617 = vdwg.mxu0
  %9618 = vmatpush.msra.mxu0 0.0
  %9619 = vmatpush.msra.mxu0 0.0
  %9620 = vmatpush.msra.mxu0 0.0
  %9621 = vmatpush.msra.mxu0 0.0
  %9622 = vmatpush.msra.mxu0 0.0
  %9623 = vmatpush.msra.mxu0 0.0
  %9624 = vmatpush.msra.mxu0 0.0
  %9625 = vmatpush.msra.mxu0 0.0
  %v9626 = vand.u32 %v9486, 4294901760
  %v9627 = vsub.f32 %v9486, %v9626
  %9628 = vmatpush.msra.mxu0 %v9627
  %v9629 = vand.u32 %v9483, 4294901760
  %v9630 = vsub.f32 %v9483, %v9629
  %9631 = vmatpush.msra.mxu0 %v9630
  %v9632 = vand.u32 %v9480, 4294901760
  %v9633 = vsub.f32 %v9480, %v9632
  %9634 = vmatpush.msra.mxu0 %v9633
  %v9635 = vand.u32 %v9477, 4294901760
  %v9636 = vsub.f32 %v9477, %v9635
  %9637 = vmatpush.msra.mxu0 %v9636
  %v9638 = vand.u32 %v9474, 4294901760
  %v9639 = vsub.f32 %v9474, %v9638
  %9640 = vmatpush.msra.mxu0 %v9639
  %v9641 = vand.u32 %v9471, 4294901760
  %v9642 = vsub.f32 %v9471, %v9641
  %9643 = vmatpush.msra.mxu0 %v9642
  %v9644 = vand.u32 %v9468, 4294901760
  %v9645 = vsub.f32 %v9468, %v9644
  %9646 = vmatpush.msra.mxu0 %v9645
  %v9647 = vand.u32 %v9465, 4294901760
  %v9648 = vsub.f32 %v9465, %v9647
  %9649 = vmatpush.msra.mxu0 %v9648
  %v9650 = vand.u32 %v740, 4294901760
  %v9651 = vsub.f32 %v740, %v9650
  %9652 = vmatmul.f32.gmra.mxu0 %v9651
  %v9653 = vpop.f32.mrf.mxu0
  %v9654 = vadd.f32 %v9604, %v9653
  %v9655 = vand.u32 %v743, 4294901760
  %v9656 = vsub.f32 %v743, %v9655
  %9657 = vmatmul.f32.gmra.mxu0 %v9656
  %v9658 = vpop.f32.mrf.mxu0
  %v9659 = vadd.f32 %v9608, %v9658
  %v9660 = vand.u32 %v746, 4294901760
  %v9661 = vsub.f32 %v746, %v9660
  %9662 = vmatmul.f32.gmra.mxu0 %v9661
  %v9663 = vpop.f32.mrf.mxu0
  %v9664 = vadd.f32 %v9612, %v9663
  %v9665 = vand.u32 %v749, 4294901760
  %v9666 = vsub.f32 %v749, %v9665
  %9667 = vmatmul.f32.gmra.mxu0 %v9666
  %v9668 = vpop.f32.mrf.mxu0
  %v9669 = vadd.f32 %v9616, %v9668
  %9670 = vdwg.mxu0
  %9671 = vmatpush.msra.mxu0 0.0
  %9672 = vmatpush.msra.mxu0 0.0
  %9673 = vmatpush.msra.mxu0 0.0
  %9674 = vmatpush.msra.mxu0 0.0
  %9675 = vmatpush.msra.mxu0 0.0
  %9676 = vmatpush.msra.mxu0 0.0
  %9677 = vmatpush.msra.mxu0 0.0
  %9678 = vmatpush.msra.mxu0 0.0
  %v9679 = vand.u32 %v9486, 4294901760
  %9680 = vmatpush.msra.mxu0 %v9679
  %v9681 = vand.u32 %v9483, 4294901760
  %9682 = vmatpush.msra.mxu0 %v9681
  %v9683 = vand.u32 %v9480, 4294901760
  %9684 = vmatpush.msra.mxu0 %v9683
  %v9685 = vand.u32 %v9477, 4294901760
  %9686 = vmatpush.msra.mxu0 %v9685
  %v9687 = vand.u32 %v9474, 4294901760
  %9688 = vmatpush.msra.mxu0 %v9687
  %v9689 = vand.u32 %v9471, 4294901760
  %9690 = vmatpush.msra.mxu0 %v9689
  %v9691 = vand.u32 %v9468, 4294901760
  %9692 = vmatpush.msra.mxu0 %v9691
  %v9693 = vand.u32 %v9465, 4294901760
  %9694 = vmatpush.msra.mxu0 %v9693
  %v9695 = vand.u32 %v740, 4294901760
  %v9696 = vsub.f32 %v740, %v9695
  %v9697 = vand.u32 %v9696, 4294901760
  %9698 = vmatmul.f32.gmra.mxu0 %v9697
  %v9699 = vpop.f32.mrf.mxu0
  %v9700 = vadd.f32 %v9654, %v9699
  %v9701 = vand.u32 %v743, 4294901760
  %v9702 = vsub.f32 %v743, %v9701
  %v9703 = vand.u32 %v9702, 4294901760
  %9704 = vmatmul.f32.gmra.mxu0 %v9703
  %v9705 = vpop.f32.mrf.mxu0
  %v9706 = vadd.f32 %v9659, %v9705
  %v9707 = vand.u32 %v746, 4294901760
  %v9708 = vsub.f32 %v746, %v9707
  %v9709 = vand.u32 %v9708, 4294901760
  %9710 = vmatmul.f32.gmra.mxu0 %v9709
  %v9711 = vpop.f32.mrf.mxu0
  %v9712 = vadd.f32 %v9664, %v9711
  %v9713 = vand.u32 %v749, 4294901760
  %v9714 = vsub.f32 %v749, %v9713
  %v9715 = vand.u32 %v9714, 4294901760
  %9716 = vmatmul.f32.gmra.mxu0 %v9715
  %v9717 = vpop.f32.mrf.mxu0
  %v9718 = vadd.f32 %v9669, %v9717
  %9719 = vdwg.mxu0
  %9720 = vmatpush.msra.mxu0 0.0
  %9721 = vmatpush.msra.mxu0 0.0
  %9722 = vmatpush.msra.mxu0 0.0
  %9723 = vmatpush.msra.mxu0 0.0
  %9724 = vmatpush.msra.mxu0 0.0
  %9725 = vmatpush.msra.mxu0 0.0
  %9726 = vmatpush.msra.mxu0 0.0
  %9727 = vmatpush.msra.mxu0 0.0
  %v9728 = vand.u32 %v9486, 4294901760
  %v9729 = vsub.f32 %v9486, %v9728
  %v9730 = vand.u32 %v9729, 4294901760
  %9731 = vmatpush.msra.mxu0 %v9730
  %v9732 = vand.u32 %v9483, 4294901760
  %v9733 = vsub.f32 %v9483, %v9732
  %v9734 = vand.u32 %v9733, 4294901760
  %9735 = vmatpush.msra.mxu0 %v9734
  %v9736 = vand.u32 %v9480, 4294901760
  %v9737 = vsub.f32 %v9480, %v9736
  %v9738 = vand.u32 %v9737, 4294901760
  %9739 = vmatpush.msra.mxu0 %v9738
  %v9740 = vand.u32 %v9477, 4294901760
  %v9741 = vsub.f32 %v9477, %v9740
  %v9742 = vand.u32 %v9741, 4294901760
  %9743 = vmatpush.msra.mxu0 %v9742
  %v9744 = vand.u32 %v9474, 4294901760
  %v9745 = vsub.f32 %v9474, %v9744
  %v9746 = vand.u32 %v9745, 4294901760
  %9747 = vmatpush.msra.mxu0 %v9746
  %v9748 = vand.u32 %v9471, 4294901760
  %v9749 = vsub.f32 %v9471, %v9748
  %v9750 = vand.u32 %v9749, 4294901760
  %9751 = vmatpush.msra.mxu0 %v9750
  %v9752 = vand.u32 %v9468, 4294901760
  %v9753 = vsub.f32 %v9468, %v9752
  %v9754 = vand.u32 %v9753, 4294901760
  %9755 = vmatpush.msra.mxu0 %v9754
  %v9756 = vand.u32 %v9465, 4294901760
  %v9757 = vsub.f32 %v9465, %v9756
  %v9758 = vand.u32 %v9757, 4294901760
  %9759 = vmatpush.msra.mxu0 %v9758
  %v9760 = vand.u32 %v740, 4294901760
  %9761 = vmatmul.f32.gmra.mxu0 %v9760
  %v9762 = vpop.f32.mrf.mxu0
  %v9763 = vadd.f32 %v9700, %v9762
  %v9764 = vand.u32 %v743, 4294901760
  %9765 = vmatmul.f32.gmra.mxu0 %v9764
  %v9766 = vpop.f32.mrf.mxu0
  %v9767 = vadd.f32 %v9706, %v9766
  %v9768 = vand.u32 %v746, 4294901760
  %9769 = vmatmul.f32.gmra.mxu0 %v9768
  %v9770 = vpop.f32.mrf.mxu0
  %v9771 = vadd.f32 %v9712, %v9770
  %v9772 = vand.u32 %v749, 4294901760
  %9773 = vmatmul.f32.gmra.mxu0 %v9772
  %v9774 = vpop.f32.mrf.mxu0
  %v9775 = vadd.f32 %v9718, %v9774
  %9776 = vdwg.mxu0
  %9777 = vmatpush.msra.mxu0 0.0
  %9778 = vmatpush.msra.mxu0 0.0
  %9779 = vmatpush.msra.mxu0 0.0
  %9780 = vmatpush.msra.mxu0 0.0
  %9781 = vmatpush.msra.mxu0 0.0
  %9782 = vmatpush.msra.mxu0 0.0
  %9783 = vmatpush.msra.mxu0 0.0
  %9784 = vmatpush.msra.mxu0 0.0
  %v9785 = vand.u32 %v9486, 4294901760
  %9786 = vmatpush.msra.mxu0 %v9785
  %v9787 = vand.u32 %v9483, 4294901760
  %9788 = vmatpush.msra.mxu0 %v9787
  %v9789 = vand.u32 %v9480, 4294901760
  %9790 = vmatpush.msra.mxu0 %v9789
  %v9791 = vand.u32 %v9477, 4294901760
  %9792 = vmatpush.msra.mxu0 %v9791
  %v9793 = vand.u32 %v9474, 4294901760
  %9794 = vmatpush.msra.mxu0 %v9793
  %v9795 = vand.u32 %v9471, 4294901760
  %9796 = vmatpush.msra.mxu0 %v9795
  %v9797 = vand.u32 %v9468, 4294901760
  %9798 = vmatpush.msra.mxu0 %v9797
  %v9799 = vand.u32 %v9465, 4294901760
  %9800 = vmatpush.msra.mxu0 %v9799
  %v9801 = vand.u32 %v740, 4294901760
  %9802 = vmatmul.f32.gmra.mxu0 %v9801
  %v9803 = vpop.f32.mrf.mxu0
  %v9804 = vadd.f32 %v9763, %v9803
  %v9805 = vand.u32 %v743, 4294901760
  %9806 = vmatmul.f32.gmra.mxu0 %v9805
  %v9807 = vpop.f32.mrf.mxu0
  %v9808 = vadd.f32 %v9767, %v9807
  %v9809 = vand.u32 %v746, 4294901760
  %9810 = vmatmul.f32.gmra.mxu0 %v9809
  %v9811 = vpop.f32.mrf.mxu0
  %v9812 = vadd.f32 %v9771, %v9811
  %v9813 = vand.u32 %v749, 4294901760
  %9814 = vmatmul.f32.gmra.mxu0 %v9813
  %v9815 = vpop.f32.mrf.mxu0
  %v9816 = vadd.f32 %v9775, %v9815
  %9817 = vdwg.mxu0
  %v9818 = vadd.f32 %v8723, %v9804
  %v9819 = vadd.f32 %v8724, %v9808
  %v9820 = vadd.f32 %v9818, %v9812
  %v9821 = vadd.f32 %v9819, %v9816
  %9824 = vrot.lane.b32.xlu0 %v9818, 5
  %v9825 = vpop.permute.xlu0 %9824
  %9826 = vrot.lane.b32.xlu0 %v9819, 5
  %v9827 = vpop.permute.xlu0 %9826
  %9832 = vrot.lane.b32.xlu0 %v9820, 10
  %v9833 = vpop.permute.xlu0 %9832
  %9834 = vrot.lane.b32.xlu0 %v9821, 10
  %v9835 = vpop.permute.xlu0 %9834
  %v9838 = vsel %vm521, %v8873, %v9825
  %v9839 = vsel %vm521, %v8874, %v9827
  %v9840 = vsel %vm1103, %v9838, %v9833
  %v9841 = vsel %vm1103, %v9839, %v9835
  %v9843 = vsel %vm1107, %v9840, 0
  %v9846 = vsel %vm1107, %v9841, 0
  %9848 = vmatpush.msra.mxu0 0.0
  %9849 = vmatpush.msra.mxu0 0.0
  %9850 = vmatpush.msra.mxu0 0.0
  %9851 = vmatpush.msra.mxu0 0.0
  %9852 = vmatpush.msra.mxu0 0.0
  %9853 = vmatpush.msra.mxu0 0.0
  %9854 = vmatpush.msra.mxu0 0.0
  %9855 = vmatpush.msra.mxu0 0.0
  %9856 = vmatpush.msra.mxu0 0.0
  %9857 = vmatpush.msra.mxu0 0.0
  %9858 = vmatpush.msra.mxu0 0.0
  %9859 = vmatpush.msra.mxu0 0.0
  %9860 = vmatpush.msra.mxu0 0.0
  %9861 = vmatpush.msra.mxu0 0.0
  %9862 = vmatpush.msra.mxu0 %v1116
  %9863 = vmatpush.msra.mxu0 %v79
  %9864 = vmatmul.f32.gmra.mxu0 %v9843
  %v9865 = vpop.f32.mrf.mxu0
  %v9866 = vadd.f32 %v1106, %v9865
  %9867 = vmatmul.f32.gmra.mxu0 %v9846
  %v9868 = vpop.f32.mrf.mxu0
  %v9869 = vadd.f32 %v1106, %v9868
  %9870 = vdwg.mxu0
  %v9871 = vxor.u32 %v9866, 2147483648
  %v9872 = vxor.u32 %v9869, 2147483648
  %v9873 = vmul.f32 %v9871, 1.442695
  %v9874 = vpow.pop %v9873
  %v9875 = vmul.f32 %v9872, 1.442695
  %v9876 = vpow.pop %v9875
  %v9877 = vadd.f32 %v9874, 1.0
  %v9878 = vadd.f32 %v9876, 1.0
  %v9879 = vrcp.pop %v9877
  %v9880 = vmul.f32 %v9877, %v9879
  %v9881 = vsub.f32 1.0, %v9880
  %v9882 = vmul.f32 %v9879, %v9881
  %v9883 = vadd.f32 %v9879, %v9882
  %vm9884 = vweird.f32 %v9877
  %vm9885 = vweird.f32 %v9879
  %vm9886 = vmor %vm9884, %vm9885
  %v9887 = vsel %vm9886, %v9879, %v9883
  %v9888 = vand.u32 2147483647, %v9877
  %vm9889 = vcmp.eq.f32.partialorder %v9888, 8.507059e+37
  %v9890 = vand.u32 %v9877, 2147483648
  %v9891 = vor.u32 1.1754944e-38, %v9890
  %v9892 = vsel %vm9889, %v9891, %v9887
  %v9893 = vmul.f32 1.0, %v9892
  %v9894 = vrcp.pop %v9878
  %v9895 = vmul.f32 %v9878, %v9894
  %v9896 = vsub.f32 1.0, %v9895
  %v9897 = vmul.f32 %v9894, %v9896
  %v9898 = vadd.f32 %v9894, %v9897
  %vm9899 = vweird.f32 %v9878
  %vm9900 = vweird.f32 %v9894
  %vm9901 = vmor %vm9899, %vm9900
  %v9902 = vsel %vm9901, %v9894, %v9898
  %v9903 = vand.u32 2147483647, %v9878
  %vm9904 = vcmp.eq.f32.partialorder %v9903, 8.507059e+37
  %v9905 = vand.u32 %v9878, 2147483648
  %v9906 = vor.u32 1.1754944e-38, %v9905
  %v9907 = vsel %vm9904, %v9906, %v9902
  %v9908 = vmul.f32 1.0, %v9907
  %9911 = vrot.lane.b32.xlu0 %v8873, 5
  %v9912 = vpop.permute.xlu0 %9911
  %9913 = vrot.lane.b32.xlu0 %v8874, 5
  %v9914 = vpop.permute.xlu0 %9913
  %v9917 = vmul.f32 %v9893, %v9912
  %v9918 = vmul.f32 %v9908, %v9914
  %9921 = vrot.lane.b32.xlu0 %v9917, 123
  %v9922 = vpop.permute.xlu0 %9921
  %9923 = vrot.lane.b32.xlu0 %v9918, 123
  %v9924 = vpop.permute.xlu0 %9923
  %v9927 = vsel %vm521, %v9922, %v9825
  %v9928 = vsel %vm521, %v9924, %v9827
  %v9929 = vsel %vm1103, %v9927, %v9833
  %v9930 = vsel %vm1103, %v9928, %v9835
  %v9932 = vsel %vm1107, %v9929, 0
  %v9935 = vsel %vm1107, %v9930, 0
  %9937 = vmatpush.msra.mxu0 0.0
  %9938 = vmatpush.msra.mxu0 0.0
  %9939 = vmatpush.msra.mxu0 0.0
  %9940 = vmatpush.msra.mxu0 0.0
  %9941 = vmatpush.msra.mxu0 0.0
  %9942 = vmatpush.msra.mxu0 0.0
  %9943 = vmatpush.msra.mxu0 0.0
  %9944 = vmatpush.msra.mxu0 0.0
  %9945 = vmatpush.msra.mxu0 0.0
  %9946 = vmatpush.msra.mxu0 0.0
  %9947 = vmatpush.msra.mxu0 0.0
  %9948 = vmatpush.msra.mxu0 0.0
  %9949 = vmatpush.msra.mxu0 0.0
  %9950 = vmatpush.msra.mxu0 0.0
  %9951 = vmatpush.msra.mxu0 %v1201
  %9952 = vmatpush.msra.mxu0 %v81
  %9953 = vmatmul.f32.gmra.mxu0 %v9932
  %v9954 = vpop.f32.mrf.mxu0
  %v9955 = vadd.f32 %v1193, %v9954
  %9956 = vmatmul.f32.gmra.mxu0 %v9935
  %v9957 = vpop.f32.mrf.mxu0
  %v9958 = vadd.f32 %v1193, %v9957
  %9959 = vdwg.mxu0
  %v9960 = vtanh.pop %v9955
  %v9961 = vtanh.pop %v9958
  %v9962 = vsub.f32 1.0, %v9893
  %v9963 = vsub.f32 1.0, %v9908
  %v9964 = vmul.f32 %v9962, %v8873
  %v9965 = vmul.f32 %v9963, %v8874
  %v9966 = vmul.f32 %v9893, %v9960
  %v9967 = vmul.f32 %v9908, %v9961
  %v9968 = vadd.f32 %v9964, %v9966
  %v9969 = vadd.f32 %v9965, %v9967
  %9970 = vmatpush.msra.mxu0 0.0
  %9971 = vmatpush.msra.mxu0 0.0
  %9972 = vmatpush.msra.mxu0 0.0
  %9973 = vmatpush.msra.mxu0 0.0
  %9974 = vmatpush.msra.mxu0 0.0
  %9975 = vmatpush.msra.mxu0 0.0
  %9976 = vmatpush.msra.mxu0 0.0
  %9977 = vmatpush.msra.mxu0 0.0
  %9978 = vmatpush.msra.mxu0 0.0
  %9979 = vmatpush.msra.mxu0 0.0
  %9980 = vmatpush.msra.mxu0 0.0
  %9981 = vmatpush.msra.mxu0 0.0
  %v9982 = vand.u32 %v9969, 4294901760
  %9983 = vmatpush.msra.mxu0 %v9982
  %v9984 = vand.u32 %v9968, 4294901760
  %9985 = vmatpush.msra.mxu0 %v9984
  %v9986 = vand.u32 %v8874, 4294901760
  %9987 = vmatpush.msra.mxu0 %v9986
  %v9988 = vand.u32 %v8873, 4294901760
  %9989 = vmatpush.msra.mxu0 %v9988
  %v9990 = vand.u32 %v148, 4294901760
  %v9991 = vsub.f32 %v148, %v9990
  %v9992 = vand.u32 %v9991, 4294901760
  %v9993 = vsub.f32 %v9991, %v9992
  %v9994 = vand.u32 %v9993, 4294901760
  %9995 = vmatmul.f32.gmra.mxu0 %v9994
  %v9996 = vpop.f32.mrf.mxu0
  %v9997 = vadd.f32 0.0, %v9996
  %v9998 = vand.u32 %v151, 4294901760
  %v9999 = vsub.f32 %v151, %v9998
  %v10000 = vand.u32 %v9999, 4294901760
  %v10001 = vsub.f32 %v9999, %v10000
  %v10002 = vand.u32 %v10001, 4294901760
  %10003 = vmatmul.f32.gmra.mxu0 %v10002
  %v10004 = vpop.f32.mrf.mxu0
  %v10005 = vadd.f32 0.0, %v10004
  %v10006 = vand.u32 %v154, 4294901760
  %v10007 = vsub.f32 %v154, %v10006
  %v10008 = vand.u32 %v10007, 4294901760
  %v10009 = vsub.f32 %v10007, %v10008
  %v10010 = vand.u32 %v10009, 4294901760
  %10011 = vmatmul.f32.gmra.mxu0 %v10010
  %v10012 = vpop.f32.mrf.mxu0
  %v10013 = vadd.f32 0.0, %v10012
  %v10014 = vand.u32 %v157, 4294901760
  %v10015 = vsub.f32 %v157, %v10014
  %v10016 = vand.u32 %v10015, 4294901760
  %v10017 = vsub.f32 %v10015, %v10016
  %v10018 = vand.u32 %v10017, 4294901760
  %10019 = vmatmul.f32.gmra.mxu0 %v10018
  %v10020 = vpop.f32.mrf.mxu0
  %v10021 = vadd.f32 0.0, %v10020
  %v10022 = vand.u32 %v160, 4294901760
  %v10023 = vsub.f32 %v160, %v10022
  %v10024 = vand.u32 %v10023, 4294901760
  %v10025 = vsub.f32 %v10023, %v10024
  %v10026 = vand.u32 %v10025, 4294901760
  %10027 = vmatmul.f32.gmra.mxu0 %v10026
  %v10028 = vpop.f32.mrf.mxu0
  %v10029 = vadd.f32 0.0, %v10028
  %v10030 = vand.u32 %v163, 4294901760
  %v10031 = vsub.f32 %v163, %v10030
  %v10032 = vand.u32 %v10031, 4294901760
  %v10033 = vsub.f32 %v10031, %v10032
  %v10034 = vand.u32 %v10033, 4294901760
  %10035 = vmatmul.f32.gmra.mxu0 %v10034
  %v10036 = vpop.f32.mrf.mxu0
  %v10037 = vadd.f32 0.0, %v10036
  %v10038 = vand.u32 %v166, 4294901760
  %v10039 = vsub.f32 %v166, %v10038
  %v10040 = vand.u32 %v10039, 4294901760
  %v10041 = vsub.f32 %v10039, %v10040
  %v10042 = vand.u32 %v10041, 4294901760
  %10043 = vmatmul.f32.gmra.mxu0 %v10042
  %v10044 = vpop.f32.mrf.mxu0
  %v10045 = vadd.f32 0.0, %v10044
  %v10046 = vand.u32 %v169, 4294901760
  %v10047 = vsub.f32 %v169, %v10046
  %v10048 = vand.u32 %v10047, 4294901760
  %v10049 = vsub.f32 %v10047, %v10048
  %v10050 = vand.u32 %v10049, 4294901760
  %10051 = vmatmul.f32.gmra.mxu0 %v10050
  %v10052 = vpop.f32.mrf.mxu0
  %v10053 = vadd.f32 0.0, %v10052
  %10054 = vdwg.mxu0
  %10055 = vmatpush.msra.mxu0 0.0
  %10056 = vmatpush.msra.mxu0 0.0
  %10057 = vmatpush.msra.mxu0 0.0
  %10058 = vmatpush.msra.mxu0 0.0
  %10059 = vmatpush.msra.mxu0 0.0
  %10060 = vmatpush.msra.mxu0 0.0
  %10061 = vmatpush.msra.mxu0 0.0
  %10062 = vmatpush.msra.mxu0 0.0
  %10063 = vmatpush.msra.mxu0 0.0
  %10064 = vmatpush.msra.mxu0 0.0
  %10065 = vmatpush.msra.mxu0 0.0
  %10066 = vmatpush.msra.mxu0 0.0
  %v10067 = vand.u32 %v9969, 4294901760
  %v10068 = vsub.f32 %v9969, %v10067
  %v10069 = vand.u32 %v10068, 4294901760
  %v10070 = vsub.f32 %v10068, %v10069
  %v10071 = vand.u32 %v10070, 4294901760
  %10072 = vmatpush.msra.mxu0 %v10071
  %v10073 = vand.u32 %v9968, 4294901760
  %v10074 = vsub.f32 %v9968, %v10073
  %v10075 = vand.u32 %v10074, 4294901760
  %v10076 = vsub.f32 %v10074, %v10075
  %v10077 = vand.u32 %v10076, 4294901760
  %10078 = vmatpush.msra.mxu0 %v10077
  %v10079 = vand.u32 %v8874, 4294901760
  %v10080 = vsub.f32 %v8874, %v10079
  %v10081 = vand.u32 %v10080, 4294901760
  %v10082 = vsub.f32 %v10080, %v10081
  %v10083 = vand.u32 %v10082, 4294901760
  %10084 = vmatpush.msra.mxu0 %v10083
  %v10085 = vand.u32 %v8873, 4294901760
  %v10086 = vsub.f32 %v8873, %v10085
  %v10087 = vand.u32 %v10086, 4294901760
  %v10088 = vsub.f32 %v10086, %v10087
  %v10089 = vand.u32 %v10088, 4294901760
  %10090 = vmatpush.msra.mxu0 %v10089
  %v10091 = vand.u32 %v148, 4294901760
  %10092 = vmatmul.f32.gmra.mxu0 %v10091
  %v10093 = vpop.f32.mrf.mxu0
  %v10094 = vadd.f32 %v9997, %v10093
  %v10095 = vand.u32 %v151, 4294901760
  %10096 = vmatmul.f32.gmra.mxu0 %v10095
  %v10097 = vpop.f32.mrf.mxu0
  %v10098 = vadd.f32 %v10005, %v10097
  %v10099 = vand.u32 %v154, 4294901760
  %10100 = vmatmul.f32.gmra.mxu0 %v10099
  %v10101 = vpop.f32.mrf.mxu0
  %v10102 = vadd.f32 %v10013, %v10101
  %v10103 = vand.u32 %v157, 4294901760
  %10104 = vmatmul.f32.gmra.mxu0 %v10103
  %v10105 = vpop.f32.mrf.mxu0
  %v10106 = vadd.f32 %v10021, %v10105
  %v10107 = vand.u32 %v160, 4294901760
  %10108 = vmatmul.f32.gmra.mxu0 %v10107
  %v10109 = vpop.f32.mrf.mxu0
  %v10110 = vadd.f32 %v10029, %v10109
  %v10111 = vand.u32 %v163, 4294901760
  %10112 = vmatmul.f32.gmra.mxu0 %v10111
  %v10113 = vpop.f32.mrf.mxu0
  %v10114 = vadd.f32 %v10037, %v10113
  %v10115 = vand.u32 %v166, 4294901760
  %10116 = vmatmul.f32.gmra.mxu0 %v10115
  %v10117 = vpop.f32.mrf.mxu0
  %v10118 = vadd.f32 %v10045, %v10117
  %v10119 = vand.u32 %v169, 4294901760
  %10120 = vmatmul.f32.gmra.mxu0 %v10119
  %v10121 = vpop.f32.mrf.mxu0
  %v10122 = vadd.f32 %v10053, %v10121
  %10123 = vdwg.mxu0
  %10124 = vmatpush.msra.mxu0 0.0
  %10125 = vmatpush.msra.mxu0 0.0
  %10126 = vmatpush.msra.mxu0 0.0
  %10127 = vmatpush.msra.mxu0 0.0
  %10128 = vmatpush.msra.mxu0 0.0
  %10129 = vmatpush.msra.mxu0 0.0
  %10130 = vmatpush.msra.mxu0 0.0
  %10131 = vmatpush.msra.mxu0 0.0
  %10132 = vmatpush.msra.mxu0 0.0
  %10133 = vmatpush.msra.mxu0 0.0
  %10134 = vmatpush.msra.mxu0 0.0
  %10135 = vmatpush.msra.mxu0 0.0
  %v10136 = vand.u32 %v9969, 4294901760
  %v10137 = vsub.f32 %v9969, %v10136
  %10138 = vmatpush.msra.mxu0 %v10137
  %v10139 = vand.u32 %v9968, 4294901760
  %v10140 = vsub.f32 %v9968, %v10139
  %10141 = vmatpush.msra.mxu0 %v10140
  %v10142 = vand.u32 %v8874, 4294901760
  %v10143 = vsub.f32 %v8874, %v10142
  %10144 = vmatpush.msra.mxu0 %v10143
  %v10145 = vand.u32 %v8873, 4294901760
  %v10146 = vsub.f32 %v8873, %v10145
  %10147 = vmatpush.msra.mxu0 %v10146
  %v10148 = vand.u32 %v148, 4294901760
  %v10149 = vsub.f32 %v148, %v10148
  %10150 = vmatmul.f32.gmra.mxu0 %v10149
  %v10151 = vpop.f32.mrf.mxu0
  %v10152 = vadd.f32 %v10094, %v10151
  %v10153 = vand.u32 %v151, 4294901760
  %v10154 = vsub.f32 %v151, %v10153
  %10155 = vmatmul.f32.gmra.mxu0 %v10154
  %v10156 = vpop.f32.mrf.mxu0
  %v10157 = vadd.f32 %v10098, %v10156
  %v10158 = vand.u32 %v154, 4294901760
  %v10159 = vsub.f32 %v154, %v10158
  %10160 = vmatmul.f32.gmra.mxu0 %v10159
  %v10161 = vpop.f32.mrf.mxu0
  %v10162 = vadd.f32 %v10102, %v10161
  %v10163 = vand.u32 %v157, 4294901760
  %v10164 = vsub.f32 %v157, %v10163
  %10165 = vmatmul.f32.gmra.mxu0 %v10164
  %v10166 = vpop.f32.mrf.mxu0
  %v10167 = vadd.f32 %v10106, %v10166
  %v10168 = vand.u32 %v160, 4294901760
  %v10169 = vsub.f32 %v160, %v10168
  %10170 = vmatmul.f32.gmra.mxu0 %v10169
  %v10171 = vpop.f32.mrf.mxu0
  %v10172 = vadd.f32 %v10110, %v10171
  %v10173 = vand.u32 %v163, 4294901760
  %v10174 = vsub.f32 %v163, %v10173
  %10175 = vmatmul.f32.gmra.mxu0 %v10174
  %v10176 = vpop.f32.mrf.mxu0
  %v10177 = vadd.f32 %v10114, %v10176
  %v10178 = vand.u32 %v166, 4294901760
  %v10179 = vsub.f32 %v166, %v10178
  %10180 = vmatmul.f32.gmra.mxu0 %v10179
  %v10181 = vpop.f32.mrf.mxu0
  %v10182 = vadd.f32 %v10118, %v10181
  %v10183 = vand.u32 %v169, 4294901760
  %v10184 = vsub.f32 %v169, %v10183
  %10185 = vmatmul.f32.gmra.mxu0 %v10184
  %v10186 = vpop.f32.mrf.mxu0
  %v10187 = vadd.f32 %v10122, %v10186
  %10188 = vdwg.mxu0
  %10189 = vmatpush.msra.mxu0 0.0
  %10190 = vmatpush.msra.mxu0 0.0
  %10191 = vmatpush.msra.mxu0 0.0
  %10192 = vmatpush.msra.mxu0 0.0
  %10193 = vmatpush.msra.mxu0 0.0
  %10194 = vmatpush.msra.mxu0 0.0
  %10195 = vmatpush.msra.mxu0 0.0
  %10196 = vmatpush.msra.mxu0 0.0
  %10197 = vmatpush.msra.mxu0 0.0
  %10198 = vmatpush.msra.mxu0 0.0
  %10199 = vmatpush.msra.mxu0 0.0
  %10200 = vmatpush.msra.mxu0 0.0
  %v10201 = vand.u32 %v9969, 4294901760
  %10202 = vmatpush.msra.mxu0 %v10201
  %v10203 = vand.u32 %v9968, 4294901760
  %10204 = vmatpush.msra.mxu0 %v10203
  %v10205 = vand.u32 %v8874, 4294901760
  %10206 = vmatpush.msra.mxu0 %v10205
  %v10207 = vand.u32 %v8873, 4294901760
  %10208 = vmatpush.msra.mxu0 %v10207
  %v10209 = vand.u32 %v148, 4294901760
  %v10210 = vsub.f32 %v148, %v10209
  %v10211 = vand.u32 %v10210, 4294901760
  %10212 = vmatmul.f32.gmra.mxu0 %v10211
  %v10213 = vpop.f32.mrf.mxu0
  %v10214 = vadd.f32 %v10152, %v10213
  %v10215 = vand.u32 %v151, 4294901760
  %v10216 = vsub.f32 %v151, %v10215
  %v10217 = vand.u32 %v10216, 4294901760
  %10218 = vmatmul.f32.gmra.mxu0 %v10217
  %v10219 = vpop.f32.mrf.mxu0
  %v10220 = vadd.f32 %v10157, %v10219
  %v10221 = vand.u32 %v154, 4294901760
  %v10222 = vsub.f32 %v154, %v10221
  %v10223 = vand.u32 %v10222, 4294901760
  %10224 = vmatmul.f32.gmra.mxu0 %v10223
  %v10225 = vpop.f32.mrf.mxu0
  %v10226 = vadd.f32 %v10162, %v10225
  %v10227 = vand.u32 %v157, 4294901760
  %v10228 = vsub.f32 %v157, %v10227
  %v10229 = vand.u32 %v10228, 4294901760
  %10230 = vmatmul.f32.gmra.mxu0 %v10229
  %v10231 = vpop.f32.mrf.mxu0
  %v10232 = vadd.f32 %v10167, %v10231
  %v10233 = vand.u32 %v160, 4294901760
  %v10234 = vsub.f32 %v160, %v10233
  %v10235 = vand.u32 %v10234, 4294901760
  %10236 = vmatmul.f32.gmra.mxu0 %v10235
  %v10237 = vpop.f32.mrf.mxu0
  %v10238 = vadd.f32 %v10172, %v10237
  %v10239 = vand.u32 %v163, 4294901760
  %v10240 = vsub.f32 %v163, %v10239
  %v10241 = vand.u32 %v10240, 4294901760
  %10242 = vmatmul.f32.gmra.mxu0 %v10241
  %v10243 = vpop.f32.mrf.mxu0
  %v10244 = vadd.f32 %v10177, %v10243
  %v10245 = vand.u32 %v166, 4294901760
  %v10246 = vsub.f32 %v166, %v10245
  %v10247 = vand.u32 %v10246, 4294901760
  %10248 = vmatmul.f32.gmra.mxu0 %v10247
  %v10249 = vpop.f32.mrf.mxu0
  %v10250 = vadd.f32 %v10182, %v10249
  %v10251 = vand.u32 %v169, 4294901760
  %v10252 = vsub.f32 %v169, %v10251
  %v10253 = vand.u32 %v10252, 4294901760
  %10254 = vmatmul.f32.gmra.mxu0 %v10253
  %v10255 = vpop.f32.mrf.mxu0
  %v10256 = vadd.f32 %v10187, %v10255
  %10257 = vdwg.mxu0
  %10258 = vmatpush.msra.mxu0 0.0
  %10259 = vmatpush.msra.mxu0 0.0
  %10260 = vmatpush.msra.mxu0 0.0
  %10261 = vmatpush.msra.mxu0 0.0
  %10262 = vmatpush.msra.mxu0 0.0
  %10263 = vmatpush.msra.mxu0 0.0
  %10264 = vmatpush.msra.mxu0 0.0
  %10265 = vmatpush.msra.mxu0 0.0
  %10266 = vmatpush.msra.mxu0 0.0
  %10267 = vmatpush.msra.mxu0 0.0
  %10268 = vmatpush.msra.mxu0 0.0
  %10269 = vmatpush.msra.mxu0 0.0
  %v10270 = vand.u32 %v9969, 4294901760
  %v10271 = vsub.f32 %v9969, %v10270
  %v10272 = vand.u32 %v10271, 4294901760
  %10273 = vmatpush.msra.mxu0 %v10272
  %v10274 = vand.u32 %v9968, 4294901760
  %v10275 = vsub.f32 %v9968, %v10274
  %v10276 = vand.u32 %v10275, 4294901760
  %10277 = vmatpush.msra.mxu0 %v10276
  %v10278 = vand.u32 %v8874, 4294901760
  %v10279 = vsub.f32 %v8874, %v10278
  %v10280 = vand.u32 %v10279, 4294901760
  %10281 = vmatpush.msra.mxu0 %v10280
  %v10282 = vand.u32 %v8873, 4294901760
  %v10283 = vsub.f32 %v8873, %v10282
  %v10284 = vand.u32 %v10283, 4294901760
  %10285 = vmatpush.msra.mxu0 %v10284
  %v10286 = vand.u32 %v148, 4294901760
  %10287 = vmatmul.f32.gmra.mxu0 %v10286
  %v10288 = vpop.f32.mrf.mxu0
  %v10289 = vadd.f32 %v10214, %v10288
  %v10290 = vand.u32 %v151, 4294901760
  %10291 = vmatmul.f32.gmra.mxu0 %v10290
  %v10292 = vpop.f32.mrf.mxu0
  %v10293 = vadd.f32 %v10220, %v10292
  %v10294 = vand.u32 %v154, 4294901760
  %10295 = vmatmul.f32.gmra.mxu0 %v10294
  %v10296 = vpop.f32.mrf.mxu0
  %v10297 = vadd.f32 %v10226, %v10296
  %v10298 = vand.u32 %v157, 4294901760
  %10299 = vmatmul.f32.gmra.mxu0 %v10298
  %v10300 = vpop.f32.mrf.mxu0
  %v10301 = vadd.f32 %v10232, %v10300
  %v10302 = vand.u32 %v160, 4294901760
  %10303 = vmatmul.f32.gmra.mxu0 %v10302
  %v10304 = vpop.f32.mrf.mxu0
  %v10305 = vadd.f32 %v10238, %v10304
  %v10306 = vand.u32 %v163, 4294901760
  %10307 = vmatmul.f32.gmra.mxu0 %v10306
  %v10308 = vpop.f32.mrf.mxu0
  %v10309 = vadd.f32 %v10244, %v10308
  %v10310 = vand.u32 %v166, 4294901760
  %10311 = vmatmul.f32.gmra.mxu0 %v10310
  %v10312 = vpop.f32.mrf.mxu0
  %v10313 = vadd.f32 %v10250, %v10312
  %v10314 = vand.u32 %v169, 4294901760
  %10315 = vmatmul.f32.gmra.mxu0 %v10314
  %v10316 = vpop.f32.mrf.mxu0
  %v10317 = vadd.f32 %v10256, %v10316
  %10318 = vdwg.mxu0
  %10319 = vmatpush.msra.mxu0 0.0
  %10320 = vmatpush.msra.mxu0 0.0
  %10321 = vmatpush.msra.mxu0 0.0
  %10322 = vmatpush.msra.mxu0 0.0
  %10323 = vmatpush.msra.mxu0 0.0
  %10324 = vmatpush.msra.mxu0 0.0
  %10325 = vmatpush.msra.mxu0 0.0
  %10326 = vmatpush.msra.mxu0 0.0
  %10327 = vmatpush.msra.mxu0 0.0
  %10328 = vmatpush.msra.mxu0 0.0
  %10329 = vmatpush.msra.mxu0 0.0
  %10330 = vmatpush.msra.mxu0 0.0
  %v10331 = vand.u32 %v9969, 4294901760
  %10332 = vmatpush.msra.mxu0 %v10331
  %v10333 = vand.u32 %v9968, 4294901760
  %10334 = vmatpush.msra.mxu0 %v10333
  %v10335 = vand.u32 %v8874, 4294901760
  %10336 = vmatpush.msra.mxu0 %v10335
  %v10337 = vand.u32 %v8873, 4294901760
  %10338 = vmatpush.msra.mxu0 %v10337
  %v10339 = vand.u32 %v148, 4294901760
  %10340 = vmatmul.f32.gmra.mxu0 %v10339
  %v10341 = vpop.f32.mrf.mxu0
  %v10342 = vadd.f32 %v10289, %v10341
  %v10343 = vand.u32 %v151, 4294901760
  %10344 = vmatmul.f32.gmra.mxu0 %v10343
  %v10345 = vpop.f32.mrf.mxu0
  %v10346 = vadd.f32 %v10293, %v10345
  %v10347 = vand.u32 %v154, 4294901760
  %10348 = vmatmul.f32.gmra.mxu0 %v10347
  %v10349 = vpop.f32.mrf.mxu0
  %v10350 = vadd.f32 %v10297, %v10349
  %v10351 = vand.u32 %v157, 4294901760
  %10352 = vmatmul.f32.gmra.mxu0 %v10351
  %v10353 = vpop.f32.mrf.mxu0
  %v10354 = vadd.f32 %v10301, %v10353
  %v10355 = vand.u32 %v160, 4294901760
  %10356 = vmatmul.f32.gmra.mxu0 %v10355
  %v10357 = vpop.f32.mrf.mxu0
  %v10358 = vadd.f32 %v10305, %v10357
  %v10359 = vand.u32 %v163, 4294901760
  %10360 = vmatmul.f32.gmra.mxu0 %v10359
  %v10361 = vpop.f32.mrf.mxu0
  %v10362 = vadd.f32 %v10309, %v10361
  %v10363 = vand.u32 %v166, 4294901760
  %10364 = vmatmul.f32.gmra.mxu0 %v10363
  %v10365 = vpop.f32.mrf.mxu0
  %v10366 = vadd.f32 %v10313, %v10365
  %v10367 = vand.u32 %v169, 4294901760
  %10368 = vmatmul.f32.gmra.mxu0 %v10367
  %v10369 = vpop.f32.mrf.mxu0
  %v10370 = vadd.f32 %v10317, %v10369
  %10371 = vdwg.mxu0
  %v10373 = vsel %vm521, %v10342, 0
  %v10376 = vsel %vm521, %v10346, 0
  %v10379 = vsel %vm521, %v10350, 0
  %v10382 = vsel %vm521, %v10354, 0
  %v10385 = vsel %vm521, %v10358, 0
  %v10388 = vsel %vm521, %v10362, 0
  %v10391 = vsel %vm521, %v10366, 0
  %v10394 = vsel %vm521, %v10370, 0
  %10396 = vmatpush.msra.mxu0 0.0
  %10397 = vmatpush.msra.mxu0 0.0
  %10398 = vmatpush.msra.mxu0 0.0
  %10399 = vmatpush.msra.mxu0 0.0
  %10400 = vmatpush.msra.mxu0 0.0
  %10401 = vmatpush.msra.mxu0 0.0
  %10402 = vmatpush.msra.mxu0 0.0
  %10403 = vmatpush.msra.mxu0 0.0
  %10404 = vmatpush.msra.mxu0 0.0
  %10405 = vmatpush.msra.mxu0 0.0
  %10406 = vmatpush.msra.mxu0 0.0
  %10407 = vmatpush.msra.mxu0 0.0
  %10408 = vmatpush.msra.mxu0 0.0
  %10409 = vmatpush.msra.mxu0 0.0
  %10410 = vmatpush.msra.mxu0 0.0
  %10411 = vmatpush.msra.mxu0 %v547
  %10412 = vmatmul.f32.gmra.mxu0 %v10373
  %v10413 = vpop.f32.mrf.mxu0
  %v10414 = vadd.f32 %v135, %v10413
  %10415 = vmatmul.f32.gmra.mxu0 %v10376
  %v10416 = vpop.f32.mrf.mxu0
  %v10417 = vadd.f32 %v138, %v10416
  %10418 = vmatmul.f32.gmra.mxu0 %v10379
  %v10419 = vpop.f32.mrf.mxu0
  %v10420 = vadd.f32 %v141, %v10419
  %10421 = vmatmul.f32.gmra.mxu0 %v10382
  %v10422 = vpop.f32.mrf.mxu0
  %v10423 = vadd.f32 %v144, %v10422
  %10424 = vmatmul.f32.gmra.mxu0 %v10385
  %v10425 = vpop.f32.mrf.mxu0
  %v10426 = vadd.f32 %v135, %v10425
  %10427 = vmatmul.f32.gmra.mxu0 %v10388
  %v10428 = vpop.f32.mrf.mxu0
  %v10429 = vadd.f32 %v138, %v10428
  %10430 = vmatmul.f32.gmra.mxu0 %v10391
  %v10431 = vpop.f32.mrf.mxu0
  %v10432 = vadd.f32 %v141, %v10431
  %10433 = vmatmul.f32.gmra.mxu0 %v10394
  %v10434 = vpop.f32.mrf.mxu0
  %v10435 = vadd.f32 %v144, %v10434
  %10436 = vdwg.mxu0
  %v10437 = vmax.f32 %v10414, 0.0
  %v10438 = vmax.f32 %v10417, 0.0
  %v10439 = vmax.f32 %v10420, 0.0
  %v10440 = vmax.f32 %v10423, 0.0
  %v10441 = vmax.f32 %v10426, 0.0
  %v10442 = vmax.f32 %v10429, 0.0
  %v10443 = vmax.f32 %v10432, 0.0
  %v10444 = vmax.f32 %v10435, 0.0
  %v10446 = vsel %vm599, %v10437, 0
  %v10449 = vsel %vm599, %v10438, 0
  %v10452 = vsel %vm599, %v10439, 0
  %v10455 = vsel %vm599, %v10440, 0
  %v10458 = vsel %vm599, %v10441, 0
  %v10461 = vsel %vm599, %v10442, 0
  %v10464 = vsel %vm599, %v10443, 0
  %v10467 = vsel %vm599, %v10444, 0
  %10469 = vmatpush.msra.mxu0 0.0
  %10470 = vmatpush.msra.mxu0 0.0
  %10471 = vmatpush.msra.mxu0 0.0
  %10472 = vmatpush.msra.mxu0 0.0
  %10473 = vmatpush.msra.mxu0 0.0
  %10474 = vmatpush.msra.mxu0 0.0
  %10475 = vmatpush.msra.mxu0 0.0
  %10476 = vmatpush.msra.mxu0 0.0
  %10477 = vmatpush.msra.mxu0 %v68
  %10478 = vmatpush.msra.mxu0 %v67
  %10479 = vmatpush.msra.mxu0 %v66
  %10480 = vmatpush.msra.mxu0 %v65
  %10481 = vmatpush.msra.mxu0 %v64
  %10482 = vmatpush.msra.mxu0 %v63
  %10483 = vmatpush.msra.mxu0 %v62
  %10484 = vmatpush.msra.mxu0 %v61
  %10485 = vmatmul.f32.gmra.mxu0 %v10446
  %v10486 = vpop.f32.mrf.mxu0
  %v10487 = vadd.f32 %v598, %v10486
  %10488 = vmatmul.f32.gmra.mxu0 %v10449
  %v10489 = vpop.f32.mrf.mxu0
  %v10490 = vadd.f32 %v598, %v10489
  %10491 = vmatmul.f32.gmra.mxu0 %v10452
  %v10492 = vpop.f32.mrf.mxu0
  %v10493 = vadd.f32 %v598, %v10492
  %10494 = vmatmul.f32.gmra.mxu0 %v10455
  %v10495 = vpop.f32.mrf.mxu0
  %v10496 = vadd.f32 %v598, %v10495
  %10497 = vmatmul.f32.gmra.mxu0 %v10458
  %v10498 = vpop.f32.mrf.mxu0
  %v10499 = vadd.f32 %v598, %v10498
  %10500 = vmatmul.f32.gmra.mxu0 %v10461
  %v10501 = vpop.f32.mrf.mxu0
  %v10502 = vadd.f32 %v598, %v10501
  %10503 = vmatmul.f32.gmra.mxu0 %v10464
  %v10504 = vpop.f32.mrf.mxu0
  %v10505 = vadd.f32 %v598, %v10504
  %10506 = vmatmul.f32.gmra.mxu0 %v10467
  %v10507 = vpop.f32.mrf.mxu0
  %v10508 = vadd.f32 %v598, %v10507
  %10509 = vdwg.mxu0
  %v10510 = vmax.f32 %v10487, 0.0
  %v10511 = vmax.f32 %v10490, 0.0
  %v10512 = vmax.f32 %v10493, 0.0
  %v10513 = vmax.f32 %v10496, 0.0
  %v10514 = vmax.f32 %v10499, 0.0
  %v10515 = vmax.f32 %v10502, 0.0
  %v10516 = vmax.f32 %v10505, 0.0
  %v10517 = vmax.f32 %v10508, 0.0
  %v10519 = vsel %vm599, %v10510, 0
  %v10522 = vsel %vm599, %v10511, 0
  %v10525 = vsel %vm599, %v10512, 0
  %v10528 = vsel %vm599, %v10513, 0
  %v10531 = vsel %vm599, %v10514, 0
  %v10534 = vsel %vm599, %v10515, 0
  %v10537 = vsel %vm599, %v10516, 0
  %v10540 = vsel %vm599, %v10517, 0
  %10542 = vmatpush.msra.mxu0 0.0
  %10543 = vmatpush.msra.mxu0 0.0
  %10544 = vmatpush.msra.mxu0 0.0
  %10545 = vmatpush.msra.mxu0 0.0
  %10546 = vmatpush.msra.mxu0 0.0
  %10547 = vmatpush.msra.mxu0 0.0
  %10548 = vmatpush.msra.mxu0 0.0
  %10549 = vmatpush.msra.mxu0 0.0
  %10550 = vmatpush.msra.mxu0 %v77
  %10551 = vmatpush.msra.mxu0 %v76
  %10552 = vmatpush.msra.mxu0 %v75
  %10553 = vmatpush.msra.mxu0 %v74
  %10554 = vmatpush.msra.mxu0 %v73
  %10555 = vmatpush.msra.mxu0 %v72
  %10556 = vmatpush.msra.mxu0 %v71
  %10557 = vmatpush.msra.mxu0 %v70
  %10558 = vmatmul.f32.gmra.mxu0 %v10519
  %v10559 = vpop.f32.mrf.mxu0
  %v10560 = vadd.f32 %v673, %v10559
  %10561 = vmatmul.f32.gmra.mxu0 %v10522
  %v10562 = vpop.f32.mrf.mxu0
  %v10563 = vadd.f32 %v673, %v10562
  %10564 = vmatmul.f32.gmra.mxu0 %v10525
  %v10565 = vpop.f32.mrf.mxu0
  %v10566 = vadd.f32 %v673, %v10565
  %10567 = vmatmul.f32.gmra.mxu0 %v10528
  %v10568 = vpop.f32.mrf.mxu0
  %v10569 = vadd.f32 %v673, %v10568
  %10570 = vmatmul.f32.gmra.mxu0 %v10531
  %v10571 = vpop.f32.mrf.mxu0
  %v10572 = vadd.f32 %v673, %v10571
  %10573 = vmatmul.f32.gmra.mxu0 %v10534
  %v10574 = vpop.f32.mrf.mxu0
  %v10575 = vadd.f32 %v673, %v10574
  %10576 = vmatmul.f32.gmra.mxu0 %v10537
  %v10577 = vpop.f32.mrf.mxu0
  %v10578 = vadd.f32 %v673, %v10577
  %10579 = vmatmul.f32.gmra.mxu0 %v10540
  %v10580 = vpop.f32.mrf.mxu0
  %v10581 = vadd.f32 %v673, %v10580
  %10582 = vdwg.mxu0
  %10583 = vmatpush.msra.mxu0 0.0
  %10584 = vmatpush.msra.mxu0 0.0
  %10585 = vmatpush.msra.mxu0 0.0
  %10586 = vmatpush.msra.mxu0 0.0
  %10587 = vmatpush.msra.mxu0 0.0
  %10588 = vmatpush.msra.mxu0 0.0
  %10589 = vmatpush.msra.mxu0 0.0
  %10590 = vmatpush.msra.mxu0 0.0
  %v10591 = vand.u32 %v10581, 4294901760
  %10592 = vmatpush.msra.mxu0 %v10591
  %v10593 = vand.u32 %v10578, 4294901760
  %10594 = vmatpush.msra.mxu0 %v10593
  %v10595 = vand.u32 %v10575, 4294901760
  %10596 = vmatpush.msra.mxu0 %v10595
  %v10597 = vand.u32 %v10572, 4294901760
  %10598 = vmatpush.msra.mxu0 %v10597
  %v10599 = vand.u32 %v10569, 4294901760
  %10600 = vmatpush.msra.mxu0 %v10599
  %v10601 = vand.u32 %v10566, 4294901760
  %10602 = vmatpush.msra.mxu0 %v10601
  %v10603 = vand.u32 %v10563, 4294901760
  %10604 = vmatpush.msra.mxu0 %v10603
  %v10605 = vand.u32 %v10560, 4294901760
  %10606 = vmatpush.msra.mxu0 %v10605
  %v10607 = vand.u32 %v740, 4294901760
  %v10608 = vsub.f32 %v740, %v10607
  %v10609 = vand.u32 %v10608, 4294901760
  %v10610 = vsub.f32 %v10608, %v10609
  %v10611 = vand.u32 %v10610, 4294901760
  %10612 = vmatmul.f32.gmra.mxu0 %v10611
  %v10613 = vpop.f32.mrf.mxu0
  %v10614 = vadd.f32 0.0, %v10613
  %v10615 = vand.u32 %v743, 4294901760
  %v10616 = vsub.f32 %v743, %v10615
  %v10617 = vand.u32 %v10616, 4294901760
  %v10618 = vsub.f32 %v10616, %v10617
  %v10619 = vand.u32 %v10618, 4294901760
  %10620 = vmatmul.f32.gmra.mxu0 %v10619
  %v10621 = vpop.f32.mrf.mxu0
  %v10622 = vadd.f32 0.0, %v10621
  %v10623 = vand.u32 %v746, 4294901760
  %v10624 = vsub.f32 %v746, %v10623
  %v10625 = vand.u32 %v10624, 4294901760
  %v10626 = vsub.f32 %v10624, %v10625
  %v10627 = vand.u32 %v10626, 4294901760
  %10628 = vmatmul.f32.gmra.mxu0 %v10627
  %v10629 = vpop.f32.mrf.mxu0
  %v10630 = vadd.f32 0.0, %v10629
  %v10631 = vand.u32 %v749, 4294901760
  %v10632 = vsub.f32 %v749, %v10631
  %v10633 = vand.u32 %v10632, 4294901760
  %v10634 = vsub.f32 %v10632, %v10633
  %v10635 = vand.u32 %v10634, 4294901760
  %10636 = vmatmul.f32.gmra.mxu0 %v10635
  %v10637 = vpop.f32.mrf.mxu0
  %v10638 = vadd.f32 0.0, %v10637
  %10639 = vdwg.mxu0
  %10640 = vmatpush.msra.mxu0 0.0
  %10641 = vmatpush.msra.mxu0 0.0
  %10642 = vmatpush.msra.mxu0 0.0
  %10643 = vmatpush.msra.mxu0 0.0
  %10644 = vmatpush.msra.mxu0 0.0
  %10645 = vmatpush.msra.mxu0 0.0
  %10646 = vmatpush.msra.mxu0 0.0
  %10647 = vmatpush.msra.mxu0 0.0
  %v10648 = vand.u32 %v10581, 4294901760
  %v10649 = vsub.f32 %v10581, %v10648
  %v10650 = vand.u32 %v10649, 4294901760
  %v10651 = vsub.f32 %v10649, %v10650
  %v10652 = vand.u32 %v10651, 4294901760
  %10653 = vmatpush.msra.mxu0 %v10652
  %v10654 = vand.u32 %v10578, 4294901760
  %v10655 = vsub.f32 %v10578, %v10654
  %v10656 = vand.u32 %v10655, 4294901760
  %v10657 = vsub.f32 %v10655, %v10656
  %v10658 = vand.u32 %v10657, 4294901760
  %10659 = vmatpush.msra.mxu0 %v10658
  %v10660 = vand.u32 %v10575, 4294901760
  %v10661 = vsub.f32 %v10575, %v10660
  %v10662 = vand.u32 %v10661, 4294901760
  %v10663 = vsub.f32 %v10661, %v10662
  %v10664 = vand.u32 %v10663, 4294901760
  %10665 = vmatpush.msra.mxu0 %v10664
  %v10666 = vand.u32 %v10572, 4294901760
  %v10667 = vsub.f32 %v10572, %v10666
  %v10668 = vand.u32 %v10667, 4294901760
  %v10669 = vsub.f32 %v10667, %v10668
  %v10670 = vand.u32 %v10669, 4294901760
  %10671 = vmatpush.msra.mxu0 %v10670
  %v10672 = vand.u32 %v10569, 4294901760
  %v10673 = vsub.f32 %v10569, %v10672
  %v10674 = vand.u32 %v10673, 4294901760
  %v10675 = vsub.f32 %v10673, %v10674
  %v10676 = vand.u32 %v10675, 4294901760
  %10677 = vmatpush.msra.mxu0 %v10676
  %v10678 = vand.u32 %v10566, 4294901760
  %v10679 = vsub.f32 %v10566, %v10678
  %v10680 = vand.u32 %v10679, 4294901760
  %v10681 = vsub.f32 %v10679, %v10680
  %v10682 = vand.u32 %v10681, 4294901760
  %10683 = vmatpush.msra.mxu0 %v10682
  %v10684 = vand.u32 %v10563, 4294901760
  %v10685 = vsub.f32 %v10563, %v10684
  %v10686 = vand.u32 %v10685, 4294901760
  %v10687 = vsub.f32 %v10685, %v10686
  %v10688 = vand.u32 %v10687, 4294901760
  %10689 = vmatpush.msra.mxu0 %v10688
  %v10690 = vand.u32 %v10560, 4294901760
  %v10691 = vsub.f32 %v10560, %v10690
  %v10692 = vand.u32 %v10691, 4294901760
  %v10693 = vsub.f32 %v10691, %v10692
  %v10694 = vand.u32 %v10693, 4294901760
  %10695 = vmatpush.msra.mxu0 %v10694
  %v10696 = vand.u32 %v740, 4294901760
  %10697 = vmatmul.f32.gmra.mxu0 %v10696
  %v10698 = vpop.f32.mrf.mxu0
  %v10699 = vadd.f32 %v10614, %v10698
  %v10700 = vand.u32 %v743, 4294901760
  %10701 = vmatmul.f32.gmra.mxu0 %v10700
  %v10702 = vpop.f32.mrf.mxu0
  %v10703 = vadd.f32 %v10622, %v10702
  %v10704 = vand.u32 %v746, 4294901760
  %10705 = vmatmul.f32.gmra.mxu0 %v10704
  %v10706 = vpop.f32.mrf.mxu0
  %v10707 = vadd.f32 %v10630, %v10706
  %v10708 = vand.u32 %v749, 4294901760
  %10709 = vmatmul.f32.gmra.mxu0 %v10708
  %v10710 = vpop.f32.mrf.mxu0
  %v10711 = vadd.f32 %v10638, %v10710
  %10712 = vdwg.mxu0
  %10713 = vmatpush.msra.mxu0 0.0
  %10714 = vmatpush.msra.mxu0 0.0
  %10715 = vmatpush.msra.mxu0 0.0
  %10716 = vmatpush.msra.mxu0 0.0
  %10717 = vmatpush.msra.mxu0 0.0
  %10718 = vmatpush.msra.mxu0 0.0
  %10719 = vmatpush.msra.mxu0 0.0
  %10720 = vmatpush.msra.mxu0 0.0
  %v10721 = vand.u32 %v10581, 4294901760
  %v10722 = vsub.f32 %v10581, %v10721
  %10723 = vmatpush.msra.mxu0 %v10722
  %v10724 = vand.u32 %v10578, 4294901760
  %v10725 = vsub.f32 %v10578, %v10724
  %10726 = vmatpush.msra.mxu0 %v10725
  %v10727 = vand.u32 %v10575, 4294901760
  %v10728 = vsub.f32 %v10575, %v10727
  %10729 = vmatpush.msra.mxu0 %v10728
  %v10730 = vand.u32 %v10572, 4294901760
  %v10731 = vsub.f32 %v10572, %v10730
  %10732 = vmatpush.msra.mxu0 %v10731
  %v10733 = vand.u32 %v10569, 4294901760
  %v10734 = vsub.f32 %v10569, %v10733
  %10735 = vmatpush.msra.mxu0 %v10734
  %v10736 = vand.u32 %v10566, 4294901760
  %v10737 = vsub.f32 %v10566, %v10736
  %10738 = vmatpush.msra.mxu0 %v10737
  %v10739 = vand.u32 %v10563, 4294901760
  %v10740 = vsub.f32 %v10563, %v10739
  %10741 = vmatpush.msra.mxu0 %v10740
  %v10742 = vand.u32 %v10560, 4294901760
  %v10743 = vsub.f32 %v10560, %v10742
  %10744 = vmatpush.msra.mxu0 %v10743
  %v10745 = vand.u32 %v740, 4294901760
  %v10746 = vsub.f32 %v740, %v10745
  %10747 = vmatmul.f32.gmra.mxu0 %v10746
  %v10748 = vpop.f32.mrf.mxu0
  %v10749 = vadd.f32 %v10699, %v10748
  %v10750 = vand.u32 %v743, 4294901760
  %v10751 = vsub.f32 %v743, %v10750
  %10752 = vmatmul.f32.gmra.mxu0 %v10751
  %v10753 = vpop.f32.mrf.mxu0
  %v10754 = vadd.f32 %v10703, %v10753
  %v10755 = vand.u32 %v746, 4294901760
  %v10756 = vsub.f32 %v746, %v10755
  %10757 = vmatmul.f32.gmra.mxu0 %v10756
  %v10758 = vpop.f32.mrf.mxu0
  %v10759 = vadd.f32 %v10707, %v10758
  %v10760 = vand.u32 %v749, 4294901760
  %v10761 = vsub.f32 %v749, %v10760
  %10762 = vmatmul.f32.gmra.mxu0 %v10761
  %v10763 = vpop.f32.mrf.mxu0
  %v10764 = vadd.f32 %v10711, %v10763
  %10765 = vdwg.mxu0
  %10766 = vmatpush.msra.mxu0 0.0
  %10767 = vmatpush.msra.mxu0 0.0
  %10768 = vmatpush.msra.mxu0 0.0
  %10769 = vmatpush.msra.mxu0 0.0
  %10770 = vmatpush.msra.mxu0 0.0
  %10771 = vmatpush.msra.mxu0 0.0
  %10772 = vmatpush.msra.mxu0 0.0
  %10773 = vmatpush.msra.mxu0 0.0
  %v10774 = vand.u32 %v10581, 4294901760
  %10775 = vmatpush.msra.mxu0 %v10774
  %v10776 = vand.u32 %v10578, 4294901760
  %10777 = vmatpush.msra.mxu0 %v10776
  %v10778 = vand.u32 %v10575, 4294901760
  %10779 = vmatpush.msra.mxu0 %v10778
  %v10780 = vand.u32 %v10572, 4294901760
  %10781 = vmatpush.msra.mxu0 %v10780
  %v10782 = vand.u32 %v10569, 4294901760
  %10783 = vmatpush.msra.mxu0 %v10782
  %v10784 = vand.u32 %v10566, 4294901760
  %10785 = vmatpush.msra.mxu0 %v10784
  %v10786 = vand.u32 %v10563, 4294901760
  %10787 = vmatpush.msra.mxu0 %v10786
  %v10788 = vand.u32 %v10560, 4294901760
  %10789 = vmatpush.msra.mxu0 %v10788
  %v10790 = vand.u32 %v740, 4294901760
  %v10791 = vsub.f32 %v740, %v10790
  %v10792 = vand.u32 %v10791, 4294901760
  %10793 = vmatmul.f32.gmra.mxu0 %v10792
  %v10794 = vpop.f32.mrf.mxu0
  %v10795 = vadd.f32 %v10749, %v10794
  %v10796 = vand.u32 %v743, 4294901760
  %v10797 = vsub.f32 %v743, %v10796
  %v10798 = vand.u32 %v10797, 4294901760
  %10799 = vmatmul.f32.gmra.mxu0 %v10798
  %v10800 = vpop.f32.mrf.mxu0
  %v10801 = vadd.f32 %v10754, %v10800
  %v10802 = vand.u32 %v746, 4294901760
  %v10803 = vsub.f32 %v746, %v10802
  %v10804 = vand.u32 %v10803, 4294901760
  %10805 = vmatmul.f32.gmra.mxu0 %v10804
  %v10806 = vpop.f32.mrf.mxu0
  %v10807 = vadd.f32 %v10759, %v10806
  %v10808 = vand.u32 %v749, 4294901760
  %v10809 = vsub.f32 %v749, %v10808
  %v10810 = vand.u32 %v10809, 4294901760
  %10811 = vmatmul.f32.gmra.mxu0 %v10810
  %v10812 = vpop.f32.mrf.mxu0
  %v10813 = vadd.f32 %v10764, %v10812
  %10814 = vdwg.mxu0
  %10815 = vmatpush.msra.mxu0 0.0
  %10816 = vmatpush.msra.mxu0 0.0
  %10817 = vmatpush.msra.mxu0 0.0
  %10818 = vmatpush.msra.mxu0 0.0
  %10819 = vmatpush.msra.mxu0 0.0
  %10820 = vmatpush.msra.mxu0 0.0
  %10821 = vmatpush.msra.mxu0 0.0
  %10822 = vmatpush.msra.mxu0 0.0
  %v10823 = vand.u32 %v10581, 4294901760
  %v10824 = vsub.f32 %v10581, %v10823
  %v10825 = vand.u32 %v10824, 4294901760
  %10826 = vmatpush.msra.mxu0 %v10825
  %v10827 = vand.u32 %v10578, 4294901760
  %v10828 = vsub.f32 %v10578, %v10827
  %v10829 = vand.u32 %v10828, 4294901760
  %10830 = vmatpush.msra.mxu0 %v10829
  %v10831 = vand.u32 %v10575, 4294901760
  %v10832 = vsub.f32 %v10575, %v10831
  %v10833 = vand.u32 %v10832, 4294901760
  %10834 = vmatpush.msra.mxu0 %v10833
  %v10835 = vand.u32 %v10572, 4294901760
  %v10836 = vsub.f32 %v10572, %v10835
  %v10837 = vand.u32 %v10836, 4294901760
  %10838 = vmatpush.msra.mxu0 %v10837
  %v10839 = vand.u32 %v10569, 4294901760
  %v10840 = vsub.f32 %v10569, %v10839
  %v10841 = vand.u32 %v10840, 4294901760
  %10842 = vmatpush.msra.mxu0 %v10841
  %v10843 = vand.u32 %v10566, 4294901760
  %v10844 = vsub.f32 %v10566, %v10843
  %v10845 = vand.u32 %v10844, 4294901760
  %10846 = vmatpush.msra.mxu0 %v10845
  %v10847 = vand.u32 %v10563, 4294901760
  %v10848 = vsub.f32 %v10563, %v10847
  %v10849 = vand.u32 %v10848, 4294901760
  %10850 = vmatpush.msra.mxu0 %v10849
  %v10851 = vand.u32 %v10560, 4294901760
  %v10852 = vsub.f32 %v10560, %v10851
  %v10853 = vand.u32 %v10852, 4294901760
  %10854 = vmatpush.msra.mxu0 %v10853
  %v10855 = vand.u32 %v740, 4294901760
  %10856 = vmatmul.f32.gmra.mxu0 %v10855
  %v10857 = vpop.f32.mrf.mxu0
  %v10858 = vadd.f32 %v10795, %v10857
  %v10859 = vand.u32 %v743, 4294901760
  %10860 = vmatmul.f32.gmra.mxu0 %v10859
  %v10861 = vpop.f32.mrf.mxu0
  %v10862 = vadd.f32 %v10801, %v10861
  %v10863 = vand.u32 %v746, 4294901760
  %10864 = vmatmul.f32.gmra.mxu0 %v10863
  %v10865 = vpop.f32.mrf.mxu0
  %v10866 = vadd.f32 %v10807, %v10865
  %v10867 = vand.u32 %v749, 4294901760
  %10868 = vmatmul.f32.gmra.mxu0 %v10867
  %v10869 = vpop.f32.mrf.mxu0
  %v10870 = vadd.f32 %v10813, %v10869
  %10871 = vdwg.mxu0
  %10872 = vmatpush.msra.mxu0 0.0
  %10873 = vmatpush.msra.mxu0 0.0
  %10874 = vmatpush.msra.mxu0 0.0
  %10875 = vmatpush.msra.mxu0 0.0
  %10876 = vmatpush.msra.mxu0 0.0
  %10877 = vmatpush.msra.mxu0 0.0
  %10878 = vmatpush.msra.mxu0 0.0
  %10879 = vmatpush.msra.mxu0 0.0
  %v10880 = vand.u32 %v10581, 4294901760
  %10881 = vmatpush.msra.mxu0 %v10880
  %v10882 = vand.u32 %v10578, 4294901760
  %10883 = vmatpush.msra.mxu0 %v10882
  %v10884 = vand.u32 %v10575, 4294901760
  %10885 = vmatpush.msra.mxu0 %v10884
  %v10886 = vand.u32 %v10572, 4294901760
  %10887 = vmatpush.msra.mxu0 %v10886
  %v10888 = vand.u32 %v10569, 4294901760
  %10889 = vmatpush.msra.mxu0 %v10888
  %v10890 = vand.u32 %v10566, 4294901760
  %10891 = vmatpush.msra.mxu0 %v10890
  %v10892 = vand.u32 %v10563, 4294901760
  %10893 = vmatpush.msra.mxu0 %v10892
  %v10894 = vand.u32 %v10560, 4294901760
  %10895 = vmatpush.msra.mxu0 %v10894
  %v10896 = vand.u32 %v740, 4294901760
  %10897 = vmatmul.f32.gmra.mxu0 %v10896
  %v10898 = vpop.f32.mrf.mxu0
  %v10899 = vadd.f32 %v10858, %v10898
  %v10900 = vand.u32 %v743, 4294901760
  %10901 = vmatmul.f32.gmra.mxu0 %v10900
  %v10902 = vpop.f32.mrf.mxu0
  %v10903 = vadd.f32 %v10862, %v10902
  %v10904 = vand.u32 %v746, 4294901760
  %10905 = vmatmul.f32.gmra.mxu0 %v10904
  %v10906 = vpop.f32.mrf.mxu0
  %v10907 = vadd.f32 %v10866, %v10906
  %v10908 = vand.u32 %v749, 4294901760
  %10909 = vmatmul.f32.gmra.mxu0 %v10908
  %v10910 = vpop.f32.mrf.mxu0
  %v10911 = vadd.f32 %v10870, %v10910
  %10912 = vdwg.mxu0
  %v10913 = vadd.f32 %v9818, %v10899
  %v10914 = vadd.f32 %v9819, %v10903
  %v10915 = vadd.f32 %v10913, %v10907
  %v10916 = vadd.f32 %v10914, %v10911
  %10919 = vrot.lane.b32.xlu0 %v10913, 5
  %v10920 = vpop.permute.xlu0 %10919
  %10921 = vrot.lane.b32.xlu0 %v10914, 5
  %v10922 = vpop.permute.xlu0 %10921
  %10927 = vrot.lane.b32.xlu0 %v10915, 10
  %v10928 = vpop.permute.xlu0 %10927
  %10929 = vrot.lane.b32.xlu0 %v10916, 10
  %v10930 = vpop.permute.xlu0 %10929
  %v10933 = vsel %vm521, %v9968, %v10920
  %v10934 = vsel %vm521, %v9969, %v10922
  %v10935 = vsel %vm1103, %v10933, %v10928
  %v10936 = vsel %vm1103, %v10934, %v10930
  %v10938 = vsel %vm1107, %v10935, 0
  %v10941 = vsel %vm1107, %v10936, 0
  %10943 = vmatpush.msra.mxu0 0.0
  %10944 = vmatpush.msra.mxu0 0.0
  %10945 = vmatpush.msra.mxu0 0.0
  %10946 = vmatpush.msra.mxu0 0.0
  %10947 = vmatpush.msra.mxu0 0.0
  %10948 = vmatpush.msra.mxu0 0.0
  %10949 = vmatpush.msra.mxu0 0.0
  %10950 = vmatpush.msra.mxu0 0.0
  %10951 = vmatpush.msra.mxu0 0.0
  %10952 = vmatpush.msra.mxu0 0.0
  %10953 = vmatpush.msra.mxu0 0.0
  %10954 = vmatpush.msra.mxu0 0.0
  %10955 = vmatpush.msra.mxu0 0.0
  %10956 = vmatpush.msra.mxu0 0.0
  %10957 = vmatpush.msra.mxu0 %v1116
  %10958 = vmatpush.msra.mxu0 %v79
  %10959 = vmatmul.f32.gmra.mxu0 %v10938
  %v10960 = vpop.f32.mrf.mxu0
  %v10961 = vadd.f32 %v1106, %v10960
  %10962 = vmatmul.f32.gmra.mxu0 %v10941
  %v10963 = vpop.f32.mrf.mxu0
  %v10964 = vadd.f32 %v1106, %v10963
  %10965 = vdwg.mxu0
  %v10966 = vxor.u32 %v10961, 2147483648
  %v10967 = vxor.u32 %v10964, 2147483648
  %v10968 = vmul.f32 %v10966, 1.442695
  %v10969 = vpow.pop %v10968
  %v10970 = vmul.f32 %v10967, 1.442695
  %v10971 = vpow.pop %v10970
  %v10972 = vadd.f32 %v10969, 1.0
  %v10973 = vadd.f32 %v10971, 1.0
  %v10974 = vrcp.pop %v10972
  %v10975 = vmul.f32 %v10972, %v10974
  %v10976 = vsub.f32 1.0, %v10975
  %v10977 = vmul.f32 %v10974, %v10976
  %v10978 = vadd.f32 %v10974, %v10977
  %vm10979 = vweird.f32 %v10972
  %vm10980 = vweird.f32 %v10974
  %vm10981 = vmor %vm10979, %vm10980
  %v10982 = vsel %vm10981, %v10974, %v10978
  %v10983 = vand.u32 2147483647, %v10972
  %vm10984 = vcmp.eq.f32.partialorder %v10983, 8.507059e+37
  %v10985 = vand.u32 %v10972, 2147483648
  %v10986 = vor.u32 1.1754944e-38, %v10985
  %v10987 = vsel %vm10984, %v10986, %v10982
  %v10988 = vmul.f32 1.0, %v10987
  %v10989 = vrcp.pop %v10973
  %v10990 = vmul.f32 %v10973, %v10989
  %v10991 = vsub.f32 1.0, %v10990
  %v10992 = vmul.f32 %v10989, %v10991
  %v10993 = vadd.f32 %v10989, %v10992
  %vm10994 = vweird.f32 %v10973
  %vm10995 = vweird.f32 %v10989
  %vm10996 = vmor %vm10994, %vm10995
  %v10997 = vsel %vm10996, %v10989, %v10993
  %v10998 = vand.u32 2147483647, %v10973
  %vm10999 = vcmp.eq.f32.partialorder %v10998, 8.507059e+37
  %v11000 = vand.u32 %v10973, 2147483648
  %v11001 = vor.u32 1.1754944e-38, %v11000
  %v11002 = vsel %vm10999, %v11001, %v10997
  %v11003 = vmul.f32 1.0, %v11002
  %11006 = vrot.lane.b32.xlu0 %v9968, 5
  %v11007 = vpop.permute.xlu0 %11006
  %11008 = vrot.lane.b32.xlu0 %v9969, 5
  %v11009 = vpop.permute.xlu0 %11008
  %v11012 = vmul.f32 %v10988, %v11007
  %v11013 = vmul.f32 %v11003, %v11009
  %11016 = vrot.lane.b32.xlu0 %v11012, 123
  %v11017 = vpop.permute.xlu0 %11016
  %11018 = vrot.lane.b32.xlu0 %v11013, 123
  %v11019 = vpop.permute.xlu0 %11018
  %v11022 = vsel %vm521, %v11017, %v10920
  %v11023 = vsel %vm521, %v11019, %v10922
  %v11024 = vsel %vm1103, %v11022, %v10928
  %v11025 = vsel %vm1103, %v11023, %v10930
  %v11027 = vsel %vm1107, %v11024, 0
  %v11030 = vsel %vm1107, %v11025, 0
  %11032 = vmatpush.msra.mxu0 0.0
  %11033 = vmatpush.msra.mxu0 0.0
  %11034 = vmatpush.msra.mxu0 0.0
  %11035 = vmatpush.msra.mxu0 0.0
  %11036 = vmatpush.msra.mxu0 0.0
  %11037 = vmatpush.msra.mxu0 0.0
  %11038 = vmatpush.msra.mxu0 0.0
  %11039 = vmatpush.msra.mxu0 0.0
  %11040 = vmatpush.msra.mxu0 0.0
  %11041 = vmatpush.msra.mxu0 0.0
  %11042 = vmatpush.msra.mxu0 0.0
  %11043 = vmatpush.msra.mxu0 0.0
  %11044 = vmatpush.msra.mxu0 0.0
  %11045 = vmatpush.msra.mxu0 0.0
  %11046 = vmatpush.msra.mxu0 %v1201
  %11047 = vmatpush.msra.mxu0 %v81
  %11048 = vmatmul.f32.gmra.mxu0 %v11027
  %v11049 = vpop.f32.mrf.mxu0
  %v11050 = vadd.f32 %v1193, %v11049
  %11051 = vmatmul.f32.gmra.mxu0 %v11030
  %v11052 = vpop.f32.mrf.mxu0
  %v11053 = vadd.f32 %v1193, %v11052
  %11054 = vdwg.mxu0
  %v11055 = vtanh.pop %v11050
  %v11056 = vtanh.pop %v11053
  %v11057 = vsub.f32 1.0, %v10988
  %v11058 = vsub.f32 1.0, %v11003
  %v11059 = vmul.f32 %v11057, %v9968
  %v11060 = vmul.f32 %v11058, %v9969
  %v11061 = vmul.f32 %v10988, %v11055
  %v11062 = vmul.f32 %v11003, %v11056
  %v11063 = vadd.f32 %v11059, %v11061
  %v11064 = vadd.f32 %v11060, %v11062
  %11066 = vset.pattern.permute.xlu0 0
  %11067 = vperm.xlu0 %11066, %v45
  %v11068 = vpop.permute.xlu0 %11067
  %11071 = vset.pattern.permute.xlu0 0
  %11072 = vperm.xlu0 %11071, %v46
  %v11073 = vpop.permute.xlu0 %11072
  %v11075 = vperm.slane %v83, 5
  %v11076 = vmul.f32 %v11068, %v11075
  %v11077 = vmul.f32 %v11073, %v11075
  %v11079 = vsel %vm521, %v11063, 0
  %v11082 = vsel %vm521, %v11064, 0
  %v11085 = vsel %vm546, %v83, 0
  %11087 = vmatpush.msra.mxu0 0.0
  %11088 = vmatpush.msra.mxu0 0.0
  %11089 = vmatpush.msra.mxu0 0.0
  %11090 = vmatpush.msra.mxu0 0.0
  %11091 = vmatpush.msra.mxu0 0.0
  %11092 = vmatpush.msra.mxu0 0.0
  %11093 = vmatpush.msra.mxu0 0.0
  %11094 = vmatpush.msra.mxu0 0.0
  %11095 = vmatpush.msra.mxu0 0.0
  %11096 = vmatpush.msra.mxu0 0.0
  %11097 = vmatpush.msra.mxu0 0.0
  %11098 = vmatpush.msra.mxu0 0.0
  %11099 = vmatpush.msra.mxu0 0.0
  %11100 = vmatpush.msra.mxu0 0.0
  %11101 = vmatpush.msra.mxu0 0.0
  %11102 = vmatpush.msra.mxu0 %v11085
  %11103 = vmatmul.f32.gmra.mxu0 %v11079
  %v11104 = vpop.f32.mrf.mxu0
  %v11105 = vadd.f32 %v11076, %v11104
  %11106 = vmatmul.f32.gmra.mxu0 %v11082
  %v11107 = vpop.f32.mrf.mxu0
  %v11108 = vadd.f32 %v11077, %v11107
  %11109 = vdwg.mxu0
  %v11110 = vperm.slane %v83, 6
  %v11111 = vadd.f32 %v11105, %v11110
  %v11112 = vadd.f32 %v11108, %v11110
  %v11113 = vmax.f32 %v11111, 0.0
  %v11114 = vmax.f32 %v11112, 0.0
  %v11115 = vperm.slane %v92, 0
  %v11117 = vsel %vm599, %v11113, 0
  %v11120 = vsel %vm599, %v11114, 0
  %11122 = vmatpush.msra.mxu0 0.0
  %11123 = vmatpush.msra.mxu0 0.0
  %11124 = vmatpush.msra.mxu0 0.0
  %11125 = vmatpush.msra.mxu0 0.0
  %11126 = vmatpush.msra.mxu0 0.0
  %11127 = vmatpush.msra.mxu0 0.0
  %11128 = vmatpush.msra.mxu0 0.0
  %11129 = vmatpush.msra.mxu0 0.0
  %11130 = vmatpush.msra.mxu0 %v91
  %11131 = vmatpush.msra.mxu0 %v90
  %11132 = vmatpush.msra.mxu0 %v89
  %11133 = vmatpush.msra.mxu0 %v88
  %11134 = vmatpush.msra.mxu0 %v87
  %11135 = vmatpush.msra.mxu0 %v86
  %11136 = vmatpush.msra.mxu0 %v85
  %11137 = vmatpush.msra.mxu0 %v84
  %11138 = vmatmul.f32.gmra.mxu0 %v11117
  %v11139 = vpop.f32.mrf.mxu0
  %v11140 = vadd.f32 %v11115, %v11139
  %11141 = vmatmul.f32.gmra.mxu0 %v11120
  %v11142 = vpop.f32.mrf.mxu0
  %v11143 = vadd.f32 %v11115, %v11142
  %11144 = vdwg.mxu0
  %v11145 = vmax.f32 %v11140, 0.0
  %v11146 = vmax.f32 %v11143, 0.0
  %v11148 = vperm.slane %v93, 0
  %v11150 = vmul.f32 %v11145, %v11148
  %v11151 = vmul.f32 %v11146, %v11148
  %v11152 = vsel %vm599, %v11150, 0.0
  %11153 = vadd.xlane.f32.xlu0 %v11152
  %v11154 = vpop.xlane.xlu0 %11153
  %v11155 = vsel %vm599, %v11151, 0.0
  %11156 = vadd.xlane.f32.xlu0 %v11155
  %v11157 = vpop.xlane.xlu0 %11156
  %v11158 = vadd.f32 %v11154, %v11148
  %v11159 = vadd.f32 %v11157, %v11148
  %v11160 = vxor.u32 %v11158, 2147483648
  %v11161 = vxor.u32 %v11159, 2147483648
  %v11162 = vmul.f32 %v11160, 1.442695
  %v11163 = vpow.pop %v11162
  %v11164 = vmul.f32 %v11161, 1.442695
  %v11165 = vpow.pop %v11164
  %v11166 = vadd.f32 %v11163, 1.0
  %v11167 = vadd.f32 %v11165, 1.0
  %v11168 = vrcp.pop %v11166
  %v11169 = vmul.f32 %v11166, %v11168
  %v11170 = vsub.f32 1.0, %v11169
  %v11171 = vmul.f32 %v11168, %v11170
  %v11172 = vadd.f32 %v11168, %v11171
  %vm11173 = vweird.f32 %v11166
  %vm11174 = vweird.f32 %v11168
  %vm11175 = vmor %vm11173, %vm11174
  %v11176 = vsel %vm11175, %v11168, %v11172
  %v11177 = vand.u32 2147483647, %v11166
  %vm11178 = vcmp.eq.f32.partialorder %v11177, 8.507059e+37
  %v11179 = vand.u32 %v11166, 2147483648
  %v11180 = vor.u32 1.1754944e-38, %v11179
  %v11181 = vsel %vm11178, %v11180, %v11176
  %v11182 = vmul.f32 1.0, %v11181
  %v11183 = vrcp.pop %v11167
  %v11184 = vmul.f32 %v11167, %v11183
  %v11185 = vsub.f32 1.0, %v11184
  %v11186 = vmul.f32 %v11183, %v11185
  %v11187 = vadd.f32 %v11183, %v11186
  %vm11188 = vweird.f32 %v11167
  %vm11189 = vweird.f32 %v11183
  %vm11190 = vmor %vm11188, %vm11189
  %v11191 = vsel %vm11190, %v11183, %v11187
  %v11192 = vand.u32 2147483647, %v11167
  %vm11193 = vcmp.eq.f32.partialorder %v11192, 8.507059e+37
  %v11194 = vand.u32 %v11167, 2147483648
  %v11195 = vor.u32 1.1754944e-38, %v11194
  %v11196 = vsel %vm11193, %v11195, %v11191
  %v11197 = vmul.f32 1.0, %v11196
  %11200 = vrot.lane.b32.xlu0 %v11182, 64
  %v11201 = vpop.permute.xlu0 %11200
  %11202 = vrot.lane.b32.xlu0 %v11197, 64
  %v11203 = vpop.permute.xlu0 %11202
  %vm11206 = vcmask 7168
  %11207 = vst.msk [vmem:[%s12] sm:$0xff] %vm11206, %v11201
  %11208 = vst.msk [vmem:[%s12 + $0x8] sm:$0xff] %vm11206, %v11203
  // Predicated region
  $region50: #{tpu_custom_call.1} parent=0 // pred_check
    _
  $region51: #{tpu_custom_call.1} parent=0 // pred_check_branch
    %11210 = sbr.rel (0) target = $region53
  $region52: #{tpu_custom_call.1} parent=0 // pred_region
    _
  $region53: #{tpu_custom_call.1} parent=0 // pred_fallthru
    _
  // Predicated region
  $region54: #{tpu_custom_call.1} parent=0 // pred_check
    _
  $region55: #{tpu_custom_call.1} parent=0 // pred_check_branch
    %11212 = sbr.rel (0) target = $region57
  $region56: #{tpu_custom_call.1} parent=0 // pred_region
    _
  $region57: #{tpu_custom_call.1} parent=0 // pred_fallthru
    _

</llo_original>
